<compile_context>
chip_gen: v6e
topology: v6e:2x2x1
jax: 0.10.0
libtpu: 0.0.40
codegen_flags: <defaults>
</compile_context>

<pallas_src>
import functools

import jax
import jax.numpy as jnp
from jax import lax
from jax.experimental import pallas as pl
from jax.experimental.pallas import tpu as pltpu

LANE = 128
CPAD = 8          # sublane-aligned column offset of the real data in the conv1 scratch


def _round_up(x, m):
    return (x + m - 1) // m * m


def _row_tile(n_rows, width, max_m=256):
    """Row sub-tile so each shifted-dot has M = rows*width <= max_m (vreg-resident acc)."""
    n_chunks = -(-(n_rows * width) // max_m)      # ceil
    return max(1, -(-n_rows // n_chunks))         # even-ish split, no tiny tail


def _conv3x3_bn_relu(read, write, n_rows, width, w_ref, scale, bias, row_tile):
    """3x3 conv as 9 shifted MXU dots + fused per-channel affine + ReLU.

    read(row0, n, dx)  -> (n, width, Cin) activation slice for tap column dx
    write(row0, y)     -> store the (n, width, Cout) result rows [row0, row0+n)
    """
    co = w_ref.shape[-1]
    for r0 in range(0, n_rows, row_tile):
        rc = min(row_tile, n_rows - r0)
        acc = jnp.zeros((rc * width, co), jnp.float32)
        for t in range(9):
            dy, dx = divmod(t, 3)
            a = read(r0 + dy, rc, dx).reshape(rc * width, -1)
            acc = acc + jnp.dot(a, w_ref[t], preferred_element_type=jnp.float32)
        write(r0, jnp.maximum(acc * scale + bias, 0.0).reshape(rc, width, co))


# ----------------------------------------------------------------------------
# Fused VGGBlock kernel: conv1 -> BN1 -> ReLU -> conv2 -> BN2 -> ReLU
# ----------------------------------------------------------------------------
def _vgg_block_kernel(TH, W,
                      x_hbm, w1_ref, s1_ref, b1_ref, w2_ref, s2_ref, b2_ref,
                      o_ref,
                      xbuf, in_sem, h_ref):
    # x_hbm : (N, H+4, Wp, Cin_p)      bf16  zero-padded input, raw HBM ref
    # w1    : (9, Cin_p, Cmid_p)       bf16  conv1 weights, tap-major (resident)
    # s1/b1 : (1, Cmid_p)              f32   folded BN1 scale / bias
    # w2    : (9, Cmid_p, Cout_p)      bf16
    # s2/b2 : (1, Cout_p)              f32
    # o_ref : (1, TH, W, Cout_p)       bf16  output band
    # xbuf  : (2, TH+4, Wp, Cin_p)     bf16  manual double-buffered input band
    # in_sem: DMA semaphores (2,)
    # h_ref : (TH+2, W+2*CPAD, Cmid_p) bf16  conv1 output (never leaves VMEM)
    n = pl.program_id(0)
    b = pl.program_id(1)
    NB = pl.num_programs(1)
    R1 = TH + 2
    rows_in = TH + 4
    cmid = h_ref.shape[-1]

    def band_copy(band_idx, slot):
        return pltpu.make_async_copy(
            x_hbm.at[n, pl.ds(band_idx * TH, rows_in)],
            xbuf.at[slot],
            in_sem.at[slot])

    slot = b % 2

    # First band of this image: start its own DMA (no earlier prefetch exists)
    # and zero the scratch's read-only halo columns (conv2's left/right padding;
    # they are never written, so once per image is enough).
    @pl.when(b == 0)
    def _():
        band_copy(0, 0).start()
        h_ref[:, CPAD - 1:CPAD, :] = jnp.zeros((R1, 1, cmid), h_ref.dtype)
        h_ref[:, CPAD + W:CPAD + W + 1, :] = jnp.zeros((R1, 1, cmid), h_ref.dtype)

    band_copy(b, slot).wait()

    # Prefetch the next band of this image while we compute on the current one.
    @pl.when(b + 1 < NB)
    def _():
        band_copy(b + 1, 1 - slot).start()

    xv = xbuf.at[slot]                      # (TH+4, Wp, Cin_p) current band view
    s1, b1 = s1_ref[...], b1_ref[...]
    s2, b2 = s2_ref[...], b2_ref[...]

    # ---- conv1 + BN1 + ReLU for image rows [b*TH - 1, b*TH + TH + 1) ---------
    def read1(rr, rc, dx):
        return xv[rr:rr + rc, dx:dx + W, :]

    def write1(r0, y):
        h_ref[r0:r0 + y.shape[0], CPAD:CPAD + W, :] = y.astype(h_ref.dtype)

    _conv3x3_bn_relu(read1, write1, R1, W, w1_ref, s1, b1, _row_tile(R1, W))

    # conv2's spatial padding is zeros, NOT conv1 evaluated outside the image:
    # blank the conv1 halo row that falls outside [0, H) (first / last band only).
    @pl.when(b == 0)
    def _():
        h_ref[0:1, CPAD:CPAD + W, :] = jnp.zeros((1, W, cmid), h_ref.dtype)

    @pl.when(b == NB - 1)
    def _():
        h_ref[R1 - 1:R1, CPAD:CPAD + W, :] = jnp.zeros((1, W, cmid), h_ref.dtype)

    # ---- conv2 + BN2 + ReLU for the band's TH output rows --------------------
    def read2(rr, rc, dx):
        return h_ref[rr:rr + rc, CPAD - 1 + dx:CPAD - 1 + dx + W, :]

    def write2(r0, y):
        o_ref[0, r0:r0 + y.shape[0]] = y.astype(o_ref.dtype)

    _conv3x3_bn_relu(read2, write2, TH, W, w2_ref, s2, b2, _row_tile(TH, W))


# ----------------------------------------------------------------------------
# Parameter packing helpers (BN folded into per-channel affine, lane padding)
# ----------------------------------------------------------------------------
def _prep_conv_weight(w_hwio, cin_p, cout_p):
    """(3, 3, Cin, Cout) f32 -> (9, Cin_p, Cout_p) bf16, zero-padded, tap-major."""
    _, _, cin, cout = w_hwio.shape
    w = jnp.zeros((3, 3, cin_p, cout_p), jnp.float32)
    w = w.at[:, :, :cin, :cout].set(w_hwio)
    return w.reshape(9, cin_p, cout_p).astype(jnp.bfloat16)


def _pad_vec(v, n):
    return jnp.zeros((1, n), jnp.float32).at[0, :v.shape[0]].set(v.astype(jnp.float32))


# ----------------------------------------------------------------------------
# Public forward: NCHW in / NCHW out, matching the PyTorch module
# ----------------------------------------------------------------------------
def vgg_block_forward(params, x_nchw, *, block_rows=16):
    x = jnp.transpose(x_nchw, (0, 2, 3, 1)).astype(jnp.float32)   # NCHW -> NHWC
    N, H, W, Cin = x.shape
    Cmid = params["w1"].shape[-1]
    Cout = params["w2"].shape[-1]
    assert W % 8 == 0, "width must be a multiple of 8 (sublane tiling)"

    # TODO(synk): tiny-Cin first layer still lane-pads Cin to 128 (no VMEM im2col path).
    Cin_p, Cmid_p, Cout_p = (_round_up(c, LANE) for c in (Cin, Cmid, Cout))

    TH = min(block_rows, H)
    while H % TH:                      # largest divisor of H that is <= block_rows
        TH -= 1
    NB = H // TH

    Wp = _round_up(W + 2, 8)           # input band columns (1-col halo + right zero pad)
    Wh = W + 2 * CPAD                  # conv1 scratch columns

    # Pad ONCE in HBM: 2-row halo top/bottom (the two fused convs), 1 zero col on
    # the left + alignment zeros on the right, channels to the lane width.
    # No band stacking: the kernel DMAs overlapping row windows itself.
    xp = jnp.pad(x, ((0, 0), (2, 2), (1, Wp - (W + 1)), (0, Cin_p - Cin)))
    xp = xp.astype(jnp.bfloat16)

    w1 = _prep_conv_weight(params["w1"], Cin_p, Cmid_p)
    w2 = _prep_conv_weight(params["w2"], Cmid_p, Cout_p)
    s1, b1 = _pad_vec(params["s1"], Cmid_p), _pad_vec(params["b1"], Cmid_p)
    s2, b2 = _pad_vec(params["s2"], Cout_p), _pad_vec(params["b2"], Cout_p)

    # Honest VMEM accounting (weights counted double-buffered to stay conservative).
    vmem_bytes = (
        2 * (TH + 4) * Wp * Cin_p * 2            # manual double-buffered input band (bf16)
        + (TH + 2) * Wh * Cmid_p * 2             # conv1 intermediate scratch (bf16)
        + 2 * (w1.size + w2.size) * 2            # resident weights (bf16)
        + 2 * TH * W * Cout_p * 2                # double-buffered output band (bf16)
        + 2 * 4 * (s1.size + b1.size + s2.size + b2.size))
    # 64 MiB cap keeps us safe on v7x; on v5e/v6e (128 MiB physical) this could
    # be raised further for very large bands.
    vmem_limit = int(min(max(32 << 20, 2 * vmem_bytes), 64 << 20))
    assert vmem_bytes < vmem_limit, "row band too large for VMEM; reduce block_rows"

    flops = 2 * 9 * N * W * (NB * (TH + 2) * Cin_p * Cmid_p + H * Cmid_p * Cout_p)
    bytes_accessed = (xp.size * 2 + (w1.size + w2.size) * 2
                      + 4 * (s1.size + b1.size + s2.size + b2.size)
                      + N * H * W * Cout_p * 2)

    kernel = functools.partial(_vgg_block_kernel, TH, W)
    out = pl.pallas_call(
        kernel,
        out_shape=jax.ShapeDtypeStruct((N, H, W, Cout_p), jnp.bfloat16),
        grid=(N, NB),
        in_specs=[
            pl.BlockSpec(memory_space=pl.ANY),                        # raw HBM input
            pl.BlockSpec((9, Cin_p, Cmid_p), lambda n, b: (0, 0, 0)),
            pl.BlockSpec((1, Cmid_p), lambda n, b: (0, 0)),
            pl.BlockSpec((1, Cmid_p), lambda n, b: (0, 0)),
            pl.BlockSpec((9, Cmid_p, Cout_p), lambda n, b: (0, 0, 0)),
            pl.BlockSpec((1, Cout_p), lambda n, b: (0, 0)),
            pl.BlockSpec((1, Cout_p), lambda n, b: (0, 0)),
        ],
        out_specs=pl.BlockSpec((1, TH, W, Cout_p), lambda n, b: (n, b, 0, 0)),
        scratch_shapes=[
            pltpu.VMEM((2, TH + 4, Wp, Cin_p), jnp.bfloat16),   # input double buffer
            pltpu.SemaphoreType.DMA((2,)),                      # per-slot DMA sems
            pltpu.VMEM((TH + 2, Wh, Cmid_p), jnp.bfloat16),     # conv1 output scratch
        ],
        compiler_params=pltpu.CompilerParams(
            # band axis is "arbitrary": the manual prefetch chain needs in-order
            # bands per image; batch axis is "parallel" for v7x megacore.
            dimension_semantics=("parallel", "arbitrary"),
            vmem_limit_bytes=vmem_limit,
        ),
        cost_estimate=pl.CostEstimate(
            flops=flops, transcendentals=0, bytes_accessed=bytes_accessed),
    )(xp, w1, s1, b1, w2, s2, b2)

    out = out[..., :Cout].astype(jnp.float32)   # strip lane padding, back to f32
    return jnp.transpose(out, (0, 3, 1, 2))     # NHWC -> NCHW


# ----------------------------------------------------------------------------
# Deterministic parameters (BN folded: y = conv(x)*scale + bias, inference mode)
# ----------------------------------------------------------------------------
# TODO(synk): training-mode BatchNorm (batch statistics + running-stat update)
# has no equivalent here; the kernel implements the inference/deployment form.
def make_params(key, cin, cmid, cout):
    ks = jax.random.split(key, 12)
    eps = 1e-5

    def conv_bn(kw, kb, kg, kbe, km, kv, ci, co):
        w = jax.random.normal(kw, (3, 3, ci, co), jnp.float32) / jnp.sqrt(9.0 * ci)
        cb = 0.05 * jax.random.normal(kb, (co,), jnp.float32)
        gamma = 1.0 + 0.1 * jax.random.normal(kg, (co,), jnp.float32)
        beta = 0.05 * jax.random.normal(kbe, (co,), jnp.float32)
        mean = 0.05 * jax.random.normal(km, (co,), jnp.float32)
        var = 1.0 + 0.1 * jax.random.uniform(kv, (co,), jnp.float32)
        scale = gamma / jnp.sqrt(var + eps)
        bias = beta + (cb - mean) * scale
        return w, scale, bias

    w1, s1, b1 = conv_bn(*ks[0:6], cin, cmid)
    w2, s2, b2 = conv_bn(*ks[6:12], cmid, cout)
    return {"w1": w1, "s1": s1, "b1": b1, "w2": w2, "s2": s2, "b2": b2}


# ----------------------------------------------------------------------------
# Pure-JAX f32 reference (numeric sanity check)
# ----------------------------------------------------------------------------
def vgg_block_reference(params, x_nchw):
    x = jnp.transpose(x_nchw, (0, 2, 3, 1)).astype(jnp.float32)

    def conv_bn_relu(x, w, scale, bias):
        y = lax.conv_general_dilated(
            x, w, window_strides=(1, 1), padding=((1, 1), (1, 1)),
            dimension_numbers=("NHWC", "HWIO", "NHWC"))
        return jnp.maximum(y * scale + bias, 0.0)

    h = conv_bn_relu(x, params["w1"], params["s1"], params["b1"])
    y = conv_bn_relu(h, params["w2"], params["s2"], params["b2"])
    return jnp.transpose(y, (0, 3, 1, 2))


# ----------------------------------------------------------------------------
# Demo
# ----------------------------------------------------------------------------
if __name__ == "__main__":
    key = jax.random.PRNGKey(0)
    kp, kx = jax.random.split(key)

    N, Cin, Cmid, Cout = 2, 4, 32, 32
    H = W = 16

    params = make_params(kp, Cin, Cmid, Cout)
    x = jax.random.normal(kx, (N, Cin, H, W), jnp.float32)   # NCHW, like the module

    fwd = jax.jit(functools.partial(vgg_block_forward, params, block_rows=16))
    out = fwd(x)
    jax.block_until_ready(out)
    assert out.shape == (N, Cout, H, W)

    # sanity check vs. the f32 reference (bf16 MXU inputs/outputs -> loose tolerance)
    ref = vgg_block_reference(params, x)
    assert bool(jnp.allclose(out, ref, atol=1e-1, rtol=1e-1)), "mismatch vs reference"
    print("KERNEL_OK")
</pallas_src>

<mosaic_0001>
module attributes {stable_mosaic.version = 11 : i64} {
  func.func @_vgg_block_kernel(%arg0: i32, %arg1: i32, %arg2: memref<2x20x24x128xbf16, #tpu.memory_space<any>>, %arg3: memref<9x128x128xbf16, #tpu.memory_space<vmem>>, %arg4: memref<1x128xf32, #tpu.memory_space<vmem>>, %arg5: memref<1x128xf32, #tpu.memory_space<vmem>>, %arg6: memref<9x128x128xbf16, #tpu.memory_space<vmem>>, %arg7: memref<1x128xf32, #tpu.memory_space<vmem>>, %arg8: memref<1x128xf32, #tpu.memory_space<vmem>>, %arg9: memref<1x16x16x128xbf16, #tpu.memory_space<vmem>>, %arg10: memref<2x20x24x128xbf16, #tpu.memory_space<vmem>>, %arg11: memref<2x!tpu.dma_semaphore, #tpu.memory_space<semaphore_mem>>, %arg12: memref<18x32x128xbf16, #tpu.memory_space<vmem>>) attributes {dimension_semantics = [#tpu.dimension_semantics<parallel>, #tpu.dimension_semantics<arbitrary>], iteration_bounds = array<i64: 2, 1>, scalar_prefetch = 0 : i64, scratch_operands = 3 : i64, tpu.core_type = #tpu.core_type<tc>, window_params = [{}, {pipeline_mode = #tpu.pipeline_mode<synchronous>, transform_indices = @transform_1, window_bounds = array<i64: 9, 128, 128>}, {pipeline_mode = #tpu.pipeline_mode<synchronous>, transform_indices = @transform_2, window_bounds = array<i64: 1, 128>}, {pipeline_mode = #tpu.pipeline_mode<synchronous>, transform_indices = @transform_3, window_bounds = array<i64: 1, 128>}, {pipeline_mode = #tpu.pipeline_mode<synchronous>, transform_indices = @transform_4, window_bounds = array<i64: 9, 128, 128>}, {pipeline_mode = #tpu.pipeline_mode<synchronous>, transform_indices = @transform_5, window_bounds = array<i64: 1, 128>}, {pipeline_mode = #tpu.pipeline_mode<synchronous>, transform_indices = @transform_6, window_bounds = array<i64: 1, 128>}, {transform_indices = @transform_7, window_bounds = array<i64: 1, 16, 16, 128>}]} {
    %c2_i32 = arith.constant 2 : i32
    %c0_i32 = arith.constant 0 : i32
    %0 = arith.cmpi eq, %c2_i32, %c0_i32 : i32
    %c1_i32 = arith.constant 1 : i32
    %1 = arith.select %0, %c1_i32, %c2_i32 : i32
    %2 = arith.remsi %arg1, %1 : i32
    %c0_i32_0 = arith.constant 0 : i32
    %3 = arith.cmpi ne, %2, %c0_i32_0 : i32
    %c0_i32_1 = arith.constant 0 : i32
    %4 = arith.cmpi slt, %2, %c0_i32_1 : i32
    %c0_i32_2 = arith.constant 0 : i32
    %5 = arith.cmpi slt, %1, %c0_i32_2 : i32
    %6 = arith.xori %4, %5 : i1
    %7 = arith.andi %6, %3 : i1
    %8 = arith.addi %2, %1 : i32
    %9 = arith.select %7, %8, %2 : i32
    %c0_i32_3 = arith.constant 0 : i32
    %10 = arith.cmpi eq, %arg1, %c0_i32_3 : i32
    %11 = arith.extui %10 : i1 to i32
    %c0_i32_4 = arith.constant 0 : i32
    %12 = arith.cmpi ne, %11, %c0_i32_4 : i32
    scf.if %12 {
      %c0_i32_271 = arith.constant 0 : i32
      %c0_i32_272 = arith.constant 0 : i32
      %c0_i32_273 = arith.constant 0 : i32
      %c0_i32_274 = arith.constant 0 : i32
      %c0_i32_275 = arith.constant 0 : i32
      %264 = tpu.memref_slice %arg2[%arg0, %c0_i32_273, %c0_i32_274, %c0_i32_275] : memref<2x20x24x128xbf16, #tpu.memory_space<any>> -> memref<1x20x24x128xbf16, #tpu.memory_space<any>>
      %265 = tpu.memref_squeeze %264 : memref<1x20x24x128xbf16, #tpu.memory_space<any>> -> memref<20x24x128xbf16, #tpu.memory_space<any>>
      %c0_i32_276 = arith.constant 0 : i32
      %c0_i32_277 = arith.constant 0 : i32
      %c0_i32_278 = arith.constant 0 : i32
      %266 = tpu.memref_slice %arg10[%c0_i32_271, %c0_i32_276, %c0_i32_277, %c0_i32_278] : memref<2x20x24x128xbf16, #tpu.memory_space<vmem>> -> memref<1x20x24x128xbf16, #tpu.memory_space<vmem>>
      %267 = tpu.memref_squeeze %266 : memref<1x20x24x128xbf16, #tpu.memory_space<vmem>> -> memref<20x24x128xbf16, #tpu.memory_space<vmem>>
      %268 = tpu.memref_slice %arg11[%c0_i32_272] : memref<2x!tpu.dma_semaphore, #tpu.memory_space<semaphore_mem>> -> memref<1x!tpu.dma_semaphore, #tpu.memory_space<semaphore_mem>>
      %269 = tpu.memref_squeeze %268 : memref<1x!tpu.dma_semaphore, #tpu.memory_space<semaphore_mem>> -> memref<!tpu.dma_semaphore, #tpu.memory_space<semaphore_mem>>
      tpu.enqueue_dma source(%265 : memref<20x24x128xbf16, #tpu.memory_space<any>>) target(%267 : memref<20x24x128xbf16, #tpu.memory_space<vmem>>) target_semaphore(%269 : memref<!tpu.dma_semaphore, #tpu.memory_space<semaphore_mem>>)
      %cst_279 = arith.constant 0.000000e+00 : bf16
      %270 = vector.broadcast %cst_279 : bf16 to vector<18x1x128xbf16>
      %c0_280 = arith.constant 0 : index
      %c7_281 = arith.constant 7 : index
      %c0_282 = arith.constant 0 : index
      %271 = vector.load %arg12[%c0_280, %c7_281, %c0_282] : memref<18x32x128xbf16, #tpu.memory_space<vmem>>, vector<18x1x128xbf16>
      tpu.vector_store %arg12[%c0_280, %c7_281, %c0_282], %270 {strides = array<i32>} : memref<18x32x128xbf16, #tpu.memory_space<vmem>>, vector<18x1x128xbf16>,
      %cst_283 = arith.constant 0.000000e+00 : bf16
      %272 = vector.broadcast %cst_283 : bf16 to vector<18x1x128xbf16>
      %c0_284 = arith.constant 0 : index
      %c24 = arith.constant 24 : index
      %c0_285 = arith.constant 0 : index
      %273 = vector.load %arg12[%c0_284, %c24, %c0_285] : memref<18x32x128xbf16, #tpu.memory_space<vmem>>, vector<18x1x128xbf16>
      tpu.vector_store %arg12[%c0_284, %c24, %c0_285], %272 {strides = array<i32>} : memref<18x32x128xbf16, #tpu.memory_space<vmem>>, vector<18x1x128xbf16>,
    } else {
    }
    %c16_i32 = arith.constant 16 : i32
    %13 = arith.muli %arg1, %c16_i32 : i32
    %c0_i32_5 = arith.constant 0 : i32
    %c0_i32_6 = arith.constant 0 : i32
    %14 = tpu.memref_slice %arg2[%arg0, %13, %c0_i32_5, %c0_i32_6] : memref<2x20x24x128xbf16, #tpu.memory_space<any>> -> memref<1x20x24x128xbf16, #tpu.memory_space<any>>
    %15 = tpu.memref_squeeze %14 : memref<1x20x24x128xbf16, #tpu.memory_space<any>> -> memref<20x24x128xbf16, #tpu.memory_space<any>>
    %c0_i32_7 = arith.constant 0 : i32
    %c0_i32_8 = arith.constant 0 : i32
    %c0_i32_9 = arith.constant 0 : i32
    %16 = tpu.memref_slice %arg10[%9, %c0_i32_7, %c0_i32_8, %c0_i32_9] : memref<2x20x24x128xbf16, #tpu.memory_space<vmem>> -> memref<1x20x24x128xbf16, #tpu.memory_space<vmem>>
    %17 = tpu.memref_squeeze %16 : memref<1x20x24x128xbf16, #tpu.memory_space<vmem>> -> memref<20x24x128xbf16, #tpu.memory_space<vmem>>
    %18 = tpu.memref_slice %arg11[%9] : memref<2x!tpu.dma_semaphore, #tpu.memory_space<semaphore_mem>> -> memref<1x!tpu.dma_semaphore, #tpu.memory_space<semaphore_mem>>
    %19 = tpu.memref_squeeze %18 : memref<1x!tpu.dma_semaphore, #tpu.memory_space<semaphore_mem>> -> memref<!tpu.dma_semaphore, #tpu.memory_space<semaphore_mem>>
    tpu.wait_dma2 semaphore(%19 : memref<!tpu.dma_semaphore, #tpu.memory_space<semaphore_mem>>) src(%15 : memref<20x24x128xbf16, #tpu.memory_space<any>>) dst(%17 : memref<20x24x128xbf16, #tpu.memory_space<vmem>>)
    %c1_i32_10 = arith.constant 1 : i32
    %20 = arith.addi %arg1, %c1_i32_10 : i32
    %c1_i32_11 = arith.constant 1 : i32
    %21 = arith.cmpi slt, %20, %c1_i32_11 : i32
    %22 = arith.extui %21 : i1 to i32
    %c0_i32_12 = arith.constant 0 : i32
    %23 = arith.cmpi ne, %22, %c0_i32_12 : i32
    scf.if %23 {
      %c1_i32_271 = arith.constant 1 : i32
      %264 = arith.addi %arg1, %c1_i32_271 : i32
      %c1_i32_272 = arith.constant 1 : i32
      %265 = arith.subi %c1_i32_272, %9 : i32
      %c16_i32_273 = arith.constant 16 : i32
      %266 = arith.muli %264, %c16_i32_273 : i32
      %c0_i32_274 = arith.constant 0 : i32
      %c0_i32_275 = arith.constant 0 : i32
      %267 = tpu.memref_slice %arg2[%arg0, %266, %c0_i32_274, %c0_i32_275] : memref<2x20x24x128xbf16, #tpu.memory_space<any>> -> memref<1x20x24x128xbf16, #tpu.memory_space<any>>
      %268 = tpu.memref_squeeze %267 : memref<1x20x24x128xbf16, #tpu.memory_space<any>> -> memref<20x24x128xbf16, #tpu.memory_space<any>>
      %c0_i32_276 = arith.constant 0 : i32
      %c0_i32_277 = arith.constant 0 : i32
      %c0_i32_278 = arith.constant 0 : i32
      %269 = tpu.memref_slice %arg10[%265, %c0_i32_276, %c0_i32_277, %c0_i32_278] : memref<2x20x24x128xbf16, #tpu.memory_space<vmem>> -> memref<1x20x24x128xbf16, #tpu.memory_space<vmem>>
      %270 = tpu.memref_squeeze %269 : memref<1x20x24x128xbf16, #tpu.memory_space<vmem>> -> memref<20x24x128xbf16, #tpu.memory_space<vmem>>
      %271 = tpu.memref_slice %arg11[%265] : memref<2x!tpu.dma_semaphore, #tpu.memory_space<semaphore_mem>> -> memref<1x!tpu.dma_semaphore, #tpu.memory_space<semaphore_mem>>
      %272 = tpu.memref_squeeze %271 : memref<1x!tpu.dma_semaphore, #tpu.memory_space<semaphore_mem>> -> memref<!tpu.dma_semaphore, #tpu.memory_space<semaphore_mem>>
      tpu.enqueue_dma source(%268 : memref<20x24x128xbf16, #tpu.memory_space<any>>) target(%270 : memref<20x24x128xbf16, #tpu.memory_space<vmem>>) target_semaphore(%272 : memref<!tpu.dma_semaphore, #tpu.memory_space<semaphore_mem>>)
    } else {
    }
    %c0 = arith.constant 0 : index
    %c0_13 = arith.constant 0 : index
    %24 = vector.load %arg4[%c0, %c0_13] : memref<1x128xf32, #tpu.memory_space<vmem>>, vector<1x128xf32>
    %c0_14 = arith.constant 0 : index
    %c0_15 = arith.constant 0 : index
    %25 = vector.load %arg5[%c0_14, %c0_15] : memref<1x128xf32, #tpu.memory_space<vmem>>, vector<1x128xf32>
    %c0_16 = arith.constant 0 : index
    %c0_17 = arith.constant 0 : index
    %26 = vector.load %arg7[%c0_16, %c0_17] : memref<1x128xf32, #tpu.memory_space<vmem>>, vector<1x128xf32>
    %c0_18 = arith.constant 0 : index
    %c0_19 = arith.constant 0 : index
    %27 = vector.load %arg8[%c0_18, %c0_19] : memref<1x128xf32, #tpu.memory_space<vmem>>, vector<1x128xf32>
    %cst = arith.constant 0.000000e+00 : f32
    %28 = vector.broadcast %cst : f32 to vector<144x128xf32>
    %c0_i32_20 = arith.constant 0 : i32
    %c0_i32_21 = arith.constant 0 : i32
    %c0_i32_22 = arith.constant 0 : i32
    %29 = tpu.memref_slice %arg10[%9, %c0_i32_20, %c0_i32_21, %c0_i32_22] : memref<2x20x24x128xbf16, #tpu.memory_space<vmem>> -> memref<1x20x24x128xbf16, #tpu.memory_space<vmem>>
    %30 = tpu.memref_squeeze %29 : memref<1x20x24x128xbf16, #tpu.memory_space<vmem>> -> memref<20x24x128xbf16, #tpu.memory_space<vmem>>
    %c0_23 = arith.constant 0 : index
    %c0_24 = arith.constant 0 : index
    %c0_25 = arith.constant 0 : index
    %31 = vector.load %30[%c0_23, %c0_24, %c0_25] : memref<20x24x128xbf16, #tpu.memory_space<vmem>>, vector<9x16x128xbf16>
    %32 = vector.shape_cast %31 : vector<9x16x128xbf16> to vector<144x128xbf16>
    %c0_26 = arith.constant 0 : index
    %c0_27 = arith.constant 0 : index
    %c0_28 = arith.constant 0 : index
    %33 = vector.load %arg3[%c0_26, %c0_27, %c0_28] : memref<9x128x128xbf16, #tpu.memory_space<vmem>>, vector<1x128x128xbf16>
    %34 = vector.shape_cast %33 : vector<1x128x128xbf16> to vector<128x128xbf16>
    %cst_29 = arith.constant dense<0.000000e+00> : vector<144x128xf32>
    %35 = tpu.matmul %32, %34, %cst_29 {dimension_numbers = #tpu.dot_dimension_numbers<[1], [0], [0], [1], [0, 0, 1, 1], [], []>} : vector<144x128xbf16>, vector<128x128xbf16>, vector<144x128xf32> -> vector<144x128xf32>
    %36 = arith.addf %28, %35 : vector<144x128xf32>
    %c0_i32_30 = arith.constant 0 : i32
    %c0_i32_31 = arith.constant 0 : i32
    %c0_i32_32 = arith.constant 0 : i32
    %37 = tpu.memref_slice %arg10[%9, %c0_i32_30, %c0_i32_31, %c0_i32_32] : memref<2x20x24x128xbf16, #tpu.memory_space<vmem>> -> memref<1x20x24x128xbf16, #tpu.memory_space<vmem>>
    %38 = tpu.memref_squeeze %37 : memref<1x20x24x128xbf16, #tpu.memory_space<vmem>> -> memref<20x24x128xbf16, #tpu.memory_space<vmem>>
    %c0_33 = arith.constant 0 : index
    %c1 = arith.constant 1 : index
    %c0_34 = arith.constant 0 : index
    %39 = vector.load %38[%c0_33, %c1, %c0_34] : memref<20x24x128xbf16, #tpu.memory_space<vmem>>, vector<9x16x128xbf16>
    %40 = vector.shape_cast %39 : vector<9x16x128xbf16> to vector<144x128xbf16>
    %c1_35 = arith.constant 1 : index
    %c0_36 = arith.constant 0 : index
    %c0_37 = arith.constant 0 : index
    %41 = vector.load %arg3[%c1_35, %c0_36, %c0_37] : memref<9x128x128xbf16, #tpu.memory_space<vmem>>, vector<1x128x128xbf16>
    %42 = vector.shape_cast %41 : vector<1x128x128xbf16> to vector<128x128xbf16>
    %cst_38 = arith.constant dense<0.000000e+00> : vector<144x128xf32>
    %43 = tpu.matmul %40, %42, %cst_38 {dimension_numbers = #tpu.dot_dimension_numbers<[1], [0], [0], [1], [0, 0, 1, 1], [], []>} : vector<144x128xbf16>, vector<128x128xbf16>, vector<144x128xf32> -> vector<144x128xf32>
    %44 = arith.addf %36, %43 : vector<144x128xf32>
    %c0_i32_39 = arith.constant 0 : i32
    %c0_i32_40 = arith.constant 0 : i32
    %c0_i32_41 = arith.constant 0 : i32
    %45 = tpu.memref_slice %arg10[%9, %c0_i32_39, %c0_i32_40, %c0_i32_41] : memref<2x20x24x128xbf16, #tpu.memory_space<vmem>> -> memref<1x20x24x128xbf16, #tpu.memory_space<vmem>>
    %46 = tpu.memref_squeeze %45 : memref<1x20x24x128xbf16, #tpu.memory_space<vmem>> -> memref<20x24x128xbf16, #tpu.memory_space<vmem>>
    %c0_42 = arith.constant 0 : index
    %c2 = arith.constant 2 : index
    %c0_43 = arith.constant 0 : index
    %47 = vector.load %46[%c0_42, %c2, %c0_43] : memref<20x24x128xbf16, #tpu.memory_space<vmem>>, vector<9x16x128xbf16>
    %48 = vector.shape_cast %47 : vector<9x16x128xbf16> to vector<144x128xbf16>
    %c2_44 = arith.constant 2 : index
    %c0_45 = arith.constant 0 : index
    %c0_46 = arith.constant 0 : index
    %49 = vector.load %arg3[%c2_44, %c0_45, %c0_46] : memref<9x128x128xbf16, #tpu.memory_space<vmem>>, vector<1x128x128xbf16>
    %50 = vector.shape_cast %49 : vector<1x128x128xbf16> to vector<128x128xbf16>
    %cst_47 = arith.constant dense<0.000000e+00> : vector<144x128xf32>
    %51 = tpu.matmul %48, %50, %cst_47 {dimension_numbers = #tpu.dot_dimension_numbers<[1], [0], [0], [1], [0, 0, 1, 1], [], []>} : vector<144x128xbf16>, vector<128x128xbf16>, vector<144x128xf32> -> vector<144x128xf32>
    %52 = arith.addf %44, %51 : vector<144x128xf32>
    %c0_i32_48 = arith.constant 0 : i32
    %c0_i32_49 = arith.constant 0 : i32
    %c0_i32_50 = arith.constant 0 : i32
    %53 = tpu.memref_slice %arg10[%9, %c0_i32_48, %c0_i32_49, %c0_i32_50] : memref<2x20x24x128xbf16, #tpu.memory_space<vmem>> -> memref<1x20x24x128xbf16, #tpu.memory_space<vmem>>
    %54 = tpu.memref_squeeze %53 : memref<1x20x24x128xbf16, #tpu.memory_space<vmem>> -> memref<20x24x128xbf16, #tpu.memory_space<vmem>>
    %c1_51 = arith.constant 1 : index
    %c0_52 = arith.constant 0 : index
    %c0_53 = arith.constant 0 : index
    %55 = vector.load %54[%c1_51, %c0_52, %c0_53] : memref<20x24x128xbf16, #tpu.memory_space<vmem>>, vector<9x16x128xbf16>
    %56 = vector.shape_cast %55 : vector<9x16x128xbf16> to vector<144x128xbf16>
    %c3 = arith.constant 3 : index
    %c0_54 = arith.constant 0 : index
    %c0_55 = arith.constant 0 : index
    %57 = vector.load %arg3[%c3, %c0_54, %c0_55] : memref<9x128x128xbf16, #tpu.memory_space<vmem>>, vector<1x128x128xbf16>
    %58 = vector.shape_cast %57 : vector<1x128x128xbf16> to vector<128x128xbf16>
    %cst_56 = arith.constant dense<0.000000e+00> : vector<144x128xf32>
    %59 = tpu.matmul %56, %58, %cst_56 {dimension_numbers = #tpu.dot_dimension_numbers<[1], [0], [0], [1], [0, 0, 1, 1], [], []>} : vector<144x128xbf16>, vector<128x128xbf16>, vector<144x128xf32> -> vector<144x128xf32>
    %60 = arith.addf %52, %59 : vector<144x128xf32>
    %c0_i32_57 = arith.constant 0 : i32
    %c0_i32_58 = arith.constant 0 : i32
    %c0_i32_59 = arith.constant 0 : i32
    %61 = tpu.memref_slice %arg10[%9, %c0_i32_57, %c0_i32_58, %c0_i32_59] : memref<2x20x24x128xbf16, #tpu.memory_space<vmem>> -> memref<1x20x24x128xbf16, #tpu.memory_space<vmem>>
    %62 = tpu.memref_squeeze %61 : memref<1x20x24x128xbf16, #tpu.memory_space<vmem>> -> memref<20x24x128xbf16, #tpu.memory_space<vmem>>
    %c1_60 = arith.constant 1 : index
    %c1_61 = arith.constant 1 : index
    %c0_62 = arith.constant 0 : index
    %63 = vector.load %62[%c1_60, %c1_61, %c0_62] : memref<20x24x128xbf16, #tpu.memory_space<vmem>>, vector<9x16x128xbf16>
    %64 = vector.shape_cast %63 : vector<9x16x128xbf16> to vector<144x128xbf16>
    %c4 = arith.constant 4 : index
    %c0_63 = arith.constant 0 : index
    %c0_64 = arith.constant 0 : index
    %65 = vector.load %arg3[%c4, %c0_63, %c0_64] : memref<9x128x128xbf16, #tpu.memory_space<vmem>>, vector<1x128x128xbf16>
    %66 = vector.shape_cast %65 : vector<1x128x128xbf16> to vector<128x128xbf16>
    %cst_65 = arith.constant dense<0.000000e+00> : vector<144x128xf32>
    %67 = tpu.matmul %64, %66, %cst_65 {dimension_numbers = #tpu.dot_dimension_numbers<[1], [0], [0], [1], [0, 0, 1, 1], [], []>} : vector<144x128xbf16>, vector<128x128xbf16>, vector<144x128xf32> -> vector<144x128xf32>
    %68 = arith.addf %60, %67 : vector<144x128xf32>
    %c0_i32_66 = arith.constant 0 : i32
    %c0_i32_67 = arith.constant 0 : i32
    %c0_i32_68 = arith.constant 0 : i32
    %69 = tpu.memref_slice %arg10[%9, %c0_i32_66, %c0_i32_67, %c0_i32_68] : memref<2x20x24x128xbf16, #tpu.memory_space<vmem>> -> memref<1x20x24x128xbf16, #tpu.memory_space<vmem>>
    %70 = tpu.memref_squeeze %69 : memref<1x20x24x128xbf16, #tpu.memory_space<vmem>> -> memref<20x24x128xbf16, #tpu.memory_space<vmem>>
    %c1_69 = arith.constant 1 : index
    %c2_70 = arith.constant 2 : index
    %c0_71 = arith.constant 0 : index
    %71 = vector.load %70[%c1_69, %c2_70, %c0_71] : memref<20x24x128xbf16, #tpu.memory_space<vmem>>, vector<9x16x128xbf16>
    %72 = vector.shape_cast %71 : vector<9x16x128xbf16> to vector<144x128xbf16>
    %c5 = arith.constant 5 : index
    %c0_72 = arith.constant 0 : index
    %c0_73 = arith.constant 0 : index
    %73 = vector.load %arg3[%c5, %c0_72, %c0_73] : memref<9x128x128xbf16, #tpu.memory_space<vmem>>, vector<1x128x128xbf16>
    %74 = vector.shape_cast %73 : vector<1x128x128xbf16> to vector<128x128xbf16>
    %cst_74 = arith.constant dense<0.000000e+00> : vector<144x128xf32>
    %75 = tpu.matmul %72, %74, %cst_74 {dimension_numbers = #tpu.dot_dimension_numbers<[1], [0], [0], [1], [0, 0, 1, 1], [], []>} : vector<144x128xbf16>, vector<128x128xbf16>, vector<144x128xf32> -> vector<144x128xf32>
    %76 = arith.addf %68, %75 : vector<144x128xf32>
    %c0_i32_75 = arith.constant 0 : i32
    %c0_i32_76 = arith.constant 0 : i32
    %c0_i32_77 = arith.constant 0 : i32
    %77 = tpu.memref_slice %arg10[%9, %c0_i32_75, %c0_i32_76, %c0_i32_77] : memref<2x20x24x128xbf16, #tpu.memory_space<vmem>> -> memref<1x20x24x128xbf16, #tpu.memory_space<vmem>>
    %78 = tpu.memref_squeeze %77 : memref<1x20x24x128xbf16, #tpu.memory_space<vmem>> -> memref<20x24x128xbf16, #tpu.memory_space<vmem>>
    %c2_78 = arith.constant 2 : index
    %c0_79 = arith.constant 0 : index
    %c0_80 = arith.constant 0 : index
    %79 = vector.load %78[%c2_78, %c0_79, %c0_80] : memref<20x24x128xbf16, #tpu.memory_space<vmem>>, vector<9x16x128xbf16>
    %80 = vector.shape_cast %79 : vector<9x16x128xbf16> to vector<144x128xbf16>
    %c6 = arith.constant 6 : index
    %c0_81 = arith.constant 0 : index
    %c0_82 = arith.constant 0 : index
    %81 = vector.load %arg3[%c6, %c0_81, %c0_82] : memref<9x128x128xbf16, #tpu.memory_space<vmem>>, vector<1x128x128xbf16>
    %82 = vector.shape_cast %81 : vector<1x128x128xbf16> to vector<128x128xbf16>
    %cst_83 = arith.constant dense<0.000000e+00> : vector<144x128xf32>
    %83 = tpu.matmul %80, %82, %cst_83 {dimension_numbers = #tpu.dot_dimension_numbers<[1], [0], [0], [1], [0, 0, 1, 1], [], []>} : vector<144x128xbf16>, vector<128x128xbf16>, vector<144x128xf32> -> vector<144x128xf32>
    %84 = arith.addf %76, %83 : vector<144x128xf32>
    %c0_i32_84 = arith.constant 0 : i32
    %c0_i32_85 = arith.constant 0 : i32
    %c0_i32_86 = arith.constant 0 : i32
    %85 = tpu.memref_slice %arg10[%9, %c0_i32_84, %c0_i32_85, %c0_i32_86] : memref<2x20x24x128xbf16, #tpu.memory_space<vmem>> -> memref<1x20x24x128xbf16, #tpu.memory_space<vmem>>
    %86 = tpu.memref_squeeze %85 : memref<1x20x24x128xbf16, #tpu.memory_space<vmem>> -> memref<20x24x128xbf16, #tpu.memory_space<vmem>>
    %c2_87 = arith.constant 2 : index
    %c1_88 = arith.constant 1 : index
    %c0_89 = arith.constant 0 : index
    %87 = vector.load %86[%c2_87, %c1_88, %c0_89] : memref<20x24x128xbf16, #tpu.memory_space<vmem>>, vector<9x16x128xbf16>
    %88 = vector.shape_cast %87 : vector<9x16x128xbf16> to vector<144x128xbf16>
    %c7 = arith.constant 7 : index
    %c0_90 = arith.constant 0 : index
    %c0_91 = arith.constant 0 : index
    %89 = vector.load %arg3[%c7, %c0_90, %c0_91] : memref<9x128x128xbf16, #tpu.memory_space<vmem>>, vector<1x128x128xbf16>
    %90 = vector.shape_cast %89 : vector<1x128x128xbf16> to vector<128x128xbf16>
    %cst_92 = arith.constant dense<0.000000e+00> : vector<144x128xf32>
    %91 = tpu.matmul %88, %90, %cst_92 {dimension_numbers = #tpu.dot_dimension_numbers<[1], [0], [0], [1], [0, 0, 1, 1], [], []>} : vector<144x128xbf16>, vector<128x128xbf16>, vector<144x128xf32> -> vector<144x128xf32>
    %92 = arith.addf %84, %91 : vector<144x128xf32>
    %c0_i32_93 = arith.constant 0 : i32
    %c0_i32_94 = arith.constant 0 : i32
    %c0_i32_95 = arith.constant 0 : i32
    %93 = tpu.memref_slice %arg10[%9, %c0_i32_93, %c0_i32_94, %c0_i32_95] : memref<2x20x24x128xbf16, #tpu.memory_space<vmem>> -> memref<1x20x24x128xbf16, #tpu.memory_space<vmem>>
    %94 = tpu.memref_squeeze %93 : memref<1x20x24x128xbf16, #tpu.memory_space<vmem>> -> memref<20x24x128xbf16, #tpu.memory_space<vmem>>
    %c2_96 = arith.constant 2 : index
    %c2_97 = arith.constant 2 : index
    %c0_98 = arith.constant 0 : index
    %95 = vector.load %94[%c2_96, %c2_97, %c0_98] : memref<20x24x128xbf16, #tpu.memory_space<vmem>>, vector<9x16x128xbf16>
    %96 = vector.shape_cast %95 : vector<9x16x128xbf16> to vector<144x128xbf16>
    %c8 = arith.constant 8 : index
    %c0_99 = arith.constant 0 : index
    %c0_100 = arith.constant 0 : index
    %97 = vector.load %arg3[%c8, %c0_99, %c0_100] : memref<9x128x128xbf16, #tpu.memory_space<vmem>>, vector<1x128x128xbf16>
    %98 = vector.shape_cast %97 : vector<1x128x128xbf16> to vector<128x128xbf16>
    %cst_101 = arith.constant dense<0.000000e+00> : vector<144x128xf32>
    %99 = tpu.matmul %96, %98, %cst_101 {dimension_numbers = #tpu.dot_dimension_numbers<[1], [0], [0], [1], [0, 0, 1, 1], [], []>} : vector<144x128xbf16>, vector<128x128xbf16>, vector<144x128xf32> -> vector<144x128xf32>
    %100 = arith.addf %92, %99 : vector<144x128xf32>
    %101 = vector.broadcast %24 : vector<1x128xf32> to vector<144x128xf32>
    %102 = arith.mulf %100, %101 : vector<144x128xf32>
    %103 = vector.broadcast %25 : vector<1x128xf32> to vector<144x128xf32>
    %104 = arith.addf %102, %103 : vector<144x128xf32>
    %cst_102 = arith.constant 0.000000e+00 : f32
    %105 = vector.broadcast %cst_102 : f32 to vector<144x128xf32>
    %106 = arith.maximumf %104, %105 : vector<144x128xf32>
    %107 = vector.shape_cast %106 : vector<144x128xf32> to vector<9x16x128xf32>
    %108 = arith.truncf %107 : vector<9x16x128xf32> to vector<9x16x128xbf16>
    %c0_103 = arith.constant 0 : index
    %c8_104 = arith.constant 8 : index
    %c0_105 = arith.constant 0 : index
    %109 = vector.load %arg12[%c0_103, %c8_104, %c0_105] : memref<18x32x128xbf16, #tpu.memory_space<vmem>>, vector<9x16x128xbf16>
    tpu.vector_store %arg12[%c0_103, %c8_104, %c0_105], %108 {strides = array<i32>} : memref<18x32x128xbf16, #tpu.memory_space<vmem>>, vector<9x16x128xbf16>,
    %cst_106 = arith.constant 0.000000e+00 : f32
    %110 = vector.broadcast %cst_106 : f32 to vector<144x128xf32>
    %c0_i32_107 = arith.constant 0 : i32
    %c0_i32_108 = arith.constant 0 : i32
    %c0_i32_109 = arith.constant 0 : i32
    %111 = tpu.memref_slice %arg10[%9, %c0_i32_107, %c0_i32_108, %c0_i32_109] : memref<2x20x24x128xbf16, #tpu.memory_space<vmem>> -> memref<1x20x24x128xbf16, #tpu.memory_space<vmem>>
    %112 = tpu.memref_squeeze %111 : memref<1x20x24x128xbf16, #tpu.memory_space<vmem>> -> memref<20x24x128xbf16, #tpu.memory_space<vmem>>
    %c9 = arith.constant 9 : index
    %c0_110 = arith.constant 0 : index
    %c0_111 = arith.constant 0 : index
    %113 = vector.load %112[%c9, %c0_110, %c0_111] : memref<20x24x128xbf16, #tpu.memory_space<vmem>>, vector<9x16x128xbf16>
    %114 = vector.shape_cast %113 : vector<9x16x128xbf16> to vector<144x128xbf16>
    %c0_112 = arith.constant 0 : index
    %c0_113 = arith.constant 0 : index
    %c0_114 = arith.constant 0 : index
    %115 = vector.load %arg3[%c0_112, %c0_113, %c0_114] : memref<9x128x128xbf16, #tpu.memory_space<vmem>>, vector<1x128x128xbf16>
    %116 = vector.shape_cast %115 : vector<1x128x128xbf16> to vector<128x128xbf16>
    %cst_115 = arith.constant dense<0.000000e+00> : vector<144x128xf32>
    %117 = tpu.matmul %114, %116, %cst_115 {dimension_numbers = #tpu.dot_dimension_numbers<[1], [0], [0], [1], [0, 0, 1, 1], [], []>} : vector<144x128xbf16>, vector<128x128xbf16>, vector<144x128xf32> -> vector<144x128xf32>
    %118 = arith.addf %110, %117 : vector<144x128xf32>
    %c0_i32_116 = arith.constant 0 : i32
    %c0_i32_117 = arith.constant 0 : i32
    %c0_i32_118 = arith.constant 0 : i32
    %119 = tpu.memref_slice %arg10[%9, %c0_i32_116, %c0_i32_117, %c0_i32_118] : memref<2x20x24x128xbf16, #tpu.memory_space<vmem>> -> memref<1x20x24x128xbf16, #tpu.memory_space<vmem>>
    %120 = tpu.memref_squeeze %119 : memref<1x20x24x128xbf16, #tpu.memory_space<vmem>> -> memref<20x24x128xbf16, #tpu.memory_space<vmem>>
    %c9_119 = arith.constant 9 : index
    %c1_120 = arith.constant 1 : index
    %c0_121 = arith.constant 0 : index
    %121 = vector.load %120[%c9_119, %c1_120, %c0_121] : memref<20x24x128xbf16, #tpu.memory_space<vmem>>, vector<9x16x128xbf16>
    %122 = vector.shape_cast %121 : vector<9x16x128xbf16> to vector<144x128xbf16>
    %c1_122 = arith.constant 1 : index
    %c0_123 = arith.constant 0 : index
    %c0_124 = arith.constant 0 : index
    %123 = vector.load %arg3[%c1_122, %c0_123, %c0_124] : memref<9x128x128xbf16, #tpu.memory_space<vmem>>, vector<1x128x128xbf16>
    %124 = vector.shape_cast %123 : vector<1x128x128xbf16> to vector<128x128xbf16>
    %cst_125 = arith.constant dense<0.000000e+00> : vector<144x128xf32>
    %125 = tpu.matmul %122, %124, %cst_125 {dimension_numbers = #tpu.dot_dimension_numbers<[1], [0], [0], [1], [0, 0, 1, 1], [], []>} : vector<144x128xbf16>, vector<128x128xbf16>, vector<144x128xf32> -> vector<144x128xf32>
    %126 = arith.addf %118, %125 : vector<144x128xf32>
    %c0_i32_126 = arith.constant 0 : i32
    %c0_i32_127 = arith.constant 0 : i32
    %c0_i32_128 = arith.constant 0 : i32
    %127 = tpu.memref_slice %arg10[%9, %c0_i32_126, %c0_i32_127, %c0_i32_128] : memref<2x20x24x128xbf16, #tpu.memory_space<vmem>> -> memref<1x20x24x128xbf16, #tpu.memory_space<vmem>>
    %128 = tpu.memref_squeeze %127 : memref<1x20x24x128xbf16, #tpu.memory_space<vmem>> -> memref<20x24x128xbf16, #tpu.memory_space<vmem>>
    %c9_129 = arith.constant 9 : index
    %c2_130 = arith.constant 2 : index
    %c0_131 = arith.constant 0 : index
    %129 = vector.load %128[%c9_129, %c2_130, %c0_131] : memref<20x24x128xbf16, #tpu.memory_space<vmem>>, vector<9x16x128xbf16>
    %130 = vector.shape_cast %129 : vector<9x16x128xbf16> to vector<144x128xbf16>
    %c2_132 = arith.constant 2 : index
    %c0_133 = arith.constant 0 : index
    %c0_134 = arith.constant 0 : index
    %131 = vector.load %arg3[%c2_132, %c0_133, %c0_134] : memref<9x128x128xbf16, #tpu.memory_space<vmem>>, vector<1x128x128xbf16>
    %132 = vector.shape_cast %131 : vector<1x128x128xbf16> to vector<128x128xbf16>
    %cst_135 = arith.constant dense<0.000000e+00> : vector<144x128xf32>
    %133 = tpu.matmul %130, %132, %cst_135 {dimension_numbers = #tpu.dot_dimension_numbers<[1], [0], [0], [1], [0, 0, 1, 1], [], []>} : vector<144x128xbf16>, vector<128x128xbf16>, vector<144x128xf32> -> vector<144x128xf32>
    %134 = arith.addf %126, %133 : vector<144x128xf32>
    %c0_i32_136 = arith.constant 0 : i32
    %c0_i32_137 = arith.constant 0 : i32
    %c0_i32_138 = arith.constant 0 : i32
    %135 = tpu.memref_slice %arg10[%9, %c0_i32_136, %c0_i32_137, %c0_i32_138] : memref<2x20x24x128xbf16, #tpu.memory_space<vmem>> -> memref<1x20x24x128xbf16, #tpu.memory_space<vmem>>
    %136 = tpu.memref_squeeze %135 : memref<1x20x24x128xbf16, #tpu.memory_space<vmem>> -> memref<20x24x128xbf16, #tpu.memory_space<vmem>>
    %c10 = arith.constant 10 : index
    %c0_139 = arith.constant 0 : index
    %c0_140 = arith.constant 0 : index
    %137 = vector.load %136[%c10, %c0_139, %c0_140] : memref<20x24x128xbf16, #tpu.memory_space<vmem>>, vector<9x16x128xbf16>
    %138 = vector.shape_cast %137 : vector<9x16x128xbf16> to vector<144x128xbf16>
    %c3_141 = arith.constant 3 : index
    %c0_142 = arith.constant 0 : index
    %c0_143 = arith.constant 0 : index
    %139 = vector.load %arg3[%c3_141, %c0_142, %c0_143] : memref<9x128x128xbf16, #tpu.memory_space<vmem>>, vector<1x128x128xbf16>
    %140 = vector.shape_cast %139 : vector<1x128x128xbf16> to vector<128x128xbf16>
    %cst_144 = arith.constant dense<0.000000e+00> : vector<144x128xf32>
    %141 = tpu.matmul %138, %140, %cst_144 {dimension_numbers = #tpu.dot_dimension_numbers<[1], [0], [0], [1], [0, 0, 1, 1], [], []>} : vector<144x128xbf16>, vector<128x128xbf16>, vector<144x128xf32> -> vector<144x128xf32>
    %142 = arith.addf %134, %141 : vector<144x128xf32>
    %c0_i32_145 = arith.constant 0 : i32
    %c0_i32_146 = arith.constant 0 : i32
    %c0_i32_147 = arith.constant 0 : i32
    %143 = tpu.memref_slice %arg10[%9, %c0_i32_145, %c0_i32_146, %c0_i32_147] : memref<2x20x24x128xbf16, #tpu.memory_space<vmem>> -> memref<1x20x24x128xbf16, #tpu.memory_space<vmem>>
    %144 = tpu.memref_squeeze %143 : memref<1x20x24x128xbf16, #tpu.memory_space<vmem>> -> memref<20x24x128xbf16, #tpu.memory_space<vmem>>
    %c10_148 = arith.constant 10 : index
    %c1_149 = arith.constant 1 : index
    %c0_150 = arith.constant 0 : index
    %145 = vector.load %144[%c10_148, %c1_149, %c0_150] : memref<20x24x128xbf16, #tpu.memory_space<vmem>>, vector<9x16x128xbf16>
    %146 = vector.shape_cast %145 : vector<9x16x128xbf16> to vector<144x128xbf16>
    %c4_151 = arith.constant 4 : index
    %c0_152 = arith.constant 0 : index
    %c0_153 = arith.constant 0 : index
    %147 = vector.load %arg3[%c4_151, %c0_152, %c0_153] : memref<9x128x128xbf16, #tpu.memory_space<vmem>>, vector<1x128x128xbf16>
    %148 = vector.shape_cast %147 : vector<1x128x128xbf16> to vector<128x128xbf16>
    %cst_154 = arith.constant dense<0.000000e+00> : vector<144x128xf32>
    %149 = tpu.matmul %146, %148, %cst_154 {dimension_numbers = #tpu.dot_dimension_numbers<[1], [0], [0], [1], [0, 0, 1, 1], [], []>} : vector<144x128xbf16>, vector<128x128xbf16>, vector<144x128xf32> -> vector<144x128xf32>
    %150 = arith.addf %142, %149 : vector<144x128xf32>
    %c0_i32_155 = arith.constant 0 : i32
    %c0_i32_156 = arith.constant 0 : i32
    %c0_i32_157 = arith.constant 0 : i32
    %151 = tpu.memref_slice %arg10[%9, %c0_i32_155, %c0_i32_156, %c0_i32_157] : memref<2x20x24x128xbf16, #tpu.memory_space<vmem>> -> memref<1x20x24x128xbf16, #tpu.memory_space<vmem>>
    %152 = tpu.memref_squeeze %151 : memref<1x20x24x128xbf16, #tpu.memory_space<vmem>> -> memref<20x24x128xbf16, #tpu.memory_space<vmem>>
    %c10_158 = arith.constant 10 : index
    %c2_159 = arith.constant 2 : index
    %c0_160 = arith.constant 0 : index
    %153 = vector.load %152[%c10_158, %c2_159, %c0_160] : memref<20x24x128xbf16, #tpu.memory_space<vmem>>, vector<9x16x128xbf16>
    %154 = vector.shape_cast %153 : vector<9x16x128xbf16> to vector<144x128xbf16>
    %c5_161 = arith.constant 5 : index
    %c0_162 = arith.constant 0 : index
    %c0_163 = arith.constant 0 : index
    %155 = vector.load %arg3[%c5_161, %c0_162, %c0_163] : memref<9x128x128xbf16, #tpu.memory_space<vmem>>, vector<1x128x128xbf16>
    %156 = vector.shape_cast %155 : vector<1x128x128xbf16> to vector<128x128xbf16>
    %cst_164 = arith.constant dense<0.000000e+00> : vector<144x128xf32>
    %157 = tpu.matmul %154, %156, %cst_164 {dimension_numbers = #tpu.dot_dimension_numbers<[1], [0], [0], [1], [0, 0, 1, 1], [], []>} : vector<144x128xbf16>, vector<128x128xbf16>, vector<144x128xf32> -> vector<144x128xf32>
    %158 = arith.addf %150, %157 : vector<144x128xf32>
    %c0_i32_165 = arith.constant 0 : i32
    %c0_i32_166 = arith.constant 0 : i32
    %c0_i32_167 = arith.constant 0 : i32
    %159 = tpu.memref_slice %arg10[%9, %c0_i32_165, %c0_i32_166, %c0_i32_167] : memref<2x20x24x128xbf16, #tpu.memory_space<vmem>> -> memref<1x20x24x128xbf16, #tpu.memory_space<vmem>>
    %160 = tpu.memref_squeeze %159 : memref<1x20x24x128xbf16, #tpu.memory_space<vmem>> -> memref<20x24x128xbf16, #tpu.memory_space<vmem>>
    %c11 = arith.constant 11 : index
    %c0_168 = arith.constant 0 : index
    %c0_169 = arith.constant 0 : index
    %161 = vector.load %160[%c11, %c0_168, %c0_169] : memref<20x24x128xbf16, #tpu.memory_space<vmem>>, vector<9x16x128xbf16>
    %162 = vector.shape_cast %161 : vector<9x16x128xbf16> to vector<144x128xbf16>
    %c6_170 = arith.constant 6 : index
    %c0_171 = arith.constant 0 : index
    %c0_172 = arith.constant 0 : index
    %163 = vector.load %arg3[%c6_170, %c0_171, %c0_172] : memref<9x128x128xbf16, #tpu.memory_space<vmem>>, vector<1x128x128xbf16>
    %164 = vector.shape_cast %163 : vector<1x128x128xbf16> to vector<128x128xbf16>
    %cst_173 = arith.constant dense<0.000000e+00> : vector<144x128xf32>
    %165 = tpu.matmul %162, %164, %cst_173 {dimension_numbers = #tpu.dot_dimension_numbers<[1], [0], [0], [1], [0, 0, 1, 1], [], []>} : vector<144x128xbf16>, vector<128x128xbf16>, vector<144x128xf32> -> vector<144x128xf32>
    %166 = arith.addf %158, %165 : vector<144x128xf32>
    %c0_i32_174 = arith.constant 0 : i32
    %c0_i32_175 = arith.constant 0 : i32
    %c0_i32_176 = arith.constant 0 : i32
    %167 = tpu.memref_slice %arg10[%9, %c0_i32_174, %c0_i32_175, %c0_i32_176] : memref<2x20x24x128xbf16, #tpu.memory_space<vmem>> -> memref<1x20x24x128xbf16, #tpu.memory_space<vmem>>
    %168 = tpu.memref_squeeze %167 : memref<1x20x24x128xbf16, #tpu.memory_space<vmem>> -> memref<20x24x128xbf16, #tpu.memory_space<vmem>>
    %c11_177 = arith.constant 11 : index
    %c1_178 = arith.constant 1 : index
    %c0_179 = arith.constant 0 : index
    %169 = vector.load %168[%c11_177, %c1_178, %c0_179] : memref<20x24x128xbf16, #tpu.memory_space<vmem>>, vector<9x16x128xbf16>
    %170 = vector.shape_cast %169 : vector<9x16x128xbf16> to vector<144x128xbf16>
    %c7_180 = arith.constant 7 : index
    %c0_181 = arith.constant 0 : index
    %c0_182 = arith.constant 0 : index
    %171 = vector.load %arg3[%c7_180, %c0_181, %c0_182] : memref<9x128x128xbf16, #tpu.memory_space<vmem>>, vector<1x128x128xbf16>
    %172 = vector.shape_cast %171 : vector<1x128x128xbf16> to vector<128x128xbf16>
    %cst_183 = arith.constant dense<0.000000e+00> : vector<144x128xf32>
    %173 = tpu.matmul %170, %172, %cst_183 {dimension_numbers = #tpu.dot_dimension_numbers<[1], [0], [0], [1], [0, 0, 1, 1], [], []>} : vector<144x128xbf16>, vector<128x128xbf16>, vector<144x128xf32> -> vector<144x128xf32>
    %174 = arith.addf %166, %173 : vector<144x128xf32>
    %c0_i32_184 = arith.constant 0 : i32
    %c0_i32_185 = arith.constant 0 : i32
    %c0_i32_186 = arith.constant 0 : i32
    %175 = tpu.memref_slice %arg10[%9, %c0_i32_184, %c0_i32_185, %c0_i32_186] : memref<2x20x24x128xbf16, #tpu.memory_space<vmem>> -> memref<1x20x24x128xbf16, #tpu.memory_space<vmem>>
    %176 = tpu.memref_squeeze %175 : memref<1x20x24x128xbf16, #tpu.memory_space<vmem>> -> memref<20x24x128xbf16, #tpu.memory_space<vmem>>
    %c11_187 = arith.constant 11 : index
    %c2_188 = arith.constant 2 : index
    %c0_189 = arith.constant 0 : index
    %177 = vector.load %176[%c11_187, %c2_188, %c0_189] : memref<20x24x128xbf16, #tpu.memory_space<vmem>>, vector<9x16x128xbf16>
    %178 = vector.shape_cast %177 : vector<9x16x128xbf16> to vector<144x128xbf16>
    %c8_190 = arith.constant 8 : index
    %c0_191 = arith.constant 0 : index
    %c0_192 = arith.constant 0 : index
    %179 = vector.load %arg3[%c8_190, %c0_191, %c0_192] : memref<9x128x128xbf16, #tpu.memory_space<vmem>>, vector<1x128x128xbf16>
    %180 = vector.shape_cast %179 : vector<1x128x128xbf16> to vector<128x128xbf16>
    %cst_193 = arith.constant dense<0.000000e+00> : vector<144x128xf32>
    %181 = tpu.matmul %178, %180, %cst_193 {dimension_numbers = #tpu.dot_dimension_numbers<[1], [0], [0], [1], [0, 0, 1, 1], [], []>} : vector<144x128xbf16>, vector<128x128xbf16>, vector<144x128xf32> -> vector<144x128xf32>
    %182 = arith.addf %174, %181 : vector<144x128xf32>
    %183 = vector.broadcast %24 : vector<1x128xf32> to vector<144x128xf32>
    %184 = arith.mulf %182, %183 : vector<144x128xf32>
    %185 = vector.broadcast %25 : vector<1x128xf32> to vector<144x128xf32>
    %186 = arith.addf %184, %185 : vector<144x128xf32>
    %cst_194 = arith.constant 0.000000e+00 : f32
    %187 = vector.broadcast %cst_194 : f32 to vector<144x128xf32>
    %188 = arith.maximumf %186, %187 : vector<144x128xf32>
    %189 = vector.shape_cast %188 : vector<144x128xf32> to vector<9x16x128xf32>
    %190 = arith.truncf %189 : vector<9x16x128xf32> to vector<9x16x128xbf16>
    %c9_195 = arith.constant 9 : index
    %c8_196 = arith.constant 8 : index
    %c0_197 = arith.constant 0 : index
    %191 = vector.load %arg12[%c9_195, %c8_196, %c0_197] : memref<18x32x128xbf16, #tpu.memory_space<vmem>>, vector<9x16x128xbf16>
    tpu.vector_store %arg12[%c9_195, %c8_196, %c0_197], %190 {strides = array<i32>} : memref<18x32x128xbf16, #tpu.memory_space<vmem>>, vector<9x16x128xbf16>,
    %c0_i32_198 = arith.constant 0 : i32
    %192 = arith.cmpi eq, %arg1, %c0_i32_198 : i32
    %193 = arith.extui %192 : i1 to i32
    %c0_i32_199 = arith.constant 0 : i32
    %194 = arith.cmpi ne, %193, %c0_i32_199 : i32
    scf.if %194 {
      %cst_271 = arith.constant 0.000000e+00 : bf16
      %264 = vector.broadcast %cst_271 : bf16 to vector<1x16x128xbf16>
      %c0_272 = arith.constant 0 : index
      %c8_273 = arith.constant 8 : index
      %c0_274 = arith.constant 0 : index
      %265 = vector.load %arg12[%c0_272, %c8_273, %c0_274] : memref<18x32x128xbf16, #tpu.memory_space<vmem>>, vector<1x16x128xbf16>
      tpu.vector_store %arg12[%c0_272, %c8_273, %c0_274], %264 {strides = array<i32>} : memref<18x32x128xbf16, #tpu.memory_space<vmem>>, vector<1x16x128xbf16>,
    } else {
    }
    %c0_i32_200 = arith.constant 0 : i32
    %195 = arith.cmpi eq, %arg1, %c0_i32_200 : i32
    %196 = arith.extui %195 : i1 to i32
    %c0_i32_201 = arith.constant 0 : i32
    %197 = arith.cmpi ne, %196, %c0_i32_201 : i32
    scf.if %197 {
      %cst_271 = arith.constant 0.000000e+00 : bf16
      %264 = vector.broadcast %cst_271 : bf16 to vector<1x16x128xbf16>
      %c17 = arith.constant 17 : index
      %c8_272 = arith.constant 8 : index
      %c0_273 = arith.constant 0 : index
      %265 = vector.load %arg12[%c17, %c8_272, %c0_273] : memref<18x32x128xbf16, #tpu.memory_space<vmem>>, vector<1x16x128xbf16>
      tpu.vector_store %arg12[%c17, %c8_272, %c0_273], %264 {strides = array<i32>} : memref<18x32x128xbf16, #tpu.memory_space<vmem>>, vector<1x16x128xbf16>,
    } else {
    }
    %cst_202 = arith.constant 0.000000e+00 : f32
    %198 = vector.broadcast %cst_202 : f32 to vector<256x128xf32>
    %c0_203 = arith.constant 0 : index
    %c7_204 = arith.constant 7 : index
    %c0_205 = arith.constant 0 : index
    %199 = vector.load %arg12[%c0_203, %c7_204, %c0_205] : memref<18x32x128xbf16, #tpu.memory_space<vmem>>, vector<16x16x128xbf16>
    %200 = vector.shape_cast %199 : vector<16x16x128xbf16> to vector<256x128xbf16>
    %c0_206 = arith.constant 0 : index
    %c0_207 = arith.constant 0 : index
    %c0_208 = arith.constant 0 : index
    %201 = vector.load %arg6[%c0_206, %c0_207, %c0_208] : memref<9x128x128xbf16, #tpu.memory_space<vmem>>, vector<1x128x128xbf16>
    %202 = vector.shape_cast %201 : vector<1x128x128xbf16> to vector<128x128xbf16>
    %cst_209 = arith.constant dense<0.000000e+00> : vector<256x128xf32>
    %203 = tpu.matmul %200, %202, %cst_209 {dimension_numbers = #tpu.dot_dimension_numbers<[1], [0], [0], [1], [0, 0, 1, 1], [], []>} : vector<256x128xbf16>, vector<128x128xbf16>, vector<256x128xf32> -> vector<256x128xf32>
    %204 = arith.addf %198, %203 : vector<256x128xf32>
    %c0_210 = arith.constant 0 : index
    %c8_211 = arith.constant 8 : index
    %c0_212 = arith.constant 0 : index
    %205 = vector.load %arg12[%c0_210, %c8_211, %c0_212] : memref<18x32x128xbf16, #tpu.memory_space<vmem>>, vector<16x16x128xbf16>
    %206 = vector.shape_cast %205 : vector<16x16x128xbf16> to vector<256x128xbf16>
    %c1_213 = arith.constant 1 : index
    %c0_214 = arith.constant 0 : index
    %c0_215 = arith.constant 0 : index
    %207 = vector.load %arg6[%c1_213, %c0_214, %c0_215] : memref<9x128x128xbf16, #tpu.memory_space<vmem>>, vector<1x128x128xbf16>
    %208 = vector.shape_cast %207 : vector<1x128x128xbf16> to vector<128x128xbf16>
    %cst_216 = arith.constant dense<0.000000e+00> : vector<256x128xf32>
    %209 = tpu.matmul %206, %208, %cst_216 {dimension_numbers = #tpu.dot_dimension_numbers<[1], [0], [0], [1], [0, 0, 1, 1], [], []>} : vector<256x128xbf16>, vector<128x128xbf16>, vector<256x128xf32> -> vector<256x128xf32>
    %210 = arith.addf %204, %209 : vector<256x128xf32>
    %c0_217 = arith.constant 0 : index
    %c9_218 = arith.constant 9 : index
    %c0_219 = arith.constant 0 : index
    %211 = vector.load %arg12[%c0_217, %c9_218, %c0_219] : memref<18x32x128xbf16, #tpu.memory_space<vmem>>, vector<16x16x128xbf16>
    %212 = vector.shape_cast %211 : vector<16x16x128xbf16> to vector<256x128xbf16>
    %c2_220 = arith.constant 2 : index
    %c0_221 = arith.constant 0 : index
    %c0_222 = arith.constant 0 : index
    %213 = vector.load %arg6[%c2_220, %c0_221, %c0_222] : memref<9x128x128xbf16, #tpu.memory_space<vmem>>, vector<1x128x128xbf16>
    %214 = vector.shape_cast %213 : vector<1x128x128xbf16> to vector<128x128xbf16>
    %cst_223 = arith.constant dense<0.000000e+00> : vector<256x128xf32>
    %215 = tpu.matmul %212, %214, %cst_223 {dimension_numbers = #tpu.dot_dimension_numbers<[1], [0], [0], [1], [0, 0, 1, 1], [], []>} : vector<256x128xbf16>, vector<128x128xbf16>, vector<256x128xf32> -> vector<256x128xf32>
    %216 = arith.addf %210, %215 : vector<256x128xf32>
    %c1_224 = arith.constant 1 : index
    %c7_225 = arith.constant 7 : index
    %c0_226 = arith.constant 0 : index
    %217 = vector.load %arg12[%c1_224, %c7_225, %c0_226] : memref<18x32x128xbf16, #tpu.memory_space<vmem>>, vector<16x16x128xbf16>
    %218 = vector.shape_cast %217 : vector<16x16x128xbf16> to vector<256x128xbf16>
    %c3_227 = arith.constant 3 : index
    %c0_228 = arith.constant 0 : index
    %c0_229 = arith.constant 0 : index
    %219 = vector.load %arg6[%c3_227, %c0_228, %c0_229] : memref<9x128x128xbf16, #tpu.memory_space<vmem>>, vector<1x128x128xbf16>
    %220 = vector.shape_cast %219 : vector<1x128x128xbf16> to vector<128x128xbf16>
    %cst_230 = arith.constant dense<0.000000e+00> : vector<256x128xf32>
    %221 = tpu.matmul %218, %220, %cst_230 {dimension_numbers = #tpu.dot_dimension_numbers<[1], [0], [0], [1], [0, 0, 1, 1], [], []>} : vector<256x128xbf16>, vector<128x128xbf16>, vector<256x128xf32> -> vector<256x128xf32>
    %222 = arith.addf %216, %221 : vector<256x128xf32>
    %c1_231 = arith.constant 1 : index
    %c8_232 = arith.constant 8 : index
    %c0_233 = arith.constant 0 : index
    %223 = vector.load %arg12[%c1_231, %c8_232, %c0_233] : memref<18x32x128xbf16, #tpu.memory_space<vmem>>, vector<16x16x128xbf16>
    %224 = vector.shape_cast %223 : vector<16x16x128xbf16> to vector<256x128xbf16>
    %c4_234 = arith.constant 4 : index
    %c0_235 = arith.constant 0 : index
    %c0_236 = arith.constant 0 : index
    %225 = vector.load %arg6[%c4_234, %c0_235, %c0_236] : memref<9x128x128xbf16, #tpu.memory_space<vmem>>, vector<1x128x128xbf16>
    %226 = vector.shape_cast %225 : vector<1x128x128xbf16> to vector<128x128xbf16>
    %cst_237 = arith.constant dense<0.000000e+00> : vector<256x128xf32>
    %227 = tpu.matmul %224, %226, %cst_237 {dimension_numbers = #tpu.dot_dimension_numbers<[1], [0], [0], [1], [0, 0, 1, 1], [], []>} : vector<256x128xbf16>, vector<128x128xbf16>, vector<256x128xf32> -> vector<256x128xf32>
    %228 = arith.addf %222, %227 : vector<256x128xf32>
    %c1_238 = arith.constant 1 : index
    %c9_239 = arith.constant 9 : index
    %c0_240 = arith.constant 0 : index
    %229 = vector.load %arg12[%c1_238, %c9_239, %c0_240] : memref<18x32x128xbf16, #tpu.memory_space<vmem>>, vector<16x16x128xbf16>
    %230 = vector.shape_cast %229 : vector<16x16x128xbf16> to vector<256x128xbf16>
    %c5_241 = arith.constant 5 : index
    %c0_242 = arith.constant 0 : index
    %c0_243 = arith.constant 0 : index
    %231 = vector.load %arg6[%c5_241, %c0_242, %c0_243] : memref<9x128x128xbf16, #tpu.memory_space<vmem>>, vector<1x128x128xbf16>
    %232 = vector.shape_cast %231 : vector<1x128x128xbf16> to vector<128x128xbf16>
    %cst_244 = arith.constant dense<0.000000e+00> : vector<256x128xf32>
    %233 = tpu.matmul %230, %232, %cst_244 {dimension_numbers = #tpu.dot_dimension_numbers<[1], [0], [0], [1], [0, 0, 1, 1], [], []>} : vector<256x128xbf16>, vector<128x128xbf16>, vector<256x128xf32> -> vector<256x128xf32>
    %234 = arith.addf %228, %233 : vector<256x128xf32>
    %c2_245 = arith.constant 2 : index
    %c7_246 = arith.constant 7 : index
    %c0_247 = arith.constant 0 : index
    %235 = vector.load %arg12[%c2_245, %c7_246, %c0_247] : memref<18x32x128xbf16, #tpu.memory_space<vmem>>, vector<16x16x128xbf16>
    %236 = vector.shape_cast %235 : vector<16x16x128xbf16> to vector<256x128xbf16>
    %c6_248 = arith.constant 6 : index
    %c0_249 = arith.constant 0 : index
    %c0_250 = arith.constant 0 : index
    %237 = vector.load %arg6[%c6_248, %c0_249, %c0_250] : memref<9x128x128xbf16, #tpu.memory_space<vmem>>, vector<1x128x128xbf16>
    %238 = vector.shape_cast %237 : vector<1x128x128xbf16> to vector<128x128xbf16>
    %cst_251 = arith.constant dense<0.000000e+00> : vector<256x128xf32>
    %239 = tpu.matmul %236, %238, %cst_251 {dimension_numbers = #tpu.dot_dimension_numbers<[1], [0], [0], [1], [0, 0, 1, 1], [], []>} : vector<256x128xbf16>, vector<128x128xbf16>, vector<256x128xf32> -> vector<256x128xf32>
    %240 = arith.addf %234, %239 : vector<256x128xf32>
    %c2_252 = arith.constant 2 : index
    %c8_253 = arith.constant 8 : index
    %c0_254 = arith.constant 0 : index
    %241 = vector.load %arg12[%c2_252, %c8_253, %c0_254] : memref<18x32x128xbf16, #tpu.memory_space<vmem>>, vector<16x16x128xbf16>
    %242 = vector.shape_cast %241 : vector<16x16x128xbf16> to vector<256x128xbf16>
    %c7_255 = arith.constant 7 : index
    %c0_256 = arith.constant 0 : index
    %c0_257 = arith.constant 0 : index
    %243 = vector.load %arg6[%c7_255, %c0_256, %c0_257] : memref<9x128x128xbf16, #tpu.memory_space<vmem>>, vector<1x128x128xbf16>
    %244 = vector.shape_cast %243 : vector<1x128x128xbf16> to vector<128x128xbf16>
    %cst_258 = arith.constant dense<0.000000e+00> : vector<256x128xf32>
    %245 = tpu.matmul %242, %244, %cst_258 {dimension_numbers = #tpu.dot_dimension_numbers<[1], [0], [0], [1], [0, 0, 1, 1], [], []>} : vector<256x128xbf16>, vector<128x128xbf16>, vector<256x128xf32> -> vector<256x128xf32>
    %246 = arith.addf %240, %245 : vector<256x128xf32>
    %c2_259 = arith.constant 2 : index
    %c9_260 = arith.constant 9 : index
    %c0_261 = arith.constant 0 : index
    %247 = vector.load %arg12[%c2_259, %c9_260, %c0_261] : memref<18x32x128xbf16, #tpu.memory_space<vmem>>, vector<16x16x128xbf16>
    %248 = vector.shape_cast %247 : vector<16x16x128xbf16> to vector<256x128xbf16>
    %c8_262 = arith.constant 8 : index
    %c0_263 = arith.constant 0 : index
    %c0_264 = arith.constant 0 : index
    %249 = vector.load %arg6[%c8_262, %c0_263, %c0_264] : memref<9x128x128xbf16, #tpu.memory_space<vmem>>, vector<1x128x128xbf16>
    %250 = vector.shape_cast %249 : vector<1x128x128xbf16> to vector<128x128xbf16>
    %cst_265 = arith.constant dense<0.000000e+00> : vector<256x128xf32>
    %251 = tpu.matmul %248, %250, %cst_265 {dimension_numbers = #tpu.dot_dimension_numbers<[1], [0], [0], [1], [0, 0, 1, 1], [], []>} : vector<256x128xbf16>, vector<128x128xbf16>, vector<256x128xf32> -> vector<256x128xf32>
    %252 = arith.addf %246, %251 : vector<256x128xf32>
    %253 = vector.broadcast %26 : vector<1x128xf32> to vector<256x128xf32>
    %254 = arith.mulf %252, %253 : vector<256x128xf32>
    %255 = vector.broadcast %27 : vector<1x128xf32> to vector<256x128xf32>
    %256 = arith.addf %254, %255 : vector<256x128xf32>
    %cst_266 = arith.constant 0.000000e+00 : f32
    %257 = vector.broadcast %cst_266 : f32 to vector<256x128xf32>
    %258 = arith.maximumf %256, %257 : vector<256x128xf32>
    %259 = vector.shape_cast %258 : vector<256x128xf32> to vector<16x16x128xf32>
    %260 = arith.truncf %259 : vector<16x16x128xf32> to vector<16x16x128xbf16>
    %c0_267 = arith.constant 0 : index
    %c0_268 = arith.constant 0 : index
    %c0_269 = arith.constant 0 : index
    %c0_270 = arith.constant 0 : index
    %261 = vector.load %arg9[%c0_267, %c0_268, %c0_269, %c0_270] : memref<1x16x16x128xbf16, #tpu.memory_space<vmem>>, vector<1x16x16x128xbf16>
    %262 = vector.shape_cast %261 : vector<1x16x16x128xbf16> to vector<16x16x128xbf16>
    %263 = vector.shape_cast %260 : vector<16x16x128xbf16> to vector<1x16x16x128xbf16>
    tpu.vector_store %arg9[%c0_267, %c0_268, %c0_269, %c0_270], %263 {strides = array<i32>} : memref<1x16x16x128xbf16, #tpu.memory_space<vmem>>, vector<1x16x16x128xbf16>,
    return
  }
  func.func @transform_1(%arg0: i32, %arg1: i32) -> (i32, i32, i32) {
    %c0_i32 = arith.constant 0 : i32
    %c0_i32_0 = arith.constant 0 : i32
    %c0_i32_1 = arith.constant 0 : i32
    %c0_i32_2 = arith.constant 0 : i32
    return %c0_i32, %c0_i32_0, %c0_i32_1 : i32, i32, i32
  }
  func.func @transform_2(%arg0: i32, %arg1: i32) -> (i32, i32) {
    %c0_i32 = arith.constant 0 : i32
    %c0_i32_0 = arith.constant 0 : i32
    %c0_i32_1 = arith.constant 0 : i32
    return %c0_i32, %c0_i32_0 : i32, i32
  }
  func.func @transform_3(%arg0: i32, %arg1: i32) -> (i32, i32) {
    %c0_i32 = arith.constant 0 : i32
    %c0_i32_0 = arith.constant 0 : i32
    %c0_i32_1 = arith.constant 0 : i32
    return %c0_i32, %c0_i32_0 : i32, i32
  }
  func.func @transform_4(%arg0: i32, %arg1: i32) -> (i32, i32, i32) {
    %c0_i32 = arith.constant 0 : i32
    %c0_i32_0 = arith.constant 0 : i32
    %c0_i32_1 = arith.constant 0 : i32
    %c0_i32_2 = arith.constant 0 : i32
    return %c0_i32, %c0_i32_0, %c0_i32_1 : i32, i32, i32
  }
  func.func @transform_5(%arg0: i32, %arg1: i32) -> (i32, i32) {
    %c0_i32 = arith.constant 0 : i32
    %c0_i32_0 = arith.constant 0 : i32
    %c0_i32_1 = arith.constant 0 : i32
    return %c0_i32, %c0_i32_0 : i32, i32
  }
  func.func @transform_6(%arg0: i32, %arg1: i32) -> (i32, i32) {
    %c0_i32 = arith.constant 0 : i32
    %c0_i32_0 = arith.constant 0 : i32
    %c0_i32_1 = arith.constant 0 : i32
    return %c0_i32, %c0_i32_0 : i32, i32
  }
  func.func @transform_7(%arg0: i32, %arg1: i32) -> (i32, i32, i32, i32) {
    %c0_i32 = arith.constant 0 : i32
    %c0_i32_0 = arith.constant 0 : i32
    %c0_i32_1 = arith.constant 0 : i32
    return %arg0, %arg1, %c0_i32, %c0_i32_0 : i32, i32, i32, i32
  }
}

</mosaic_0001>

<llo_original>
// kernel: vgg_block_forward.1
$region0: #{vgg_block_forward.1}
  #allocation0 [shape = 'u32[]', space=smem, size = 0x4, offset = 0x4, fixed_abs, tag = 'smem constant byte address 0x4 - core index']
  #allocation1 [shape = 'u32[144,128]{1,0:T(1,128)}', space=vmem, size = 0x12000, scoped, tag = 'internal scratch']
  #allocation2 [shape = 'bf16[2,20,24,128]{3,2,1,0:T(8,128)(2,1)}', space=vmem, size = 0x3c000, scoped, tag = 'scratch operand']
  #allocation3 [shape = 's32[2]{0}', space=sflag, size = 0x8, scoped, tag = 'scratch operand']
  #allocation4 [shape = 'bf16[18,32,128]{2,1,0:T(8,128)(2,1)}', space=vmem, size = 0x24000, scoped, tag = 'scratch operand']
  #allocation5 [shape = 's32[]', space=sflag, size = 0x4, offset = 0, fixed_abs, tag = 'sflag constant byte address 0x0 - dummy sync flag']
  #allocation6 [shape = 's32[]', space=sflag, size = 0x4, offset = 0, fixed_abs, tag = 'sflag constant byte address 0x0 - dummy sync flag']
  %s0 = inlined_call_operand.vmem [shape: bf16[2,20,24,128], index: 0, kind: input, shape index: {}]
  %s1 = inlined_call_operand.vmem [shape: bf16[9,128,128], index: 1, kind: input, shape index: {}]
  %s2 = inlined_call_operand.vmem [shape: f32[1,128], index: 2, kind: input, shape index: {}]
  %s3 = inlined_call_operand.vmem [shape: f32[1,128], index: 3, kind: input, shape index: {}]
  %s4 = inlined_call_operand.vmem [shape: bf16[9,128,128], index: 4, kind: input, shape index: {}]
  %s5 = inlined_call_operand.vmem [shape: f32[1,128], index: 5, kind: input, shape index: {}]
  %s6 = inlined_call_operand.vmem [shape: f32[1,128], index: 6, kind: input, shape index: {}]
  %s7 = inlined_call_operand.vmem [shape: bf16[2,16,16,128], index: 7, kind: output, shape index: {}]
  %s8 = sld [smem:[#allocation0]]
  $region137: #{vgg_block_forward.1} parent=0
    _
  %s10 = ssub.s32 1, %s8
  %s11 = scalar_select 0, %s10, %s8
  loop: start=0, step=1, limit=4
  $region2: #{vgg_block_forward.1} parent=0 // loop_pre_header
    _
  $region3: #{vgg_block_forward.1} parent=0 // loop_header
    %s13 = sphi 0, %s17
    %p14 = scmp.ge.s32.totalorder %s13, 4
    %s20 = sphi 0, %s32
    %s21 = sphi 0, %s28
    %s22 = sphi 0, %s20
    %s23 = sphi 0, %s21
    %s24 = sphi 0, %s22
    %s25 = sphi 0, %s23
    %s33 = sphi 0, %s33
    %s35 = sphi 0, %s33
    %s36 = sphi 0, %s35
    %s50 = sphi 0, %s36
    %s54 = sphi 0, %s54
    %s56 = sphi 0, %s54
    %s57 = sphi 0, %s56
    %s71 = sphi 0, %s57
    %s75 = sphi 0, %s75
    %s77 = sphi 0, %s75
    %s78 = sphi 0, %s77
    %s92 = sphi 0, %s78
    %s96 = sphi 0, %s96
    %s98 = sphi 0, %s96
    %s99 = sphi 0, %s98
    %s113 = sphi 0, %s99
    %s117 = sphi 0, %s117
    %s119 = sphi 0, %s117
    %s120 = sphi 0, %s119
    %s134 = sphi 0, %s120
    %s138 = sphi 0, %s138
    %s140 = sphi 0, %s138
    %s141 = sphi 0, %s140
    %s155 = sphi 0, %s141
    %s163 = sphi 0, %s165
    %s166 = sphi 0, %s163
    %s167 = sphi 0, %s166
    %s183 = sphi 0, %s167
  $region4: #{vgg_block_forward.1} parent=0 // loop_header_branch
    %16 = sbr.rel (%p14) target = $region8
  $region5: #{vgg_block_forward.1} parent=0 // loop_body
    %s18 = ssub.s32 %s13, 1
    %s19 = ssub.s32 %s13, 2
    %s26 = sadd.s32 1, %s21
    %p27 = scmp.ge.s32.totalorder %s26, 1
    %s28 = scalar_select %p27, 0, %s26
    %s29 = sadd.s32 1, %s20
    %s30 = scalar_select %p27, %s29, %s20
    %p31 = scmp.ge.s32.totalorder %s30, 2
    %s32 = scalar_select %p31, 0, %s30
    %s34 = sadd.s32 %s33, 1
    %p37 = scmp.eq.s32.totalorder %s13, 1
    %p38 = scmp.ne.s32.totalorder %s33, %s35
    %p39 = scmp.eq.s32.totalorder %s13, 0
    %p40 = por %p38, %p39
    %p41 = scmp.ne.s32.totalorder %s33, %s35
    %p42 = scmp.eq.s32.totalorder %s18, 1
    %p43 = por %p41, %p42
    %p44 = scmp.ne.s32.totalorder %s35, %s36
    %p45 = scmp.eq.s32.totalorder %s18, 0
    %p46 = por %p44, %p45
    %p47 = scmp.ne.s32.totalorder %s35, %s36
    %p48 = scmp.eq.s32.totalorder %s19, 1
    %p49 = por %p47, %p48
    %p51 = scmp.ne.s32.totalorder %s36, %s50
    %p52 = scmp.eq.s32.totalorder %s19, 0
    %p53 = por %p51, %p52
    %s55 = sadd.s32 %s54, 1
    %p58 = scmp.eq.s32.totalorder %s13, 1
    %p59 = scmp.ne.s32.totalorder %s54, %s56
    %p60 = scmp.eq.s32.totalorder %s13, 0
    %p61 = por %p59, %p60
    %p62 = scmp.ne.s32.totalorder %s54, %s56
    %p63 = scmp.eq.s32.totalorder %s18, 1
    %p64 = por %p62, %p63
    %p65 = scmp.ne.s32.totalorder %s56, %s57
    %p66 = scmp.eq.s32.totalorder %s18, 0
    %p67 = por %p65, %p66
    %p68 = scmp.ne.s32.totalorder %s56, %s57
    %p69 = scmp.eq.s32.totalorder %s19, 1
    %p70 = por %p68, %p69
    %p72 = scmp.ne.s32.totalorder %s57, %s71
    %p73 = scmp.eq.s32.totalorder %s19, 0
    %p74 = por %p72, %p73
    %s76 = sadd.s32 %s75, 1
    %p79 = scmp.eq.s32.totalorder %s13, 1
    %p80 = scmp.ne.s32.totalorder %s75, %s77
    %p81 = scmp.eq.s32.totalorder %s13, 0
    %p82 = por %p80, %p81
    %p83 = scmp.ne.s32.totalorder %s75, %s77
    %p84 = scmp.eq.s32.totalorder %s18, 1
    %p85 = por %p83, %p84
    %p86 = scmp.ne.s32.totalorder %s77, %s78
    %p87 = scmp.eq.s32.totalorder %s18, 0
    %p88 = por %p86, %p87
    %p89 = scmp.ne.s32.totalorder %s77, %s78
    %p90 = scmp.eq.s32.totalorder %s19, 1
    %p91 = por %p89, %p90
    %p93 = scmp.ne.s32.totalorder %s78, %s92
    %p94 = scmp.eq.s32.totalorder %s19, 0
    %p95 = por %p93, %p94
    %s97 = sadd.s32 %s96, 1
    %p100 = scmp.eq.s32.totalorder %s13, 1
    %p101 = scmp.ne.s32.totalorder %s96, %s98
    %p102 = scmp.eq.s32.totalorder %s13, 0
    %p103 = por %p101, %p102
    %p104 = scmp.ne.s32.totalorder %s96, %s98
    %p105 = scmp.eq.s32.totalorder %s18, 1
    %p106 = por %p104, %p105
    %p107 = scmp.ne.s32.totalorder %s98, %s99
    %p108 = scmp.eq.s32.totalorder %s18, 0
    %p109 = por %p107, %p108
    %p110 = scmp.ne.s32.totalorder %s98, %s99
    %p111 = scmp.eq.s32.totalorder %s19, 1
    %p112 = por %p110, %p111
    %p114 = scmp.ne.s32.totalorder %s99, %s113
    %p115 = scmp.eq.s32.totalorder %s19, 0
    %p116 = por %p114, %p115
    %s118 = sadd.s32 %s117, 1
    %p121 = scmp.eq.s32.totalorder %s13, 1
    %p122 = scmp.ne.s32.totalorder %s117, %s119
    %p123 = scmp.eq.s32.totalorder %s13, 0
    %p124 = por %p122, %p123
    %p125 = scmp.ne.s32.totalorder %s117, %s119
    %p126 = scmp.eq.s32.totalorder %s18, 1
    %p127 = por %p125, %p126
    %p128 = scmp.ne.s32.totalorder %s119, %s120
    %p129 = scmp.eq.s32.totalorder %s18, 0
    %p130 = por %p128, %p129
    %p131 = scmp.ne.s32.totalorder %s119, %s120
    %p132 = scmp.eq.s32.totalorder %s19, 1
    %p133 = por %p131, %p132
    %p135 = scmp.ne.s32.totalorder %s120, %s134
    %p136 = scmp.eq.s32.totalorder %s19, 0
    %p137 = por %p135, %p136
    %s139 = sadd.s32 %s138, 1
    %p142 = scmp.eq.s32.totalorder %s13, 1
    %p143 = scmp.ne.s32.totalorder %s138, %s140
    %p144 = scmp.eq.s32.totalorder %s13, 0
    %p145 = por %p143, %p144
    %p146 = scmp.ne.s32.totalorder %s138, %s140
    %p147 = scmp.eq.s32.totalorder %s18, 1
    %p148 = por %p146, %p147
    %p149 = scmp.ne.s32.totalorder %s140, %s141
    %p150 = scmp.eq.s32.totalorder %s18, 0
    %p151 = por %p149, %p150
    %p152 = scmp.ne.s32.totalorder %s140, %s141
    %p153 = scmp.eq.s32.totalorder %s19, 1
    %p154 = por %p152, %p153
    %p156 = scmp.ne.s32.totalorder %s141, %s155
    %p157 = scmp.eq.s32.totalorder %s19, 0
    %p158 = por %p156, %p157
    %s159 = ssub.s32 %s20, %s32
    %s160 = ssub.s32 %s21, %s28
    %s161 = sor.u32 %s159, %s160
    %p162 = scmp.eq.s32.totalorder %s161, 0
    %s164 = sadd.s32 %s163, 1
    %s165 = scalar_select %p162, %s163, %s164
    %p168 = pneg %p162
    %p169 = scmp.eq.s32.totalorder %s13, 1
    %p170 = por %p168, %p169
    %p171 = scmp.ne.s32.totalorder %s163, %s166
    %p172 = scmp.eq.s32.totalorder %s13, 0
    %p173 = por %p171, %p172
    %p174 = scmp.ne.s32.totalorder %s163, %s166
    %p175 = scmp.eq.s32.totalorder %s18, 1
    %p176 = por %p174, %p175
    %p177 = scmp.ne.s32.totalorder %s166, %s167
    %p178 = scmp.eq.s32.totalorder %s18, 0
    %p179 = por %p177, %p178
    %p180 = scmp.ne.s32.totalorder %s166, %s167
    %p181 = scmp.eq.s32.totalorder %s19, 1
    %p182 = por %p180, %p181
    %p184 = scmp.ne.s32.totalorder %s167, %s183
    %p185 = scmp.eq.s32.totalorder %s19, 0
    %p186 = por %p184, %p185
    %p187 = scmp.le.s32.totalorder 1, %s13
    %p188 = scmp.lt.s32.totalorder %s13, 3
    %p189 = pnand %p187, %p188
    %p190 = pneg %p189
    // Predicated region
    $region9: #{vgg_block_forward.1} parent=5 // pred_check
      _
    $region10: #{vgg_block_forward.1} parent=5 // pred_check_branch
      %192 = sbr.rel (%p189) target = $region12
    $region11: #{vgg_block_forward.1} parent=5 // pred_region
      %s193 = ssub.s32 %s13, 1
      // Predicated region
      $region13: #{vgg_block_forward.1} parent=11 // pred_check
        %p194 = pneg %p46
      $region14: #{vgg_block_forward.1} parent=11 // pred_check_branch
        %196 = sbr.rel (%p194) target = $region16
      $region15: #{vgg_block_forward.1} parent=11 // pred_region
        _
      $region16: #{vgg_block_forward.1} parent=11 // pred_fallthru
        _
      // Predicated region
      $region17: #{vgg_block_forward.1} parent=11 // pred_check
        %p197 = pneg %p67
      $region18: #{vgg_block_forward.1} parent=11 // pred_check_branch
        %199 = sbr.rel (%p197) target = $region20
      $region19: #{vgg_block_forward.1} parent=11 // pred_region
        _
      $region20: #{vgg_block_forward.1} parent=11 // pred_fallthru
        _
      // Predicated region
      $region21: #{vgg_block_forward.1} parent=11 // pred_check
        %p200 = pneg %p88
      $region22: #{vgg_block_forward.1} parent=11 // pred_check_branch
        %202 = sbr.rel (%p200) target = $region24
      $region23: #{vgg_block_forward.1} parent=11 // pred_region
        _
      $region24: #{vgg_block_forward.1} parent=11 // pred_fallthru
        _
      // Predicated region
      $region25: #{vgg_block_forward.1} parent=11 // pred_check
        %p203 = pneg %p109
      $region26: #{vgg_block_forward.1} parent=11 // pred_check_branch
        %205 = sbr.rel (%p203) target = $region28
      $region27: #{vgg_block_forward.1} parent=11 // pred_region
        _
      $region28: #{vgg_block_forward.1} parent=11 // pred_fallthru
        _
      // Predicated region
      $region29: #{vgg_block_forward.1} parent=11 // pred_check
        %p206 = pneg %p130
      $region30: #{vgg_block_forward.1} parent=11 // pred_check_branch
        %208 = sbr.rel (%p206) target = $region32
      $region31: #{vgg_block_forward.1} parent=11 // pred_region
        _
      $region32: #{vgg_block_forward.1} parent=11 // pred_fallthru
        _
      // Predicated region
      $region33: #{vgg_block_forward.1} parent=11 // pred_check
        %p209 = pneg %p151
      $region34: #{vgg_block_forward.1} parent=11 // pred_check_branch
        %211 = sbr.rel (%p209) target = $region36
      $region35: #{vgg_block_forward.1} parent=11 // pred_region
        _
      $region36: #{vgg_block_forward.1} parent=11 // pred_fallthru
        _
    $region12: #{vgg_block_forward.1} parent=5 // pred_fallthru
      _
    %p212 = scmp.lt.s32.totalorder %s13, 2
    // Predicated region
    $region37: #{vgg_block_forward.1} parent=5 // pred_check
      %p213 = pneg %p212
    $region38: #{vgg_block_forward.1} parent=5 // pred_check_branch
      %215 = sbr.rel (%p213) target = $region40
    $region39: #{vgg_block_forward.1} parent=5 // pred_region
      _
    $region40: #{vgg_block_forward.1} parent=5 // pred_fallthru
      _
    %p216 = scmp.le.s32.totalorder 1, %s13
    %p217 = scmp.lt.s32.totalorder %s13, 3
    %p218 = pnand %p216, %p217
    %p219 = pneg %p218
    // Predicated region
    $region41: #{vgg_block_forward.1} parent=5 // pred_check
      _
    $region42: #{vgg_block_forward.1} parent=5 // pred_check_branch
      %221 = sbr.rel (%p218) target = $region44
    $region43: #{vgg_block_forward.1} parent=5 // pred_region
      %s222 = ssub.s32 %s13, 1
      %p223 = pneg %p46
      %p224 = pneg %p43
      %p225 = pneg %p67
      %p226 = pneg %p64
      %p227 = pneg %p88
      %p228 = pneg %p85
      %p229 = pneg %p109
      %p230 = pneg %p106
      %p231 = pneg %p130
      %p232 = pneg %p127
      %p233 = pneg %p151
      %p234 = pneg %p148
      %p235 = pneg %p179
      %p236 = pneg %p176
      %s237 = smul.u32 16, %s23
      %p238 = scmp.lt.s32.totalorder %s22, 1
      %s239 = scalar_select %p238, %s22, 1
      %p240 = scmp.lt.s32.totalorder %s237, 15
      %s241 = scalar_select %p240, %s237, 15
      %s242 = smul.addr %s241, 2
      %s243 = smul.addr %s239, 32
      %s244 = sadd.s32 %s242, %s243
      %s245 = smul.addr %s244, 4
      %s246 = scalar_lea.vmem %s7, %s245
      %s247 = smul.u32 16, %s23
      %p248 = scmp.lt.s32.totalorder %s22, 1
      %s249 = scalar_select %p248, %s22, 1
      %p250 = scmp.lt.s32.totalorder %s247, 15
      %s251 = scalar_select %p250, %s247, 15
      %s252 = smul.addr %s251, 2
      %s253 = smul.addr %s249, 32
      %s254 = sadd.s32 %s252, %s253
      %s255 = smul.addr %s254, 4
      %s256 = scalar_lea.vmem %s7, %s255
      %s257 = smul.u32 16, %s23
      %p259 = scmp.lt.s32.totalorder %s23, 0
      %s260 = ssub.s32 0, %s23
      %s261 = scalar_select %p259, %s260, %s23
      %s262 = sand.u32 %s261, 1
      %s263 = ssub.s32 0, %s262
      %s264 = scalar_select %p259, %s263, %s262
      %p265 = scmp.ne.s32.totalorder %s264, 0
      %p266 = scmp.lt.s32.totalorder %s264, 0
      %p267 = pnand %p266, %p265
      %p268 = pneg %p267
      %s269 = sadd.s32 %s264, 2
      %s270 = scalar_select %p268, %s269, %s264
      %p271 = scmp.eq.s32.totalorder %s23, 0
      // Predicated region
      $region45: #{vgg_block_forward.1} parent=43 // pred_check
        %p272 = pneg %p271
      $region46: #{vgg_block_forward.1} parent=43 // pred_check_branch
        %274 = sbr.rel (%p272) target = $region48
      $region47: #{vgg_block_forward.1} parent=43 // pred_region
        %s275 = smul.u32 %s22, 60
        %s276 = smul.addr %s275, 4
        %s277 = scalar_lea.vmem %s0, %s276
        %p279 = scmp.lt.u32.totalorder 240, 8
        %p280 = pneg %p279
        // Predicated region
        $region49: #{vgg_block_forward.1} parent=47 // pred_check
          _
        $region50: #{vgg_block_forward.1} parent=47 // pred_check_branch
          %282 = sbr.rel (%p279) target = $region52
        $region51: #{vgg_block_forward.1} parent=47 // pred_region
          %s298 = sand.u32 240, 7
          %p299 = scmp.eq.s32.totalorder %s298, 0
          // Predicated region
          $region64: #{vgg_block_forward.1} parent=51 // pred_check
            %p300 = pneg %p299
          $region65: #{vgg_block_forward.1} parent=51 // pred_check_branch
            %302 = sbr.rel (%p300) target = $region67
          $region66: #{vgg_block_forward.1} parent=51 // pred_region
            loop: start=0, step=1, limit=1
            $region68: #{vgg_block_forward.1} parent=66 // loop_pre_header
              _
            $region69: #{vgg_block_forward.1} parent=66 // loop_header
              %s304 = sphi 0, %s308
              %p305 = scmp.ge.s32.totalorder %s304, 1
              %s309 = sphi %s277, %s277
              %s310 = sphi [#allocation2], [#allocation2]
            $region70: #{vgg_block_forward.1} parent=66 // loop_header_branch
              %307 = sbr.rel (%p305) target = $region74
            $region71: #{vgg_block_forward.1} parent=66 // loop_body
              %v311 = vld [vmem:[%s309] sm:$0xff]
              %312 = vst [vmem:[%s310] sm:$0xff] %v311
              %v313 = vld [vmem:[%s309 + $0x8] sm:$0xff]
              %314 = vst [vmem:[%s310 + $0x8] sm:$0xff] %v313
              %v315 = vld [vmem:[%s309 + $0x10] sm:$0xff]
              %316 = vst [vmem:[%s310 + $0x10] sm:$0xff] %v315
              %v317 = vld [vmem:[%s309 + $0x18] sm:$0xff]
              %318 = vst [vmem:[%s310 + $0x18] sm:$0xff] %v317
              %v319 = vld [vmem:[%s309 + $0x20] sm:$0xff]
              %320 = vst [vmem:[%s310 + $0x20] sm:$0xff] %v319
              %v321 = vld [vmem:[%s309 + $0x28] sm:$0xff]
              %322 = vst [vmem:[%s310 + $0x28] sm:$0xff] %v321
              %v323 = vld [vmem:[%s309 + $0x30] sm:$0xff]
              %324 = vst [vmem:[%s310 + $0x30] sm:$0xff] %v323
              %v325 = vld [vmem:[%s309 + $0x38] sm:$0xff]
              %326 = vst [vmem:[%s310 + $0x38] sm:$0xff] %v325
              %v327 = vld [vmem:[%s309 + $0x40] sm:$0xff]
              %328 = vst [vmem:[%s310 + $0x40] sm:$0xff] %v327
              %v329 = vld [vmem:[%s309 + $0x48] sm:$0xff]
              %330 = vst [vmem:[%s310 + $0x48] sm:$0xff] %v329
              %v331 = vld [vmem:[%s309 + $0x50] sm:$0xff]
              %332 = vst [vmem:[%s310 + $0x50] sm:$0xff] %v331
              %v333 = vld [vmem:[%s309 + $0x58] sm:$0xff]
              %334 = vst [vmem:[%s310 + $0x58] sm:$0xff] %v333
              %v335 = vld [vmem:[%s309 + $0x60] sm:$0xff]
              %336 = vst [vmem:[%s310 + $0x60] sm:$0xff] %v335
              %v337 = vld [vmem:[%s309 + $0x68] sm:$0xff]
              %338 = vst [vmem:[%s310 + $0x68] sm:$0xff] %v337
              %v339 = vld [vmem:[%s309 + $0x70] sm:$0xff]
              %340 = vst [vmem:[%s310 + $0x70] sm:$0xff] %v339
              %v341 = vld [vmem:[%s309 + $0x78] sm:$0xff]
              %342 = vst [vmem:[%s310 + $0x78] sm:$0xff] %v341
              %v343 = vld [vmem:[%s309 + $0x80] sm:$0xff]
              %344 = vst [vmem:[%s310 + $0x80] sm:$0xff] %v343
              %v345 = vld [vmem:[%s309 + $0x88] sm:$0xff]
              %346 = vst [vmem:[%s310 + $0x88] sm:$0xff] %v345
              %v347 = vld [vmem:[%s309 + $0x90] sm:$0xff]
              %348 = vst [vmem:[%s310 + $0x90] sm:$0xff] %v347
              %v349 = vld [vmem:[%s309 + $0x98] sm:$0xff]
              %350 = vst [vmem:[%s310 + $0x98] sm:$0xff] %v349
              %v351 = vld [vmem:[%s309 + $0xa0] sm:$0xff]
              %352 = vst [vmem:[%s310 + $0xa0] sm:$0xff] %v351
              %v353 = vld [vmem:[%s309 + $0xa8] sm:$0xff]
              %354 = vst [vmem:[%s310 + $0xa8] sm:$0xff] %v353
              %v355 = vld [vmem:[%s309 + $0xb0] sm:$0xff]
              %356 = vst [vmem:[%s310 + $0xb0] sm:$0xff] %v355
              %v357 = vld [vmem:[%s309 + $0xb8] sm:$0xff]
              %358 = vst [vmem:[%s310 + $0xb8] sm:$0xff] %v357
              %v359 = vld [vmem:[%s309 + $0xc0] sm:$0xff]
              %360 = vst [vmem:[%s310 + $0xc0] sm:$0xff] %v359
              %v361 = vld [vmem:[%s309 + $0xc8] sm:$0xff]
              %362 = vst [vmem:[%s310 + $0xc8] sm:$0xff] %v361
              %v363 = vld [vmem:[%s309 + $0xd0] sm:$0xff]
              %364 = vst [vmem:[%s310 + $0xd0] sm:$0xff] %v363
              %v365 = vld [vmem:[%s309 + $0xd8] sm:$0xff]
              %366 = vst [vmem:[%s310 + $0xd8] sm:$0xff] %v365
              %v367 = vld [vmem:[%s309 + $0xe0] sm:$0xff]
              %368 = vst [vmem:[%s310 + $0xe0] sm:$0xff] %v367
              %v369 = vld [vmem:[%s309 + $0xe8] sm:$0xff]
              %370 = vst [vmem:[%s310 + $0xe8] sm:$0xff] %v369
            $region72: #{vgg_block_forward.1} parent=66 // loop_footer
              %s308 = sadd.s32 1, %s304
            $region73: #{vgg_block_forward.1} parent=66 // loop_footer_branch
              %303 = sbr.rel target = $region69
            $region74: #{vgg_block_forward.1} parent=66 // loop_exit
              _
          $region67: #{vgg_block_forward.1} parent=51 // pred_fallthru
            _
          %p371 = pneg %p299
          // Predicated region
          $region75: #{vgg_block_forward.1} parent=51 // pred_check
            _
          $region76: #{vgg_block_forward.1} parent=51 // pred_check_branch
            %373 = sbr.rel (%p299) target = $region78
          $region77: #{vgg_block_forward.1} parent=51 // pred_region
            %s374 = sand.u32 240, 7
          $region78: #{vgg_block_forward.1} parent=51 // pred_fallthru
            _
        $region52: #{vgg_block_forward.1} parent=47 // pred_fallthru
          _
        // Predicated region
        $region53: #{vgg_block_forward.1} parent=47 // pred_check
          %p283 = pneg %p279
        $region54: #{vgg_block_forward.1} parent=47 // pred_check_branch
          %285 = sbr.rel (%p283) target = $region56
        $region55: #{vgg_block_forward.1} parent=47 // pred_region
          %s286 = sshll.u32 1, 240
          %s287 = ssub.s32 %s286, 1
          loop: start=0, step=1, limit=1
          $region57: #{vgg_block_forward.1} parent=55 // loop_pre_header
            _
          $region58: #{vgg_block_forward.1} parent=55 // loop_header
            %s289 = sphi 0, %s293
            %p290 = scmp.ge.s32.totalorder %s289, 1
            %s294 = sphi %s277, %s277
            %s295 = sphi [#allocation2], [#allocation2]
          $region59: #{vgg_block_forward.1} parent=55 // loop_header_branch
            %292 = sbr.rel (%p290) target = $region63
          $region60: #{vgg_block_forward.1} parent=55 // loop_body
            %v296 = vld [vmem:[%s294] sm:%s287]
            %297 = vst [vmem:[%s295] sm:%s287] %v296
          $region61: #{vgg_block_forward.1} parent=55 // loop_footer
            %s293 = sadd.s32 1, %s289
          $region62: #{vgg_block_forward.1} parent=55 // loop_footer_branch
            %288 = sbr.rel target = $region58
          $region63: #{vgg_block_forward.1} parent=55 // loop_exit
            _
        $region56: #{vgg_block_forward.1} parent=47 // pred_fallthru
          _
        // Predicated region
        $region79: #{vgg_block_forward.1} parent=47 // pred_check
          _
        $region80: #{vgg_block_forward.1} parent=47 // pred_check_branch
          %377 = sbr.rel (0) target = $region82
        $region81: #{vgg_block_forward.1} parent=47 // pred_region
          %378 = vsyncadd [#allocation3], 3840
        $region82: #{vgg_block_forward.1} parent=47 // pred_fallthru
          _
        %vm379 = vcmask 1043459
        %vm380 = vsmask.f32 7950
        %vm381 = vmand %vm379, %vm380
        %v382 = vld [vmem:[#allocation4] sm:$0x8]
        %v383 = vsel %vm381, 0, %v382
        %384 = vst [vmem:[#allocation4] sm:$0x8] %v383
        %v385 = vld [vmem:[#allocation4 + $0x10] sm:$0x8]
        %v386 = vsel %vm381, 0, %v385
        %387 = vst [vmem:[#allocation4 + $0x10] sm:$0x8] %v386
        %v388 = vld [vmem:[#allocation4 + $0x20] sm:$0x8]
        %v389 = vsel %vm381, 0, %v388
        %390 = vst [vmem:[#allocation4 + $0x20] sm:$0x8] %v389
        %v391 = vld [vmem:[#allocation4 + $0x30] sm:$0x8]
        %v392 = vsel %vm381, 0, %v391
        %393 = vst [vmem:[#allocation4 + $0x30] sm:$0x8] %v392
        %v394 = vld [vmem:[#allocation4 + $0x40] sm:$0x8]
        %v395 = vsel %vm381, 0, %v394
        %396 = vst [vmem:[#allocation4 + $0x40] sm:$0x8] %v395
        %v397 = vld [vmem:[#allocation4 + $0x50] sm:$0x8]
        %v398 = vsel %vm381, 0, %v397
        %399 = vst [vmem:[#allocation4 + $0x50] sm:$0x8] %v398
        %v400 = vld [vmem:[#allocation4 + $0x60] sm:$0x8]
        %v401 = vsel %vm381, 0, %v400
        %402 = vst [vmem:[#allocation4 + $0x60] sm:$0x8] %v401
        %v403 = vld [vmem:[#allocation4 + $0x70] sm:$0x8]
        %v404 = vsel %vm381, 0, %v403
        %405 = vst [vmem:[#allocation4 + $0x70] sm:$0x8] %v404
        %v406 = vld [vmem:[#allocation4 + $0x80] sm:$0x8]
        %v407 = vsel %vm381, 0, %v406
        %408 = vst [vmem:[#allocation4 + $0x80] sm:$0x8] %v407
        %v409 = vld [vmem:[#allocation4 + $0x90] sm:$0x8]
        %v410 = vsel %vm381, 0, %v409
        %411 = vst [vmem:[#allocation4 + $0x90] sm:$0x8] %v410
        %v412 = vld [vmem:[#allocation4 + $0xa0] sm:$0x8]
        %v413 = vsel %vm381, 0, %v412
        %414 = vst [vmem:[#allocation4 + $0xa0] sm:$0x8] %v413
        %v415 = vld [vmem:[#allocation4 + $0xb0] sm:$0x8]
        %v416 = vsel %vm381, 0, %v415
        %417 = vst [vmem:[#allocation4 + $0xb0] sm:$0x8] %v416
        %v418 = vld [vmem:[#allocation4 + $0xc0] sm:$0x8]
        %v419 = vsel %vm381, 0, %v418
        %420 = vst [vmem:[#allocation4 + $0xc0] sm:$0x8] %v419
        %v421 = vld [vmem:[#allocation4 + $0xd0] sm:$0x8]
        %v422 = vsel %vm381, 0, %v421
        %423 = vst [vmem:[#allocation4 + $0xd0] sm:$0x8] %v422
        %v424 = vld [vmem:[#allocation4 + $0xe0] sm:$0x8]
        %v425 = vsel %vm381, 0, %v424
        %426 = vst [vmem:[#allocation4 + $0xe0] sm:$0x8] %v425
        %v427 = vld [vmem:[#allocation4 + $0xf0] sm:$0x8]
        %v428 = vsel %vm381, 0, %v427
        %429 = vst [vmem:[#allocation4 + $0xf0] sm:$0x8] %v428
        %v430 = vld [vmem:[#allocation4 + $0x100] sm:$0x8]
        %v431 = vsel %vm381, 0, %v430
        %432 = vst [vmem:[#allocation4 + $0x100] sm:$0x8] %v431
        %v433 = vld [vmem:[#allocation4 + $0x110] sm:$0x8]
        %v434 = vsel %vm381, 0, %v433
        %435 = vst [vmem:[#allocation4 + $0x110] sm:$0x8] %v434
        %vm436 = vcmask 1040384
        %vm437 = vsmask.f32 256
        %vm438 = vmand %vm436, %vm437
        %v439 = vld [vmem:[#allocation4 + $0xc] sm:$0x1]
        %v440 = vsel %vm438, 0, %v439
        %441 = vst [vmem:[#allocation4 + $0xc] sm:$0x1] %v440
        %v442 = vld [vmem:[#allocation4 + $0x1c] sm:$0x1]
        %v443 = vsel %vm438, 0, %v442
        %444 = vst [vmem:[#allocation4 + $0x1c] sm:$0x1] %v443
        %v445 = vld [vmem:[#allocation4 + $0x2c] sm:$0x1]
        %v446 = vsel %vm438, 0, %v445
        %447 = vst [vmem:[#allocation4 + $0x2c] sm:$0x1] %v446
        %v448 = vld [vmem:[#allocation4 + $0x3c] sm:$0x1]
        %v449 = vsel %vm438, 0, %v448
        %450 = vst [vmem:[#allocation4 + $0x3c] sm:$0x1] %v449
        %v451 = vld [vmem:[#allocation4 + $0x4c] sm:$0x1]
        %v452 = vsel %vm438, 0, %v451
        %453 = vst [vmem:[#allocation4 + $0x4c] sm:$0x1] %v452
        %v454 = vld [vmem:[#allocation4 + $0x5c] sm:$0x1]
        %v455 = vsel %vm438, 0, %v454
        %456 = vst [vmem:[#allocation4 + $0x5c] sm:$0x1] %v455
        %v457 = vld [vmem:[#allocation4 + $0x6c] sm:$0x1]
        %v458 = vsel %vm438, 0, %v457
        %459 = vst [vmem:[#allocation4 + $0x6c] sm:$0x1] %v458
        %v460 = vld [vmem:[#allocation4 + $0x7c] sm:$0x1]
        %v461 = vsel %vm438, 0, %v460
        %462 = vst [vmem:[#allocation4 + $0x7c] sm:$0x1] %v461
        %v463 = vld [vmem:[#allocation4 + $0x8c] sm:$0x1]
        %v464 = vsel %vm438, 0, %v463
        %465 = vst [vmem:[#allocation4 + $0x8c] sm:$0x1] %v464
        %v466 = vld [vmem:[#allocation4 + $0x9c] sm:$0x1]
        %v467 = vsel %vm438, 0, %v466
        %468 = vst [vmem:[#allocation4 + $0x9c] sm:$0x1] %v467
        %v469 = vld [vmem:[#allocation4 + $0xac] sm:$0x1]
        %v470 = vsel %vm438, 0, %v469
        %471 = vst [vmem:[#allocation4 + $0xac] sm:$0x1] %v470
        %v472 = vld [vmem:[#allocation4 + $0xbc] sm:$0x1]
        %v473 = vsel %vm438, 0, %v472
        %474 = vst [vmem:[#allocation4 + $0xbc] sm:$0x1] %v473
        %v475 = vld [vmem:[#allocation4 + $0xcc] sm:$0x1]
        %v476 = vsel %vm438, 0, %v475
        %477 = vst [vmem:[#allocation4 + $0xcc] sm:$0x1] %v476
        %v478 = vld [vmem:[#allocation4 + $0xdc] sm:$0x1]
        %v479 = vsel %vm438, 0, %v478
        %480 = vst [vmem:[#allocation4 + $0xdc] sm:$0x1] %v479
        %v481 = vld [vmem:[#allocation4 + $0xec] sm:$0x1]
        %v482 = vsel %vm438, 0, %v481
        %483 = vst [vmem:[#allocation4 + $0xec] sm:$0x1] %v482
        %v484 = vld [vmem:[#allocation4 + $0xfc] sm:$0x1]
        %v485 = vsel %vm438, 0, %v484
        %486 = vst [vmem:[#allocation4 + $0xfc] sm:$0x1] %v485
        %v487 = vld [vmem:[#allocation4 + $0x10c] sm:$0x1]
        %v488 = vsel %vm438, 0, %v487
        %489 = vst [vmem:[#allocation4 + $0x10c] sm:$0x1] %v488
        %v490 = vld [vmem:[#allocation4 + $0x11c] sm:$0x1]
        %v491 = vsel %vm438, 0, %v490
        %492 = vst [vmem:[#allocation4 + $0x11c] sm:$0x1] %v491
      $region48: #{vgg_block_forward.1} parent=43 // pred_fallthru
        _
      %s493 = smul.u32 %s270, 60
      %s494 = smul.addr %s493, 4
      %s495 = scalar_lea.vmem [#allocation2], %s494
      %s496 = scalar_lea.sflag [#allocation3], %s270
      %s497 = smul.u32 4, 20
      %s498 = smul.u32 %s497, 3
      %s499 = smul.u32 %s498, 1
      %s500 = sshll.u32 %s499, 4
      %501 = dma.done %s496, %s500
      %s502 = sadd.s32 %s23, 1
      %p503 = scmp.lt.s32.totalorder %s502, 1
      // Predicated region
      $region83: #{vgg_block_forward.1} parent=43 // pred_check
        %p504 = pneg %p503
      $region84: #{vgg_block_forward.1} parent=43 // pred_check_branch
        %506 = sbr.rel (%p504) target = $region86
      $region85: #{vgg_block_forward.1} parent=43 // pred_region
        %s507 = ssub.s32 1, %s270
        %s508 = smul.u32 %s502, 16
        %s509 = smul.u32 %s508, 3
        %s510 = smul.u32 %s22, 60
        %s511 = sadd.s32 %s509, %s510
        %s512 = smul.addr %s511, 4
        %s513 = scalar_lea.vmem %s0, %s512
        %s514 = smul.u32 %s507, 60
        %s515 = smul.addr %s514, 4
        %s516 = scalar_lea.vmem [#allocation2], %s515
        %s517 = scalar_lea.sflag [#allocation3], %s507
        %p519 = scmp.lt.u32.totalorder 240, 8
        %p520 = pneg %p519
        // Predicated region
        $region87: #{vgg_block_forward.1} parent=85 // pred_check
          _
        $region88: #{vgg_block_forward.1} parent=85 // pred_check_branch
          %522 = sbr.rel (%p519) target = $region90
        $region89: #{vgg_block_forward.1} parent=85 // pred_region
          %s538 = sand.u32 240, 7
          %p539 = scmp.eq.s32.totalorder %s538, 0
          // Predicated region
          $region102: #{vgg_block_forward.1} parent=89 // pred_check
            %p540 = pneg %p539
          $region103: #{vgg_block_forward.1} parent=89 // pred_check_branch
            %542 = sbr.rel (%p540) target = $region105
          $region104: #{vgg_block_forward.1} parent=89 // pred_region
            loop: start=0, step=1, limit=1
            $region106: #{vgg_block_forward.1} parent=104 // loop_pre_header
              _
            $region107: #{vgg_block_forward.1} parent=104 // loop_header
              %s544 = sphi 0, %s548
              %p545 = scmp.ge.s32.totalorder %s544, 1
              %s549 = sphi %s513, %s513
              %s550 = sphi %s516, %s516
            $region108: #{vgg_block_forward.1} parent=104 // loop_header_branch
              %547 = sbr.rel (%p545) target = $region112
            $region109: #{vgg_block_forward.1} parent=104 // loop_body
              %v551 = vld [vmem:[%s549] sm:$0xff]
              %552 = vst [vmem:[%s550] sm:$0xff] %v551
              %v553 = vld [vmem:[%s549 + $0x8] sm:$0xff]
              %554 = vst [vmem:[%s550 + $0x8] sm:$0xff] %v553
              %v555 = vld [vmem:[%s549 + $0x10] sm:$0xff]
              %556 = vst [vmem:[%s550 + $0x10] sm:$0xff] %v555
              %v557 = vld [vmem:[%s549 + $0x18] sm:$0xff]
              %558 = vst [vmem:[%s550 + $0x18] sm:$0xff] %v557
              %v559 = vld [vmem:[%s549 + $0x20] sm:$0xff]
              %560 = vst [vmem:[%s550 + $0x20] sm:$0xff] %v559
              %v561 = vld [vmem:[%s549 + $0x28] sm:$0xff]
              %562 = vst [vmem:[%s550 + $0x28] sm:$0xff] %v561
              %v563 = vld [vmem:[%s549 + $0x30] sm:$0xff]
              %564 = vst [vmem:[%s550 + $0x30] sm:$0xff] %v563
              %v565 = vld [vmem:[%s549 + $0x38] sm:$0xff]
              %566 = vst [vmem:[%s550 + $0x38] sm:$0xff] %v565
              %v567 = vld [vmem:[%s549 + $0x40] sm:$0xff]
              %568 = vst [vmem:[%s550 + $0x40] sm:$0xff] %v567
              %v569 = vld [vmem:[%s549 + $0x48] sm:$0xff]
              %570 = vst [vmem:[%s550 + $0x48] sm:$0xff] %v569
              %v571 = vld [vmem:[%s549 + $0x50] sm:$0xff]
              %572 = vst [vmem:[%s550 + $0x50] sm:$0xff] %v571
              %v573 = vld [vmem:[%s549 + $0x58] sm:$0xff]
              %574 = vst [vmem:[%s550 + $0x58] sm:$0xff] %v573
              %v575 = vld [vmem:[%s549 + $0x60] sm:$0xff]
              %576 = vst [vmem:[%s550 + $0x60] sm:$0xff] %v575
              %v577 = vld [vmem:[%s549 + $0x68] sm:$0xff]
              %578 = vst [vmem:[%s550 + $0x68] sm:$0xff] %v577
              %v579 = vld [vmem:[%s549 + $0x70] sm:$0xff]
              %580 = vst [vmem:[%s550 + $0x70] sm:$0xff] %v579
              %v581 = vld [vmem:[%s549 + $0x78] sm:$0xff]
              %582 = vst [vmem:[%s550 + $0x78] sm:$0xff] %v581
              %v583 = vld [vmem:[%s549 + $0x80] sm:$0xff]
              %584 = vst [vmem:[%s550 + $0x80] sm:$0xff] %v583
              %v585 = vld [vmem:[%s549 + $0x88] sm:$0xff]
              %586 = vst [vmem:[%s550 + $0x88] sm:$0xff] %v585
              %v587 = vld [vmem:[%s549 + $0x90] sm:$0xff]
              %588 = vst [vmem:[%s550 + $0x90] sm:$0xff] %v587
              %v589 = vld [vmem:[%s549 + $0x98] sm:$0xff]
              %590 = vst [vmem:[%s550 + $0x98] sm:$0xff] %v589
              %v591 = vld [vmem:[%s549 + $0xa0] sm:$0xff]
              %592 = vst [vmem:[%s550 + $0xa0] sm:$0xff] %v591
              %v593 = vld [vmem:[%s549 + $0xa8] sm:$0xff]
              %594 = vst [vmem:[%s550 + $0xa8] sm:$0xff] %v593
              %v595 = vld [vmem:[%s549 + $0xb0] sm:$0xff]
              %596 = vst [vmem:[%s550 + $0xb0] sm:$0xff] %v595
              %v597 = vld [vmem:[%s549 + $0xb8] sm:$0xff]
              %598 = vst [vmem:[%s550 + $0xb8] sm:$0xff] %v597
              %v599 = vld [vmem:[%s549 + $0xc0] sm:$0xff]
              %600 = vst [vmem:[%s550 + $0xc0] sm:$0xff] %v599
              %v601 = vld [vmem:[%s549 + $0xc8] sm:$0xff]
              %602 = vst [vmem:[%s550 + $0xc8] sm:$0xff] %v601
              %v603 = vld [vmem:[%s549 + $0xd0] sm:$0xff]
              %604 = vst [vmem:[%s550 + $0xd0] sm:$0xff] %v603
              %v605 = vld [vmem:[%s549 + $0xd8] sm:$0xff]
              %606 = vst [vmem:[%s550 + $0xd8] sm:$0xff] %v605
              %v607 = vld [vmem:[%s549 + $0xe0] sm:$0xff]
              %608 = vst [vmem:[%s550 + $0xe0] sm:$0xff] %v607
              %v609 = vld [vmem:[%s549 + $0xe8] sm:$0xff]
              %610 = vst [vmem:[%s550 + $0xe8] sm:$0xff] %v609
            $region110: #{vgg_block_forward.1} parent=104 // loop_footer
              %s548 = sadd.s32 1, %s544
            $region111: #{vgg_block_forward.1} parent=104 // loop_footer_branch
              %543 = sbr.rel target = $region107
            $region112: #{vgg_block_forward.1} parent=104 // loop_exit
              _
          $region105: #{vgg_block_forward.1} parent=89 // pred_fallthru
            _
          %p611 = pneg %p539
          // Predicated region
          $region113: #{vgg_block_forward.1} parent=89 // pred_check
            _
          $region114: #{vgg_block_forward.1} parent=89 // pred_check_branch
            %613 = sbr.rel (%p539) target = $region116
          $region115: #{vgg_block_forward.1} parent=89 // pred_region
            %s614 = sand.u32 240, 7
          $region116: #{vgg_block_forward.1} parent=89 // pred_fallthru
            _
        $region90: #{vgg_block_forward.1} parent=85 // pred_fallthru
          _
        // Predicated region
        $region91: #{vgg_block_forward.1} parent=85 // pred_check
          %p523 = pneg %p519
        $region92: #{vgg_block_forward.1} parent=85 // pred_check_branch
          %525 = sbr.rel (%p523) target = $region94
        $region93: #{vgg_block_forward.1} parent=85 // pred_region
          %s526 = sshll.u32 1, 240
          %s527 = ssub.s32 %s526, 1
          loop: start=0, step=1, limit=1
          $region95: #{vgg_block_forward.1} parent=93 // loop_pre_header
            _
          $region96: #{vgg_block_forward.1} parent=93 // loop_header
            %s529 = sphi 0, %s533
            %p530 = scmp.ge.s32.totalorder %s529, 1
            %s534 = sphi %s513, %s513
            %s535 = sphi %s516, %s516
          $region97: #{vgg_block_forward.1} parent=93 // loop_header_branch
            %532 = sbr.rel (%p530) target = $region101
          $region98: #{vgg_block_forward.1} parent=93 // loop_body
            %v536 = vld [vmem:[%s534] sm:%s527]
            %537 = vst [vmem:[%s535] sm:%s527] %v536
          $region99: #{vgg_block_forward.1} parent=93 // loop_footer
            %s533 = sadd.s32 1, %s529
          $region100: #{vgg_block_forward.1} parent=93 // loop_footer_branch
            %528 = sbr.rel target = $region96
          $region101: #{vgg_block_forward.1} parent=93 // loop_exit
            _
        $region94: #{vgg_block_forward.1} parent=85 // pred_fallthru
          _
        // Predicated region
        $region117: #{vgg_block_forward.1} parent=85 // pred_check
          _
        $region118: #{vgg_block_forward.1} parent=85 // pred_check_branch
          %617 = sbr.rel (0) target = $region120
        $region119: #{vgg_block_forward.1} parent=85 // pred_region
          %618 = vsyncadd %s517, 3840
        $region120: #{vgg_block_forward.1} parent=85 // pred_fallthru
          _
      $region86: #{vgg_block_forward.1} parent=43 // pred_fallthru
        _
      %v619 = vld [vmem:[%s2] sm:$0x1]
      %v620 = vld [vmem:[%s3] sm:$0x1]
      %v621 = vld [vmem:[%s5] sm:$0x1]
      %v622 = vld [vmem:[%s6] sm:$0x1]
      %v623 = vld [vmem:[%s495] sm:$0xf]
      %v624 = vld [vmem:[%s495 + $0x4] sm:$0xf]
      %v625 = vld [vmem:[%s495 + $0xc] sm:$0xf]
      %v626 = vld [vmem:[%s495 + $0x10] sm:$0xf]
      %v627 = vld [vmem:[%s495 + $0x18] sm:$0xf]
      %v628 = vld [vmem:[%s495 + $0x1c] sm:$0xf]
      %v629 = vld [vmem:[%s495 + $0x24] sm:$0xf]
      %v630 = vld [vmem:[%s495 + $0x28] sm:$0xf]
      %v631 = vld [vmem:[%s495 + $0x30] sm:$0xf]
      %v632 = vld [vmem:[%s495 + $0x34] sm:$0xf]
      %v633 = vld [vmem:[%s495 + $0x3c] sm:$0xf]
      %v634 = vld [vmem:[%s495 + $0x40] sm:$0xf]
      %v635 = vld [vmem:[%s495 + $0x48] sm:$0xf]
      %v636 = vld [vmem:[%s495 + $0x4c] sm:$0xf]
      %v637 = vld [vmem:[%s495 + $0x54] sm:$0xf]
      %v638 = vld [vmem:[%s495 + $0x58] sm:$0xf]
      %v639 = vld [vmem:[%s495 + $0x60] sm:$0xf]
      %v640 = vld [vmem:[%s495 + $0x64] sm:$0xf]
      %v641 = vld [vmem:[%s1] sm:$0xf]
      %v642 = vld [vmem:[%s1 + $0x4] sm:$0xf]
      %v643 = vld [vmem:[%s1 + $0x8] sm:$0xf]
      %v644 = vld [vmem:[%s1 + $0xc] sm:$0xf]
      %v645 = vld [vmem:[%s1 + $0x10] sm:$0xf]
      %v646 = vld [vmem:[%s1 + $0x14] sm:$0xf]
      %v647 = vld [vmem:[%s1 + $0x18] sm:$0xf]
      %v648 = vld [vmem:[%s1 + $0x1c] sm:$0xf]
      %v649 = vld [vmem:[%s1 + $0x20] sm:$0xf]
      %v650 = vld [vmem:[%s1 + $0x24] sm:$0xf]
      %v651 = vld [vmem:[%s1 + $0x28] sm:$0xf]
      %v652 = vld [vmem:[%s1 + $0x2c] sm:$0xf]
      %v653 = vld [vmem:[%s1 + $0x30] sm:$0xf]
      %v654 = vld [vmem:[%s1 + $0x34] sm:$0xf]
      %v655 = vld [vmem:[%s1 + $0x38] sm:$0xf]
      %v656 = vld [vmem:[%s1 + $0x3c] sm:$0xf]
      %v657 = vld [vmem:[%s495 + $0x8] sm:$0x1]
      %v658 = vld [vmem:[%s495 + $0x14] sm:$0x1]
      %v659 = vld [vmem:[%s495 + $0x20] sm:$0x1]
      %v660 = vld [vmem:[%s495 + $0x2c] sm:$0x1]
      %v661 = vld [vmem:[%s495 + $0x38] sm:$0x1]
      %v662 = vld [vmem:[%s495 + $0x44] sm:$0x1]
      %v663 = vld [vmem:[%s495 + $0x50] sm:$0x1]
      %v664 = vld [vmem:[%s495 + $0x5c] sm:$0x1]
      %v665 = vld [vmem:[%s495 + $0x68] sm:$0x1]
      %vm666 = vsmask.f32 3328
      %vm667 = vsmask.f32 7440
      %vm668 = vmor %vm666, %vm667
      %v670 = vshrl.u32 %v623, 16
      %v672 = vrot.slane %v670, 4
      %v673 = vshll.u32 %v623, 16
      %v675 = vrot.slane %v673, 5
      %v676 = vor.u32 %v672, %v675
      %v677 = vrot.slane %v676, 4
      %v679 = vshll.u32 %v624, 16
      %v681 = vrot.slane %v679, 5
      %v682 = vsel %vm668, %v677, %v681
      %v683 = vshrl.u32 %v624, 16
      %v685 = vrot.slane %v683, 4
      %v686 = vor.u32 %v685, %v681
      %v687 = vrot.slane %v686, 4
      %v689 = vshll.u32 %v657, 16
      %v691 = vrot.slane %v689, 5
      %v692 = vsel %vm668, %v687, %v691
      %v694 = vshrl.u32 %v625, 16
      %v696 = vrot.slane %v694, 4
      %v697 = vshll.u32 %v625, 16
      %v699 = vrot.slane %v697, 5
      %v700 = vor.u32 %v696, %v699
      %v701 = vrot.slane %v700, 4
      %v703 = vshll.u32 %v626, 16
      %v705 = vrot.slane %v703, 5
      %v706 = vsel %vm668, %v701, %v705
      %v707 = vshrl.u32 %v626, 16
      %v709 = vrot.slane %v707, 4
      %v710 = vor.u32 %v709, %v705
      %v711 = vrot.slane %v710, 4
      %v713 = vshll.u32 %v658, 16
      %v715 = vrot.slane %v713, 5
      %v716 = vsel %vm668, %v711, %v715
      %v718 = vshrl.u32 %v627, 16
      %v720 = vrot.slane %v718, 4
      %v721 = vshll.u32 %v627, 16
      %v723 = vrot.slane %v721, 5
      %v724 = vor.u32 %v720, %v723
      %v725 = vrot.slane %v724, 4
      %v727 = vshll.u32 %v628, 16
      %v729 = vrot.slane %v727, 5
      %v730 = vsel %vm668, %v725, %v729
      %v731 = vshrl.u32 %v628, 16
      %v733 = vrot.slane %v731, 4
      %v734 = vor.u32 %v733, %v729
      %v735 = vrot.slane %v734, 4
      %v737 = vshll.u32 %v659, 16
      %v739 = vrot.slane %v737, 5
      %v740 = vsel %vm668, %v735, %v739
      %v742 = vshrl.u32 %v629, 16
      %v744 = vrot.slane %v742, 4
      %v745 = vshll.u32 %v629, 16
      %v747 = vrot.slane %v745, 5
      %v748 = vor.u32 %v744, %v747
      %v749 = vrot.slane %v748, 4
      %v751 = vshll.u32 %v630, 16
      %v753 = vrot.slane %v751, 5
      %v754 = vsel %vm668, %v749, %v753
      %v755 = vshrl.u32 %v630, 16
      %v757 = vrot.slane %v755, 4
      %v758 = vor.u32 %v757, %v753
      %v759 = vrot.slane %v758, 4
      %v761 = vshll.u32 %v660, 16
      %v763 = vrot.slane %v761, 5
      %v764 = vsel %vm668, %v759, %v763
      %v766 = vshrl.u32 %v631, 16
      %v768 = vrot.slane %v766, 4
      %v769 = vshll.u32 %v631, 16
      %v771 = vrot.slane %v769, 5
      %v772 = vor.u32 %v768, %v771
      %v773 = vrot.slane %v772, 4
      %v775 = vshll.u32 %v632, 16
      %v777 = vrot.slane %v775, 5
      %v778 = vsel %vm668, %v773, %v777
      %v779 = vshrl.u32 %v632, 16
      %v781 = vrot.slane %v779, 4
      %v782 = vor.u32 %v781, %v777
      %v783 = vrot.slane %v782, 4
      %v785 = vshll.u32 %v661, 16
      %v787 = vrot.slane %v785, 5
      %v788 = vsel %vm668, %v783, %v787
      %v790 = vshrl.u32 %v633, 16
      %v792 = vrot.slane %v790, 4
      %v793 = vshll.u32 %v633, 16
      %v795 = vrot.slane %v793, 5
      %v796 = vor.u32 %v792, %v795
      %v797 = vrot.slane %v796, 4
      %v799 = vshll.u32 %v634, 16
      %v801 = vrot.slane %v799, 5
      %v802 = vsel %vm668, %v797, %v801
      %v803 = vshrl.u32 %v634, 16
      %v805 = vrot.slane %v803, 4
      %v806 = vor.u32 %v805, %v801
      %v807 = vrot.slane %v806, 4
      %v809 = vshll.u32 %v662, 16
      %v811 = vrot.slane %v809, 5
      %v812 = vsel %vm668, %v807, %v811
      %v814 = vshrl.u32 %v635, 16
      %v816 = vrot.slane %v814, 4
      %v817 = vshll.u32 %v635, 16
      %v819 = vrot.slane %v817, 5
      %v820 = vor.u32 %v816, %v819
      %v821 = vrot.slane %v820, 4
      %v823 = vshll.u32 %v636, 16
      %v825 = vrot.slane %v823, 5
      %v826 = vsel %vm668, %v821, %v825
      %v827 = vshrl.u32 %v636, 16
      %v829 = vrot.slane %v827, 4
      %v830 = vor.u32 %v829, %v825
      %v831 = vrot.slane %v830, 4
      %v833 = vshll.u32 %v663, 16
      %v835 = vrot.slane %v833, 5
      %v836 = vsel %vm668, %v831, %v835
      %v838 = vshrl.u32 %v637, 16
      %v840 = vrot.slane %v838, 4
      %v841 = vshll.u32 %v637, 16
      %v843 = vrot.slane %v841, 5
      %v844 = vor.u32 %v840, %v843
      %v845 = vrot.slane %v844, 4
      %v847 = vshll.u32 %v638, 16
      %v849 = vrot.slane %v847, 5
      %v850 = vsel %vm668, %v845, %v849
      %v851 = vshrl.u32 %v638, 16
      %v853 = vrot.slane %v851, 4
      %v854 = vor.u32 %v853, %v849
      %v855 = vrot.slane %v854, 4
      %v857 = vshll.u32 %v664, 16
      %v859 = vrot.slane %v857, 5
      %v860 = vsel %vm668, %v855, %v859
      %v862 = vshrl.u32 %v639, 16
      %v864 = vrot.slane %v862, 4
      %v865 = vshll.u32 %v639, 16
      %v867 = vrot.slane %v865, 5
      %v868 = vor.u32 %v864, %v867
      %v869 = vrot.slane %v868, 4
      %v871 = vshll.u32 %v640, 16
      %v873 = vrot.slane %v871, 5
      %v874 = vsel %vm668, %v869, %v873
      %v875 = vshrl.u32 %v640, 16
      %v877 = vrot.slane %v875, 4
      %v878 = vor.u32 %v877, %v873
      %v879 = vrot.slane %v878, 4
      %v881 = vshll.u32 %v665, 16
      %v883 = vrot.slane %v881, 5
      %v884 = vsel %vm668, %v879, %v883
      %s885 = scalar_lea.vmem %s1, 64
      %v886 = vld [vmem:[%s885] sm:$0xf]
      %v887 = vld [vmem:[%s885 + $0x4] sm:$0xf]
      %v888 = vld [vmem:[%s885 + $0x8] sm:$0xf]
      %v889 = vld [vmem:[%s885 + $0xc] sm:$0xf]
      %v890 = vld [vmem:[%s885 + $0x10] sm:$0xf]
      %v891 = vld [vmem:[%s885 + $0x14] sm:$0xf]
      %v892 = vld [vmem:[%s885 + $0x18] sm:$0xf]
      %v893 = vld [vmem:[%s885 + $0x1c] sm:$0xf]
      %v894 = vld [vmem:[%s885 + $0x20] sm:$0xf]
      %v895 = vld [vmem:[%s885 + $0x24] sm:$0xf]
      %v896 = vld [vmem:[%s885 + $0x28] sm:$0xf]
      %v897 = vld [vmem:[%s885 + $0x2c] sm:$0xf]
      %v898 = vld [vmem:[%s885 + $0x30] sm:$0xf]
      %v899 = vld [vmem:[%s885 + $0x34] sm:$0xf]
      %v900 = vld [vmem:[%s885 + $0x38] sm:$0xf]
      %v901 = vld [vmem:[%s885 + $0x3c] sm:$0xf]
      %v902 = vunpack.c.l.b16 %v682
      %v903 = vunpack.c.l.b16 %v692
      %v904 = vunpack.c.l.b16 %v706
      %v905 = vunpack.c.l.b16 %v716
      %v906 = vunpack.c.l.b16 %v730
      %v907 = vunpack.c.l.b16 %v740
      %v908 = vunpack.c.l.b16 %v754
      %v909 = vunpack.c.l.b16 %v764
      %v910 = vunpack.c.l.b16 %v778
      %v911 = vunpack.c.l.b16 %v788
      %v912 = vunpack.c.l.b16 %v802
      %v913 = vunpack.c.l.b16 %v812
      %v914 = vunpack.c.l.b16 %v826
      %v915 = vunpack.c.l.b16 %v836
      %v916 = vunpack.c.l.b16 %v850
      %v917 = vunpack.c.l.b16 %v860
      %v918 = vunpack.c.l.b16 %v874
      %v919 = vunpack.c.l.b16 %v884
      %v920 = vpack.c.b16 %v903, %v902
      %v921 = vpack.c.b16 %v905, %v904
      %v922 = vpack.c.b16 %v907, %v906
      %v923 = vpack.c.b16 %v909, %v908
      %v924 = vpack.c.b16 %v911, %v910
      %v925 = vpack.c.b16 %v913, %v912
      %v926 = vpack.c.b16 %v915, %v914
      %v927 = vpack.c.b16 %v917, %v916
      %v928 = vpack.c.b16 %v919, %v918
      %v954 = vunpack.c.l.b16 %v886
      %v955 = vunpack.c.l.b16 %v887
      %v956 = vunpack.c.l.b16 %v888
      %v957 = vunpack.c.l.b16 %v889
      %v958 = vunpack.c.l.b16 %v890
      %v959 = vunpack.c.l.b16 %v891
      %v960 = vunpack.c.l.b16 %v892
      %v961 = vunpack.c.l.b16 %v893
      %v962 = vunpack.c.l.b16 %v894
      %v963 = vunpack.c.l.b16 %v895
      %v964 = vunpack.c.l.b16 %v896
      %v965 = vunpack.c.l.b16 %v897
      %v966 = vunpack.c.l.b16 %v898
      %v967 = vunpack.c.l.b16 %v899
      %v968 = vunpack.c.l.b16 %v900
      %v969 = vunpack.c.l.b16 %v901
      %v970 = vpack.c.b16 %v955, %v954
      %v971 = vpack.c.b16 %v957, %v956
      %v972 = vpack.c.b16 %v959, %v958
      %v973 = vpack.c.b16 %v961, %v960
      %v974 = vpack.c.b16 %v963, %v962
      %v975 = vpack.c.b16 %v965, %v964
      %v976 = vpack.c.b16 %v967, %v966
      %v977 = vpack.c.b16 %v969, %v968
      %986 = vmatprep.subr.bf16.mxu0 0
      %987 = vmatpush1.bf16.msra.mxu0 %v977
      %988 = vmatprep.subr.bf16.mxu0 0
      %989 = vmatpush1.bf16.msra.mxu0 %v976
      %990 = vmatprep.subr.bf16.mxu0 0
      %991 = vmatpush1.bf16.msra.mxu0 %v975
      %992 = vmatprep.subr.bf16.mxu0 0
      %993 = vmatpush1.bf16.msra.mxu0 %v974
      %994 = vmatprep.subr.bf16.mxu0 0
      %995 = vmatpush1.bf16.msra.mxu0 %v973
      %996 = vmatprep.subr.bf16.mxu0 0
      %997 = vmatpush1.bf16.msra.mxu0 %v972
      %998 = vmatprep.subr.bf16.mxu0 0
      %999 = vmatpush1.bf16.msra.mxu0 %v971
      %1000 = vmatprep.subr.bf16.mxu0 0
      %1001 = vmatpush1.bf16.msra.mxu0 %v970
      %1002 = vmatprep.subr.bf16.mxu0 0
      %1003 = vmatpush2.bf16.msra.mxu0 0
      %1004 = vmatprep.subr.bf16.mxu0 0
      %1005 = vmatpush2.bf16.msra.mxu0 0
      %1006 = vmatprep.subr.bf16.mxu0 0
      %1007 = vmatpush2.bf16.msra.mxu0 0
      %1008 = vmatprep.subr.bf16.mxu0 0
      %1009 = vmatpush2.bf16.msra.mxu0 0
      %1010 = vmatprep.subr.bf16.mxu0 0
      %1011 = vmatpush2.bf16.msra.mxu0 0
      %1012 = vmatprep.subr.bf16.mxu0 0
      %1013 = vmatpush2.bf16.msra.mxu0 0
      %1014 = vmatprep.subr.bf16.mxu0 0
      %1015 = vmatpush2.bf16.msra.mxu0 0
      %1016 = vmatprep.subr.bf16.mxu0 0
      %1017 = vmatpush2.bf16.msra.mxu0 0
      %1018 = vmatprep.mubr.bf16.mxu0 0
      %1019 = vmatmul.mubr.bf16.gmra.mxu0 %v920
      %v1020 = vpop.f32.mrf.mxu0
      %v1021 = vadd.f32 0.0, %v1020
      %v1022 = vpop.f32.mrf.mxu0
      %v1023 = vpop.f32.mrf.mxu0
      %v1024 = vadd.f32 0.0, %v1023
      %v1025 = vpop.f32.mrf.mxu0
      %1026 = vmatprep.mubr.bf16.mxu0 0
      %1027 = vmatmul.mubr.bf16.gmra.mxu0 %v921
      %v1028 = vpop.f32.mrf.mxu0
      %v1029 = vadd.f32 0.0, %v1028
      %v1030 = vpop.f32.mrf.mxu0
      %v1031 = vpop.f32.mrf.mxu0
      %v1032 = vadd.f32 0.0, %v1031
      %v1033 = vpop.f32.mrf.mxu0
      %1034 = vmatprep.mubr.bf16.mxu0 0
      %1035 = vmatmul.mubr.bf16.gmra.mxu0 %v922
      %v1036 = vpop.f32.mrf.mxu0
      %v1037 = vadd.f32 0.0, %v1036
      %v1038 = vpop.f32.mrf.mxu0
      %v1039 = vpop.f32.mrf.mxu0
      %v1040 = vadd.f32 0.0, %v1039
      %v1041 = vpop.f32.mrf.mxu0
      %1042 = vmatprep.mubr.bf16.mxu0 0
      %1043 = vmatmul.mubr.bf16.gmra.mxu0 %v923
      %v1044 = vpop.f32.mrf.mxu0
      %v1045 = vadd.f32 0.0, %v1044
      %v1046 = vpop.f32.mrf.mxu0
      %v1047 = vpop.f32.mrf.mxu0
      %v1048 = vadd.f32 0.0, %v1047
      %v1049 = vpop.f32.mrf.mxu0
      %1050 = vmatprep.mubr.bf16.mxu0 0
      %1051 = vmatmul.mubr.bf16.gmra.mxu0 %v924
      %v1052 = vpop.f32.mrf.mxu0
      %v1053 = vadd.f32 0.0, %v1052
      %v1054 = vpop.f32.mrf.mxu0
      %v1055 = vpop.f32.mrf.mxu0
      %v1056 = vadd.f32 0.0, %v1055
      %v1057 = vpop.f32.mrf.mxu0
      %1058 = vmatprep.mubr.bf16.mxu0 0
      %1059 = vmatmul.mubr.bf16.gmra.mxu0 %v925
      %v1060 = vpop.f32.mrf.mxu0
      %v1061 = vadd.f32 0.0, %v1060
      %v1062 = vpop.f32.mrf.mxu0
      %v1063 = vpop.f32.mrf.mxu0
      %v1064 = vadd.f32 0.0, %v1063
      %v1065 = vpop.f32.mrf.mxu0
      %1066 = vmatprep.mubr.bf16.mxu0 0
      %1067 = vmatmul.mubr.bf16.gmra.mxu0 %v926
      %v1068 = vpop.f32.mrf.mxu0
      %v1069 = vadd.f32 0.0, %v1068
      %v1070 = vpop.f32.mrf.mxu0
      %v1071 = vpop.f32.mrf.mxu0
      %v1072 = vadd.f32 0.0, %v1071
      %v1073 = vpop.f32.mrf.mxu0
      %1074 = vmatprep.mubr.bf16.mxu0 0
      %1075 = vmatmul.mubr.bf16.gmra.mxu0 %v927
      %v1076 = vpop.f32.mrf.mxu0
      %v1077 = vadd.f32 0.0, %v1076
      %v1078 = vpop.f32.mrf.mxu0
      %v1079 = vpop.f32.mrf.mxu0
      %v1080 = vadd.f32 0.0, %v1079
      %v1081 = vpop.f32.mrf.mxu0
      %1082 = vmatprep.mubr.bf16.mxu0 0
      %1083 = vmatmul.mubr.bf16.gmra.mxu0 %v928
      %v1084 = vpop.f32.mrf.mxu0
      %v1085 = vadd.f32 0.0, %v1084
      %v1086 = vpop.f32.mrf.mxu0
      %v1087 = vpop.f32.mrf.mxu0
      %v1088 = vadd.f32 0.0, %v1087
      %v1089 = vpop.f32.mrf.mxu0
      %1090 = vdwg.mxu0
      %v1109 = vunpack.c.l.b16 %v623
      %v1110 = vunpack.c.l.b16 %v624
      %v1111 = vunpack.c.l.b16 %v625
      %v1112 = vunpack.c.l.b16 %v626
      %v1113 = vunpack.c.l.b16 %v627
      %v1114 = vunpack.c.l.b16 %v628
      %v1115 = vunpack.c.l.b16 %v629
      %v1116 = vunpack.c.l.b16 %v630
      %v1117 = vunpack.c.l.b16 %v631
      %v1118 = vunpack.c.l.b16 %v632
      %v1119 = vunpack.c.l.b16 %v633
      %v1120 = vunpack.c.l.b16 %v634
      %v1121 = vunpack.c.l.b16 %v635
      %v1122 = vunpack.c.l.b16 %v636
      %v1123 = vunpack.c.l.b16 %v637
      %v1124 = vunpack.c.l.b16 %v638
      %v1125 = vunpack.c.l.b16 %v639
      %v1126 = vunpack.c.l.b16 %v640
      %v1127 = vpack.c.b16 %v1110, %v1109
      %v1128 = vpack.c.b16 %v1112, %v1111
      %v1129 = vpack.c.b16 %v1114, %v1113
      %v1130 = vpack.c.b16 %v1116, %v1115
      %v1131 = vpack.c.b16 %v1118, %v1117
      %v1132 = vpack.c.b16 %v1120, %v1119
      %v1133 = vpack.c.b16 %v1122, %v1121
      %v1134 = vpack.c.b16 %v1124, %v1123
      %v1135 = vpack.c.b16 %v1126, %v1125
      %v1161 = vunpack.c.l.b16 %v641
      %v1162 = vunpack.c.l.b16 %v642
      %v1163 = vunpack.c.l.b16 %v643
      %v1164 = vunpack.c.l.b16 %v644
      %v1165 = vunpack.c.l.b16 %v645
      %v1166 = vunpack.c.l.b16 %v646
      %v1167 = vunpack.c.l.b16 %v647
      %v1168 = vunpack.c.l.b16 %v648
      %v1169 = vunpack.c.l.b16 %v649
      %v1170 = vunpack.c.l.b16 %v650
      %v1171 = vunpack.c.l.b16 %v651
      %v1172 = vunpack.c.l.b16 %v652
      %v1173 = vunpack.c.l.b16 %v653
      %v1174 = vunpack.c.l.b16 %v654
      %v1175 = vunpack.c.l.b16 %v655
      %v1176 = vunpack.c.l.b16 %v656
      %v1177 = vpack.c.b16 %v1162, %v1161
      %v1178 = vpack.c.b16 %v1164, %v1163
      %v1179 = vpack.c.b16 %v1166, %v1165
      %v1180 = vpack.c.b16 %v1168, %v1167
      %v1181 = vpack.c.b16 %v1170, %v1169
      %v1182 = vpack.c.b16 %v1172, %v1171
      %v1183 = vpack.c.b16 %v1174, %v1173
      %v1184 = vpack.c.b16 %v1176, %v1175
      %1193 = vmatprep.subr.bf16.mxu0 0
      %1194 = vmatpush1.bf16.msra.mxu0 %v1184
      %1195 = vmatprep.subr.bf16.mxu0 0
      %1196 = vmatpush1.bf16.msra.mxu0 %v1183
      %1197 = vmatprep.subr.bf16.mxu0 0
      %1198 = vmatpush1.bf16.msra.mxu0 %v1182
      %1199 = vmatprep.subr.bf16.mxu0 0
      %1200 = vmatpush1.bf16.msra.mxu0 %v1181
      %1201 = vmatprep.subr.bf16.mxu0 0
      %1202 = vmatpush1.bf16.msra.mxu0 %v1180
      %1203 = vmatprep.subr.bf16.mxu0 0
      %1204 = vmatpush1.bf16.msra.mxu0 %v1179
      %1205 = vmatprep.subr.bf16.mxu0 0
      %1206 = vmatpush1.bf16.msra.mxu0 %v1178
      %1207 = vmatprep.subr.bf16.mxu0 0
      %1208 = vmatpush1.bf16.msra.mxu0 %v1177
      %1209 = vmatprep.subr.bf16.mxu0 0
      %1210 = vmatpush2.bf16.msra.mxu0 0
      %1211 = vmatprep.subr.bf16.mxu0 0
      %1212 = vmatpush2.bf16.msra.mxu0 0
      %1213 = vmatprep.subr.bf16.mxu0 0
      %1214 = vmatpush2.bf16.msra.mxu0 0
      %1215 = vmatprep.subr.bf16.mxu0 0
      %1216 = vmatpush2.bf16.msra.mxu0 0
      %1217 = vmatprep.subr.bf16.mxu0 0
      %1218 = vmatpush2.bf16.msra.mxu0 0
      %1219 = vmatprep.subr.bf16.mxu0 0
      %1220 = vmatpush2.bf16.msra.mxu0 0
      %1221 = vmatprep.subr.bf16.mxu0 0
      %1222 = vmatpush2.bf16.msra.mxu0 0
      %1223 = vmatprep.subr.bf16.mxu0 0
      %1224 = vmatpush2.bf16.msra.mxu0 0
      %1225 = vmatprep.mubr.bf16.mxu0 0
      %1226 = vmatmul.mubr.bf16.gmra.mxu0 %v1127
      %v1227 = vpop.f32.mrf.mxu0
      %v1228 = vadd.f32 %v1021, %v1227
      %v1229 = vpop.f32.mrf.mxu0
      %v1230 = vpop.f32.mrf.mxu0
      %v1231 = vadd.f32 %v1024, %v1230
      %v1232 = vpop.f32.mrf.mxu0
      %1233 = vmatprep.mubr.bf16.mxu0 0
      %1234 = vmatmul.mubr.bf16.gmra.mxu0 %v1128
      %v1235 = vpop.f32.mrf.mxu0
      %v1236 = vadd.f32 %v1029, %v1235
      %v1237 = vpop.f32.mrf.mxu0
      %v1238 = vpop.f32.mrf.mxu0
      %v1239 = vadd.f32 %v1032, %v1238
      %v1240 = vpop.f32.mrf.mxu0
      %1241 = vmatprep.mubr.bf16.mxu0 0
      %1242 = vmatmul.mubr.bf16.gmra.mxu0 %v1129
      %v1243 = vpop.f32.mrf.mxu0
      %v1244 = vadd.f32 %v1037, %v1243
      %v1245 = vpop.f32.mrf.mxu0
      %v1246 = vpop.f32.mrf.mxu0
      %v1247 = vadd.f32 %v1040, %v1246
      %v1248 = vpop.f32.mrf.mxu0
      %1249 = vmatprep.mubr.bf16.mxu0 0
      %1250 = vmatmul.mubr.bf16.gmra.mxu0 %v1130
      %v1251 = vpop.f32.mrf.mxu0
      %v1252 = vadd.f32 %v1045, %v1251
      %v1253 = vpop.f32.mrf.mxu0
      %v1254 = vpop.f32.mrf.mxu0
      %v1255 = vadd.f32 %v1048, %v1254
      %v1256 = vpop.f32.mrf.mxu0
      %1257 = vmatprep.mubr.bf16.mxu0 0
      %1258 = vmatmul.mubr.bf16.gmra.mxu0 %v1131
      %v1259 = vpop.f32.mrf.mxu0
      %v1260 = vadd.f32 %v1053, %v1259
      %v1261 = vpop.f32.mrf.mxu0
      %v1262 = vpop.f32.mrf.mxu0
      %v1263 = vadd.f32 %v1056, %v1262
      %v1264 = vpop.f32.mrf.mxu0
      %1265 = vmatprep.mubr.bf16.mxu0 0
      %1266 = vmatmul.mubr.bf16.gmra.mxu0 %v1132
      %v1267 = vpop.f32.mrf.mxu0
      %v1268 = vadd.f32 %v1061, %v1267
      %v1269 = vpop.f32.mrf.mxu0
      %v1270 = vpop.f32.mrf.mxu0
      %v1271 = vadd.f32 %v1064, %v1270
      %v1272 = vpop.f32.mrf.mxu0
      %1273 = vmatprep.mubr.bf16.mxu0 0
      %1274 = vmatmul.mubr.bf16.gmra.mxu0 %v1133
      %v1275 = vpop.f32.mrf.mxu0
      %v1276 = vadd.f32 %v1069, %v1275
      %v1277 = vpop.f32.mrf.mxu0
      %v1278 = vpop.f32.mrf.mxu0
      %v1279 = vadd.f32 %v1072, %v1278
      %v1280 = vpop.f32.mrf.mxu0
      %1281 = vmatprep.mubr.bf16.mxu0 0
      %1282 = vmatmul.mubr.bf16.gmra.mxu0 %v1134
      %v1283 = vpop.f32.mrf.mxu0
      %v1284 = vadd.f32 %v1077, %v1283
      %v1285 = vpop.f32.mrf.mxu0
      %v1286 = vpop.f32.mrf.mxu0
      %v1287 = vadd.f32 %v1080, %v1286
      %v1288 = vpop.f32.mrf.mxu0
      %1289 = vmatprep.mubr.bf16.mxu0 0
      %1290 = vmatmul.mubr.bf16.gmra.mxu0 %v1135
      %v1291 = vpop.f32.mrf.mxu0
      %v1292 = vadd.f32 %v1085, %v1291
      %v1293 = vpop.f32.mrf.mxu0
      %v1294 = vpop.f32.mrf.mxu0
      %v1295 = vadd.f32 %v1088, %v1294
      %v1296 = vpop.f32.mrf.mxu0
      %1297 = vdwg.mxu0
      %v1298 = vld [vmem:[%s495] sm:$0xe]
      %v1299 = vld [vmem:[%s495 + $0xc] sm:$0xe]
      %v1300 = vld [vmem:[%s495 + $0x18] sm:$0xe]
      %v1301 = vld [vmem:[%s495 + $0x24] sm:$0xe]
      %v1302 = vld [vmem:[%s495 + $0x30] sm:$0xe]
      %v1303 = vld [vmem:[%s495 + $0x3c] sm:$0xe]
      %v1304 = vld [vmem:[%s495 + $0x48] sm:$0xe]
      %v1305 = vld [vmem:[%s495 + $0x54] sm:$0xe]
      %v1306 = vld [vmem:[%s495 + $0x60] sm:$0xe]
      %vm1325 = vcmask 1042432
      %vm1326 = vcmask 1046532
      %vm1327 = vmor %vm1325, %vm1326
      %v1328 = vrot.slane %v1298, 5
      %v1329 = vrot.slane %v1328, 4
      %v1330 = vrot.slane %v624, 5
      %v1331 = vsel %vm1327, %v1329, %v1330
      %v1332 = vrot.slane %v1330, 4
      %v1333 = vrot.slane %v657, 5
      %v1334 = vsel %vm1327, %v1332, %v1333
      %v1335 = vrot.slane %v1299, 5
      %v1336 = vrot.slane %v1335, 4
      %v1337 = vrot.slane %v626, 5
      %v1338 = vsel %vm1327, %v1336, %v1337
      %v1339 = vrot.slane %v1337, 4
      %v1340 = vrot.slane %v658, 5
      %v1341 = vsel %vm1327, %v1339, %v1340
      %v1342 = vrot.slane %v1300, 5
      %v1343 = vrot.slane %v1342, 4
      %v1344 = vrot.slane %v628, 5
      %v1345 = vsel %vm1327, %v1343, %v1344
      %v1346 = vrot.slane %v1344, 4
      %v1347 = vrot.slane %v659, 5
      %v1348 = vsel %vm1327, %v1346, %v1347
      %v1349 = vrot.slane %v1301, 5
      %v1350 = vrot.slane %v1349, 4
      %v1351 = vrot.slane %v630, 5
      %v1352 = vsel %vm1327, %v1350, %v1351
      %v1353 = vrot.slane %v1351, 4
      %v1354 = vrot.slane %v660, 5
      %v1355 = vsel %vm1327, %v1353, %v1354
      %v1356 = vrot.slane %v1302, 5
      %v1357 = vrot.slane %v1356, 4
      %v1358 = vrot.slane %v632, 5
      %v1359 = vsel %vm1327, %v1357, %v1358
      %v1360 = vrot.slane %v1358, 4
      %v1361 = vrot.slane %v661, 5
      %v1362 = vsel %vm1327, %v1360, %v1361
      %v1363 = vrot.slane %v1303, 5
      %v1364 = vrot.slane %v1363, 4
      %v1365 = vrot.slane %v634, 5
      %v1366 = vsel %vm1327, %v1364, %v1365
      %v1367 = vrot.slane %v1365, 4
      %v1368 = vrot.slane %v662, 5
      %v1369 = vsel %vm1327, %v1367, %v1368
      %v1370 = vrot.slane %v1304, 5
      %v1371 = vrot.slane %v1370, 4
      %v1372 = vrot.slane %v636, 5
      %v1373 = vsel %vm1327, %v1371, %v1372
      %v1374 = vrot.slane %v1372, 4
      %v1375 = vrot.slane %v663, 5
      %v1376 = vsel %vm1327, %v1374, %v1375
      %v1377 = vrot.slane %v1305, 5
      %v1378 = vrot.slane %v1377, 4
      %v1379 = vrot.slane %v638, 5
      %v1380 = vsel %vm1327, %v1378, %v1379
      %v1381 = vrot.slane %v1379, 4
      %v1382 = vrot.slane %v664, 5
      %v1383 = vsel %vm1327, %v1381, %v1382
      %v1384 = vrot.slane %v1306, 5
      %v1385 = vrot.slane %v1384, 4
      %v1386 = vrot.slane %v640, 5
      %v1387 = vsel %vm1327, %v1385, %v1386
      %v1388 = vrot.slane %v1386, 4
      %v1389 = vrot.slane %v665, 5
      %v1390 = vsel %vm1327, %v1388, %v1389
      %s1391 = scalar_lea.vmem %s1, 128
      %v1392 = vld [vmem:[%s1391] sm:$0xf]
      %v1393 = vld [vmem:[%s1391 + $0x4] sm:$0xf]
      %v1394 = vld [vmem:[%s1391 + $0x8] sm:$0xf]
      %v1395 = vld [vmem:[%s1391 + $0xc] sm:$0xf]
      %v1396 = vld [vmem:[%s1391 + $0x10] sm:$0xf]
      %v1397 = vld [vmem:[%s1391 + $0x14] sm:$0xf]
      %v1398 = vld [vmem:[%s1391 + $0x18] sm:$0xf]
      %v1399 = vld [vmem:[%s1391 + $0x1c] sm:$0xf]
      %v1400 = vld [vmem:[%s1391 + $0x20] sm:$0xf]
      %v1401 = vld [vmem:[%s1391 + $0x24] sm:$0xf]
      %v1402 = vld [vmem:[%s1391 + $0x28] sm:$0xf]
      %v1403 = vld [vmem:[%s1391 + $0x2c] sm:$0xf]
      %v1404 = vld [vmem:[%s1391 + $0x30] sm:$0xf]
      %v1405 = vld [vmem:[%s1391 + $0x34] sm:$0xf]
      %v1406 = vld [vmem:[%s1391 + $0x38] sm:$0xf]
      %v1407 = vld [vmem:[%s1391 + $0x3c] sm:$0xf]
      %v1408 = vunpack.c.l.b16 %v1331
      %v1409 = vunpack.c.l.b16 %v1334
      %v1410 = vunpack.c.l.b16 %v1338
      %v1411 = vunpack.c.l.b16 %v1341
      %v1412 = vunpack.c.l.b16 %v1345
      %v1413 = vunpack.c.l.b16 %v1348
      %v1414 = vunpack.c.l.b16 %v1352
      %v1415 = vunpack.c.l.b16 %v1355
      %v1416 = vunpack.c.l.b16 %v1359
      %v1417 = vunpack.c.l.b16 %v1362
      %v1418 = vunpack.c.l.b16 %v1366
      %v1419 = vunpack.c.l.b16 %v1369
      %v1420 = vunpack.c.l.b16 %v1373
      %v1421 = vunpack.c.l.b16 %v1376
      %v1422 = vunpack.c.l.b16 %v1380
      %v1423 = vunpack.c.l.b16 %v1383
      %v1424 = vunpack.c.l.b16 %v1387
      %v1425 = vunpack.c.l.b16 %v1390
      %v1426 = vpack.c.b16 %v1409, %v1408
      %v1427 = vpack.c.b16 %v1411, %v1410
      %v1428 = vpack.c.b16 %v1413, %v1412
      %v1429 = vpack.c.b16 %v1415, %v1414
      %v1430 = vpack.c.b16 %v1417, %v1416
      %v1431 = vpack.c.b16 %v1419, %v1418
      %v1432 = vpack.c.b16 %v1421, %v1420
      %v1433 = vpack.c.b16 %v1423, %v1422
      %v1434 = vpack.c.b16 %v1425, %v1424
      %v1460 = vunpack.c.l.b16 %v1392
      %v1461 = vunpack.c.l.b16 %v1393
      %v1462 = vunpack.c.l.b16 %v1394
      %v1463 = vunpack.c.l.b16 %v1395
      %v1464 = vunpack.c.l.b16 %v1396
      %v1465 = vunpack.c.l.b16 %v1397
      %v1466 = vunpack.c.l.b16 %v1398
      %v1467 = vunpack.c.l.b16 %v1399
      %v1468 = vunpack.c.l.b16 %v1400
      %v1469 = vunpack.c.l.b16 %v1401
      %v1470 = vunpack.c.l.b16 %v1402
      %v1471 = vunpack.c.l.b16 %v1403
      %v1472 = vunpack.c.l.b16 %v1404
      %v1473 = vunpack.c.l.b16 %v1405
      %v1474 = vunpack.c.l.b16 %v1406
      %v1475 = vunpack.c.l.b16 %v1407
      %v1476 = vpack.c.b16 %v1461, %v1460
      %v1477 = vpack.c.b16 %v1463, %v1462
      %v1478 = vpack.c.b16 %v1465, %v1464
      %v1479 = vpack.c.b16 %v1467, %v1466
      %v1480 = vpack.c.b16 %v1469, %v1468
      %v1481 = vpack.c.b16 %v1471, %v1470
      %v1482 = vpack.c.b16 %v1473, %v1472
      %v1483 = vpack.c.b16 %v1475, %v1474
      %1492 = vmatprep.subr.bf16.mxu0 0
      %1493 = vmatpush1.bf16.msra.mxu0 %v1483
      %1494 = vmatprep.subr.bf16.mxu0 0
      %1495 = vmatpush1.bf16.msra.mxu0 %v1482
      %1496 = vmatprep.subr.bf16.mxu0 0
      %1497 = vmatpush1.bf16.msra.mxu0 %v1481
      %1498 = vmatprep.subr.bf16.mxu0 0
      %1499 = vmatpush1.bf16.msra.mxu0 %v1480
      %1500 = vmatprep.subr.bf16.mxu0 0
      %1501 = vmatpush1.bf16.msra.mxu0 %v1479
      %1502 = vmatprep.subr.bf16.mxu0 0
      %1503 = vmatpush1.bf16.msra.mxu0 %v1478
      %1504 = vmatprep.subr.bf16.mxu0 0
      %1505 = vmatpush1.bf16.msra.mxu0 %v1477
      %1506 = vmatprep.subr.bf16.mxu0 0
      %1507 = vmatpush1.bf16.msra.mxu0 %v1476
      %1508 = vmatprep.subr.bf16.mxu0 0
      %1509 = vmatpush2.bf16.msra.mxu0 0
      %1510 = vmatprep.subr.bf16.mxu0 0
      %1511 = vmatpush2.bf16.msra.mxu0 0
      %1512 = vmatprep.subr.bf16.mxu0 0
      %1513 = vmatpush2.bf16.msra.mxu0 0
      %1514 = vmatprep.subr.bf16.mxu0 0
      %1515 = vmatpush2.bf16.msra.mxu0 0
      %1516 = vmatprep.subr.bf16.mxu0 0
      %1517 = vmatpush2.bf16.msra.mxu0 0
      %1518 = vmatprep.subr.bf16.mxu0 0
      %1519 = vmatpush2.bf16.msra.mxu0 0
      %1520 = vmatprep.subr.bf16.mxu0 0
      %1521 = vmatpush2.bf16.msra.mxu0 0
      %1522 = vmatprep.subr.bf16.mxu0 0
      %1523 = vmatpush2.bf16.msra.mxu0 0
      %1524 = vmatprep.mubr.bf16.mxu0 0
      %1525 = vmatmul.mubr.bf16.gmra.mxu0 %v1426
      %v1526 = vpop.f32.mrf.mxu0
      %v1527 = vadd.f32 0.0, %v1526
      %v1528 = vpop.f32.mrf.mxu0
      %v1529 = vpop.f32.mrf.mxu0
      %v1530 = vadd.f32 0.0, %v1529
      %v1531 = vpop.f32.mrf.mxu0
      %1532 = vmatprep.mubr.bf16.mxu0 0
      %1533 = vmatmul.mubr.bf16.gmra.mxu0 %v1427
      %v1534 = vpop.f32.mrf.mxu0
      %v1535 = vadd.f32 0.0, %v1534
      %v1536 = vpop.f32.mrf.mxu0
      %v1537 = vpop.f32.mrf.mxu0
      %v1538 = vadd.f32 0.0, %v1537
      %v1539 = vpop.f32.mrf.mxu0
      %1540 = vmatprep.mubr.bf16.mxu0 0
      %1541 = vmatmul.mubr.bf16.gmra.mxu0 %v1428
      %v1542 = vpop.f32.mrf.mxu0
      %v1543 = vadd.f32 0.0, %v1542
      %v1544 = vpop.f32.mrf.mxu0
      %v1545 = vpop.f32.mrf.mxu0
      %v1546 = vadd.f32 0.0, %v1545
      %v1547 = vpop.f32.mrf.mxu0
      %1548 = vmatprep.mubr.bf16.mxu0 0
      %1549 = vmatmul.mubr.bf16.gmra.mxu0 %v1429
      %v1550 = vpop.f32.mrf.mxu0
      %v1551 = vadd.f32 0.0, %v1550
      %v1552 = vpop.f32.mrf.mxu0
      %v1553 = vpop.f32.mrf.mxu0
      %v1554 = vadd.f32 0.0, %v1553
      %v1555 = vpop.f32.mrf.mxu0
      %1556 = vmatprep.mubr.bf16.mxu0 0
      %1557 = vmatmul.mubr.bf16.gmra.mxu0 %v1430
      %v1558 = vpop.f32.mrf.mxu0
      %v1559 = vadd.f32 0.0, %v1558
      %v1560 = vpop.f32.mrf.mxu0
      %v1561 = vpop.f32.mrf.mxu0
      %v1562 = vadd.f32 0.0, %v1561
      %v1563 = vpop.f32.mrf.mxu0
      %1564 = vmatprep.mubr.bf16.mxu0 0
      %1565 = vmatmul.mubr.bf16.gmra.mxu0 %v1431
      %v1566 = vpop.f32.mrf.mxu0
      %v1567 = vadd.f32 0.0, %v1566
      %v1568 = vpop.f32.mrf.mxu0
      %v1569 = vpop.f32.mrf.mxu0
      %v1570 = vadd.f32 0.0, %v1569
      %v1571 = vpop.f32.mrf.mxu0
      %1572 = vmatprep.mubr.bf16.mxu0 0
      %1573 = vmatmul.mubr.bf16.gmra.mxu0 %v1432
      %v1574 = vpop.f32.mrf.mxu0
      %v1575 = vadd.f32 0.0, %v1574
      %v1576 = vpop.f32.mrf.mxu0
      %v1577 = vpop.f32.mrf.mxu0
      %v1578 = vadd.f32 0.0, %v1577
      %v1579 = vpop.f32.mrf.mxu0
      %1580 = vmatprep.mubr.bf16.mxu0 0
      %1581 = vmatmul.mubr.bf16.gmra.mxu0 %v1433
      %v1582 = vpop.f32.mrf.mxu0
      %v1583 = vadd.f32 0.0, %v1582
      %v1584 = vpop.f32.mrf.mxu0
      %v1585 = vpop.f32.mrf.mxu0
      %v1586 = vadd.f32 0.0, %v1585
      %v1587 = vpop.f32.mrf.mxu0
      %1588 = vmatprep.mubr.bf16.mxu0 0
      %1589 = vmatmul.mubr.bf16.gmra.mxu0 %v1434
      %v1590 = vpop.f32.mrf.mxu0
      %v1591 = vadd.f32 0.0, %v1590
      %v1592 = vpop.f32.mrf.mxu0
      %v1593 = vpop.f32.mrf.mxu0
      %v1594 = vadd.f32 0.0, %v1593
      %v1595 = vpop.f32.mrf.mxu0
      %1596 = vdwg.mxu0
      %v1597 = vadd.f32 %v1228, %v1527
      %v1598 = vadd.f32 %v1231, %v1530
      %v1599 = vadd.f32 %v1236, %v1535
      %v1600 = vadd.f32 %v1239, %v1538
      %v1601 = vadd.f32 %v1244, %v1543
      %v1602 = vadd.f32 %v1247, %v1546
      %v1603 = vadd.f32 %v1252, %v1551
      %v1604 = vadd.f32 %v1255, %v1554
      %v1605 = vadd.f32 %v1260, %v1559
      %v1606 = vadd.f32 %v1263, %v1562
      %v1607 = vadd.f32 %v1268, %v1567
      %v1608 = vadd.f32 %v1271, %v1570
      %v1609 = vadd.f32 %v1276, %v1575
      %v1610 = vadd.f32 %v1279, %v1578
      %v1611 = vadd.f32 %v1284, %v1583
      %v1612 = vadd.f32 %v1287, %v1586
      %v1613 = vadd.f32 %v1292, %v1591
      %v1614 = vadd.f32 %v1295, %v1594
      %s1615 = scalar_lea.vmem %s495, 12 [#allocation2]
      %v1616 = vld [vmem:[%s1615] sm:$0xf]
      %v1617 = vld [vmem:[%s1615 + $0x4] sm:$0xf]
      %v1618 = vld [vmem:[%s1615 + $0xc] sm:$0xf]
      %v1619 = vld [vmem:[%s1615 + $0x10] sm:$0xf]
      %v1620 = vld [vmem:[%s1615 + $0x18] sm:$0xf]
      %v1621 = vld [vmem:[%s1615 + $0x1c] sm:$0xf]
      %v1622 = vld [vmem:[%s1615 + $0x24] sm:$0xf]
      %v1623 = vld [vmem:[%s1615 + $0x28] sm:$0xf]
      %v1624 = vld [vmem:[%s1615 + $0x30] sm:$0xf]
      %v1625 = vld [vmem:[%s1615 + $0x34] sm:$0xf]
      %v1626 = vld [vmem:[%s1615 + $0x3c] sm:$0xf]
      %v1627 = vld [vmem:[%s1615 + $0x40] sm:$0xf]
      %v1628 = vld [vmem:[%s1615 + $0x48] sm:$0xf]
      %v1629 = vld [vmem:[%s1615 + $0x4c] sm:$0xf]
      %v1630 = vld [vmem:[%s1615 + $0x54] sm:$0xf]
      %v1631 = vld [vmem:[%s1615 + $0x58] sm:$0xf]
      %v1632 = vld [vmem:[%s1615 + $0x60] sm:$0xf]
      %v1633 = vld [vmem:[%s1615 + $0x64] sm:$0xf]
      %s1634 = scalar_lea.vmem %s1, 192
      %v1635 = vld [vmem:[%s1634] sm:$0xf]
      %v1636 = vld [vmem:[%s1634 + $0x4] sm:$0xf]
      %v1637 = vld [vmem:[%s1634 + $0x8] sm:$0xf]
      %v1638 = vld [vmem:[%s1634 + $0xc] sm:$0xf]
      %v1639 = vld [vmem:[%s1634 + $0x10] sm:$0xf]
      %v1640 = vld [vmem:[%s1634 + $0x14] sm:$0xf]
      %v1641 = vld [vmem:[%s1634 + $0x18] sm:$0xf]
      %v1642 = vld [vmem:[%s1634 + $0x1c] sm:$0xf]
      %v1643 = vld [vmem:[%s1634 + $0x20] sm:$0xf]
      %v1644 = vld [vmem:[%s1634 + $0x24] sm:$0xf]
      %v1645 = vld [vmem:[%s1634 + $0x28] sm:$0xf]
      %v1646 = vld [vmem:[%s1634 + $0x2c] sm:$0xf]
      %v1647 = vld [vmem:[%s1634 + $0x30] sm:$0xf]
      %v1648 = vld [vmem:[%s1634 + $0x34] sm:$0xf]
      %v1649 = vld [vmem:[%s1634 + $0x38] sm:$0xf]
      %v1650 = vld [vmem:[%s1634 + $0x3c] sm:$0xf]
      %v1669 = vunpack.c.l.b16 %v1616
      %v1670 = vunpack.c.l.b16 %v1617
      %v1671 = vunpack.c.l.b16 %v1618
      %v1672 = vunpack.c.l.b16 %v1619
      %v1673 = vunpack.c.l.b16 %v1620
      %v1674 = vunpack.c.l.b16 %v1621
      %v1675 = vunpack.c.l.b16 %v1622
      %v1676 = vunpack.c.l.b16 %v1623
      %v1677 = vunpack.c.l.b16 %v1624
      %v1678 = vunpack.c.l.b16 %v1625
      %v1679 = vunpack.c.l.b16 %v1626
      %v1680 = vunpack.c.l.b16 %v1627
      %v1681 = vunpack.c.l.b16 %v1628
      %v1682 = vunpack.c.l.b16 %v1629
      %v1683 = vunpack.c.l.b16 %v1630
      %v1684 = vunpack.c.l.b16 %v1631
      %v1685 = vunpack.c.l.b16 %v1632
      %v1686 = vunpack.c.l.b16 %v1633
      %v1687 = vpack.c.b16 %v1670, %v1669
      %v1688 = vpack.c.b16 %v1672, %v1671
      %v1689 = vpack.c.b16 %v1674, %v1673
      %v1690 = vpack.c.b16 %v1676, %v1675
      %v1691 = vpack.c.b16 %v1678, %v1677
      %v1692 = vpack.c.b16 %v1680, %v1679
      %v1693 = vpack.c.b16 %v1682, %v1681
      %v1694 = vpack.c.b16 %v1684, %v1683
      %v1695 = vpack.c.b16 %v1686, %v1685
      %v1721 = vunpack.c.l.b16 %v1635
      %v1722 = vunpack.c.l.b16 %v1636
      %v1723 = vunpack.c.l.b16 %v1637
      %v1724 = vunpack.c.l.b16 %v1638
      %v1725 = vunpack.c.l.b16 %v1639
      %v1726 = vunpack.c.l.b16 %v1640
      %v1727 = vunpack.c.l.b16 %v1641
      %v1728 = vunpack.c.l.b16 %v1642
      %v1729 = vunpack.c.l.b16 %v1643
      %v1730 = vunpack.c.l.b16 %v1644
      %v1731 = vunpack.c.l.b16 %v1645
      %v1732 = vunpack.c.l.b16 %v1646
      %v1733 = vunpack.c.l.b16 %v1647
      %v1734 = vunpack.c.l.b16 %v1648
      %v1735 = vunpack.c.l.b16 %v1649
      %v1736 = vunpack.c.l.b16 %v1650
      %v1737 = vpack.c.b16 %v1722, %v1721
      %v1738 = vpack.c.b16 %v1724, %v1723
      %v1739 = vpack.c.b16 %v1726, %v1725
      %v1740 = vpack.c.b16 %v1728, %v1727
      %v1741 = vpack.c.b16 %v1730, %v1729
      %v1742 = vpack.c.b16 %v1732, %v1731
      %v1743 = vpack.c.b16 %v1734, %v1733
      %v1744 = vpack.c.b16 %v1736, %v1735
      %1753 = vmatprep.subr.bf16.mxu0 0
      %1754 = vmatpush1.bf16.msra.mxu0 %v1744
      %1755 = vmatprep.subr.bf16.mxu0 0
      %1756 = vmatpush1.bf16.msra.mxu0 %v1743
      %1757 = vmatprep.subr.bf16.mxu0 0
      %1758 = vmatpush1.bf16.msra.mxu0 %v1742
      %1759 = vmatprep.subr.bf16.mxu0 0
      %1760 = vmatpush1.bf16.msra.mxu0 %v1741
      %1761 = vmatprep.subr.bf16.mxu0 0
      %1762 = vmatpush1.bf16.msra.mxu0 %v1740
      %1763 = vmatprep.subr.bf16.mxu0 0
      %1764 = vmatpush1.bf16.msra.mxu0 %v1739
      %1765 = vmatprep.subr.bf16.mxu0 0
      %1766 = vmatpush1.bf16.msra.mxu0 %v1738
      %1767 = vmatprep.subr.bf16.mxu0 0
      %1768 = vmatpush1.bf16.msra.mxu0 %v1737
      %1769 = vmatprep.subr.bf16.mxu0 0
      %1770 = vmatpush2.bf16.msra.mxu0 0
      %1771 = vmatprep.subr.bf16.mxu0 0
      %1772 = vmatpush2.bf16.msra.mxu0 0
      %1773 = vmatprep.subr.bf16.mxu0 0
      %1774 = vmatpush2.bf16.msra.mxu0 0
      %1775 = vmatprep.subr.bf16.mxu0 0
      %1776 = vmatpush2.bf16.msra.mxu0 0
      %1777 = vmatprep.subr.bf16.mxu0 0
      %1778 = vmatpush2.bf16.msra.mxu0 0
      %1779 = vmatprep.subr.bf16.mxu0 0
      %1780 = vmatpush2.bf16.msra.mxu0 0
      %1781 = vmatprep.subr.bf16.mxu0 0
      %1782 = vmatpush2.bf16.msra.mxu0 0
      %1783 = vmatprep.subr.bf16.mxu0 0
      %1784 = vmatpush2.bf16.msra.mxu0 0
      %1785 = vmatprep.mubr.bf16.mxu0 0
      %1786 = vmatmul.mubr.bf16.gmra.mxu0 %v1687
      %v1787 = vpop.f32.mrf.mxu0
      %v1788 = vadd.f32 0.0, %v1787
      %v1789 = vpop.f32.mrf.mxu0
      %v1790 = vpop.f32.mrf.mxu0
      %v1791 = vadd.f32 0.0, %v1790
      %v1792 = vpop.f32.mrf.mxu0
      %1793 = vmatprep.mubr.bf16.mxu0 0
      %1794 = vmatmul.mubr.bf16.gmra.mxu0 %v1688
      %v1795 = vpop.f32.mrf.mxu0
      %v1796 = vadd.f32 0.0, %v1795
      %v1797 = vpop.f32.mrf.mxu0
      %v1798 = vpop.f32.mrf.mxu0
      %v1799 = vadd.f32 0.0, %v1798
      %v1800 = vpop.f32.mrf.mxu0
      %1801 = vmatprep.mubr.bf16.mxu0 0
      %1802 = vmatmul.mubr.bf16.gmra.mxu0 %v1689
      %v1803 = vpop.f32.mrf.mxu0
      %v1804 = vadd.f32 0.0, %v1803
      %v1805 = vpop.f32.mrf.mxu0
      %v1806 = vpop.f32.mrf.mxu0
      %v1807 = vadd.f32 0.0, %v1806
      %v1808 = vpop.f32.mrf.mxu0
      %1809 = vmatprep.mubr.bf16.mxu0 0
      %1810 = vmatmul.mubr.bf16.gmra.mxu0 %v1690
      %v1811 = vpop.f32.mrf.mxu0
      %v1812 = vadd.f32 0.0, %v1811
      %v1813 = vpop.f32.mrf.mxu0
      %v1814 = vpop.f32.mrf.mxu0
      %v1815 = vadd.f32 0.0, %v1814
      %v1816 = vpop.f32.mrf.mxu0
      %1817 = vmatprep.mubr.bf16.mxu0 0
      %1818 = vmatmul.mubr.bf16.gmra.mxu0 %v1691
      %v1819 = vpop.f32.mrf.mxu0
      %v1820 = vadd.f32 0.0, %v1819
      %v1821 = vpop.f32.mrf.mxu0
      %v1822 = vpop.f32.mrf.mxu0
      %v1823 = vadd.f32 0.0, %v1822
      %v1824 = vpop.f32.mrf.mxu0
      %1825 = vmatprep.mubr.bf16.mxu0 0
      %1826 = vmatmul.mubr.bf16.gmra.mxu0 %v1692
      %v1827 = vpop.f32.mrf.mxu0
      %v1828 = vadd.f32 0.0, %v1827
      %v1829 = vpop.f32.mrf.mxu0
      %v1830 = vpop.f32.mrf.mxu0
      %v1831 = vadd.f32 0.0, %v1830
      %v1832 = vpop.f32.mrf.mxu0
      %1833 = vmatprep.mubr.bf16.mxu0 0
      %1834 = vmatmul.mubr.bf16.gmra.mxu0 %v1693
      %v1835 = vpop.f32.mrf.mxu0
      %v1836 = vadd.f32 0.0, %v1835
      %v1837 = vpop.f32.mrf.mxu0
      %v1838 = vpop.f32.mrf.mxu0
      %v1839 = vadd.f32 0.0, %v1838
      %v1840 = vpop.f32.mrf.mxu0
      %1841 = vmatprep.mubr.bf16.mxu0 0
      %1842 = vmatmul.mubr.bf16.gmra.mxu0 %v1694
      %v1843 = vpop.f32.mrf.mxu0
      %v1844 = vadd.f32 0.0, %v1843
      %v1845 = vpop.f32.mrf.mxu0
      %v1846 = vpop.f32.mrf.mxu0
      %v1847 = vadd.f32 0.0, %v1846
      %v1848 = vpop.f32.mrf.mxu0
      %1849 = vmatprep.mubr.bf16.mxu0 0
      %1850 = vmatmul.mubr.bf16.gmra.mxu0 %v1695
      %v1851 = vpop.f32.mrf.mxu0
      %v1852 = vadd.f32 0.0, %v1851
      %v1853 = vpop.f32.mrf.mxu0
      %v1854 = vpop.f32.mrf.mxu0
      %v1855 = vadd.f32 0.0, %v1854
      %v1856 = vpop.f32.mrf.mxu0
      %1857 = vdwg.mxu0
      %v1858 = vadd.f32 %v1597, %v1788
      %v1859 = vadd.f32 %v1598, %v1791
      %v1860 = vadd.f32 %v1599, %v1796
      %v1861 = vadd.f32 %v1600, %v1799
      %v1862 = vadd.f32 %v1601, %v1804
      %v1863 = vadd.f32 %v1602, %v1807
      %v1864 = vadd.f32 %v1603, %v1812
      %v1865 = vadd.f32 %v1604, %v1815
      %v1866 = vadd.f32 %v1605, %v1820
      %v1867 = vadd.f32 %v1606, %v1823
      %v1868 = vadd.f32 %v1607, %v1828
      %v1869 = vadd.f32 %v1608, %v1831
      %v1870 = vadd.f32 %v1609, %v1836
      %v1871 = vadd.f32 %v1610, %v1839
      %v1872 = vadd.f32 %v1611, %v1844
      %v1873 = vadd.f32 %v1612, %v1847
      %v1874 = vadd.f32 %v1613, %v1852
      %v1875 = vadd.f32 %v1614, %v1855
      %v1876 = vld [vmem:[%s1615] sm:$0xf]
      %v1877 = vld [vmem:[%s1615 + $0x4] sm:$0xf]
      %v1878 = vld [vmem:[%s1615 + $0x8] sm:$0x1]
      %v1879 = vld [vmem:[%s1615 + $0xc] sm:$0xf]
      %v1880 = vld [vmem:[%s1615 + $0x10] sm:$0xf]
      %v1881 = vld [vmem:[%s1615 + $0x14] sm:$0x1]
      %v1882 = vld [vmem:[%s1615 + $0x18] sm:$0xf]
      %v1883 = vld [vmem:[%s1615 + $0x1c] sm:$0xf]
      %v1884 = vld [vmem:[%s1615 + $0x20] sm:$0x1]
      %v1885 = vld [vmem:[%s1615 + $0x24] sm:$0xf]
      %v1886 = vld [vmem:[%s1615 + $0x28] sm:$0xf]
      %v1887 = vld [vmem:[%s1615 + $0x2c] sm:$0x1]
      %v1888 = vld [vmem:[%s1615 + $0x30] sm:$0xf]
      %v1889 = vld [vmem:[%s1615 + $0x34] sm:$0xf]
      %v1890 = vld [vmem:[%s1615 + $0x38] sm:$0x1]
      %v1891 = vld [vmem:[%s1615 + $0x3c] sm:$0xf]
      %v1892 = vld [vmem:[%s1615 + $0x40] sm:$0xf]
      %v1893 = vld [vmem:[%s1615 + $0x44] sm:$0x1]
      %v1894 = vld [vmem:[%s1615 + $0x48] sm:$0xf]
      %v1895 = vld [vmem:[%s1615 + $0x4c] sm:$0xf]
      %v1896 = vld [vmem:[%s1615 + $0x50] sm:$0x1]
      %v1897 = vld [vmem:[%s1615 + $0x54] sm:$0xf]
      %v1898 = vld [vmem:[%s1615 + $0x58] sm:$0xf]
      %v1899 = vld [vmem:[%s1615 + $0x5c] sm:$0x1]
      %v1900 = vld [vmem:[%s1615 + $0x60] sm:$0xf]
      %v1901 = vld [vmem:[%s1615 + $0x64] sm:$0xf]
      %v1902 = vld [vmem:[%s1615 + $0x68] sm:$0x1]
      %v1904 = vshrl.u32 %v1876, 16
      %v1906 = vrot.slane %v1904, 4
      %v1907 = vshll.u32 %v1876, 16
      %v1909 = vrot.slane %v1907, 5
      %v1910 = vor.u32 %v1906, %v1909
      %v1911 = vrot.slane %v1910, 4
      %v1913 = vshll.u32 %v1877, 16
      %v1915 = vrot.slane %v1913, 5
      %v1916 = vsel %vm668, %v1911, %v1915
      %v1917 = vshrl.u32 %v1877, 16
      %v1919 = vrot.slane %v1917, 4
      %v1920 = vor.u32 %v1919, %v1915
      %v1921 = vrot.slane %v1920, 4
      %v1923 = vshll.u32 %v1878, 16
      %v1925 = vrot.slane %v1923, 5
      %v1926 = vsel %vm668, %v1921, %v1925
      %v1928 = vshrl.u32 %v1879, 16
      %v1930 = vrot.slane %v1928, 4
      %v1931 = vshll.u32 %v1879, 16
      %v1933 = vrot.slane %v1931, 5
      %v1934 = vor.u32 %v1930, %v1933
      %v1935 = vrot.slane %v1934, 4
      %v1937 = vshll.u32 %v1880, 16
      %v1939 = vrot.slane %v1937, 5
      %v1940 = vsel %vm668, %v1935, %v1939
      %v1941 = vshrl.u32 %v1880, 16
      %v1943 = vrot.slane %v1941, 4
      %v1944 = vor.u32 %v1943, %v1939
      %v1945 = vrot.slane %v1944, 4
      %v1947 = vshll.u32 %v1881, 16
      %v1949 = vrot.slane %v1947, 5
      %v1950 = vsel %vm668, %v1945, %v1949
      %v1952 = vshrl.u32 %v1882, 16
      %v1954 = vrot.slane %v1952, 4
      %v1955 = vshll.u32 %v1882, 16
      %v1957 = vrot.slane %v1955, 5
      %v1958 = vor.u32 %v1954, %v1957
      %v1959 = vrot.slane %v1958, 4
      %v1961 = vshll.u32 %v1883, 16
      %v1963 = vrot.slane %v1961, 5
      %v1964 = vsel %vm668, %v1959, %v1963
      %v1965 = vshrl.u32 %v1883, 16
      %v1967 = vrot.slane %v1965, 4
      %v1968 = vor.u32 %v1967, %v1963
      %v1969 = vrot.slane %v1968, 4
      %v1971 = vshll.u32 %v1884, 16
      %v1973 = vrot.slane %v1971, 5
      %v1974 = vsel %vm668, %v1969, %v1973
      %v1976 = vshrl.u32 %v1885, 16
      %v1978 = vrot.slane %v1976, 4
      %v1979 = vshll.u32 %v1885, 16
      %v1981 = vrot.slane %v1979, 5
      %v1982 = vor.u32 %v1978, %v1981
      %v1983 = vrot.slane %v1982, 4
      %v1985 = vshll.u32 %v1886, 16
      %v1987 = vrot.slane %v1985, 5
      %v1988 = vsel %vm668, %v1983, %v1987
      %v1989 = vshrl.u32 %v1886, 16
      %v1991 = vrot.slane %v1989, 4
      %v1992 = vor.u32 %v1991, %v1987
      %v1993 = vrot.slane %v1992, 4
      %v1995 = vshll.u32 %v1887, 16
      %v1997 = vrot.slane %v1995, 5
      %v1998 = vsel %vm668, %v1993, %v1997
      %v2000 = vshrl.u32 %v1888, 16
      %v2002 = vrot.slane %v2000, 4
      %v2003 = vshll.u32 %v1888, 16
      %v2005 = vrot.slane %v2003, 5
      %v2006 = vor.u32 %v2002, %v2005
      %v2007 = vrot.slane %v2006, 4
      %v2009 = vshll.u32 %v1889, 16
      %v2011 = vrot.slane %v2009, 5
      %v2012 = vsel %vm668, %v2007, %v2011
      %v2013 = vshrl.u32 %v1889, 16
      %v2015 = vrot.slane %v2013, 4
      %v2016 = vor.u32 %v2015, %v2011
      %v2017 = vrot.slane %v2016, 4
      %v2019 = vshll.u32 %v1890, 16
      %v2021 = vrot.slane %v2019, 5
      %v2022 = vsel %vm668, %v2017, %v2021
      %v2024 = vshrl.u32 %v1891, 16
      %v2026 = vrot.slane %v2024, 4
      %v2027 = vshll.u32 %v1891, 16
      %v2029 = vrot.slane %v2027, 5
      %v2030 = vor.u32 %v2026, %v2029
      %v2031 = vrot.slane %v2030, 4
      %v2033 = vshll.u32 %v1892, 16
      %v2035 = vrot.slane %v2033, 5
      %v2036 = vsel %vm668, %v2031, %v2035
      %v2037 = vshrl.u32 %v1892, 16
      %v2039 = vrot.slane %v2037, 4
      %v2040 = vor.u32 %v2039, %v2035
      %v2041 = vrot.slane %v2040, 4
      %v2043 = vshll.u32 %v1893, 16
      %v2045 = vrot.slane %v2043, 5
      %v2046 = vsel %vm668, %v2041, %v2045
      %v2048 = vshrl.u32 %v1894, 16
      %v2050 = vrot.slane %v2048, 4
      %v2051 = vshll.u32 %v1894, 16
      %v2053 = vrot.slane %v2051, 5
      %v2054 = vor.u32 %v2050, %v2053
      %v2055 = vrot.slane %v2054, 4
      %v2057 = vshll.u32 %v1895, 16
      %v2059 = vrot.slane %v2057, 5
      %v2060 = vsel %vm668, %v2055, %v2059
      %v2061 = vshrl.u32 %v1895, 16
      %v2063 = vrot.slane %v2061, 4
      %v2064 = vor.u32 %v2063, %v2059
      %v2065 = vrot.slane %v2064, 4
      %v2067 = vshll.u32 %v1896, 16
      %v2069 = vrot.slane %v2067, 5
      %v2070 = vsel %vm668, %v2065, %v2069
      %v2072 = vshrl.u32 %v1897, 16
      %v2074 = vrot.slane %v2072, 4
      %v2075 = vshll.u32 %v1897, 16
      %v2077 = vrot.slane %v2075, 5
      %v2078 = vor.u32 %v2074, %v2077
      %v2079 = vrot.slane %v2078, 4
      %v2081 = vshll.u32 %v1898, 16
      %v2083 = vrot.slane %v2081, 5
      %v2084 = vsel %vm668, %v2079, %v2083
      %v2085 = vshrl.u32 %v1898, 16
      %v2087 = vrot.slane %v2085, 4
      %v2088 = vor.u32 %v2087, %v2083
      %v2089 = vrot.slane %v2088, 4
      %v2091 = vshll.u32 %v1899, 16
      %v2093 = vrot.slane %v2091, 5
      %v2094 = vsel %vm668, %v2089, %v2093
      %v2096 = vshrl.u32 %v1900, 16
      %v2098 = vrot.slane %v2096, 4
      %v2099 = vshll.u32 %v1900, 16
      %v2101 = vrot.slane %v2099, 5
      %v2102 = vor.u32 %v2098, %v2101
      %v2103 = vrot.slane %v2102, 4
      %v2105 = vshll.u32 %v1901, 16
      %v2107 = vrot.slane %v2105, 5
      %v2108 = vsel %vm668, %v2103, %v2107
      %v2109 = vshrl.u32 %v1901, 16
      %v2111 = vrot.slane %v2109, 4
      %v2112 = vor.u32 %v2111, %v2107
      %v2113 = vrot.slane %v2112, 4
      %v2115 = vshll.u32 %v1902, 16
      %v2117 = vrot.slane %v2115, 5
      %v2118 = vsel %vm668, %v2113, %v2117
      %s2119 = scalar_lea.vmem %s1, 256
      %v2120 = vld [vmem:[%s2119] sm:$0xf]
      %v2121 = vld [vmem:[%s2119 + $0x4] sm:$0xf]
      %v2122 = vld [vmem:[%s2119 + $0x8] sm:$0xf]
      %v2123 = vld [vmem:[%s2119 + $0xc] sm:$0xf]
      %v2124 = vld [vmem:[%s2119 + $0x10] sm:$0xf]
      %v2125 = vld [vmem:[%s2119 + $0x14] sm:$0xf]
      %v2126 = vld [vmem:[%s2119 + $0x18] sm:$0xf]
      %v2127 = vld [vmem:[%s2119 + $0x1c] sm:$0xf]
      %v2128 = vld [vmem:[%s2119 + $0x20] sm:$0xf]
      %v2129 = vld [vmem:[%s2119 + $0x24] sm:$0xf]
      %v2130 = vld [vmem:[%s2119 + $0x28] sm:$0xf]
      %v2131 = vld [vmem:[%s2119 + $0x2c] sm:$0xf]
      %v2132 = vld [vmem:[%s2119 + $0x30] sm:$0xf]
      %v2133 = vld [vmem:[%s2119 + $0x34] sm:$0xf]
      %v2134 = vld [vmem:[%s2119 + $0x38] sm:$0xf]
      %v2135 = vld [vmem:[%s2119 + $0x3c] sm:$0xf]
      %v2136 = vunpack.c.l.b16 %v1916
      %v2137 = vunpack.c.l.b16 %v1926
      %v2138 = vunpack.c.l.b16 %v1940
      %v2139 = vunpack.c.l.b16 %v1950
      %v2140 = vunpack.c.l.b16 %v1964
      %v2141 = vunpack.c.l.b16 %v1974
      %v2142 = vunpack.c.l.b16 %v1988
      %v2143 = vunpack.c.l.b16 %v1998
      %v2144 = vunpack.c.l.b16 %v2012
      %v2145 = vunpack.c.l.b16 %v2022
      %v2146 = vunpack.c.l.b16 %v2036
      %v2147 = vunpack.c.l.b16 %v2046
      %v2148 = vunpack.c.l.b16 %v2060
      %v2149 = vunpack.c.l.b16 %v2070
      %v2150 = vunpack.c.l.b16 %v2084
      %v2151 = vunpack.c.l.b16 %v2094
      %v2152 = vunpack.c.l.b16 %v2108
      %v2153 = vunpack.c.l.b16 %v2118
      %v2154 = vpack.c.b16 %v2137, %v2136
      %v2155 = vpack.c.b16 %v2139, %v2138
      %v2156 = vpack.c.b16 %v2141, %v2140
      %v2157 = vpack.c.b16 %v2143, %v2142
      %v2158 = vpack.c.b16 %v2145, %v2144
      %v2159 = vpack.c.b16 %v2147, %v2146
      %v2160 = vpack.c.b16 %v2149, %v2148
      %v2161 = vpack.c.b16 %v2151, %v2150
      %v2162 = vpack.c.b16 %v2153, %v2152
      %v2188 = vunpack.c.l.b16 %v2120
      %v2189 = vunpack.c.l.b16 %v2121
      %v2190 = vunpack.c.l.b16 %v2122
      %v2191 = vunpack.c.l.b16 %v2123
      %v2192 = vunpack.c.l.b16 %v2124
      %v2193 = vunpack.c.l.b16 %v2125
      %v2194 = vunpack.c.l.b16 %v2126
      %v2195 = vunpack.c.l.b16 %v2127
      %v2196 = vunpack.c.l.b16 %v2128
      %v2197 = vunpack.c.l.b16 %v2129
      %v2198 = vunpack.c.l.b16 %v2130
      %v2199 = vunpack.c.l.b16 %v2131
      %v2200 = vunpack.c.l.b16 %v2132
      %v2201 = vunpack.c.l.b16 %v2133
      %v2202 = vunpack.c.l.b16 %v2134
      %v2203 = vunpack.c.l.b16 %v2135
      %v2204 = vpack.c.b16 %v2189, %v2188
      %v2205 = vpack.c.b16 %v2191, %v2190
      %v2206 = vpack.c.b16 %v2193, %v2192
      %v2207 = vpack.c.b16 %v2195, %v2194
      %v2208 = vpack.c.b16 %v2197, %v2196
      %v2209 = vpack.c.b16 %v2199, %v2198
      %v2210 = vpack.c.b16 %v2201, %v2200
      %v2211 = vpack.c.b16 %v2203, %v2202
      %2220 = vmatprep.subr.bf16.mxu0 0
      %2221 = vmatpush1.bf16.msra.mxu0 %v2211
      %2222 = vmatprep.subr.bf16.mxu0 0
      %2223 = vmatpush1.bf16.msra.mxu0 %v2210
      %2224 = vmatprep.subr.bf16.mxu0 0
      %2225 = vmatpush1.bf16.msra.mxu0 %v2209
      %2226 = vmatprep.subr.bf16.mxu0 0
      %2227 = vmatpush1.bf16.msra.mxu0 %v2208
      %2228 = vmatprep.subr.bf16.mxu0 0
      %2229 = vmatpush1.bf16.msra.mxu0 %v2207
      %2230 = vmatprep.subr.bf16.mxu0 0
      %2231 = vmatpush1.bf16.msra.mxu0 %v2206
      %2232 = vmatprep.subr.bf16.mxu0 0
      %2233 = vmatpush1.bf16.msra.mxu0 %v2205
      %2234 = vmatprep.subr.bf16.mxu0 0
      %2235 = vmatpush1.bf16.msra.mxu0 %v2204
      %2236 = vmatprep.subr.bf16.mxu0 0
      %2237 = vmatpush2.bf16.msra.mxu0 0
      %2238 = vmatprep.subr.bf16.mxu0 0
      %2239 = vmatpush2.bf16.msra.mxu0 0
      %2240 = vmatprep.subr.bf16.mxu0 0
      %2241 = vmatpush2.bf16.msra.mxu0 0
      %2242 = vmatprep.subr.bf16.mxu0 0
      %2243 = vmatpush2.bf16.msra.mxu0 0
      %2244 = vmatprep.subr.bf16.mxu0 0
      %2245 = vmatpush2.bf16.msra.mxu0 0
      %2246 = vmatprep.subr.bf16.mxu0 0
      %2247 = vmatpush2.bf16.msra.mxu0 0
      %2248 = vmatprep.subr.bf16.mxu0 0
      %2249 = vmatpush2.bf16.msra.mxu0 0
      %2250 = vmatprep.subr.bf16.mxu0 0
      %2251 = vmatpush2.bf16.msra.mxu0 0
      %2252 = vmatprep.mubr.bf16.mxu0 0
      %2253 = vmatmul.mubr.bf16.gmra.mxu0 %v2154
      %v2254 = vpop.f32.mrf.mxu0
      %v2255 = vadd.f32 0.0, %v2254
      %v2256 = vpop.f32.mrf.mxu0
      %v2257 = vpop.f32.mrf.mxu0
      %v2258 = vadd.f32 0.0, %v2257
      %v2259 = vpop.f32.mrf.mxu0
      %2260 = vmatprep.mubr.bf16.mxu0 0
      %2261 = vmatmul.mubr.bf16.gmra.mxu0 %v2155
      %v2262 = vpop.f32.mrf.mxu0
      %v2263 = vadd.f32 0.0, %v2262
      %v2264 = vpop.f32.mrf.mxu0
      %v2265 = vpop.f32.mrf.mxu0
      %v2266 = vadd.f32 0.0, %v2265
      %v2267 = vpop.f32.mrf.mxu0
      %2268 = vmatprep.mubr.bf16.mxu0 0
      %2269 = vmatmul.mubr.bf16.gmra.mxu0 %v2156
      %v2270 = vpop.f32.mrf.mxu0
      %v2271 = vadd.f32 0.0, %v2270
      %v2272 = vpop.f32.mrf.mxu0
      %v2273 = vpop.f32.mrf.mxu0
      %v2274 = vadd.f32 0.0, %v2273
      %v2275 = vpop.f32.mrf.mxu0
      %2276 = vmatprep.mubr.bf16.mxu0 0
      %2277 = vmatmul.mubr.bf16.gmra.mxu0 %v2157
      %v2278 = vpop.f32.mrf.mxu0
      %v2279 = vadd.f32 0.0, %v2278
      %v2280 = vpop.f32.mrf.mxu0
      %v2281 = vpop.f32.mrf.mxu0
      %v2282 = vadd.f32 0.0, %v2281
      %v2283 = vpop.f32.mrf.mxu0
      %2284 = vmatprep.mubr.bf16.mxu0 0
      %2285 = vmatmul.mubr.bf16.gmra.mxu0 %v2158
      %v2286 = vpop.f32.mrf.mxu0
      %v2287 = vadd.f32 0.0, %v2286
      %v2288 = vpop.f32.mrf.mxu0
      %v2289 = vpop.f32.mrf.mxu0
      %v2290 = vadd.f32 0.0, %v2289
      %v2291 = vpop.f32.mrf.mxu0
      %2292 = vmatprep.mubr.bf16.mxu0 0
      %2293 = vmatmul.mubr.bf16.gmra.mxu0 %v2159
      %v2294 = vpop.f32.mrf.mxu0
      %v2295 = vadd.f32 0.0, %v2294
      %v2296 = vpop.f32.mrf.mxu0
      %v2297 = vpop.f32.mrf.mxu0
      %v2298 = vadd.f32 0.0, %v2297
      %v2299 = vpop.f32.mrf.mxu0
      %2300 = vmatprep.mubr.bf16.mxu0 0
      %2301 = vmatmul.mubr.bf16.gmra.mxu0 %v2160
      %v2302 = vpop.f32.mrf.mxu0
      %v2303 = vadd.f32 0.0, %v2302
      %v2304 = vpop.f32.mrf.mxu0
      %v2305 = vpop.f32.mrf.mxu0
      %v2306 = vadd.f32 0.0, %v2305
      %v2307 = vpop.f32.mrf.mxu0
      %2308 = vmatprep.mubr.bf16.mxu0 0
      %2309 = vmatmul.mubr.bf16.gmra.mxu0 %v2161
      %v2310 = vpop.f32.mrf.mxu0
      %v2311 = vadd.f32 0.0, %v2310
      %v2312 = vpop.f32.mrf.mxu0
      %v2313 = vpop.f32.mrf.mxu0
      %v2314 = vadd.f32 0.0, %v2313
      %v2315 = vpop.f32.mrf.mxu0
      %2316 = vmatprep.mubr.bf16.mxu0 0
      %2317 = vmatmul.mubr.bf16.gmra.mxu0 %v2162
      %v2318 = vpop.f32.mrf.mxu0
      %v2319 = vadd.f32 0.0, %v2318
      %v2320 = vpop.f32.mrf.mxu0
      %v2321 = vpop.f32.mrf.mxu0
      %v2322 = vadd.f32 0.0, %v2321
      %v2323 = vpop.f32.mrf.mxu0
      %2324 = vdwg.mxu0
      %v2325 = vadd.f32 %v1858, %v2255
      %v2326 = vadd.f32 %v1859, %v2258
      %v2327 = vadd.f32 %v1860, %v2263
      %v2328 = vadd.f32 %v1861, %v2266
      %v2329 = vadd.f32 %v1862, %v2271
      %v2330 = vadd.f32 %v1863, %v2274
      %v2331 = vadd.f32 %v1864, %v2279
      %v2332 = vadd.f32 %v1865, %v2282
      %v2333 = vadd.f32 %v1866, %v2287
      %v2334 = vadd.f32 %v1867, %v2290
      %v2335 = vadd.f32 %v1868, %v2295
      %v2336 = vadd.f32 %v1869, %v2298
      %v2337 = vadd.f32 %v1870, %v2303
      %v2338 = vadd.f32 %v1871, %v2306
      %v2339 = vadd.f32 %v1872, %v2311
      %v2340 = vadd.f32 %v1873, %v2314
      %v2341 = vadd.f32 %v1874, %v2319
      %v2342 = vadd.f32 %v1875, %v2322
      %v2343 = vld [vmem:[%s1615] sm:$0xe]
      %v2344 = vld [vmem:[%s1615 + $0xc] sm:$0xe]
      %v2345 = vld [vmem:[%s1615 + $0x18] sm:$0xe]
      %v2346 = vld [vmem:[%s1615 + $0x24] sm:$0xe]
      %v2347 = vld [vmem:[%s1615 + $0x30] sm:$0xe]
      %v2348 = vld [vmem:[%s1615 + $0x3c] sm:$0xe]
      %v2349 = vld [vmem:[%s1615 + $0x48] sm:$0xe]
      %v2350 = vld [vmem:[%s1615 + $0x54] sm:$0xe]
      %v2351 = vld [vmem:[%s1615 + $0x60] sm:$0xe]
      %v2379 = vrot.slane %v2343, 5
      %v2380 = vrot.slane %v2379, 4
      %v2381 = vrot.slane %v1877, 5
      %v2382 = vsel %vm1327, %v2380, %v2381
      %v2383 = vrot.slane %v2381, 4
      %v2384 = vrot.slane %v1878, 5
      %v2385 = vsel %vm1327, %v2383, %v2384
      %v2386 = vrot.slane %v2344, 5
      %v2387 = vrot.slane %v2386, 4
      %v2388 = vrot.slane %v1880, 5
      %v2389 = vsel %vm1327, %v2387, %v2388
      %v2390 = vrot.slane %v2388, 4
      %v2391 = vrot.slane %v1881, 5
      %v2392 = vsel %vm1327, %v2390, %v2391
      %v2393 = vrot.slane %v2345, 5
      %v2394 = vrot.slane %v2393, 4
      %v2395 = vrot.slane %v1883, 5
      %v2396 = vsel %vm1327, %v2394, %v2395
      %v2397 = vrot.slane %v2395, 4
      %v2398 = vrot.slane %v1884, 5
      %v2399 = vsel %vm1327, %v2397, %v2398
      %v2400 = vrot.slane %v2346, 5
      %v2401 = vrot.slane %v2400, 4
      %v2402 = vrot.slane %v1886, 5
      %v2403 = vsel %vm1327, %v2401, %v2402
      %v2404 = vrot.slane %v2402, 4
      %v2405 = vrot.slane %v1887, 5
      %v2406 = vsel %vm1327, %v2404, %v2405
      %v2407 = vrot.slane %v2347, 5
      %v2408 = vrot.slane %v2407, 4
      %v2409 = vrot.slane %v1889, 5
      %v2410 = vsel %vm1327, %v2408, %v2409
      %v2411 = vrot.slane %v2409, 4
      %v2412 = vrot.slane %v1890, 5
      %v2413 = vsel %vm1327, %v2411, %v2412
      %v2414 = vrot.slane %v2348, 5
      %v2415 = vrot.slane %v2414, 4
      %v2416 = vrot.slane %v1892, 5
      %v2417 = vsel %vm1327, %v2415, %v2416
      %v2418 = vrot.slane %v2416, 4
      %v2419 = vrot.slane %v1893, 5
      %v2420 = vsel %vm1327, %v2418, %v2419
      %v2421 = vrot.slane %v2349, 5
      %v2422 = vrot.slane %v2421, 4
      %v2423 = vrot.slane %v1895, 5
      %v2424 = vsel %vm1327, %v2422, %v2423
      %v2425 = vrot.slane %v2423, 4
      %v2426 = vrot.slane %v1896, 5
      %v2427 = vsel %vm1327, %v2425, %v2426
      %v2428 = vrot.slane %v2350, 5
      %v2429 = vrot.slane %v2428, 4
      %v2430 = vrot.slane %v1898, 5
      %v2431 = vsel %vm1327, %v2429, %v2430
      %v2432 = vrot.slane %v2430, 4
      %v2433 = vrot.slane %v1899, 5
      %v2434 = vsel %vm1327, %v2432, %v2433
      %v2435 = vrot.slane %v2351, 5
      %v2436 = vrot.slane %v2435, 4
      %v2437 = vrot.slane %v1901, 5
      %v2438 = vsel %vm1327, %v2436, %v2437
      %v2439 = vrot.slane %v2437, 4
      %v2440 = vrot.slane %v1902, 5
      %v2441 = vsel %vm1327, %v2439, %v2440
      %s2442 = scalar_lea.vmem %s1, 320
      %v2443 = vld [vmem:[%s2442] sm:$0xf]
      %v2444 = vld [vmem:[%s2442 + $0x4] sm:$0xf]
      %v2445 = vld [vmem:[%s2442 + $0x8] sm:$0xf]
      %v2446 = vld [vmem:[%s2442 + $0xc] sm:$0xf]
      %v2447 = vld [vmem:[%s2442 + $0x10] sm:$0xf]
      %v2448 = vld [vmem:[%s2442 + $0x14] sm:$0xf]
      %v2449 = vld [vmem:[%s2442 + $0x18] sm:$0xf]
      %v2450 = vld [vmem:[%s2442 + $0x1c] sm:$0xf]
      %v2451 = vld [vmem:[%s2442 + $0x20] sm:$0xf]
      %v2452 = vld [vmem:[%s2442 + $0x24] sm:$0xf]
      %v2453 = vld [vmem:[%s2442 + $0x28] sm:$0xf]
      %v2454 = vld [vmem:[%s2442 + $0x2c] sm:$0xf]
      %v2455 = vld [vmem:[%s2442 + $0x30] sm:$0xf]
      %v2456 = vld [vmem:[%s2442 + $0x34] sm:$0xf]
      %v2457 = vld [vmem:[%s2442 + $0x38] sm:$0xf]
      %v2458 = vld [vmem:[%s2442 + $0x3c] sm:$0xf]
      %v2459 = vunpack.c.l.b16 %v2382
      %v2460 = vunpack.c.l.b16 %v2385
      %v2461 = vunpack.c.l.b16 %v2389
      %v2462 = vunpack.c.l.b16 %v2392
      %v2463 = vunpack.c.l.b16 %v2396
      %v2464 = vunpack.c.l.b16 %v2399
      %v2465 = vunpack.c.l.b16 %v2403
      %v2466 = vunpack.c.l.b16 %v2406
      %v2467 = vunpack.c.l.b16 %v2410
      %v2468 = vunpack.c.l.b16 %v2413
      %v2469 = vunpack.c.l.b16 %v2417
      %v2470 = vunpack.c.l.b16 %v2420
      %v2471 = vunpack.c.l.b16 %v2424
      %v2472 = vunpack.c.l.b16 %v2427
      %v2473 = vunpack.c.l.b16 %v2431
      %v2474 = vunpack.c.l.b16 %v2434
      %v2475 = vunpack.c.l.b16 %v2438
      %v2476 = vunpack.c.l.b16 %v2441
      %v2477 = vpack.c.b16 %v2460, %v2459
      %v2478 = vpack.c.b16 %v2462, %v2461
      %v2479 = vpack.c.b16 %v2464, %v2463
      %v2480 = vpack.c.b16 %v2466, %v2465
      %v2481 = vpack.c.b16 %v2468, %v2467
      %v2482 = vpack.c.b16 %v2470, %v2469
      %v2483 = vpack.c.b16 %v2472, %v2471
      %v2484 = vpack.c.b16 %v2474, %v2473
      %v2485 = vpack.c.b16 %v2476, %v2475
      %v2511 = vunpack.c.l.b16 %v2443
      %v2512 = vunpack.c.l.b16 %v2444
      %v2513 = vunpack.c.l.b16 %v2445
      %v2514 = vunpack.c.l.b16 %v2446
      %v2515 = vunpack.c.l.b16 %v2447
      %v2516 = vunpack.c.l.b16 %v2448
      %v2517 = vunpack.c.l.b16 %v2449
      %v2518 = vunpack.c.l.b16 %v2450
      %v2519 = vunpack.c.l.b16 %v2451
      %v2520 = vunpack.c.l.b16 %v2452
      %v2521 = vunpack.c.l.b16 %v2453
      %v2522 = vunpack.c.l.b16 %v2454
      %v2523 = vunpack.c.l.b16 %v2455
      %v2524 = vunpack.c.l.b16 %v2456
      %v2525 = vunpack.c.l.b16 %v2457
      %v2526 = vunpack.c.l.b16 %v2458
      %v2527 = vpack.c.b16 %v2512, %v2511
      %v2528 = vpack.c.b16 %v2514, %v2513
      %v2529 = vpack.c.b16 %v2516, %v2515
      %v2530 = vpack.c.b16 %v2518, %v2517
      %v2531 = vpack.c.b16 %v2520, %v2519
      %v2532 = vpack.c.b16 %v2522, %v2521
      %v2533 = vpack.c.b16 %v2524, %v2523
      %v2534 = vpack.c.b16 %v2526, %v2525
      %2543 = vmatprep.subr.bf16.mxu0 0
      %2544 = vmatpush1.bf16.msra.mxu0 %v2534
      %2545 = vmatprep.subr.bf16.mxu0 0
      %2546 = vmatpush1.bf16.msra.mxu0 %v2533
      %2547 = vmatprep.subr.bf16.mxu0 0
      %2548 = vmatpush1.bf16.msra.mxu0 %v2532
      %2549 = vmatprep.subr.bf16.mxu0 0
      %2550 = vmatpush1.bf16.msra.mxu0 %v2531
      %2551 = vmatprep.subr.bf16.mxu0 0
      %2552 = vmatpush1.bf16.msra.mxu0 %v2530
      %2553 = vmatprep.subr.bf16.mxu0 0
      %2554 = vmatpush1.bf16.msra.mxu0 %v2529
      %2555 = vmatprep.subr.bf16.mxu0 0
      %2556 = vmatpush1.bf16.msra.mxu0 %v2528
      %2557 = vmatprep.subr.bf16.mxu0 0
      %2558 = vmatpush1.bf16.msra.mxu0 %v2527
      %2559 = vmatprep.subr.bf16.mxu0 0
      %2560 = vmatpush2.bf16.msra.mxu0 0
      %2561 = vmatprep.subr.bf16.mxu0 0
      %2562 = vmatpush2.bf16.msra.mxu0 0
      %2563 = vmatprep.subr.bf16.mxu0 0
      %2564 = vmatpush2.bf16.msra.mxu0 0
      %2565 = vmatprep.subr.bf16.mxu0 0
      %2566 = vmatpush2.bf16.msra.mxu0 0
      %2567 = vmatprep.subr.bf16.mxu0 0
      %2568 = vmatpush2.bf16.msra.mxu0 0
      %2569 = vmatprep.subr.bf16.mxu0 0
      %2570 = vmatpush2.bf16.msra.mxu0 0
      %2571 = vmatprep.subr.bf16.mxu0 0
      %2572 = vmatpush2.bf16.msra.mxu0 0
      %2573 = vmatprep.subr.bf16.mxu0 0
      %2574 = vmatpush2.bf16.msra.mxu0 0
      %2575 = vmatprep.mubr.bf16.mxu0 0
      %2576 = vmatmul.mubr.bf16.gmra.mxu0 %v2477
      %v2577 = vpop.f32.mrf.mxu0
      %v2578 = vadd.f32 0.0, %v2577
      %v2579 = vpop.f32.mrf.mxu0
      %v2580 = vpop.f32.mrf.mxu0
      %v2581 = vadd.f32 0.0, %v2580
      %v2582 = vpop.f32.mrf.mxu0
      %2583 = vmatprep.mubr.bf16.mxu0 0
      %2584 = vmatmul.mubr.bf16.gmra.mxu0 %v2478
      %v2585 = vpop.f32.mrf.mxu0
      %v2586 = vadd.f32 0.0, %v2585
      %v2587 = vpop.f32.mrf.mxu0
      %v2588 = vpop.f32.mrf.mxu0
      %v2589 = vadd.f32 0.0, %v2588
      %v2590 = vpop.f32.mrf.mxu0
      %2591 = vmatprep.mubr.bf16.mxu0 0
      %2592 = vmatmul.mubr.bf16.gmra.mxu0 %v2479
      %v2593 = vpop.f32.mrf.mxu0
      %v2594 = vadd.f32 0.0, %v2593
      %v2595 = vpop.f32.mrf.mxu0
      %v2596 = vpop.f32.mrf.mxu0
      %v2597 = vadd.f32 0.0, %v2596
      %v2598 = vpop.f32.mrf.mxu0
      %2599 = vmatprep.mubr.bf16.mxu0 0
      %2600 = vmatmul.mubr.bf16.gmra.mxu0 %v2480
      %v2601 = vpop.f32.mrf.mxu0
      %v2602 = vadd.f32 0.0, %v2601
      %v2603 = vpop.f32.mrf.mxu0
      %v2604 = vpop.f32.mrf.mxu0
      %v2605 = vadd.f32 0.0, %v2604
      %v2606 = vpop.f32.mrf.mxu0
      %2607 = vmatprep.mubr.bf16.mxu0 0
      %2608 = vmatmul.mubr.bf16.gmra.mxu0 %v2481
      %v2609 = vpop.f32.mrf.mxu0
      %v2610 = vadd.f32 0.0, %v2609
      %v2611 = vpop.f32.mrf.mxu0
      %v2612 = vpop.f32.mrf.mxu0
      %v2613 = vadd.f32 0.0, %v2612
      %v2614 = vpop.f32.mrf.mxu0
      %2615 = vmatprep.mubr.bf16.mxu0 0
      %2616 = vmatmul.mubr.bf16.gmra.mxu0 %v2482
      %v2617 = vpop.f32.mrf.mxu0
      %v2618 = vadd.f32 0.0, %v2617
      %v2619 = vpop.f32.mrf.mxu0
      %v2620 = vpop.f32.mrf.mxu0
      %v2621 = vadd.f32 0.0, %v2620
      %v2622 = vpop.f32.mrf.mxu0
      %2623 = vmatprep.mubr.bf16.mxu0 0
      %2624 = vmatmul.mubr.bf16.gmra.mxu0 %v2483
      %v2625 = vpop.f32.mrf.mxu0
      %v2626 = vadd.f32 0.0, %v2625
      %v2627 = vpop.f32.mrf.mxu0
      %v2628 = vpop.f32.mrf.mxu0
      %v2629 = vadd.f32 0.0, %v2628
      %v2630 = vpop.f32.mrf.mxu0
      %2631 = vmatprep.mubr.bf16.mxu0 0
      %2632 = vmatmul.mubr.bf16.gmra.mxu0 %v2484
      %v2633 = vpop.f32.mrf.mxu0
      %v2634 = vadd.f32 0.0, %v2633
      %v2635 = vpop.f32.mrf.mxu0
      %v2636 = vpop.f32.mrf.mxu0
      %v2637 = vadd.f32 0.0, %v2636
      %v2638 = vpop.f32.mrf.mxu0
      %2639 = vmatprep.mubr.bf16.mxu0 0
      %2640 = vmatmul.mubr.bf16.gmra.mxu0 %v2485
      %v2641 = vpop.f32.mrf.mxu0
      %v2642 = vadd.f32 0.0, %v2641
      %v2643 = vpop.f32.mrf.mxu0
      %v2644 = vpop.f32.mrf.mxu0
      %v2645 = vadd.f32 0.0, %v2644
      %v2646 = vpop.f32.mrf.mxu0
      %2647 = vdwg.mxu0
      %v2648 = vadd.f32 %v2325, %v2578
      %v2649 = vadd.f32 %v2326, %v2581
      %v2650 = vadd.f32 %v2327, %v2586
      %v2651 = vadd.f32 %v2328, %v2589
      %v2652 = vadd.f32 %v2329, %v2594
      %v2653 = vadd.f32 %v2330, %v2597
      %v2654 = vadd.f32 %v2331, %v2602
      %v2655 = vadd.f32 %v2332, %v2605
      %v2656 = vadd.f32 %v2333, %v2610
      %v2657 = vadd.f32 %v2334, %v2613
      %v2658 = vadd.f32 %v2335, %v2618
      %v2659 = vadd.f32 %v2336, %v2621
      %v2660 = vadd.f32 %v2337, %v2626
      %v2661 = vadd.f32 %v2338, %v2629
      %v2662 = vadd.f32 %v2339, %v2634
      %v2663 = vadd.f32 %v2340, %v2637
      %v2664 = vadd.f32 %v2341, %v2642
      %v2665 = vadd.f32 %v2342, %v2645
      %s2666 = scalar_lea.vmem %s495, 24 [#allocation2]
      %v2667 = vld [vmem:[%s2666] sm:$0xf]
      %v2668 = vld [vmem:[%s2666 + $0x4] sm:$0xf]
      %v2669 = vld [vmem:[%s2666 + $0xc] sm:$0xf]
      %v2670 = vld [vmem:[%s2666 + $0x10] sm:$0xf]
      %v2671 = vld [vmem:[%s2666 + $0x18] sm:$0xf]
      %v2672 = vld [vmem:[%s2666 + $0x1c] sm:$0xf]
      %v2673 = vld [vmem:[%s2666 + $0x24] sm:$0xf]
      %v2674 = vld [vmem:[%s2666 + $0x28] sm:$0xf]
      %v2675 = vld [vmem:[%s2666 + $0x30] sm:$0xf]
      %v2676 = vld [vmem:[%s2666 + $0x34] sm:$0xf]
      %v2677 = vld [vmem:[%s2666 + $0x3c] sm:$0xf]
      %v2678 = vld [vmem:[%s2666 + $0x40] sm:$0xf]
      %v2679 = vld [vmem:[%s2666 + $0x48] sm:$0xf]
      %v2680 = vld [vmem:[%s2666 + $0x4c] sm:$0xf]
      %v2681 = vld [vmem:[%s2666 + $0x54] sm:$0xf]
      %v2682 = vld [vmem:[%s2666 + $0x58] sm:$0xf]
      %v2683 = vld [vmem:[%s2666 + $0x60] sm:$0xf]
      %v2684 = vld [vmem:[%s2666 + $0x64] sm:$0xf]
      %s2685 = scalar_lea.vmem %s1, 384
      %v2686 = vld [vmem:[%s2685] sm:$0xf]
      %v2687 = vld [vmem:[%s2685 + $0x4] sm:$0xf]
      %v2688 = vld [vmem:[%s2685 + $0x8] sm:$0xf]
      %v2689 = vld [vmem:[%s2685 + $0xc] sm:$0xf]
      %v2690 = vld [vmem:[%s2685 + $0x10] sm:$0xf]
      %v2691 = vld [vmem:[%s2685 + $0x14] sm:$0xf]
      %v2692 = vld [vmem:[%s2685 + $0x18] sm:$0xf]
      %v2693 = vld [vmem:[%s2685 + $0x1c] sm:$0xf]
      %v2694 = vld [vmem:[%s2685 + $0x20] sm:$0xf]
      %v2695 = vld [vmem:[%s2685 + $0x24] sm:$0xf]
      %v2696 = vld [vmem:[%s2685 + $0x28] sm:$0xf]
      %v2697 = vld [vmem:[%s2685 + $0x2c] sm:$0xf]
      %v2698 = vld [vmem:[%s2685 + $0x30] sm:$0xf]
      %v2699 = vld [vmem:[%s2685 + $0x34] sm:$0xf]
      %v2700 = vld [vmem:[%s2685 + $0x38] sm:$0xf]
      %v2701 = vld [vmem:[%s2685 + $0x3c] sm:$0xf]
      %v2720 = vunpack.c.l.b16 %v2667
      %v2721 = vunpack.c.l.b16 %v2668
      %v2722 = vunpack.c.l.b16 %v2669
      %v2723 = vunpack.c.l.b16 %v2670
      %v2724 = vunpack.c.l.b16 %v2671
      %v2725 = vunpack.c.l.b16 %v2672
      %v2726 = vunpack.c.l.b16 %v2673
      %v2727 = vunpack.c.l.b16 %v2674
      %v2728 = vunpack.c.l.b16 %v2675
      %v2729 = vunpack.c.l.b16 %v2676
      %v2730 = vunpack.c.l.b16 %v2677
      %v2731 = vunpack.c.l.b16 %v2678
      %v2732 = vunpack.c.l.b16 %v2679
      %v2733 = vunpack.c.l.b16 %v2680
      %v2734 = vunpack.c.l.b16 %v2681
      %v2735 = vunpack.c.l.b16 %v2682
      %v2736 = vunpack.c.l.b16 %v2683
      %v2737 = vunpack.c.l.b16 %v2684
      %v2738 = vpack.c.b16 %v2721, %v2720
      %v2739 = vpack.c.b16 %v2723, %v2722
      %v2740 = vpack.c.b16 %v2725, %v2724
      %v2741 = vpack.c.b16 %v2727, %v2726
      %v2742 = vpack.c.b16 %v2729, %v2728
      %v2743 = vpack.c.b16 %v2731, %v2730
      %v2744 = vpack.c.b16 %v2733, %v2732
      %v2745 = vpack.c.b16 %v2735, %v2734
      %v2746 = vpack.c.b16 %v2737, %v2736
      %v2772 = vunpack.c.l.b16 %v2686
      %v2773 = vunpack.c.l.b16 %v2687
      %v2774 = vunpack.c.l.b16 %v2688
      %v2775 = vunpack.c.l.b16 %v2689
      %v2776 = vunpack.c.l.b16 %v2690
      %v2777 = vunpack.c.l.b16 %v2691
      %v2778 = vunpack.c.l.b16 %v2692
      %v2779 = vunpack.c.l.b16 %v2693
      %v2780 = vunpack.c.l.b16 %v2694
      %v2781 = vunpack.c.l.b16 %v2695
      %v2782 = vunpack.c.l.b16 %v2696
      %v2783 = vunpack.c.l.b16 %v2697
      %v2784 = vunpack.c.l.b16 %v2698
      %v2785 = vunpack.c.l.b16 %v2699
      %v2786 = vunpack.c.l.b16 %v2700
      %v2787 = vunpack.c.l.b16 %v2701
      %v2788 = vpack.c.b16 %v2773, %v2772
      %v2789 = vpack.c.b16 %v2775, %v2774
      %v2790 = vpack.c.b16 %v2777, %v2776
      %v2791 = vpack.c.b16 %v2779, %v2778
      %v2792 = vpack.c.b16 %v2781, %v2780
      %v2793 = vpack.c.b16 %v2783, %v2782
      %v2794 = vpack.c.b16 %v2785, %v2784
      %v2795 = vpack.c.b16 %v2787, %v2786
      %2804 = vmatprep.subr.bf16.mxu0 0
      %2805 = vmatpush1.bf16.msra.mxu0 %v2795
      %2806 = vmatprep.subr.bf16.mxu0 0
      %2807 = vmatpush1.bf16.msra.mxu0 %v2794
      %2808 = vmatprep.subr.bf16.mxu0 0
      %2809 = vmatpush1.bf16.msra.mxu0 %v2793
      %2810 = vmatprep.subr.bf16.mxu0 0
      %2811 = vmatpush1.bf16.msra.mxu0 %v2792
      %2812 = vmatprep.subr.bf16.mxu0 0
      %2813 = vmatpush1.bf16.msra.mxu0 %v2791
      %2814 = vmatprep.subr.bf16.mxu0 0
      %2815 = vmatpush1.bf16.msra.mxu0 %v2790
      %2816 = vmatprep.subr.bf16.mxu0 0
      %2817 = vmatpush1.bf16.msra.mxu0 %v2789
      %2818 = vmatprep.subr.bf16.mxu0 0
      %2819 = vmatpush1.bf16.msra.mxu0 %v2788
      %2820 = vmatprep.subr.bf16.mxu0 0
      %2821 = vmatpush2.bf16.msra.mxu0 0
      %2822 = vmatprep.subr.bf16.mxu0 0
      %2823 = vmatpush2.bf16.msra.mxu0 0
      %2824 = vmatprep.subr.bf16.mxu0 0
      %2825 = vmatpush2.bf16.msra.mxu0 0
      %2826 = vmatprep.subr.bf16.mxu0 0
      %2827 = vmatpush2.bf16.msra.mxu0 0
      %2828 = vmatprep.subr.bf16.mxu0 0
      %2829 = vmatpush2.bf16.msra.mxu0 0
      %2830 = vmatprep.subr.bf16.mxu0 0
      %2831 = vmatpush2.bf16.msra.mxu0 0
      %2832 = vmatprep.subr.bf16.mxu0 0
      %2833 = vmatpush2.bf16.msra.mxu0 0
      %2834 = vmatprep.subr.bf16.mxu0 0
      %2835 = vmatpush2.bf16.msra.mxu0 0
      %2836 = vmatprep.mubr.bf16.mxu0 0
      %2837 = vmatmul.mubr.bf16.gmra.mxu0 %v2738
      %v2838 = vpop.f32.mrf.mxu0
      %v2839 = vadd.f32 0.0, %v2838
      %v2840 = vpop.f32.mrf.mxu0
      %v2841 = vpop.f32.mrf.mxu0
      %v2842 = vadd.f32 0.0, %v2841
      %v2843 = vpop.f32.mrf.mxu0
      %2844 = vmatprep.mubr.bf16.mxu0 0
      %2845 = vmatmul.mubr.bf16.gmra.mxu0 %v2739
      %v2846 = vpop.f32.mrf.mxu0
      %v2847 = vadd.f32 0.0, %v2846
      %v2848 = vpop.f32.mrf.mxu0
      %v2849 = vpop.f32.mrf.mxu0
      %v2850 = vadd.f32 0.0, %v2849
      %v2851 = vpop.f32.mrf.mxu0
      %2852 = vmatprep.mubr.bf16.mxu0 0
      %2853 = vmatmul.mubr.bf16.gmra.mxu0 %v2740
      %v2854 = vpop.f32.mrf.mxu0
      %v2855 = vadd.f32 0.0, %v2854
      %v2856 = vpop.f32.mrf.mxu0
      %v2857 = vpop.f32.mrf.mxu0
      %v2858 = vadd.f32 0.0, %v2857
      %v2859 = vpop.f32.mrf.mxu0
      %2860 = vmatprep.mubr.bf16.mxu0 0
      %2861 = vmatmul.mubr.bf16.gmra.mxu0 %v2741
      %v2862 = vpop.f32.mrf.mxu0
      %v2863 = vadd.f32 0.0, %v2862
      %v2864 = vpop.f32.mrf.mxu0
      %v2865 = vpop.f32.mrf.mxu0
      %v2866 = vadd.f32 0.0, %v2865
      %v2867 = vpop.f32.mrf.mxu0
      %2868 = vmatprep.mubr.bf16.mxu0 0
      %2869 = vmatmul.mubr.bf16.gmra.mxu0 %v2742
      %v2870 = vpop.f32.mrf.mxu0
      %v2871 = vadd.f32 0.0, %v2870
      %v2872 = vpop.f32.mrf.mxu0
      %v2873 = vpop.f32.mrf.mxu0
      %v2874 = vadd.f32 0.0, %v2873
      %v2875 = vpop.f32.mrf.mxu0
      %2876 = vmatprep.mubr.bf16.mxu0 0
      %2877 = vmatmul.mubr.bf16.gmra.mxu0 %v2743
      %v2878 = vpop.f32.mrf.mxu0
      %v2879 = vadd.f32 0.0, %v2878
      %v2880 = vpop.f32.mrf.mxu0
      %v2881 = vpop.f32.mrf.mxu0
      %v2882 = vadd.f32 0.0, %v2881
      %v2883 = vpop.f32.mrf.mxu0
      %2884 = vmatprep.mubr.bf16.mxu0 0
      %2885 = vmatmul.mubr.bf16.gmra.mxu0 %v2744
      %v2886 = vpop.f32.mrf.mxu0
      %v2887 = vadd.f32 0.0, %v2886
      %v2888 = vpop.f32.mrf.mxu0
      %v2889 = vpop.f32.mrf.mxu0
      %v2890 = vadd.f32 0.0, %v2889
      %v2891 = vpop.f32.mrf.mxu0
      %2892 = vmatprep.mubr.bf16.mxu0 0
      %2893 = vmatmul.mubr.bf16.gmra.mxu0 %v2745
      %v2894 = vpop.f32.mrf.mxu0
      %v2895 = vadd.f32 0.0, %v2894
      %v2896 = vpop.f32.mrf.mxu0
      %v2897 = vpop.f32.mrf.mxu0
      %v2898 = vadd.f32 0.0, %v2897
      %v2899 = vpop.f32.mrf.mxu0
      %2900 = vmatprep.mubr.bf16.mxu0 0
      %2901 = vmatmul.mubr.bf16.gmra.mxu0 %v2746
      %v2902 = vpop.f32.mrf.mxu0
      %v2903 = vadd.f32 0.0, %v2902
      %v2904 = vpop.f32.mrf.mxu0
      %v2905 = vpop.f32.mrf.mxu0
      %v2906 = vadd.f32 0.0, %v2905
      %v2907 = vpop.f32.mrf.mxu0
      %2908 = vdwg.mxu0
      %v2909 = vadd.f32 %v2648, %v2839
      %v2910 = vadd.f32 %v2649, %v2842
      %v2911 = vadd.f32 %v2650, %v2847
      %v2912 = vadd.f32 %v2651, %v2850
      %v2913 = vadd.f32 %v2652, %v2855
      %v2914 = vadd.f32 %v2653, %v2858
      %v2915 = vadd.f32 %v2654, %v2863
      %v2916 = vadd.f32 %v2655, %v2866
      %v2917 = vadd.f32 %v2656, %v2871
      %v2918 = vadd.f32 %v2657, %v2874
      %v2919 = vadd.f32 %v2658, %v2879
      %v2920 = vadd.f32 %v2659, %v2882
      %v2921 = vadd.f32 %v2660, %v2887
      %v2922 = vadd.f32 %v2661, %v2890
      %v2923 = vadd.f32 %v2662, %v2895
      %v2924 = vadd.f32 %v2663, %v2898
      %v2925 = vadd.f32 %v2664, %v2903
      %v2926 = vadd.f32 %v2665, %v2906
      %v2927 = vld [vmem:[%s2666] sm:$0xf]
      %v2928 = vld [vmem:[%s2666 + $0x4] sm:$0xf]
      %v2929 = vld [vmem:[%s2666 + $0x8] sm:$0x1]
      %v2930 = vld [vmem:[%s2666 + $0xc] sm:$0xf]
      %v2931 = vld [vmem:[%s2666 + $0x10] sm:$0xf]
      %v2932 = vld [vmem:[%s2666 + $0x14] sm:$0x1]
      %v2933 = vld [vmem:[%s2666 + $0x18] sm:$0xf]
      %v2934 = vld [vmem:[%s2666 + $0x1c] sm:$0xf]
      %v2935 = vld [vmem:[%s2666 + $0x20] sm:$0x1]
      %v2936 = vld [vmem:[%s2666 + $0x24] sm:$0xf]
      %v2937 = vld [vmem:[%s2666 + $0x28] sm:$0xf]
      %v2938 = vld [vmem:[%s2666 + $0x2c] sm:$0x1]
      %v2939 = vld [vmem:[%s2666 + $0x30] sm:$0xf]
      %v2940 = vld [vmem:[%s2666 + $0x34] sm:$0xf]
      %v2941 = vld [vmem:[%s2666 + $0x38] sm:$0x1]
      %v2942 = vld [vmem:[%s2666 + $0x3c] sm:$0xf]
      %v2943 = vld [vmem:[%s2666 + $0x40] sm:$0xf]
      %v2944 = vld [vmem:[%s2666 + $0x44] sm:$0x1]
      %v2945 = vld [vmem:[%s2666 + $0x48] sm:$0xf]
      %v2946 = vld [vmem:[%s2666 + $0x4c] sm:$0xf]
      %v2947 = vld [vmem:[%s2666 + $0x50] sm:$0x1]
      %v2948 = vld [vmem:[%s2666 + $0x54] sm:$0xf]
      %v2949 = vld [vmem:[%s2666 + $0x58] sm:$0xf]
      %v2950 = vld [vmem:[%s2666 + $0x5c] sm:$0x1]
      %v2951 = vld [vmem:[%s2666 + $0x60] sm:$0xf]
      %v2952 = vld [vmem:[%s2666 + $0x64] sm:$0xf]
      %v2953 = vld [vmem:[%s2666 + $0x68] sm:$0x1]
      %v2955 = vshrl.u32 %v2927, 16
      %v2957 = vrot.slane %v2955, 4
      %v2958 = vshll.u32 %v2927, 16
      %v2960 = vrot.slane %v2958, 5
      %v2961 = vor.u32 %v2957, %v2960
      %v2962 = vrot.slane %v2961, 4
      %v2964 = vshll.u32 %v2928, 16
      %v2966 = vrot.slane %v2964, 5
      %v2967 = vsel %vm668, %v2962, %v2966
      %v2968 = vshrl.u32 %v2928, 16
      %v2970 = vrot.slane %v2968, 4
      %v2971 = vor.u32 %v2970, %v2966
      %v2972 = vrot.slane %v2971, 4
      %v2974 = vshll.u32 %v2929, 16
      %v2976 = vrot.slane %v2974, 5
      %v2977 = vsel %vm668, %v2972, %v2976
      %v2979 = vshrl.u32 %v2930, 16
      %v2981 = vrot.slane %v2979, 4
      %v2982 = vshll.u32 %v2930, 16
      %v2984 = vrot.slane %v2982, 5
      %v2985 = vor.u32 %v2981, %v2984
      %v2986 = vrot.slane %v2985, 4
      %v2988 = vshll.u32 %v2931, 16
      %v2990 = vrot.slane %v2988, 5
      %v2991 = vsel %vm668, %v2986, %v2990
      %v2992 = vshrl.u32 %v2931, 16
      %v2994 = vrot.slane %v2992, 4
      %v2995 = vor.u32 %v2994, %v2990
      %v2996 = vrot.slane %v2995, 4
      %v2998 = vshll.u32 %v2932, 16
      %v3000 = vrot.slane %v2998, 5
      %v3001 = vsel %vm668, %v2996, %v3000
      %v3003 = vshrl.u32 %v2933, 16
      %v3005 = vrot.slane %v3003, 4
      %v3006 = vshll.u32 %v2933, 16
      %v3008 = vrot.slane %v3006, 5
      %v3009 = vor.u32 %v3005, %v3008
      %v3010 = vrot.slane %v3009, 4
      %v3012 = vshll.u32 %v2934, 16
      %v3014 = vrot.slane %v3012, 5
      %v3015 = vsel %vm668, %v3010, %v3014
      %v3016 = vshrl.u32 %v2934, 16
      %v3018 = vrot.slane %v3016, 4
      %v3019 = vor.u32 %v3018, %v3014
      %v3020 = vrot.slane %v3019, 4
      %v3022 = vshll.u32 %v2935, 16
      %v3024 = vrot.slane %v3022, 5
      %v3025 = vsel %vm668, %v3020, %v3024
      %v3027 = vshrl.u32 %v2936, 16
      %v3029 = vrot.slane %v3027, 4
      %v3030 = vshll.u32 %v2936, 16
      %v3032 = vrot.slane %v3030, 5
      %v3033 = vor.u32 %v3029, %v3032
      %v3034 = vrot.slane %v3033, 4
      %v3036 = vshll.u32 %v2937, 16
      %v3038 = vrot.slane %v3036, 5
      %v3039 = vsel %vm668, %v3034, %v3038
      %v3040 = vshrl.u32 %v2937, 16
      %v3042 = vrot.slane %v3040, 4
      %v3043 = vor.u32 %v3042, %v3038
      %v3044 = vrot.slane %v3043, 4
      %v3046 = vshll.u32 %v2938, 16
      %v3048 = vrot.slane %v3046, 5
      %v3049 = vsel %vm668, %v3044, %v3048
      %v3051 = vshrl.u32 %v2939, 16
      %v3053 = vrot.slane %v3051, 4
      %v3054 = vshll.u32 %v2939, 16
      %v3056 = vrot.slane %v3054, 5
      %v3057 = vor.u32 %v3053, %v3056
      %v3058 = vrot.slane %v3057, 4
      %v3060 = vshll.u32 %v2940, 16
      %v3062 = vrot.slane %v3060, 5
      %v3063 = vsel %vm668, %v3058, %v3062
      %v3064 = vshrl.u32 %v2940, 16
      %v3066 = vrot.slane %v3064, 4
      %v3067 = vor.u32 %v3066, %v3062
      %v3068 = vrot.slane %v3067, 4
      %v3070 = vshll.u32 %v2941, 16
      %v3072 = vrot.slane %v3070, 5
      %v3073 = vsel %vm668, %v3068, %v3072
      %v3075 = vshrl.u32 %v2942, 16
      %v3077 = vrot.slane %v3075, 4
      %v3078 = vshll.u32 %v2942, 16
      %v3080 = vrot.slane %v3078, 5
      %v3081 = vor.u32 %v3077, %v3080
      %v3082 = vrot.slane %v3081, 4
      %v3084 = vshll.u32 %v2943, 16
      %v3086 = vrot.slane %v3084, 5
      %v3087 = vsel %vm668, %v3082, %v3086
      %v3088 = vshrl.u32 %v2943, 16
      %v3090 = vrot.slane %v3088, 4
      %v3091 = vor.u32 %v3090, %v3086
      %v3092 = vrot.slane %v3091, 4
      %v3094 = vshll.u32 %v2944, 16
      %v3096 = vrot.slane %v3094, 5
      %v3097 = vsel %vm668, %v3092, %v3096
      %v3099 = vshrl.u32 %v2945, 16
      %v3101 = vrot.slane %v3099, 4
      %v3102 = vshll.u32 %v2945, 16
      %v3104 = vrot.slane %v3102, 5
      %v3105 = vor.u32 %v3101, %v3104
      %v3106 = vrot.slane %v3105, 4
      %v3108 = vshll.u32 %v2946, 16
      %v3110 = vrot.slane %v3108, 5
      %v3111 = vsel %vm668, %v3106, %v3110
      %v3112 = vshrl.u32 %v2946, 16
      %v3114 = vrot.slane %v3112, 4
      %v3115 = vor.u32 %v3114, %v3110
      %v3116 = vrot.slane %v3115, 4
      %v3118 = vshll.u32 %v2947, 16
      %v3120 = vrot.slane %v3118, 5
      %v3121 = vsel %vm668, %v3116, %v3120
      %v3123 = vshrl.u32 %v2948, 16
      %v3125 = vrot.slane %v3123, 4
      %v3126 = vshll.u32 %v2948, 16
      %v3128 = vrot.slane %v3126, 5
      %v3129 = vor.u32 %v3125, %v3128
      %v3130 = vrot.slane %v3129, 4
      %v3132 = vshll.u32 %v2949, 16
      %v3134 = vrot.slane %v3132, 5
      %v3135 = vsel %vm668, %v3130, %v3134
      %v3136 = vshrl.u32 %v2949, 16
      %v3138 = vrot.slane %v3136, 4
      %v3139 = vor.u32 %v3138, %v3134
      %v3140 = vrot.slane %v3139, 4
      %v3142 = vshll.u32 %v2950, 16
      %v3144 = vrot.slane %v3142, 5
      %v3145 = vsel %vm668, %v3140, %v3144
      %v3147 = vshrl.u32 %v2951, 16
      %v3149 = vrot.slane %v3147, 4
      %v3150 = vshll.u32 %v2951, 16
      %v3152 = vrot.slane %v3150, 5
      %v3153 = vor.u32 %v3149, %v3152
      %v3154 = vrot.slane %v3153, 4
      %v3156 = vshll.u32 %v2952, 16
      %v3158 = vrot.slane %v3156, 5
      %v3159 = vsel %vm668, %v3154, %v3158
      %v3160 = vshrl.u32 %v2952, 16
      %v3162 = vrot.slane %v3160, 4
      %v3163 = vor.u32 %v3162, %v3158
      %v3164 = vrot.slane %v3163, 4
      %v3166 = vshll.u32 %v2953, 16
      %v3168 = vrot.slane %v3166, 5
      %v3169 = vsel %vm668, %v3164, %v3168
      %s3170 = scalar_lea.vmem %s1, 448
      %v3171 = vld [vmem:[%s3170] sm:$0xf]
      %v3172 = vld [vmem:[%s3170 + $0x4] sm:$0xf]
      %v3173 = vld [vmem:[%s3170 + $0x8] sm:$0xf]
      %v3174 = vld [vmem:[%s3170 + $0xc] sm:$0xf]
      %v3175 = vld [vmem:[%s3170 + $0x10] sm:$0xf]
      %v3176 = vld [vmem:[%s3170 + $0x14] sm:$0xf]
      %v3177 = vld [vmem:[%s3170 + $0x18] sm:$0xf]
      %v3178 = vld [vmem:[%s3170 + $0x1c] sm:$0xf]
      %v3179 = vld [vmem:[%s3170 + $0x20] sm:$0xf]
      %v3180 = vld [vmem:[%s3170 + $0x24] sm:$0xf]
      %v3181 = vld [vmem:[%s3170 + $0x28] sm:$0xf]
      %v3182 = vld [vmem:[%s3170 + $0x2c] sm:$0xf]
      %v3183 = vld [vmem:[%s3170 + $0x30] sm:$0xf]
      %v3184 = vld [vmem:[%s3170 + $0x34] sm:$0xf]
      %v3185 = vld [vmem:[%s3170 + $0x38] sm:$0xf]
      %v3186 = vld [vmem:[%s3170 + $0x3c] sm:$0xf]
      %v3187 = vunpack.c.l.b16 %v2967
      %v3188 = vunpack.c.l.b16 %v2977
      %v3189 = vunpack.c.l.b16 %v2991
      %v3190 = vunpack.c.l.b16 %v3001
      %v3191 = vunpack.c.l.b16 %v3015
      %v3192 = vunpack.c.l.b16 %v3025
      %v3193 = vunpack.c.l.b16 %v3039
      %v3194 = vunpack.c.l.b16 %v3049
      %v3195 = vunpack.c.l.b16 %v3063
      %v3196 = vunpack.c.l.b16 %v3073
      %v3197 = vunpack.c.l.b16 %v3087
      %v3198 = vunpack.c.l.b16 %v3097
      %v3199 = vunpack.c.l.b16 %v3111
      %v3200 = vunpack.c.l.b16 %v3121
      %v3201 = vunpack.c.l.b16 %v3135
      %v3202 = vunpack.c.l.b16 %v3145
      %v3203 = vunpack.c.l.b16 %v3159
      %v3204 = vunpack.c.l.b16 %v3169
      %v3205 = vpack.c.b16 %v3188, %v3187
      %v3206 = vpack.c.b16 %v3190, %v3189
      %v3207 = vpack.c.b16 %v3192, %v3191
      %v3208 = vpack.c.b16 %v3194, %v3193
      %v3209 = vpack.c.b16 %v3196, %v3195
      %v3210 = vpack.c.b16 %v3198, %v3197
      %v3211 = vpack.c.b16 %v3200, %v3199
      %v3212 = vpack.c.b16 %v3202, %v3201
      %v3213 = vpack.c.b16 %v3204, %v3203
      %v3239 = vunpack.c.l.b16 %v3171
      %v3240 = vunpack.c.l.b16 %v3172
      %v3241 = vunpack.c.l.b16 %v3173
      %v3242 = vunpack.c.l.b16 %v3174
      %v3243 = vunpack.c.l.b16 %v3175
      %v3244 = vunpack.c.l.b16 %v3176
      %v3245 = vunpack.c.l.b16 %v3177
      %v3246 = vunpack.c.l.b16 %v3178
      %v3247 = vunpack.c.l.b16 %v3179
      %v3248 = vunpack.c.l.b16 %v3180
      %v3249 = vunpack.c.l.b16 %v3181
      %v3250 = vunpack.c.l.b16 %v3182
      %v3251 = vunpack.c.l.b16 %v3183
      %v3252 = vunpack.c.l.b16 %v3184
      %v3253 = vunpack.c.l.b16 %v3185
      %v3254 = vunpack.c.l.b16 %v3186
      %v3255 = vpack.c.b16 %v3240, %v3239
      %v3256 = vpack.c.b16 %v3242, %v3241
      %v3257 = vpack.c.b16 %v3244, %v3243
      %v3258 = vpack.c.b16 %v3246, %v3245
      %v3259 = vpack.c.b16 %v3248, %v3247
      %v3260 = vpack.c.b16 %v3250, %v3249
      %v3261 = vpack.c.b16 %v3252, %v3251
      %v3262 = vpack.c.b16 %v3254, %v3253
      %3271 = vmatprep.subr.bf16.mxu0 0
      %3272 = vmatpush1.bf16.msra.mxu0 %v3262
      %3273 = vmatprep.subr.bf16.mxu0 0
      %3274 = vmatpush1.bf16.msra.mxu0 %v3261
      %3275 = vmatprep.subr.bf16.mxu0 0
      %3276 = vmatpush1.bf16.msra.mxu0 %v3260
      %3277 = vmatprep.subr.bf16.mxu0 0
      %3278 = vmatpush1.bf16.msra.mxu0 %v3259
      %3279 = vmatprep.subr.bf16.mxu0 0
      %3280 = vmatpush1.bf16.msra.mxu0 %v3258
      %3281 = vmatprep.subr.bf16.mxu0 0
      %3282 = vmatpush1.bf16.msra.mxu0 %v3257
      %3283 = vmatprep.subr.bf16.mxu0 0
      %3284 = vmatpush1.bf16.msra.mxu0 %v3256
      %3285 = vmatprep.subr.bf16.mxu0 0
      %3286 = vmatpush1.bf16.msra.mxu0 %v3255
      %3287 = vmatprep.subr.bf16.mxu0 0
      %3288 = vmatpush2.bf16.msra.mxu0 0
      %3289 = vmatprep.subr.bf16.mxu0 0
      %3290 = vmatpush2.bf16.msra.mxu0 0
      %3291 = vmatprep.subr.bf16.mxu0 0
      %3292 = vmatpush2.bf16.msra.mxu0 0
      %3293 = vmatprep.subr.bf16.mxu0 0
      %3294 = vmatpush2.bf16.msra.mxu0 0
      %3295 = vmatprep.subr.bf16.mxu0 0
      %3296 = vmatpush2.bf16.msra.mxu0 0
      %3297 = vmatprep.subr.bf16.mxu0 0
      %3298 = vmatpush2.bf16.msra.mxu0 0
      %3299 = vmatprep.subr.bf16.mxu0 0
      %3300 = vmatpush2.bf16.msra.mxu0 0
      %3301 = vmatprep.subr.bf16.mxu0 0
      %3302 = vmatpush2.bf16.msra.mxu0 0
      %3303 = vmatprep.mubr.bf16.mxu0 0
      %3304 = vmatmul.mubr.bf16.gmra.mxu0 %v3205
      %v3305 = vpop.f32.mrf.mxu0
      %v3306 = vadd.f32 0.0, %v3305
      %v3307 = vpop.f32.mrf.mxu0
      %v3308 = vpop.f32.mrf.mxu0
      %v3309 = vadd.f32 0.0, %v3308
      %v3310 = vpop.f32.mrf.mxu0
      %3311 = vmatprep.mubr.bf16.mxu0 0
      %3312 = vmatmul.mubr.bf16.gmra.mxu0 %v3206
      %v3313 = vpop.f32.mrf.mxu0
      %v3314 = vadd.f32 0.0, %v3313
      %v3315 = vpop.f32.mrf.mxu0
      %v3316 = vpop.f32.mrf.mxu0
      %v3317 = vadd.f32 0.0, %v3316
      %v3318 = vpop.f32.mrf.mxu0
      %3319 = vmatprep.mubr.bf16.mxu0 0
      %3320 = vmatmul.mubr.bf16.gmra.mxu0 %v3207
      %v3321 = vpop.f32.mrf.mxu0
      %v3322 = vadd.f32 0.0, %v3321
      %v3323 = vpop.f32.mrf.mxu0
      %v3324 = vpop.f32.mrf.mxu0
      %v3325 = vadd.f32 0.0, %v3324
      %v3326 = vpop.f32.mrf.mxu0
      %3327 = vmatprep.mubr.bf16.mxu0 0
      %3328 = vmatmul.mubr.bf16.gmra.mxu0 %v3208
      %v3329 = vpop.f32.mrf.mxu0
      %v3330 = vadd.f32 0.0, %v3329
      %v3331 = vpop.f32.mrf.mxu0
      %v3332 = vpop.f32.mrf.mxu0
      %v3333 = vadd.f32 0.0, %v3332
      %v3334 = vpop.f32.mrf.mxu0
      %3335 = vmatprep.mubr.bf16.mxu0 0
      %3336 = vmatmul.mubr.bf16.gmra.mxu0 %v3209
      %v3337 = vpop.f32.mrf.mxu0
      %v3338 = vadd.f32 0.0, %v3337
      %v3339 = vpop.f32.mrf.mxu0
      %v3340 = vpop.f32.mrf.mxu0
      %v3341 = vadd.f32 0.0, %v3340
      %v3342 = vpop.f32.mrf.mxu0
      %3343 = vmatprep.mubr.bf16.mxu0 0
      %3344 = vmatmul.mubr.bf16.gmra.mxu0 %v3210
      %v3345 = vpop.f32.mrf.mxu0
      %v3346 = vadd.f32 0.0, %v3345
      %v3347 = vpop.f32.mrf.mxu0
      %v3348 = vpop.f32.mrf.mxu0
      %v3349 = vadd.f32 0.0, %v3348
      %v3350 = vpop.f32.mrf.mxu0
      %3351 = vmatprep.mubr.bf16.mxu0 0
      %3352 = vmatmul.mubr.bf16.gmra.mxu0 %v3211
      %v3353 = vpop.f32.mrf.mxu0
      %v3354 = vadd.f32 0.0, %v3353
      %v3355 = vpop.f32.mrf.mxu0
      %v3356 = vpop.f32.mrf.mxu0
      %v3357 = vadd.f32 0.0, %v3356
      %v3358 = vpop.f32.mrf.mxu0
      %3359 = vmatprep.mubr.bf16.mxu0 0
      %3360 = vmatmul.mubr.bf16.gmra.mxu0 %v3212
      %v3361 = vpop.f32.mrf.mxu0
      %v3362 = vadd.f32 0.0, %v3361
      %v3363 = vpop.f32.mrf.mxu0
      %v3364 = vpop.f32.mrf.mxu0
      %v3365 = vadd.f32 0.0, %v3364
      %v3366 = vpop.f32.mrf.mxu0
      %3367 = vmatprep.mubr.bf16.mxu0 0
      %3368 = vmatmul.mubr.bf16.gmra.mxu0 %v3213
      %v3369 = vpop.f32.mrf.mxu0
      %v3370 = vadd.f32 0.0, %v3369
      %v3371 = vpop.f32.mrf.mxu0
      %v3372 = vpop.f32.mrf.mxu0
      %v3373 = vadd.f32 0.0, %v3372
      %v3374 = vpop.f32.mrf.mxu0
      %3375 = vdwg.mxu0
      %v3376 = vadd.f32 %v2909, %v3306
      %v3377 = vadd.f32 %v2910, %v3309
      %v3378 = vadd.f32 %v2911, %v3314
      %v3379 = vadd.f32 %v2912, %v3317
      %v3380 = vadd.f32 %v2913, %v3322
      %v3381 = vadd.f32 %v2914, %v3325
      %v3382 = vadd.f32 %v2915, %v3330
      %v3383 = vadd.f32 %v2916, %v3333
      %v3384 = vadd.f32 %v2917, %v3338
      %v3385 = vadd.f32 %v2918, %v3341
      %v3386 = vadd.f32 %v2919, %v3346
      %v3387 = vadd.f32 %v2920, %v3349
      %v3388 = vadd.f32 %v2921, %v3354
      %v3389 = vadd.f32 %v2922, %v3357
      %v3390 = vadd.f32 %v2923, %v3362
      %v3391 = vadd.f32 %v2924, %v3365
      %v3392 = vadd.f32 %v2925, %v3370
      %v3393 = vadd.f32 %v2926, %v3373
      %v3394 = vld [vmem:[%s2666] sm:$0xe]
      %v3395 = vld [vmem:[%s2666 + $0xc] sm:$0xe]
      %v3396 = vld [vmem:[%s2666 + $0x18] sm:$0xe]
      %v3397 = vld [vmem:[%s2666 + $0x24] sm:$0xe]
      %v3398 = vld [vmem:[%s2666 + $0x30] sm:$0xe]
      %v3399 = vld [vmem:[%s2666 + $0x3c] sm:$0xe]
      %v3400 = vld [vmem:[%s2666 + $0x48] sm:$0xe]
      %v3401 = vld [vmem:[%s2666 + $0x54] sm:$0xe]
      %v3402 = vld [vmem:[%s2666 + $0x60] sm:$0xe]
      %v3430 = vrot.slane %v3394, 5
      %v3431 = vrot.slane %v3430, 4
      %v3432 = vrot.slane %v2928, 5
      %v3433 = vsel %vm1327, %v3431, %v3432
      %v3434 = vrot.slane %v3432, 4
      %v3435 = vrot.slane %v2929, 5
      %v3436 = vsel %vm1327, %v3434, %v3435
      %v3437 = vrot.slane %v3395, 5
      %v3438 = vrot.slane %v3437, 4
      %v3439 = vrot.slane %v2931, 5
      %v3440 = vsel %vm1327, %v3438, %v3439
      %v3441 = vrot.slane %v3439, 4
      %v3442 = vrot.slane %v2932, 5
      %v3443 = vsel %vm1327, %v3441, %v3442
      %v3444 = vrot.slane %v3396, 5
      %v3445 = vrot.slane %v3444, 4
      %v3446 = vrot.slane %v2934, 5
      %v3447 = vsel %vm1327, %v3445, %v3446
      %v3448 = vrot.slane %v3446, 4
      %v3449 = vrot.slane %v2935, 5
      %v3450 = vsel %vm1327, %v3448, %v3449
      %v3451 = vrot.slane %v3397, 5
      %v3452 = vrot.slane %v3451, 4
      %v3453 = vrot.slane %v2937, 5
      %v3454 = vsel %vm1327, %v3452, %v3453
      %v3455 = vrot.slane %v3453, 4
      %v3456 = vrot.slane %v2938, 5
      %v3457 = vsel %vm1327, %v3455, %v3456
      %v3458 = vrot.slane %v3398, 5
      %v3459 = vrot.slane %v3458, 4
      %v3460 = vrot.slane %v2940, 5
      %v3461 = vsel %vm1327, %v3459, %v3460
      %v3462 = vrot.slane %v3460, 4
      %v3463 = vrot.slane %v2941, 5
      %v3464 = vsel %vm1327, %v3462, %v3463
      %v3465 = vrot.slane %v3399, 5
      %v3466 = vrot.slane %v3465, 4
      %v3467 = vrot.slane %v2943, 5
      %v3468 = vsel %vm1327, %v3466, %v3467
      %v3469 = vrot.slane %v3467, 4
      %v3470 = vrot.slane %v2944, 5
      %v3471 = vsel %vm1327, %v3469, %v3470
      %v3472 = vrot.slane %v3400, 5
      %v3473 = vrot.slane %v3472, 4
      %v3474 = vrot.slane %v2946, 5
      %v3475 = vsel %vm1327, %v3473, %v3474
      %v3476 = vrot.slane %v3474, 4
      %v3477 = vrot.slane %v2947, 5
      %v3478 = vsel %vm1327, %v3476, %v3477
      %v3479 = vrot.slane %v3401, 5
      %v3480 = vrot.slane %v3479, 4
      %v3481 = vrot.slane %v2949, 5
      %v3482 = vsel %vm1327, %v3480, %v3481
      %v3483 = vrot.slane %v3481, 4
      %v3484 = vrot.slane %v2950, 5
      %v3485 = vsel %vm1327, %v3483, %v3484
      %v3486 = vrot.slane %v3402, 5
      %v3487 = vrot.slane %v3486, 4
      %v3488 = vrot.slane %v2952, 5
      %v3489 = vsel %vm1327, %v3487, %v3488
      %v3490 = vrot.slane %v3488, 4
      %v3491 = vrot.slane %v2953, 5
      %v3492 = vsel %vm1327, %v3490, %v3491
      %s3493 = scalar_lea.vmem %s1, 512
      %v3494 = vld [vmem:[%s3493] sm:$0xf]
      %v3495 = vld [vmem:[%s3493 + $0x4] sm:$0xf]
      %v3496 = vld [vmem:[%s3493 + $0x8] sm:$0xf]
      %v3497 = vld [vmem:[%s3493 + $0xc] sm:$0xf]
      %v3498 = vld [vmem:[%s3493 + $0x10] sm:$0xf]
      %v3499 = vld [vmem:[%s3493 + $0x14] sm:$0xf]
      %v3500 = vld [vmem:[%s3493 + $0x18] sm:$0xf]
      %v3501 = vld [vmem:[%s3493 + $0x1c] sm:$0xf]
      %v3502 = vld [vmem:[%s3493 + $0x20] sm:$0xf]
      %v3503 = vld [vmem:[%s3493 + $0x24] sm:$0xf]
      %v3504 = vld [vmem:[%s3493 + $0x28] sm:$0xf]
      %v3505 = vld [vmem:[%s3493 + $0x2c] sm:$0xf]
      %v3506 = vld [vmem:[%s3493 + $0x30] sm:$0xf]
      %v3507 = vld [vmem:[%s3493 + $0x34] sm:$0xf]
      %v3508 = vld [vmem:[%s3493 + $0x38] sm:$0xf]
      %v3509 = vld [vmem:[%s3493 + $0x3c] sm:$0xf]
      %v3510 = vunpack.c.l.b16 %v3433
      %v3511 = vunpack.c.l.b16 %v3436
      %v3512 = vunpack.c.l.b16 %v3440
      %v3513 = vunpack.c.l.b16 %v3443
      %v3514 = vunpack.c.l.b16 %v3447
      %v3515 = vunpack.c.l.b16 %v3450
      %v3516 = vunpack.c.l.b16 %v3454
      %v3517 = vunpack.c.l.b16 %v3457
      %v3518 = vunpack.c.l.b16 %v3461
      %v3519 = vunpack.c.l.b16 %v3464
      %v3520 = vunpack.c.l.b16 %v3468
      %v3521 = vunpack.c.l.b16 %v3471
      %v3522 = vunpack.c.l.b16 %v3475
      %v3523 = vunpack.c.l.b16 %v3478
      %v3524 = vunpack.c.l.b16 %v3482
      %v3525 = vunpack.c.l.b16 %v3485
      %v3526 = vunpack.c.l.b16 %v3489
      %v3527 = vunpack.c.l.b16 %v3492
      %v3528 = vpack.c.b16 %v3511, %v3510
      %v3529 = vpack.c.b16 %v3513, %v3512
      %v3530 = vpack.c.b16 %v3515, %v3514
      %v3531 = vpack.c.b16 %v3517, %v3516
      %v3532 = vpack.c.b16 %v3519, %v3518
      %v3533 = vpack.c.b16 %v3521, %v3520
      %v3534 = vpack.c.b16 %v3523, %v3522
      %v3535 = vpack.c.b16 %v3525, %v3524
      %v3536 = vpack.c.b16 %v3527, %v3526
      %v3562 = vunpack.c.l.b16 %v3494
      %v3563 = vunpack.c.l.b16 %v3495
      %v3564 = vunpack.c.l.b16 %v3496
      %v3565 = vunpack.c.l.b16 %v3497
      %v3566 = vunpack.c.l.b16 %v3498
      %v3567 = vunpack.c.l.b16 %v3499
      %v3568 = vunpack.c.l.b16 %v3500
      %v3569 = vunpack.c.l.b16 %v3501
      %v3570 = vunpack.c.l.b16 %v3502
      %v3571 = vunpack.c.l.b16 %v3503
      %v3572 = vunpack.c.l.b16 %v3504
      %v3573 = vunpack.c.l.b16 %v3505
      %v3574 = vunpack.c.l.b16 %v3506
      %v3575 = vunpack.c.l.b16 %v3507
      %v3576 = vunpack.c.l.b16 %v3508
      %v3577 = vunpack.c.l.b16 %v3509
      %v3578 = vpack.c.b16 %v3563, %v3562
      %v3579 = vpack.c.b16 %v3565, %v3564
      %v3580 = vpack.c.b16 %v3567, %v3566
      %v3581 = vpack.c.b16 %v3569, %v3568
      %v3582 = vpack.c.b16 %v3571, %v3570
      %v3583 = vpack.c.b16 %v3573, %v3572
      %v3584 = vpack.c.b16 %v3575, %v3574
      %v3585 = vpack.c.b16 %v3577, %v3576
      %3594 = vmatprep.subr.bf16.mxu0 0
      %3595 = vmatpush1.bf16.msra.mxu0 %v3585
      %3596 = vmatprep.subr.bf16.mxu0 0
      %3597 = vmatpush1.bf16.msra.mxu0 %v3584
      %3598 = vmatprep.subr.bf16.mxu0 0
      %3599 = vmatpush1.bf16.msra.mxu0 %v3583
      %3600 = vmatprep.subr.bf16.mxu0 0
      %3601 = vmatpush1.bf16.msra.mxu0 %v3582
      %3602 = vmatprep.subr.bf16.mxu0 0
      %3603 = vmatpush1.bf16.msra.mxu0 %v3581
      %3604 = vmatprep.subr.bf16.mxu0 0
      %3605 = vmatpush1.bf16.msra.mxu0 %v3580
      %3606 = vmatprep.subr.bf16.mxu0 0
      %3607 = vmatpush1.bf16.msra.mxu0 %v3579
      %3608 = vmatprep.subr.bf16.mxu0 0
      %3609 = vmatpush1.bf16.msra.mxu0 %v3578
      %3610 = vmatprep.subr.bf16.mxu0 0
      %3611 = vmatpush2.bf16.msra.mxu0 0
      %3612 = vmatprep.subr.bf16.mxu0 0
      %3613 = vmatpush2.bf16.msra.mxu0 0
      %3614 = vmatprep.subr.bf16.mxu0 0
      %3615 = vmatpush2.bf16.msra.mxu0 0
      %3616 = vmatprep.subr.bf16.mxu0 0
      %3617 = vmatpush2.bf16.msra.mxu0 0
      %3618 = vmatprep.subr.bf16.mxu0 0
      %3619 = vmatpush2.bf16.msra.mxu0 0
      %3620 = vmatprep.subr.bf16.mxu0 0
      %3621 = vmatpush2.bf16.msra.mxu0 0
      %3622 = vmatprep.subr.bf16.mxu0 0
      %3623 = vmatpush2.bf16.msra.mxu0 0
      %3624 = vmatprep.subr.bf16.mxu0 0
      %3625 = vmatpush2.bf16.msra.mxu0 0
      %3626 = vmatprep.mubr.bf16.mxu0 0
      %3627 = vmatmul.mubr.bf16.gmra.mxu0 %v3528
      %v3628 = vpop.f32.mrf.mxu0
      %v3629 = vadd.f32 0.0, %v3628
      %v3630 = vpop.f32.mrf.mxu0
      %v3631 = vpop.f32.mrf.mxu0
      %v3632 = vadd.f32 0.0, %v3631
      %v3633 = vpop.f32.mrf.mxu0
      %3634 = vmatprep.mubr.bf16.mxu0 0
      %3635 = vmatmul.mubr.bf16.gmra.mxu0 %v3529
      %v3636 = vpop.f32.mrf.mxu0
      %v3637 = vadd.f32 0.0, %v3636
      %v3638 = vpop.f32.mrf.mxu0
      %v3639 = vpop.f32.mrf.mxu0
      %v3640 = vadd.f32 0.0, %v3639
      %v3641 = vpop.f32.mrf.mxu0
      %3642 = vmatprep.mubr.bf16.mxu0 0
      %3643 = vmatmul.mubr.bf16.gmra.mxu0 %v3530
      %v3644 = vpop.f32.mrf.mxu0
      %v3645 = vadd.f32 0.0, %v3644
      %v3646 = vpop.f32.mrf.mxu0
      %v3647 = vpop.f32.mrf.mxu0
      %v3648 = vadd.f32 0.0, %v3647
      %v3649 = vpop.f32.mrf.mxu0
      %3650 = vmatprep.mubr.bf16.mxu0 0
      %3651 = vmatmul.mubr.bf16.gmra.mxu0 %v3531
      %v3652 = vpop.f32.mrf.mxu0
      %v3653 = vadd.f32 0.0, %v3652
      %v3654 = vpop.f32.mrf.mxu0
      %v3655 = vpop.f32.mrf.mxu0
      %v3656 = vadd.f32 0.0, %v3655
      %v3657 = vpop.f32.mrf.mxu0
      %3658 = vmatprep.mubr.bf16.mxu0 0
      %3659 = vmatmul.mubr.bf16.gmra.mxu0 %v3532
      %v3660 = vpop.f32.mrf.mxu0
      %v3661 = vadd.f32 0.0, %v3660
      %v3662 = vpop.f32.mrf.mxu0
      %v3663 = vpop.f32.mrf.mxu0
      %v3664 = vadd.f32 0.0, %v3663
      %v3665 = vpop.f32.mrf.mxu0
      %3666 = vmatprep.mubr.bf16.mxu0 0
      %3667 = vmatmul.mubr.bf16.gmra.mxu0 %v3533
      %v3668 = vpop.f32.mrf.mxu0
      %v3669 = vadd.f32 0.0, %v3668
      %v3670 = vpop.f32.mrf.mxu0
      %v3671 = vpop.f32.mrf.mxu0
      %v3672 = vadd.f32 0.0, %v3671
      %v3673 = vpop.f32.mrf.mxu0
      %3674 = vmatprep.mubr.bf16.mxu0 0
      %3675 = vmatmul.mubr.bf16.gmra.mxu0 %v3534
      %v3676 = vpop.f32.mrf.mxu0
      %v3677 = vadd.f32 0.0, %v3676
      %v3678 = vpop.f32.mrf.mxu0
      %v3679 = vpop.f32.mrf.mxu0
      %v3680 = vadd.f32 0.0, %v3679
      %v3681 = vpop.f32.mrf.mxu0
      %3682 = vmatprep.mubr.bf16.mxu0 0
      %3683 = vmatmul.mubr.bf16.gmra.mxu0 %v3535
      %v3684 = vpop.f32.mrf.mxu0
      %v3685 = vadd.f32 0.0, %v3684
      %v3686 = vpop.f32.mrf.mxu0
      %v3687 = vpop.f32.mrf.mxu0
      %v3688 = vadd.f32 0.0, %v3687
      %v3689 = vpop.f32.mrf.mxu0
      %3690 = vmatprep.mubr.bf16.mxu0 0
      %3691 = vmatmul.mubr.bf16.gmra.mxu0 %v3536
      %v3692 = vpop.f32.mrf.mxu0
      %v3693 = vadd.f32 0.0, %v3692
      %v3694 = vpop.f32.mrf.mxu0
      %v3695 = vpop.f32.mrf.mxu0
      %v3696 = vadd.f32 0.0, %v3695
      %v3697 = vpop.f32.mrf.mxu0
      %3698 = vdwg.mxu0
      %v3699 = vadd.f32 %v3376, %v3629
      %v3700 = vadd.f32 %v3377, %v3632
      %v3701 = vadd.f32 %v3378, %v3637
      %v3702 = vadd.f32 %v3379, %v3640
      %v3703 = vadd.f32 %v3380, %v3645
      %v3704 = vadd.f32 %v3381, %v3648
      %v3705 = vadd.f32 %v3382, %v3653
      %v3706 = vadd.f32 %v3383, %v3656
      %v3707 = vadd.f32 %v3384, %v3661
      %v3708 = vadd.f32 %v3385, %v3664
      %v3709 = vadd.f32 %v3386, %v3669
      %v3710 = vadd.f32 %v3387, %v3672
      %v3711 = vadd.f32 %v3388, %v3677
      %v3712 = vadd.f32 %v3389, %v3680
      %v3713 = vadd.f32 %v3390, %v3685
      %v3714 = vadd.f32 %v3391, %v3688
      %v3715 = vadd.f32 %v3392, %v3693
      %v3716 = vadd.f32 %v3393, %v3696
      %v3718 = vlaneseq
      %v3719 = vshrl.u32 %v3718, 7
      %v3720 = vsub.s32 0, %v3719
      %v3721 = vrot.slane %v619, %v3720
      %v3723 = vmul.f32 %v3699, %v3721
      %v3724 = vmul.f32 %v3700, %v3721
      %v3725 = vmul.f32 %v3701, %v3721
      %v3726 = vmul.f32 %v3702, %v3721
      %v3727 = vmul.f32 %v3703, %v3721
      %v3728 = vmul.f32 %v3704, %v3721
      %v3729 = vmul.f32 %v3705, %v3721
      %v3730 = vmul.f32 %v3706, %v3721
      %v3731 = vmul.f32 %v3707, %v3721
      %v3732 = vmul.f32 %v3708, %v3721
      %v3733 = vmul.f32 %v3709, %v3721
      %v3734 = vmul.f32 %v3710, %v3721
      %v3735 = vmul.f32 %v3711, %v3721
      %v3736 = vmul.f32 %v3712, %v3721
      %v3737 = vmul.f32 %v3713, %v3721
      %v3738 = vmul.f32 %v3714, %v3721
      %v3739 = vmul.f32 %v3715, %v3721
      %v3740 = vmul.f32 %v3716, %v3721
      %v3742 = vlaneseq
      %v3743 = vshrl.u32 %v3742, 7
      %v3744 = vsub.s32 0, %v3743
      %v3745 = vrot.slane %v620, %v3744
      %v3747 = vadd.f32 %v3723, %v3745
      %v3748 = vadd.f32 %v3724, %v3745
      %v3749 = vadd.f32 %v3725, %v3745
      %v3750 = vadd.f32 %v3726, %v3745
      %v3751 = vadd.f32 %v3727, %v3745
      %v3752 = vadd.f32 %v3728, %v3745
      %v3753 = vadd.f32 %v3729, %v3745
      %v3754 = vadd.f32 %v3730, %v3745
      %v3755 = vadd.f32 %v3731, %v3745
      %v3756 = vadd.f32 %v3732, %v3745
      %v3757 = vadd.f32 %v3733, %v3745
      %v3758 = vadd.f32 %v3734, %v3745
      %v3759 = vadd.f32 %v3735, %v3745
      %v3760 = vadd.f32 %v3736, %v3745
      %v3761 = vadd.f32 %v3737, %v3745
      %v3762 = vadd.f32 %v3738, %v3745
      %v3763 = vadd.f32 %v3739, %v3745
      %v3764 = vadd.f32 %v3740, %v3745
      %v3765 = vmax.f32 %v3747, 0.0
      %v3766 = vmax.f32 %v3748, 0.0
      %v3767 = vmax.f32 %v3749, 0.0
      %v3768 = vmax.f32 %v3750, 0.0
      %v3769 = vmax.f32 %v3751, 0.0
      %v3770 = vmax.f32 %v3752, 0.0
      %v3771 = vmax.f32 %v3753, 0.0
      %v3772 = vmax.f32 %v3754, 0.0
      %v3773 = vmax.f32 %v3755, 0.0
      %v3774 = vmax.f32 %v3756, 0.0
      %v3775 = vmax.f32 %v3757, 0.0
      %v3776 = vmax.f32 %v3758, 0.0
      %v3777 = vmax.f32 %v3759, 0.0
      %v3778 = vmax.f32 %v3760, 0.0
      %v3779 = vmax.f32 %v3761, 0.0
      %v3780 = vmax.f32 %v3762, 0.0
      %v3781 = vmax.f32 %v3763, 0.0
      %v3782 = vmax.f32 %v3764, 0.0
      %v3783 = vpack.c.bf16 %v3766, %v3765
      %v3784 = vpack.c.bf16 %v3768, %v3767
      %v3785 = vpack.c.bf16 %v3770, %v3769
      %v3786 = vpack.c.bf16 %v3772, %v3771
      %v3787 = vpack.c.bf16 %v3774, %v3773
      %v3788 = vpack.c.bf16 %v3776, %v3775
      %v3789 = vpack.c.bf16 %v3778, %v3777
      %v3790 = vpack.c.bf16 %v3780, %v3779
      %v3791 = vpack.c.bf16 %v3782, %v3781
      %v3801 = vunpack.c.l.b16 %v3783
      %v3802 = vunpack.c.h.b16 %v3783
      %v3803 = vunpack.c.l.b16 %v3784
      %v3804 = vunpack.c.h.b16 %v3784
      %v3805 = vunpack.c.l.b16 %v3785
      %v3806 = vunpack.c.h.b16 %v3785
      %v3807 = vunpack.c.l.b16 %v3786
      %v3808 = vunpack.c.h.b16 %v3786
      %v3809 = vunpack.c.l.b16 %v3787
      %v3810 = vunpack.c.h.b16 %v3787
      %v3811 = vunpack.c.l.b16 %v3788
      %v3812 = vunpack.c.h.b16 %v3788
      %v3813 = vunpack.c.l.b16 %v3789
      %v3814 = vunpack.c.h.b16 %v3789
      %v3815 = vunpack.c.l.b16 %v3790
      %v3816 = vunpack.c.h.b16 %v3790
      %v3817 = vunpack.c.l.b16 %v3791
      %v3818 = vunpack.c.h.b16 %v3791
      %v3819 = vpack.c.b16 %v3801, %v3801
      %v3820 = vpack.c.b16 %v3802, %v3802
      %v3821 = vpack.c.b16 %v3803, %v3803
      %v3822 = vpack.c.b16 %v3804, %v3804
      %v3823 = vpack.c.b16 %v3805, %v3805
      %v3824 = vpack.c.b16 %v3806, %v3806
      %v3825 = vpack.c.b16 %v3807, %v3807
      %v3826 = vpack.c.b16 %v3808, %v3808
      %v3827 = vpack.c.b16 %v3809, %v3809
      %v3828 = vpack.c.b16 %v3810, %v3810
      %v3829 = vpack.c.b16 %v3811, %v3811
      %v3830 = vpack.c.b16 %v3812, %v3812
      %v3831 = vpack.c.b16 %v3813, %v3813
      %v3832 = vpack.c.b16 %v3814, %v3814
      %v3833 = vpack.c.b16 %v3815, %v3815
      %v3834 = vpack.c.b16 %v3816, %v3816
      %v3835 = vpack.c.b16 %v3817, %v3817
      %v3836 = vpack.c.b16 %v3818, %v3818
      %3855 = vst [vmem:[#allocation4 + $0x4] sm:$0xf] %v3819
      %3856 = vst [vmem:[#allocation4 + $0x8] sm:$0xf] %v3820
      %3857 = vst [vmem:[#allocation4 + $0x14] sm:$0xf] %v3821
      %3858 = vst [vmem:[#allocation4 + $0x18] sm:$0xf] %v3822
      %3859 = vst [vmem:[#allocation4 + $0x24] sm:$0xf] %v3823
      %3860 = vst [vmem:[#allocation4 + $0x28] sm:$0xf] %v3824
      %3861 = vst [vmem:[#allocation4 + $0x34] sm:$0xf] %v3825
      %3862 = vst [vmem:[#allocation4 + $0x38] sm:$0xf] %v3826
      %3863 = vst [vmem:[#allocation4 + $0x44] sm:$0xf] %v3827
      %3864 = vst [vmem:[#allocation4 + $0x48] sm:$0xf] %v3828
      %3865 = vst [vmem:[#allocation4 + $0x54] sm:$0xf] %v3829
      %3866 = vst [vmem:[#allocation4 + $0x58] sm:$0xf] %v3830
      %3867 = vst [vmem:[#allocation4 + $0x64] sm:$0xf] %v3831
      %3868 = vst [vmem:[#allocation4 + $0x68] sm:$0xf] %v3832
      %3869 = vst [vmem:[#allocation4 + $0x74] sm:$0xf] %v3833
      %3870 = vst [vmem:[#allocation4 + $0x78] sm:$0xf] %v3834
      %3871 = vst [vmem:[#allocation4 + $0x84] sm:$0xf] %v3835
      %3872 = vst [vmem:[#allocation4 + $0x88] sm:$0xf] %v3836
      %s3873 = scalar_lea.vmem %s495, 108 [#allocation2]
      %v3874 = vld [vmem:[%s3873] sm:$0xf]
      %v3875 = vld [vmem:[%s3873 + $0x4] sm:$0xf]
      %v3876 = vld [vmem:[%s3873 + $0xc] sm:$0xf]
      %v3877 = vld [vmem:[%s3873 + $0x10] sm:$0xf]
      %v3878 = vld [vmem:[%s3873 + $0x18] sm:$0xf]
      %v3879 = vld [vmem:[%s3873 + $0x1c] sm:$0xf]
      %v3880 = vld [vmem:[%s3873 + $0x24] sm:$0xf]
      %v3881 = vld [vmem:[%s3873 + $0x28] sm:$0xf]
      %v3882 = vld [vmem:[%s3873 + $0x30] sm:$0xf]
      %v3883 = vld [vmem:[%s3873 + $0x34] sm:$0xf]
      %v3884 = vld [vmem:[%s3873 + $0x3c] sm:$0xf]
      %v3885 = vld [vmem:[%s3873 + $0x40] sm:$0xf]
      %v3886 = vld [vmem:[%s3873 + $0x48] sm:$0xf]
      %v3887 = vld [vmem:[%s3873 + $0x4c] sm:$0xf]
      %v3888 = vld [vmem:[%s3873 + $0x54] sm:$0xf]
      %v3889 = vld [vmem:[%s3873 + $0x58] sm:$0xf]
      %v3890 = vld [vmem:[%s3873 + $0x60] sm:$0xf]
      %v3891 = vld [vmem:[%s3873 + $0x64] sm:$0xf]
      %v3892 = vld [vmem:[%s1] sm:$0xf]
      %v3893 = vld [vmem:[%s1 + $0x4] sm:$0xf]
      %v3894 = vld [vmem:[%s1 + $0x8] sm:$0xf]
      %v3895 = vld [vmem:[%s1 + $0xc] sm:$0xf]
      %v3896 = vld [vmem:[%s1 + $0x10] sm:$0xf]
      %v3897 = vld [vmem:[%s1 + $0x14] sm:$0xf]
      %v3898 = vld [vmem:[%s1 + $0x18] sm:$0xf]
      %v3899 = vld [vmem:[%s1 + $0x1c] sm:$0xf]
      %v3900 = vld [vmem:[%s1 + $0x20] sm:$0xf]
      %v3901 = vld [vmem:[%s1 + $0x24] sm:$0xf]
      %v3902 = vld [vmem:[%s1 + $0x28] sm:$0xf]
      %v3903 = vld [vmem:[%s1 + $0x2c] sm:$0xf]
      %v3904 = vld [vmem:[%s1 + $0x30] sm:$0xf]
      %v3905 = vld [vmem:[%s1 + $0x34] sm:$0xf]
      %v3906 = vld [vmem:[%s1 + $0x38] sm:$0xf]
      %v3907 = vld [vmem:[%s1 + $0x3c] sm:$0xf]
      %v3908 = vld [vmem:[%s3873 + $0x8] sm:$0x1]
      %v3909 = vld [vmem:[%s3873 + $0x14] sm:$0x1]
      %v3910 = vld [vmem:[%s3873 + $0x20] sm:$0x1]
      %v3911 = vld [vmem:[%s3873 + $0x2c] sm:$0x1]
      %v3912 = vld [vmem:[%s3873 + $0x38] sm:$0x1]
      %v3913 = vld [vmem:[%s3873 + $0x44] sm:$0x1]
      %v3914 = vld [vmem:[%s3873 + $0x50] sm:$0x1]
      %v3915 = vld [vmem:[%s3873 + $0x5c] sm:$0x1]
      %v3916 = vld [vmem:[%s3873 + $0x68] sm:$0x1]
      %v3918 = vshrl.u32 %v3874, 16
      %v3920 = vrot.slane %v3918, 4
      %v3921 = vshll.u32 %v3874, 16
      %v3923 = vrot.slane %v3921, 5
      %v3924 = vor.u32 %v3920, %v3923
      %v3925 = vrot.slane %v3924, 4
      %v3927 = vshll.u32 %v3875, 16
      %v3929 = vrot.slane %v3927, 5
      %v3930 = vsel %vm668, %v3925, %v3929
      %v3931 = vshrl.u32 %v3875, 16
      %v3933 = vrot.slane %v3931, 4
      %v3934 = vor.u32 %v3933, %v3929
      %v3935 = vrot.slane %v3934, 4
      %v3937 = vshll.u32 %v3908, 16
      %v3939 = vrot.slane %v3937, 5
      %v3940 = vsel %vm668, %v3935, %v3939
      %v3942 = vshrl.u32 %v3876, 16
      %v3944 = vrot.slane %v3942, 4
      %v3945 = vshll.u32 %v3876, 16
      %v3947 = vrot.slane %v3945, 5
      %v3948 = vor.u32 %v3944, %v3947
      %v3949 = vrot.slane %v3948, 4
      %v3951 = vshll.u32 %v3877, 16
      %v3953 = vrot.slane %v3951, 5
      %v3954 = vsel %vm668, %v3949, %v3953
      %v3955 = vshrl.u32 %v3877, 16
      %v3957 = vrot.slane %v3955, 4
      %v3958 = vor.u32 %v3957, %v3953
      %v3959 = vrot.slane %v3958, 4
      %v3961 = vshll.u32 %v3909, 16
      %v3963 = vrot.slane %v3961, 5
      %v3964 = vsel %vm668, %v3959, %v3963
      %v3966 = vshrl.u32 %v3878, 16
      %v3968 = vrot.slane %v3966, 4
      %v3969 = vshll.u32 %v3878, 16
      %v3971 = vrot.slane %v3969, 5
      %v3972 = vor.u32 %v3968, %v3971
      %v3973 = vrot.slane %v3972, 4
      %v3975 = vshll.u32 %v3879, 16
      %v3977 = vrot.slane %v3975, 5
      %v3978 = vsel %vm668, %v3973, %v3977
      %v3979 = vshrl.u32 %v3879, 16
      %v3981 = vrot.slane %v3979, 4
      %v3982 = vor.u32 %v3981, %v3977
      %v3983 = vrot.slane %v3982, 4
      %v3985 = vshll.u32 %v3910, 16
      %v3987 = vrot.slane %v3985, 5
      %v3988 = vsel %vm668, %v3983, %v3987
      %v3990 = vshrl.u32 %v3880, 16
      %v3992 = vrot.slane %v3990, 4
      %v3993 = vshll.u32 %v3880, 16
      %v3995 = vrot.slane %v3993, 5
      %v3996 = vor.u32 %v3992, %v3995
      %v3997 = vrot.slane %v3996, 4
      %v3999 = vshll.u32 %v3881, 16
      %v4001 = vrot.slane %v3999, 5
      %v4002 = vsel %vm668, %v3997, %v4001
      %v4003 = vshrl.u32 %v3881, 16
      %v4005 = vrot.slane %v4003, 4
      %v4006 = vor.u32 %v4005, %v4001
      %v4007 = vrot.slane %v4006, 4
      %v4009 = vshll.u32 %v3911, 16
      %v4011 = vrot.slane %v4009, 5
      %v4012 = vsel %vm668, %v4007, %v4011
      %v4014 = vshrl.u32 %v3882, 16
      %v4016 = vrot.slane %v4014, 4
      %v4017 = vshll.u32 %v3882, 16
      %v4019 = vrot.slane %v4017, 5
      %v4020 = vor.u32 %v4016, %v4019
      %v4021 = vrot.slane %v4020, 4
      %v4023 = vshll.u32 %v3883, 16
      %v4025 = vrot.slane %v4023, 5
      %v4026 = vsel %vm668, %v4021, %v4025
      %v4027 = vshrl.u32 %v3883, 16
      %v4029 = vrot.slane %v4027, 4
      %v4030 = vor.u32 %v4029, %v4025
      %v4031 = vrot.slane %v4030, 4
      %v4033 = vshll.u32 %v3912, 16
      %v4035 = vrot.slane %v4033, 5
      %v4036 = vsel %vm668, %v4031, %v4035
      %v4038 = vshrl.u32 %v3884, 16
      %v4040 = vrot.slane %v4038, 4
      %v4041 = vshll.u32 %v3884, 16
      %v4043 = vrot.slane %v4041, 5
      %v4044 = vor.u32 %v4040, %v4043
      %v4045 = vrot.slane %v4044, 4
      %v4047 = vshll.u32 %v3885, 16
      %v4049 = vrot.slane %v4047, 5
      %v4050 = vsel %vm668, %v4045, %v4049
      %v4051 = vshrl.u32 %v3885, 16
      %v4053 = vrot.slane %v4051, 4
      %v4054 = vor.u32 %v4053, %v4049
      %v4055 = vrot.slane %v4054, 4
      %v4057 = vshll.u32 %v3913, 16
      %v4059 = vrot.slane %v4057, 5
      %v4060 = vsel %vm668, %v4055, %v4059
      %v4062 = vshrl.u32 %v3886, 16
      %v4064 = vrot.slane %v4062, 4
      %v4065 = vshll.u32 %v3886, 16
      %v4067 = vrot.slane %v4065, 5
      %v4068 = vor.u32 %v4064, %v4067
      %v4069 = vrot.slane %v4068, 4
      %v4071 = vshll.u32 %v3887, 16
      %v4073 = vrot.slane %v4071, 5
      %v4074 = vsel %vm668, %v4069, %v4073
      %v4075 = vshrl.u32 %v3887, 16
      %v4077 = vrot.slane %v4075, 4
      %v4078 = vor.u32 %v4077, %v4073
      %v4079 = vrot.slane %v4078, 4
      %v4081 = vshll.u32 %v3914, 16
      %v4083 = vrot.slane %v4081, 5
      %v4084 = vsel %vm668, %v4079, %v4083
      %v4086 = vshrl.u32 %v3888, 16
      %v4088 = vrot.slane %v4086, 4
      %v4089 = vshll.u32 %v3888, 16
      %v4091 = vrot.slane %v4089, 5
      %v4092 = vor.u32 %v4088, %v4091
      %v4093 = vrot.slane %v4092, 4
      %v4095 = vshll.u32 %v3889, 16
      %v4097 = vrot.slane %v4095, 5
      %v4098 = vsel %vm668, %v4093, %v4097
      %v4099 = vshrl.u32 %v3889, 16
      %v4101 = vrot.slane %v4099, 4
      %v4102 = vor.u32 %v4101, %v4097
      %v4103 = vrot.slane %v4102, 4
      %v4105 = vshll.u32 %v3915, 16
      %v4107 = vrot.slane %v4105, 5
      %v4108 = vsel %vm668, %v4103, %v4107
      %v4110 = vshrl.u32 %v3890, 16
      %v4112 = vrot.slane %v4110, 4
      %v4113 = vshll.u32 %v3890, 16
      %v4115 = vrot.slane %v4113, 5
      %v4116 = vor.u32 %v4112, %v4115
      %v4117 = vrot.slane %v4116, 4
      %v4119 = vshll.u32 %v3891, 16
      %v4121 = vrot.slane %v4119, 5
      %v4122 = vsel %vm668, %v4117, %v4121
      %v4123 = vshrl.u32 %v3891, 16
      %v4125 = vrot.slane %v4123, 4
      %v4126 = vor.u32 %v4125, %v4121
      %v4127 = vrot.slane %v4126, 4
      %v4129 = vshll.u32 %v3916, 16
      %v4131 = vrot.slane %v4129, 5
      %v4132 = vsel %vm668, %v4127, %v4131
      %v4133 = vld [vmem:[%s885] sm:$0xf]
      %v4134 = vld [vmem:[%s885 + $0x4] sm:$0xf]
      %v4135 = vld [vmem:[%s885 + $0x8] sm:$0xf]
      %v4136 = vld [vmem:[%s885 + $0xc] sm:$0xf]
      %v4137 = vld [vmem:[%s885 + $0x10] sm:$0xf]
      %v4138 = vld [vmem:[%s885 + $0x14] sm:$0xf]
      %v4139 = vld [vmem:[%s885 + $0x18] sm:$0xf]
      %v4140 = vld [vmem:[%s885 + $0x1c] sm:$0xf]
      %v4141 = vld [vmem:[%s885 + $0x20] sm:$0xf]
      %v4142 = vld [vmem:[%s885 + $0x24] sm:$0xf]
      %v4143 = vld [vmem:[%s885 + $0x28] sm:$0xf]
      %v4144 = vld [vmem:[%s885 + $0x2c] sm:$0xf]
      %v4145 = vld [vmem:[%s885 + $0x30] sm:$0xf]
      %v4146 = vld [vmem:[%s885 + $0x34] sm:$0xf]
      %v4147 = vld [vmem:[%s885 + $0x38] sm:$0xf]
      %v4148 = vld [vmem:[%s885 + $0x3c] sm:$0xf]
      %v4149 = vunpack.c.l.b16 %v3930
      %v4150 = vunpack.c.l.b16 %v3940
      %v4151 = vunpack.c.l.b16 %v3954
      %v4152 = vunpack.c.l.b16 %v3964
      %v4153 = vunpack.c.l.b16 %v3978
      %v4154 = vunpack.c.l.b16 %v3988
      %v4155 = vunpack.c.l.b16 %v4002
      %v4156 = vunpack.c.l.b16 %v4012
      %v4157 = vunpack.c.l.b16 %v4026
      %v4158 = vunpack.c.l.b16 %v4036
      %v4159 = vunpack.c.l.b16 %v4050
      %v4160 = vunpack.c.l.b16 %v4060
      %v4161 = vunpack.c.l.b16 %v4074
      %v4162 = vunpack.c.l.b16 %v4084
      %v4163 = vunpack.c.l.b16 %v4098
      %v4164 = vunpack.c.l.b16 %v4108
      %v4165 = vunpack.c.l.b16 %v4122
      %v4166 = vunpack.c.l.b16 %v4132
      %v4167 = vpack.c.b16 %v4150, %v4149
      %v4168 = vpack.c.b16 %v4152, %v4151
      %v4169 = vpack.c.b16 %v4154, %v4153
      %v4170 = vpack.c.b16 %v4156, %v4155
      %v4171 = vpack.c.b16 %v4158, %v4157
      %v4172 = vpack.c.b16 %v4160, %v4159
      %v4173 = vpack.c.b16 %v4162, %v4161
      %v4174 = vpack.c.b16 %v4164, %v4163
      %v4175 = vpack.c.b16 %v4166, %v4165
      %v4201 = vunpack.c.l.b16 %v4133
      %v4202 = vunpack.c.l.b16 %v4134
      %v4203 = vunpack.c.l.b16 %v4135
      %v4204 = vunpack.c.l.b16 %v4136
      %v4205 = vunpack.c.l.b16 %v4137
      %v4206 = vunpack.c.l.b16 %v4138
      %v4207 = vunpack.c.l.b16 %v4139
      %v4208 = vunpack.c.l.b16 %v4140
      %v4209 = vunpack.c.l.b16 %v4141
      %v4210 = vunpack.c.l.b16 %v4142
      %v4211 = vunpack.c.l.b16 %v4143
      %v4212 = vunpack.c.l.b16 %v4144
      %v4213 = vunpack.c.l.b16 %v4145
      %v4214 = vunpack.c.l.b16 %v4146
      %v4215 = vunpack.c.l.b16 %v4147
      %v4216 = vunpack.c.l.b16 %v4148
      %v4217 = vpack.c.b16 %v4202, %v4201
      %v4218 = vpack.c.b16 %v4204, %v4203
      %v4219 = vpack.c.b16 %v4206, %v4205
      %v4220 = vpack.c.b16 %v4208, %v4207
      %v4221 = vpack.c.b16 %v4210, %v4209
      %v4222 = vpack.c.b16 %v4212, %v4211
      %v4223 = vpack.c.b16 %v4214, %v4213
      %v4224 = vpack.c.b16 %v4216, %v4215
      %4233 = vmatprep.subr.bf16.mxu0 0
      %4234 = vmatpush1.bf16.msra.mxu0 %v4224
      %4235 = vmatprep.subr.bf16.mxu0 0
      %4236 = vmatpush1.bf16.msra.mxu0 %v4223
      %4237 = vmatprep.subr.bf16.mxu0 0
      %4238 = vmatpush1.bf16.msra.mxu0 %v4222
      %4239 = vmatprep.subr.bf16.mxu0 0
      %4240 = vmatpush1.bf16.msra.mxu0 %v4221
      %4241 = vmatprep.subr.bf16.mxu0 0
      %4242 = vmatpush1.bf16.msra.mxu0 %v4220
      %4243 = vmatprep.subr.bf16.mxu0 0
      %4244 = vmatpush1.bf16.msra.mxu0 %v4219
      %4245 = vmatprep.subr.bf16.mxu0 0
      %4246 = vmatpush1.bf16.msra.mxu0 %v4218
      %4247 = vmatprep.subr.bf16.mxu0 0
      %4248 = vmatpush1.bf16.msra.mxu0 %v4217
      %4249 = vmatprep.subr.bf16.mxu0 0
      %4250 = vmatpush2.bf16.msra.mxu0 0
      %4251 = vmatprep.subr.bf16.mxu0 0
      %4252 = vmatpush2.bf16.msra.mxu0 0
      %4253 = vmatprep.subr.bf16.mxu0 0
      %4254 = vmatpush2.bf16.msra.mxu0 0
      %4255 = vmatprep.subr.bf16.mxu0 0
      %4256 = vmatpush2.bf16.msra.mxu0 0
      %4257 = vmatprep.subr.bf16.mxu0 0
      %4258 = vmatpush2.bf16.msra.mxu0 0
      %4259 = vmatprep.subr.bf16.mxu0 0
      %4260 = vmatpush2.bf16.msra.mxu0 0
      %4261 = vmatprep.subr.bf16.mxu0 0
      %4262 = vmatpush2.bf16.msra.mxu0 0
      %4263 = vmatprep.subr.bf16.mxu0 0
      %4264 = vmatpush2.bf16.msra.mxu0 0
      %4265 = vmatprep.mubr.bf16.mxu0 0
      %4266 = vmatmul.mubr.bf16.gmra.mxu0 %v4167
      %v4267 = vpop.f32.mrf.mxu0
      %v4268 = vadd.f32 0.0, %v4267
      %v4269 = vpop.f32.mrf.mxu0
      %v4270 = vpop.f32.mrf.mxu0
      %v4271 = vadd.f32 0.0, %v4270
      %v4272 = vpop.f32.mrf.mxu0
      %4273 = vmatprep.mubr.bf16.mxu0 0
      %4274 = vmatmul.mubr.bf16.gmra.mxu0 %v4168
      %v4275 = vpop.f32.mrf.mxu0
      %v4276 = vadd.f32 0.0, %v4275
      %v4277 = vpop.f32.mrf.mxu0
      %v4278 = vpop.f32.mrf.mxu0
      %v4279 = vadd.f32 0.0, %v4278
      %v4280 = vpop.f32.mrf.mxu0
      %4281 = vmatprep.mubr.bf16.mxu0 0
      %4282 = vmatmul.mubr.bf16.gmra.mxu0 %v4169
      %v4283 = vpop.f32.mrf.mxu0
      %v4284 = vadd.f32 0.0, %v4283
      %v4285 = vpop.f32.mrf.mxu0
      %v4286 = vpop.f32.mrf.mxu0
      %v4287 = vadd.f32 0.0, %v4286
      %v4288 = vpop.f32.mrf.mxu0
      %4289 = vmatprep.mubr.bf16.mxu0 0
      %4290 = vmatmul.mubr.bf16.gmra.mxu0 %v4170
      %v4291 = vpop.f32.mrf.mxu0
      %v4292 = vadd.f32 0.0, %v4291
      %v4293 = vpop.f32.mrf.mxu0
      %v4294 = vpop.f32.mrf.mxu0
      %v4295 = vadd.f32 0.0, %v4294
      %v4296 = vpop.f32.mrf.mxu0
      %4297 = vmatprep.mubr.bf16.mxu0 0
      %4298 = vmatmul.mubr.bf16.gmra.mxu0 %v4171
      %v4299 = vpop.f32.mrf.mxu0
      %v4300 = vadd.f32 0.0, %v4299
      %v4301 = vpop.f32.mrf.mxu0
      %v4302 = vpop.f32.mrf.mxu0
      %v4303 = vadd.f32 0.0, %v4302
      %v4304 = vpop.f32.mrf.mxu0
      %4305 = vmatprep.mubr.bf16.mxu0 0
      %4306 = vmatmul.mubr.bf16.gmra.mxu0 %v4172
      %v4307 = vpop.f32.mrf.mxu0
      %v4308 = vadd.f32 0.0, %v4307
      %v4309 = vpop.f32.mrf.mxu0
      %v4310 = vpop.f32.mrf.mxu0
      %v4311 = vadd.f32 0.0, %v4310
      %v4312 = vpop.f32.mrf.mxu0
      %4313 = vmatprep.mubr.bf16.mxu0 0
      %4314 = vmatmul.mubr.bf16.gmra.mxu0 %v4173
      %v4315 = vpop.f32.mrf.mxu0
      %v4316 = vadd.f32 0.0, %v4315
      %v4317 = vpop.f32.mrf.mxu0
      %v4318 = vpop.f32.mrf.mxu0
      %v4319 = vadd.f32 0.0, %v4318
      %v4320 = vpop.f32.mrf.mxu0
      %4321 = vmatprep.mubr.bf16.mxu0 0
      %4322 = vmatmul.mubr.bf16.gmra.mxu0 %v4174
      %v4323 = vpop.f32.mrf.mxu0
      %v4324 = vadd.f32 0.0, %v4323
      %v4325 = vpop.f32.mrf.mxu0
      %v4326 = vpop.f32.mrf.mxu0
      %v4327 = vadd.f32 0.0, %v4326
      %v4328 = vpop.f32.mrf.mxu0
      %4329 = vmatprep.mubr.bf16.mxu0 0
      %4330 = vmatmul.mubr.bf16.gmra.mxu0 %v4175
      %v4331 = vpop.f32.mrf.mxu0
      %v4332 = vadd.f32 0.0, %v4331
      %v4333 = vpop.f32.mrf.mxu0
      %v4334 = vpop.f32.mrf.mxu0
      %v4335 = vadd.f32 0.0, %v4334
      %v4336 = vpop.f32.mrf.mxu0
      %4337 = vdwg.mxu0
      %v4356 = vunpack.c.l.b16 %v3874
      %v4357 = vunpack.c.l.b16 %v3875
      %v4358 = vunpack.c.l.b16 %v3876
      %v4359 = vunpack.c.l.b16 %v3877
      %v4360 = vunpack.c.l.b16 %v3878
      %v4361 = vunpack.c.l.b16 %v3879
      %v4362 = vunpack.c.l.b16 %v3880
      %v4363 = vunpack.c.l.b16 %v3881
      %v4364 = vunpack.c.l.b16 %v3882
      %v4365 = vunpack.c.l.b16 %v3883
      %v4366 = vunpack.c.l.b16 %v3884
      %v4367 = vunpack.c.l.b16 %v3885
      %v4368 = vunpack.c.l.b16 %v3886
      %v4369 = vunpack.c.l.b16 %v3887
      %v4370 = vunpack.c.l.b16 %v3888
      %v4371 = vunpack.c.l.b16 %v3889
      %v4372 = vunpack.c.l.b16 %v3890
      %v4373 = vunpack.c.l.b16 %v3891
      %v4374 = vpack.c.b16 %v4357, %v4356
      %v4375 = vpack.c.b16 %v4359, %v4358
      %v4376 = vpack.c.b16 %v4361, %v4360
      %v4377 = vpack.c.b16 %v4363, %v4362
      %v4378 = vpack.c.b16 %v4365, %v4364
      %v4379 = vpack.c.b16 %v4367, %v4366
      %v4380 = vpack.c.b16 %v4369, %v4368
      %v4381 = vpack.c.b16 %v4371, %v4370
      %v4382 = vpack.c.b16 %v4373, %v4372
      %v4408 = vunpack.c.l.b16 %v3892
      %v4409 = vunpack.c.l.b16 %v3893
      %v4410 = vunpack.c.l.b16 %v3894
      %v4411 = vunpack.c.l.b16 %v3895
      %v4412 = vunpack.c.l.b16 %v3896
      %v4413 = vunpack.c.l.b16 %v3897
      %v4414 = vunpack.c.l.b16 %v3898
      %v4415 = vunpack.c.l.b16 %v3899
      %v4416 = vunpack.c.l.b16 %v3900
      %v4417 = vunpack.c.l.b16 %v3901
      %v4418 = vunpack.c.l.b16 %v3902
      %v4419 = vunpack.c.l.b16 %v3903
      %v4420 = vunpack.c.l.b16 %v3904
      %v4421 = vunpack.c.l.b16 %v3905
      %v4422 = vunpack.c.l.b16 %v3906
      %v4423 = vunpack.c.l.b16 %v3907
      %v4424 = vpack.c.b16 %v4409, %v4408
      %v4425 = vpack.c.b16 %v4411, %v4410
      %v4426 = vpack.c.b16 %v4413, %v4412
      %v4427 = vpack.c.b16 %v4415, %v4414
      %v4428 = vpack.c.b16 %v4417, %v4416
      %v4429 = vpack.c.b16 %v4419, %v4418
      %v4430 = vpack.c.b16 %v4421, %v4420
      %v4431 = vpack.c.b16 %v4423, %v4422
      %4440 = vmatprep.subr.bf16.mxu0 0
      %4441 = vmatpush1.bf16.msra.mxu0 %v4431
      %4442 = vmatprep.subr.bf16.mxu0 0
      %4443 = vmatpush1.bf16.msra.mxu0 %v4430
      %4444 = vmatprep.subr.bf16.mxu0 0
      %4445 = vmatpush1.bf16.msra.mxu0 %v4429
      %4446 = vmatprep.subr.bf16.mxu0 0
      %4447 = vmatpush1.bf16.msra.mxu0 %v4428
      %4448 = vmatprep.subr.bf16.mxu0 0
      %4449 = vmatpush1.bf16.msra.mxu0 %v4427
      %4450 = vmatprep.subr.bf16.mxu0 0
      %4451 = vmatpush1.bf16.msra.mxu0 %v4426
      %4452 = vmatprep.subr.bf16.mxu0 0
      %4453 = vmatpush1.bf16.msra.mxu0 %v4425
      %4454 = vmatprep.subr.bf16.mxu0 0
      %4455 = vmatpush1.bf16.msra.mxu0 %v4424
      %4456 = vmatprep.subr.bf16.mxu0 0
      %4457 = vmatpush2.bf16.msra.mxu0 0
      %4458 = vmatprep.subr.bf16.mxu0 0
      %4459 = vmatpush2.bf16.msra.mxu0 0
      %4460 = vmatprep.subr.bf16.mxu0 0
      %4461 = vmatpush2.bf16.msra.mxu0 0
      %4462 = vmatprep.subr.bf16.mxu0 0
      %4463 = vmatpush2.bf16.msra.mxu0 0
      %4464 = vmatprep.subr.bf16.mxu0 0
      %4465 = vmatpush2.bf16.msra.mxu0 0
      %4466 = vmatprep.subr.bf16.mxu0 0
      %4467 = vmatpush2.bf16.msra.mxu0 0
      %4468 = vmatprep.subr.bf16.mxu0 0
      %4469 = vmatpush2.bf16.msra.mxu0 0
      %4470 = vmatprep.subr.bf16.mxu0 0
      %4471 = vmatpush2.bf16.msra.mxu0 0
      %4472 = vmatprep.mubr.bf16.mxu0 0
      %4473 = vmatmul.mubr.bf16.gmra.mxu0 %v4374
      %v4474 = vpop.f32.mrf.mxu0
      %v4475 = vadd.f32 %v4268, %v4474
      %v4476 = vpop.f32.mrf.mxu0
      %v4477 = vpop.f32.mrf.mxu0
      %v4478 = vadd.f32 %v4271, %v4477
      %v4479 = vpop.f32.mrf.mxu0
      %4480 = vmatprep.mubr.bf16.mxu0 0
      %4481 = vmatmul.mubr.bf16.gmra.mxu0 %v4375
      %v4482 = vpop.f32.mrf.mxu0
      %v4483 = vadd.f32 %v4276, %v4482
      %v4484 = vpop.f32.mrf.mxu0
      %v4485 = vpop.f32.mrf.mxu0
      %v4486 = vadd.f32 %v4279, %v4485
      %v4487 = vpop.f32.mrf.mxu0
      %4488 = vmatprep.mubr.bf16.mxu0 0
      %4489 = vmatmul.mubr.bf16.gmra.mxu0 %v4376
      %v4490 = vpop.f32.mrf.mxu0
      %v4491 = vadd.f32 %v4284, %v4490
      %v4492 = vpop.f32.mrf.mxu0
      %v4493 = vpop.f32.mrf.mxu0
      %v4494 = vadd.f32 %v4287, %v4493
      %v4495 = vpop.f32.mrf.mxu0
      %4496 = vmatprep.mubr.bf16.mxu0 0
      %4497 = vmatmul.mubr.bf16.gmra.mxu0 %v4377
      %v4498 = vpop.f32.mrf.mxu0
      %v4499 = vadd.f32 %v4292, %v4498
      %v4500 = vpop.f32.mrf.mxu0
      %v4501 = vpop.f32.mrf.mxu0
      %v4502 = vadd.f32 %v4295, %v4501
      %v4503 = vpop.f32.mrf.mxu0
      %4504 = vmatprep.mubr.bf16.mxu0 0
      %4505 = vmatmul.mubr.bf16.gmra.mxu0 %v4378
      %v4506 = vpop.f32.mrf.mxu0
      %v4507 = vadd.f32 %v4300, %v4506
      %v4508 = vpop.f32.mrf.mxu0
      %v4509 = vpop.f32.mrf.mxu0
      %v4510 = vadd.f32 %v4303, %v4509
      %v4511 = vpop.f32.mrf.mxu0
      %4512 = vmatprep.mubr.bf16.mxu0 0
      %4513 = vmatmul.mubr.bf16.gmra.mxu0 %v4379
      %v4514 = vpop.f32.mrf.mxu0
      %v4515 = vadd.f32 %v4308, %v4514
      %v4516 = vpop.f32.mrf.mxu0
      %v4517 = vpop.f32.mrf.mxu0
      %v4518 = vadd.f32 %v4311, %v4517
      %v4519 = vpop.f32.mrf.mxu0
      %4520 = vmatprep.mubr.bf16.mxu0 0
      %4521 = vmatmul.mubr.bf16.gmra.mxu0 %v4380
      %v4522 = vpop.f32.mrf.mxu0
      %v4523 = vadd.f32 %v4316, %v4522
      %v4524 = vpop.f32.mrf.mxu0
      %v4525 = vpop.f32.mrf.mxu0
      %v4526 = vadd.f32 %v4319, %v4525
      %v4527 = vpop.f32.mrf.mxu0
      %4528 = vmatprep.mubr.bf16.mxu0 0
      %4529 = vmatmul.mubr.bf16.gmra.mxu0 %v4381
      %v4530 = vpop.f32.mrf.mxu0
      %v4531 = vadd.f32 %v4324, %v4530
      %v4532 = vpop.f32.mrf.mxu0
      %v4533 = vpop.f32.mrf.mxu0
      %v4534 = vadd.f32 %v4327, %v4533
      %v4535 = vpop.f32.mrf.mxu0
      %4536 = vmatprep.mubr.bf16.mxu0 0
      %4537 = vmatmul.mubr.bf16.gmra.mxu0 %v4382
      %v4538 = vpop.f32.mrf.mxu0
      %v4539 = vadd.f32 %v4332, %v4538
      %v4540 = vpop.f32.mrf.mxu0
      %v4541 = vpop.f32.mrf.mxu0
      %v4542 = vadd.f32 %v4335, %v4541
      %v4543 = vpop.f32.mrf.mxu0
      %4544 = vdwg.mxu0
      %v4545 = vld [vmem:[%s3873] sm:$0xe]
      %v4546 = vld [vmem:[%s3873 + $0xc] sm:$0xe]
      %v4547 = vld [vmem:[%s3873 + $0x18] sm:$0xe]
      %v4548 = vld [vmem:[%s3873 + $0x24] sm:$0xe]
      %v4549 = vld [vmem:[%s3873 + $0x30] sm:$0xe]
      %v4550 = vld [vmem:[%s3873 + $0x3c] sm:$0xe]
      %v4551 = vld [vmem:[%s3873 + $0x48] sm:$0xe]
      %v4552 = vld [vmem:[%s3873 + $0x54] sm:$0xe]
      %v4553 = vld [vmem:[%s3873 + $0x60] sm:$0xe]
      %v4572 = vrot.slane %v4545, 5
      %v4573 = vrot.slane %v4572, 4
      %v4574 = vrot.slane %v3875, 5
      %v4575 = vsel %vm1327, %v4573, %v4574
      %v4576 = vrot.slane %v4574, 4
      %v4577 = vrot.slane %v3908, 5
      %v4578 = vsel %vm1327, %v4576, %v4577
      %v4579 = vrot.slane %v4546, 5
      %v4580 = vrot.slane %v4579, 4
      %v4581 = vrot.slane %v3877, 5
      %v4582 = vsel %vm1327, %v4580, %v4581
      %v4583 = vrot.slane %v4581, 4
      %v4584 = vrot.slane %v3909, 5
      %v4585 = vsel %vm1327, %v4583, %v4584
      %v4586 = vrot.slane %v4547, 5
      %v4587 = vrot.slane %v4586, 4
      %v4588 = vrot.slane %v3879, 5
      %v4589 = vsel %vm1327, %v4587, %v4588
      %v4590 = vrot.slane %v4588, 4
      %v4591 = vrot.slane %v3910, 5
      %v4592 = vsel %vm1327, %v4590, %v4591
      %v4593 = vrot.slane %v4548, 5
      %v4594 = vrot.slane %v4593, 4
      %v4595 = vrot.slane %v3881, 5
      %v4596 = vsel %vm1327, %v4594, %v4595
      %v4597 = vrot.slane %v4595, 4
      %v4598 = vrot.slane %v3911, 5
      %v4599 = vsel %vm1327, %v4597, %v4598
      %v4600 = vrot.slane %v4549, 5
      %v4601 = vrot.slane %v4600, 4
      %v4602 = vrot.slane %v3883, 5
      %v4603 = vsel %vm1327, %v4601, %v4602
      %v4604 = vrot.slane %v4602, 4
      %v4605 = vrot.slane %v3912, 5
      %v4606 = vsel %vm1327, %v4604, %v4605
      %v4607 = vrot.slane %v4550, 5
      %v4608 = vrot.slane %v4607, 4
      %v4609 = vrot.slane %v3885, 5
      %v4610 = vsel %vm1327, %v4608, %v4609
      %v4611 = vrot.slane %v4609, 4
      %v4612 = vrot.slane %v3913, 5
      %v4613 = vsel %vm1327, %v4611, %v4612
      %v4614 = vrot.slane %v4551, 5
      %v4615 = vrot.slane %v4614, 4
      %v4616 = vrot.slane %v3887, 5
      %v4617 = vsel %vm1327, %v4615, %v4616
      %v4618 = vrot.slane %v4616, 4
      %v4619 = vrot.slane %v3914, 5
      %v4620 = vsel %vm1327, %v4618, %v4619
      %v4621 = vrot.slane %v4552, 5
      %v4622 = vrot.slane %v4621, 4
      %v4623 = vrot.slane %v3889, 5
      %v4624 = vsel %vm1327, %v4622, %v4623
      %v4625 = vrot.slane %v4623, 4
      %v4626 = vrot.slane %v3915, 5
      %v4627 = vsel %vm1327, %v4625, %v4626
      %v4628 = vrot.slane %v4553, 5
      %v4629 = vrot.slane %v4628, 4
      %v4630 = vrot.slane %v3891, 5
      %v4631 = vsel %vm1327, %v4629, %v4630
      %v4632 = vrot.slane %v4630, 4
      %v4633 = vrot.slane %v3916, 5
      %v4634 = vsel %vm1327, %v4632, %v4633
      %v4635 = vld [vmem:[%s1391] sm:$0xf]
      %v4636 = vld [vmem:[%s1391 + $0x4] sm:$0xf]
      %v4637 = vld [vmem:[%s1391 + $0x8] sm:$0xf]
      %v4638 = vld [vmem:[%s1391 + $0xc] sm:$0xf]
      %v4639 = vld [vmem:[%s1391 + $0x10] sm:$0xf]
      %v4640 = vld [vmem:[%s1391 + $0x14] sm:$0xf]
      %v4641 = vld [vmem:[%s1391 + $0x18] sm:$0xf]
      %v4642 = vld [vmem:[%s1391 + $0x1c] sm:$0xf]
      %v4643 = vld [vmem:[%s1391 + $0x20] sm:$0xf]
      %v4644 = vld [vmem:[%s1391 + $0x24] sm:$0xf]
      %v4645 = vld [vmem:[%s1391 + $0x28] sm:$0xf]
      %v4646 = vld [vmem:[%s1391 + $0x2c] sm:$0xf]
      %v4647 = vld [vmem:[%s1391 + $0x30] sm:$0xf]
      %v4648 = vld [vmem:[%s1391 + $0x34] sm:$0xf]
      %v4649 = vld [vmem:[%s1391 + $0x38] sm:$0xf]
      %v4650 = vld [vmem:[%s1391 + $0x3c] sm:$0xf]
      %v4651 = vunpack.c.l.b16 %v4575
      %v4652 = vunpack.c.l.b16 %v4578
      %v4653 = vunpack.c.l.b16 %v4582
      %v4654 = vunpack.c.l.b16 %v4585
      %v4655 = vunpack.c.l.b16 %v4589
      %v4656 = vunpack.c.l.b16 %v4592
      %v4657 = vunpack.c.l.b16 %v4596
      %v4658 = vunpack.c.l.b16 %v4599
      %v4659 = vunpack.c.l.b16 %v4603
      %v4660 = vunpack.c.l.b16 %v4606
      %v4661 = vunpack.c.l.b16 %v4610
      %v4662 = vunpack.c.l.b16 %v4613
      %v4663 = vunpack.c.l.b16 %v4617
      %v4664 = vunpack.c.l.b16 %v4620
      %v4665 = vunpack.c.l.b16 %v4624
      %v4666 = vunpack.c.l.b16 %v4627
      %v4667 = vunpack.c.l.b16 %v4631
      %v4668 = vunpack.c.l.b16 %v4634
      %v4669 = vpack.c.b16 %v4652, %v4651
      %v4670 = vpack.c.b16 %v4654, %v4653
      %v4671 = vpack.c.b16 %v4656, %v4655
      %v4672 = vpack.c.b16 %v4658, %v4657
      %v4673 = vpack.c.b16 %v4660, %v4659
      %v4674 = vpack.c.b16 %v4662, %v4661
      %v4675 = vpack.c.b16 %v4664, %v4663
      %v4676 = vpack.c.b16 %v4666, %v4665
      %v4677 = vpack.c.b16 %v4668, %v4667
      %v4703 = vunpack.c.l.b16 %v4635
      %v4704 = vunpack.c.l.b16 %v4636
      %v4705 = vunpack.c.l.b16 %v4637
      %v4706 = vunpack.c.l.b16 %v4638
      %v4707 = vunpack.c.l.b16 %v4639
      %v4708 = vunpack.c.l.b16 %v4640
      %v4709 = vunpack.c.l.b16 %v4641
      %v4710 = vunpack.c.l.b16 %v4642
      %v4711 = vunpack.c.l.b16 %v4643
      %v4712 = vunpack.c.l.b16 %v4644
      %v4713 = vunpack.c.l.b16 %v4645
      %v4714 = vunpack.c.l.b16 %v4646
      %v4715 = vunpack.c.l.b16 %v4647
      %v4716 = vunpack.c.l.b16 %v4648
      %v4717 = vunpack.c.l.b16 %v4649
      %v4718 = vunpack.c.l.b16 %v4650
      %v4719 = vpack.c.b16 %v4704, %v4703
      %v4720 = vpack.c.b16 %v4706, %v4705
      %v4721 = vpack.c.b16 %v4708, %v4707
      %v4722 = vpack.c.b16 %v4710, %v4709
      %v4723 = vpack.c.b16 %v4712, %v4711
      %v4724 = vpack.c.b16 %v4714, %v4713
      %v4725 = vpack.c.b16 %v4716, %v4715
      %v4726 = vpack.c.b16 %v4718, %v4717
      %4735 = vmatprep.subr.bf16.mxu0 0
      %4736 = vmatpush1.bf16.msra.mxu0 %v4726
      %4737 = vmatprep.subr.bf16.mxu0 0
      %4738 = vmatpush1.bf16.msra.mxu0 %v4725
      %4739 = vmatprep.subr.bf16.mxu0 0
      %4740 = vmatpush1.bf16.msra.mxu0 %v4724
      %4741 = vmatprep.subr.bf16.mxu0 0
      %4742 = vmatpush1.bf16.msra.mxu0 %v4723
      %4743 = vmatprep.subr.bf16.mxu0 0
      %4744 = vmatpush1.bf16.msra.mxu0 %v4722
      %4745 = vmatprep.subr.bf16.mxu0 0
      %4746 = vmatpush1.bf16.msra.mxu0 %v4721
      %4747 = vmatprep.subr.bf16.mxu0 0
      %4748 = vmatpush1.bf16.msra.mxu0 %v4720
      %4749 = vmatprep.subr.bf16.mxu0 0
      %4750 = vmatpush1.bf16.msra.mxu0 %v4719
      %4751 = vmatprep.subr.bf16.mxu0 0
      %4752 = vmatpush2.bf16.msra.mxu0 0
      %4753 = vmatprep.subr.bf16.mxu0 0
      %4754 = vmatpush2.bf16.msra.mxu0 0
      %4755 = vmatprep.subr.bf16.mxu0 0
      %4756 = vmatpush2.bf16.msra.mxu0 0
      %4757 = vmatprep.subr.bf16.mxu0 0
      %4758 = vmatpush2.bf16.msra.mxu0 0
      %4759 = vmatprep.subr.bf16.mxu0 0
      %4760 = vmatpush2.bf16.msra.mxu0 0
      %4761 = vmatprep.subr.bf16.mxu0 0
      %4762 = vmatpush2.bf16.msra.mxu0 0
      %4763 = vmatprep.subr.bf16.mxu0 0
      %4764 = vmatpush2.bf16.msra.mxu0 0
      %4765 = vmatprep.subr.bf16.mxu0 0
      %4766 = vmatpush2.bf16.msra.mxu0 0
      %4767 = vmatprep.mubr.bf16.mxu0 0
      %4768 = vmatmul.mubr.bf16.gmra.mxu0 %v4669
      %v4769 = vpop.f32.mrf.mxu0
      %v4770 = vadd.f32 0.0, %v4769
      %v4771 = vpop.f32.mrf.mxu0
      %v4772 = vpop.f32.mrf.mxu0
      %v4773 = vadd.f32 0.0, %v4772
      %v4774 = vpop.f32.mrf.mxu0
      %4775 = vmatprep.mubr.bf16.mxu0 0
      %4776 = vmatmul.mubr.bf16.gmra.mxu0 %v4670
      %v4777 = vpop.f32.mrf.mxu0
      %v4778 = vadd.f32 0.0, %v4777
      %v4779 = vpop.f32.mrf.mxu0
      %v4780 = vpop.f32.mrf.mxu0
      %v4781 = vadd.f32 0.0, %v4780
      %v4782 = vpop.f32.mrf.mxu0
      %4783 = vmatprep.mubr.bf16.mxu0 0
      %4784 = vmatmul.mubr.bf16.gmra.mxu0 %v4671
      %v4785 = vpop.f32.mrf.mxu0
      %v4786 = vadd.f32 0.0, %v4785
      %v4787 = vpop.f32.mrf.mxu0
      %v4788 = vpop.f32.mrf.mxu0
      %v4789 = vadd.f32 0.0, %v4788
      %v4790 = vpop.f32.mrf.mxu0
      %4791 = vmatprep.mubr.bf16.mxu0 0
      %4792 = vmatmul.mubr.bf16.gmra.mxu0 %v4672
      %v4793 = vpop.f32.mrf.mxu0
      %v4794 = vadd.f32 0.0, %v4793
      %v4795 = vpop.f32.mrf.mxu0
      %v4796 = vpop.f32.mrf.mxu0
      %v4797 = vadd.f32 0.0, %v4796
      %v4798 = vpop.f32.mrf.mxu0
      %4799 = vmatprep.mubr.bf16.mxu0 0
      %4800 = vmatmul.mubr.bf16.gmra.mxu0 %v4673
      %v4801 = vpop.f32.mrf.mxu0
      %v4802 = vadd.f32 0.0, %v4801
      %v4803 = vpop.f32.mrf.mxu0
      %v4804 = vpop.f32.mrf.mxu0
      %v4805 = vadd.f32 0.0, %v4804
      %v4806 = vpop.f32.mrf.mxu0
      %4807 = vmatprep.mubr.bf16.mxu0 0
      %4808 = vmatmul.mubr.bf16.gmra.mxu0 %v4674
      %v4809 = vpop.f32.mrf.mxu0
      %v4810 = vadd.f32 0.0, %v4809
      %v4811 = vpop.f32.mrf.mxu0
      %v4812 = vpop.f32.mrf.mxu0
      %v4813 = vadd.f32 0.0, %v4812
      %v4814 = vpop.f32.mrf.mxu0
      %4815 = vmatprep.mubr.bf16.mxu0 0
      %4816 = vmatmul.mubr.bf16.gmra.mxu0 %v4675
      %v4817 = vpop.f32.mrf.mxu0
      %v4818 = vadd.f32 0.0, %v4817
      %v4819 = vpop.f32.mrf.mxu0
      %v4820 = vpop.f32.mrf.mxu0
      %v4821 = vadd.f32 0.0, %v4820
      %v4822 = vpop.f32.mrf.mxu0
      %4823 = vmatprep.mubr.bf16.mxu0 0
      %4824 = vmatmul.mubr.bf16.gmra.mxu0 %v4676
      %v4825 = vpop.f32.mrf.mxu0
      %v4826 = vadd.f32 0.0, %v4825
      %v4827 = vpop.f32.mrf.mxu0
      %v4828 = vpop.f32.mrf.mxu0
      %v4829 = vadd.f32 0.0, %v4828
      %v4830 = vpop.f32.mrf.mxu0
      %4831 = vmatprep.mubr.bf16.mxu0 0
      %4832 = vmatmul.mubr.bf16.gmra.mxu0 %v4677
      %v4833 = vpop.f32.mrf.mxu0
      %v4834 = vadd.f32 0.0, %v4833
      %v4835 = vpop.f32.mrf.mxu0
      %v4836 = vpop.f32.mrf.mxu0
      %v4837 = vadd.f32 0.0, %v4836
      %v4838 = vpop.f32.mrf.mxu0
      %4839 = vdwg.mxu0
      %v4840 = vadd.f32 %v4475, %v4770
      %v4841 = vadd.f32 %v4478, %v4773
      %v4842 = vadd.f32 %v4483, %v4778
      %v4843 = vadd.f32 %v4486, %v4781
      %v4844 = vadd.f32 %v4491, %v4786
      %v4845 = vadd.f32 %v4494, %v4789
      %v4846 = vadd.f32 %v4499, %v4794
      %v4847 = vadd.f32 %v4502, %v4797
      %v4848 = vadd.f32 %v4507, %v4802
      %v4849 = vadd.f32 %v4510, %v4805
      %v4850 = vadd.f32 %v4515, %v4810
      %v4851 = vadd.f32 %v4518, %v4813
      %v4852 = vadd.f32 %v4523, %v4818
      %v4853 = vadd.f32 %v4526, %v4821
      %v4854 = vadd.f32 %v4531, %v4826
      %v4855 = vadd.f32 %v4534, %v4829
      %v4856 = vadd.f32 %v4539, %v4834
      %v4857 = vadd.f32 %v4542, %v4837
      %s4858 = scalar_lea.vmem %s495, 120 [#allocation2]
      %v4859 = vld [vmem:[%s4858] sm:$0xf]
      %v4860 = vld [vmem:[%s4858 + $0x4] sm:$0xf]
      %v4861 = vld [vmem:[%s4858 + $0xc] sm:$0xf]
      %v4862 = vld [vmem:[%s4858 + $0x10] sm:$0xf]
      %v4863 = vld [vmem:[%s4858 + $0x18] sm:$0xf]
      %v4864 = vld [vmem:[%s4858 + $0x1c] sm:$0xf]
      %v4865 = vld [vmem:[%s4858 + $0x24] sm:$0xf]
      %v4866 = vld [vmem:[%s4858 + $0x28] sm:$0xf]
      %v4867 = vld [vmem:[%s4858 + $0x30] sm:$0xf]
      %v4868 = vld [vmem:[%s4858 + $0x34] sm:$0xf]
      %v4869 = vld [vmem:[%s4858 + $0x3c] sm:$0xf]
      %v4870 = vld [vmem:[%s4858 + $0x40] sm:$0xf]
      %v4871 = vld [vmem:[%s4858 + $0x48] sm:$0xf]
      %v4872 = vld [vmem:[%s4858 + $0x4c] sm:$0xf]
      %v4873 = vld [vmem:[%s4858 + $0x54] sm:$0xf]
      %v4874 = vld [vmem:[%s4858 + $0x58] sm:$0xf]
      %v4875 = vld [vmem:[%s4858 + $0x60] sm:$0xf]
      %v4876 = vld [vmem:[%s4858 + $0x64] sm:$0xf]
      %v4877 = vld [vmem:[%s1634] sm:$0xf]
      %v4878 = vld [vmem:[%s1634 + $0x4] sm:$0xf]
      %v4879 = vld [vmem:[%s1634 + $0x8] sm:$0xf]
      %v4880 = vld [vmem:[%s1634 + $0xc] sm:$0xf]
      %v4881 = vld [vmem:[%s1634 + $0x10] sm:$0xf]
      %v4882 = vld [vmem:[%s1634 + $0x14] sm:$0xf]
      %v4883 = vld [vmem:[%s1634 + $0x18] sm:$0xf]
      %v4884 = vld [vmem:[%s1634 + $0x1c] sm:$0xf]
      %v4885 = vld [vmem:[%s1634 + $0x20] sm:$0xf]
      %v4886 = vld [vmem:[%s1634 + $0x24] sm:$0xf]
      %v4887 = vld [vmem:[%s1634 + $0x28] sm:$0xf]
      %v4888 = vld [vmem:[%s1634 + $0x2c] sm:$0xf]
      %v4889 = vld [vmem:[%s1634 + $0x30] sm:$0xf]
      %v4890 = vld [vmem:[%s1634 + $0x34] sm:$0xf]
      %v4891 = vld [vmem:[%s1634 + $0x38] sm:$0xf]
      %v4892 = vld [vmem:[%s1634 + $0x3c] sm:$0xf]
      %v4911 = vunpack.c.l.b16 %v4859
      %v4912 = vunpack.c.l.b16 %v4860
      %v4913 = vunpack.c.l.b16 %v4861
      %v4914 = vunpack.c.l.b16 %v4862
      %v4915 = vunpack.c.l.b16 %v4863
      %v4916 = vunpack.c.l.b16 %v4864
      %v4917 = vunpack.c.l.b16 %v4865
      %v4918 = vunpack.c.l.b16 %v4866
      %v4919 = vunpack.c.l.b16 %v4867
      %v4920 = vunpack.c.l.b16 %v4868
      %v4921 = vunpack.c.l.b16 %v4869
      %v4922 = vunpack.c.l.b16 %v4870
      %v4923 = vunpack.c.l.b16 %v4871
      %v4924 = vunpack.c.l.b16 %v4872
      %v4925 = vunpack.c.l.b16 %v4873
      %v4926 = vunpack.c.l.b16 %v4874
      %v4927 = vunpack.c.l.b16 %v4875
      %v4928 = vunpack.c.l.b16 %v4876
      %v4929 = vpack.c.b16 %v4912, %v4911
      %v4930 = vpack.c.b16 %v4914, %v4913
      %v4931 = vpack.c.b16 %v4916, %v4915
      %v4932 = vpack.c.b16 %v4918, %v4917
      %v4933 = vpack.c.b16 %v4920, %v4919
      %v4934 = vpack.c.b16 %v4922, %v4921
      %v4935 = vpack.c.b16 %v4924, %v4923
      %v4936 = vpack.c.b16 %v4926, %v4925
      %v4937 = vpack.c.b16 %v4928, %v4927
      %v4963 = vunpack.c.l.b16 %v4877
      %v4964 = vunpack.c.l.b16 %v4878
      %v4965 = vunpack.c.l.b16 %v4879
      %v4966 = vunpack.c.l.b16 %v4880
      %v4967 = vunpack.c.l.b16 %v4881
      %v4968 = vunpack.c.l.b16 %v4882
      %v4969 = vunpack.c.l.b16 %v4883
      %v4970 = vunpack.c.l.b16 %v4884
      %v4971 = vunpack.c.l.b16 %v4885
      %v4972 = vunpack.c.l.b16 %v4886
      %v4973 = vunpack.c.l.b16 %v4887
      %v4974 = vunpack.c.l.b16 %v4888
      %v4975 = vunpack.c.l.b16 %v4889
      %v4976 = vunpack.c.l.b16 %v4890
      %v4977 = vunpack.c.l.b16 %v4891
      %v4978 = vunpack.c.l.b16 %v4892
      %v4979 = vpack.c.b16 %v4964, %v4963
      %v4980 = vpack.c.b16 %v4966, %v4965
      %v4981 = vpack.c.b16 %v4968, %v4967
      %v4982 = vpack.c.b16 %v4970, %v4969
      %v4983 = vpack.c.b16 %v4972, %v4971
      %v4984 = vpack.c.b16 %v4974, %v4973
      %v4985 = vpack.c.b16 %v4976, %v4975
      %v4986 = vpack.c.b16 %v4978, %v4977
      %4995 = vmatprep.subr.bf16.mxu0 0
      %4996 = vmatpush1.bf16.msra.mxu0 %v4986
      %4997 = vmatprep.subr.bf16.mxu0 0
      %4998 = vmatpush1.bf16.msra.mxu0 %v4985
      %4999 = vmatprep.subr.bf16.mxu0 0
      %5000 = vmatpush1.bf16.msra.mxu0 %v4984
      %5001 = vmatprep.subr.bf16.mxu0 0
      %5002 = vmatpush1.bf16.msra.mxu0 %v4983
      %5003 = vmatprep.subr.bf16.mxu0 0
      %5004 = vmatpush1.bf16.msra.mxu0 %v4982
      %5005 = vmatprep.subr.bf16.mxu0 0
      %5006 = vmatpush1.bf16.msra.mxu0 %v4981
      %5007 = vmatprep.subr.bf16.mxu0 0
      %5008 = vmatpush1.bf16.msra.mxu0 %v4980
      %5009 = vmatprep.subr.bf16.mxu0 0
      %5010 = vmatpush1.bf16.msra.mxu0 %v4979
      %5011 = vmatprep.subr.bf16.mxu0 0
      %5012 = vmatpush2.bf16.msra.mxu0 0
      %5013 = vmatprep.subr.bf16.mxu0 0
      %5014 = vmatpush2.bf16.msra.mxu0 0
      %5015 = vmatprep.subr.bf16.mxu0 0
      %5016 = vmatpush2.bf16.msra.mxu0 0
      %5017 = vmatprep.subr.bf16.mxu0 0
      %5018 = vmatpush2.bf16.msra.mxu0 0
      %5019 = vmatprep.subr.bf16.mxu0 0
      %5020 = vmatpush2.bf16.msra.mxu0 0
      %5021 = vmatprep.subr.bf16.mxu0 0
      %5022 = vmatpush2.bf16.msra.mxu0 0
      %5023 = vmatprep.subr.bf16.mxu0 0
      %5024 = vmatpush2.bf16.msra.mxu0 0
      %5025 = vmatprep.subr.bf16.mxu0 0
      %5026 = vmatpush2.bf16.msra.mxu0 0
      %5027 = vmatprep.mubr.bf16.mxu0 0
      %5028 = vmatmul.mubr.bf16.gmra.mxu0 %v4929
      %v5029 = vpop.f32.mrf.mxu0
      %v5030 = vadd.f32 0.0, %v5029
      %v5031 = vpop.f32.mrf.mxu0
      %v5032 = vpop.f32.mrf.mxu0
      %v5033 = vadd.f32 0.0, %v5032
      %v5034 = vpop.f32.mrf.mxu0
      %5035 = vmatprep.mubr.bf16.mxu0 0
      %5036 = vmatmul.mubr.bf16.gmra.mxu0 %v4930
      %v5037 = vpop.f32.mrf.mxu0
      %v5038 = vadd.f32 0.0, %v5037
      %v5039 = vpop.f32.mrf.mxu0
      %v5040 = vpop.f32.mrf.mxu0
      %v5041 = vadd.f32 0.0, %v5040
      %v5042 = vpop.f32.mrf.mxu0
      %5043 = vmatprep.mubr.bf16.mxu0 0
      %5044 = vmatmul.mubr.bf16.gmra.mxu0 %v4931
      %v5045 = vpop.f32.mrf.mxu0
      %v5046 = vadd.f32 0.0, %v5045
      %v5047 = vpop.f32.mrf.mxu0
      %v5048 = vpop.f32.mrf.mxu0
      %v5049 = vadd.f32 0.0, %v5048
      %v5050 = vpop.f32.mrf.mxu0
      %5051 = vmatprep.mubr.bf16.mxu0 0
      %5052 = vmatmul.mubr.bf16.gmra.mxu0 %v4932
      %v5053 = vpop.f32.mrf.mxu0
      %v5054 = vadd.f32 0.0, %v5053
      %v5055 = vpop.f32.mrf.mxu0
      %v5056 = vpop.f32.mrf.mxu0
      %v5057 = vadd.f32 0.0, %v5056
      %v5058 = vpop.f32.mrf.mxu0
      %5059 = vmatprep.mubr.bf16.mxu0 0
      %5060 = vmatmul.mubr.bf16.gmra.mxu0 %v4933
      %v5061 = vpop.f32.mrf.mxu0
      %v5062 = vadd.f32 0.0, %v5061
      %v5063 = vpop.f32.mrf.mxu0
      %v5064 = vpop.f32.mrf.mxu0
      %v5065 = vadd.f32 0.0, %v5064
      %v5066 = vpop.f32.mrf.mxu0
      %5067 = vmatprep.mubr.bf16.mxu0 0
      %5068 = vmatmul.mubr.bf16.gmra.mxu0 %v4934
      %v5069 = vpop.f32.mrf.mxu0
      %v5070 = vadd.f32 0.0, %v5069
      %v5071 = vpop.f32.mrf.mxu0
      %v5072 = vpop.f32.mrf.mxu0
      %v5073 = vadd.f32 0.0, %v5072
      %v5074 = vpop.f32.mrf.mxu0
      %5075 = vmatprep.mubr.bf16.mxu0 0
      %5076 = vmatmul.mubr.bf16.gmra.mxu0 %v4935
      %v5077 = vpop.f32.mrf.mxu0
      %v5078 = vadd.f32 0.0, %v5077
      %v5079 = vpop.f32.mrf.mxu0
      %v5080 = vpop.f32.mrf.mxu0
      %v5081 = vadd.f32 0.0, %v5080
      %v5082 = vpop.f32.mrf.mxu0
      %5083 = vmatprep.mubr.bf16.mxu0 0
      %5084 = vmatmul.mubr.bf16.gmra.mxu0 %v4936
      %v5085 = vpop.f32.mrf.mxu0
      %v5086 = vadd.f32 0.0, %v5085
      %v5087 = vpop.f32.mrf.mxu0
      %v5088 = vpop.f32.mrf.mxu0
      %v5089 = vadd.f32 0.0, %v5088
      %v5090 = vpop.f32.mrf.mxu0
      %5091 = vmatprep.mubr.bf16.mxu0 0
      %5092 = vmatmul.mubr.bf16.gmra.mxu0 %v4937
      %v5093 = vpop.f32.mrf.mxu0
      %v5094 = vadd.f32 0.0, %v5093
      %v5095 = vpop.f32.mrf.mxu0
      %v5096 = vpop.f32.mrf.mxu0
      %v5097 = vadd.f32 0.0, %v5096
      %v5098 = vpop.f32.mrf.mxu0
      %5099 = vdwg.mxu0
      %v5100 = vadd.f32 %v4840, %v5030
      %v5101 = vadd.f32 %v4841, %v5033
      %v5102 = vadd.f32 %v4842, %v5038
      %v5103 = vadd.f32 %v4843, %v5041
      %v5104 = vadd.f32 %v4844, %v5046
      %v5105 = vadd.f32 %v4845, %v5049
      %v5106 = vadd.f32 %v4846, %v5054
      %v5107 = vadd.f32 %v4847, %v5057
      %v5108 = vadd.f32 %v4848, %v5062
      %v5109 = vadd.f32 %v4849, %v5065
      %v5110 = vadd.f32 %v4850, %v5070
      %v5111 = vadd.f32 %v4851, %v5073
      %v5112 = vadd.f32 %v4852, %v5078
      %v5113 = vadd.f32 %v4853, %v5081
      %v5114 = vadd.f32 %v4854, %v5086
      %v5115 = vadd.f32 %v4855, %v5089
      %v5116 = vadd.f32 %v4856, %v5094
      %v5117 = vadd.f32 %v4857, %v5097
      %v5118 = vld [vmem:[%s4858] sm:$0xf]
      %v5119 = vld [vmem:[%s4858 + $0x4] sm:$0xf]
      %v5120 = vld [vmem:[%s4858 + $0x8] sm:$0x1]
      %v5121 = vld [vmem:[%s4858 + $0xc] sm:$0xf]
      %v5122 = vld [vmem:[%s4858 + $0x10] sm:$0xf]
      %v5123 = vld [vmem:[%s4858 + $0x14] sm:$0x1]
      %v5124 = vld [vmem:[%s4858 + $0x18] sm:$0xf]
      %v5125 = vld [vmem:[%s4858 + $0x1c] sm:$0xf]
      %v5126 = vld [vmem:[%s4858 + $0x20] sm:$0x1]
      %v5127 = vld [vmem:[%s4858 + $0x24] sm:$0xf]
      %v5128 = vld [vmem:[%s4858 + $0x28] sm:$0xf]
      %v5129 = vld [vmem:[%s4858 + $0x2c] sm:$0x1]
      %v5130 = vld [vmem:[%s4858 + $0x30] sm:$0xf]
      %v5131 = vld [vmem:[%s4858 + $0x34] sm:$0xf]
      %v5132 = vld [vmem:[%s4858 + $0x38] sm:$0x1]
      %v5133 = vld [vmem:[%s4858 + $0x3c] sm:$0xf]
      %v5134 = vld [vmem:[%s4858 + $0x40] sm:$0xf]
      %v5135 = vld [vmem:[%s4858 + $0x44] sm:$0x1]
      %v5136 = vld [vmem:[%s4858 + $0x48] sm:$0xf]
      %v5137 = vld [vmem:[%s4858 + $0x4c] sm:$0xf]
      %v5138 = vld [vmem:[%s4858 + $0x50] sm:$0x1]
      %v5139 = vld [vmem:[%s4858 + $0x54] sm:$0xf]
      %v5140 = vld [vmem:[%s4858 + $0x58] sm:$0xf]
      %v5141 = vld [vmem:[%s4858 + $0x5c] sm:$0x1]
      %v5142 = vld [vmem:[%s4858 + $0x60] sm:$0xf]
      %v5143 = vld [vmem:[%s4858 + $0x64] sm:$0xf]
      %v5144 = vld [vmem:[%s4858 + $0x68] sm:$0x1]
      %v5146 = vshrl.u32 %v5118, 16
      %v5148 = vrot.slane %v5146, 4
      %v5149 = vshll.u32 %v5118, 16
      %v5151 = vrot.slane %v5149, 5
      %v5152 = vor.u32 %v5148, %v5151
      %v5153 = vrot.slane %v5152, 4
      %v5155 = vshll.u32 %v5119, 16
      %v5157 = vrot.slane %v5155, 5
      %v5158 = vsel %vm668, %v5153, %v5157
      %v5159 = vshrl.u32 %v5119, 16
      %v5161 = vrot.slane %v5159, 4
      %v5162 = vor.u32 %v5161, %v5157
      %v5163 = vrot.slane %v5162, 4
      %v5165 = vshll.u32 %v5120, 16
      %v5167 = vrot.slane %v5165, 5
      %v5168 = vsel %vm668, %v5163, %v5167
      %v5170 = vshrl.u32 %v5121, 16
      %v5172 = vrot.slane %v5170, 4
      %v5173 = vshll.u32 %v5121, 16
      %v5175 = vrot.slane %v5173, 5
      %v5176 = vor.u32 %v5172, %v5175
      %v5177 = vrot.slane %v5176, 4
      %v5179 = vshll.u32 %v5122, 16
      %v5181 = vrot.slane %v5179, 5
      %v5182 = vsel %vm668, %v5177, %v5181
      %v5183 = vshrl.u32 %v5122, 16
      %v5185 = vrot.slane %v5183, 4
      %v5186 = vor.u32 %v5185, %v5181
      %v5187 = vrot.slane %v5186, 4
      %v5189 = vshll.u32 %v5123, 16
      %v5191 = vrot.slane %v5189, 5
      %v5192 = vsel %vm668, %v5187, %v5191
      %v5194 = vshrl.u32 %v5124, 16
      %v5196 = vrot.slane %v5194, 4
      %v5197 = vshll.u32 %v5124, 16
      %v5199 = vrot.slane %v5197, 5
      %v5200 = vor.u32 %v5196, %v5199
      %v5201 = vrot.slane %v5200, 4
      %v5203 = vshll.u32 %v5125, 16
      %v5205 = vrot.slane %v5203, 5
      %v5206 = vsel %vm668, %v5201, %v5205
      %v5207 = vshrl.u32 %v5125, 16
      %v5209 = vrot.slane %v5207, 4
      %v5210 = vor.u32 %v5209, %v5205
      %v5211 = vrot.slane %v5210, 4
      %v5213 = vshll.u32 %v5126, 16
      %v5215 = vrot.slane %v5213, 5
      %v5216 = vsel %vm668, %v5211, %v5215
      %v5218 = vshrl.u32 %v5127, 16
      %v5220 = vrot.slane %v5218, 4
      %v5221 = vshll.u32 %v5127, 16
      %v5223 = vrot.slane %v5221, 5
      %v5224 = vor.u32 %v5220, %v5223
      %v5225 = vrot.slane %v5224, 4
      %v5227 = vshll.u32 %v5128, 16
      %v5229 = vrot.slane %v5227, 5
      %v5230 = vsel %vm668, %v5225, %v5229
      %v5231 = vshrl.u32 %v5128, 16
      %v5233 = vrot.slane %v5231, 4
      %v5234 = vor.u32 %v5233, %v5229
      %v5235 = vrot.slane %v5234, 4
      %v5237 = vshll.u32 %v5129, 16
      %v5239 = vrot.slane %v5237, 5
      %v5240 = vsel %vm668, %v5235, %v5239
      %v5242 = vshrl.u32 %v5130, 16
      %v5244 = vrot.slane %v5242, 4
      %v5245 = vshll.u32 %v5130, 16
      %v5247 = vrot.slane %v5245, 5
      %v5248 = vor.u32 %v5244, %v5247
      %v5249 = vrot.slane %v5248, 4
      %v5251 = vshll.u32 %v5131, 16
      %v5253 = vrot.slane %v5251, 5
      %v5254 = vsel %vm668, %v5249, %v5253
      %v5255 = vshrl.u32 %v5131, 16
      %v5257 = vrot.slane %v5255, 4
      %v5258 = vor.u32 %v5257, %v5253
      %v5259 = vrot.slane %v5258, 4
      %v5261 = vshll.u32 %v5132, 16
      %v5263 = vrot.slane %v5261, 5
      %v5264 = vsel %vm668, %v5259, %v5263
      %v5266 = vshrl.u32 %v5133, 16
      %v5268 = vrot.slane %v5266, 4
      %v5269 = vshll.u32 %v5133, 16
      %v5271 = vrot.slane %v5269, 5
      %v5272 = vor.u32 %v5268, %v5271
      %v5273 = vrot.slane %v5272, 4
      %v5275 = vshll.u32 %v5134, 16
      %v5277 = vrot.slane %v5275, 5
      %v5278 = vsel %vm668, %v5273, %v5277
      %v5279 = vshrl.u32 %v5134, 16
      %v5281 = vrot.slane %v5279, 4
      %v5282 = vor.u32 %v5281, %v5277
      %v5283 = vrot.slane %v5282, 4
      %v5285 = vshll.u32 %v5135, 16
      %v5287 = vrot.slane %v5285, 5
      %v5288 = vsel %vm668, %v5283, %v5287
      %v5290 = vshrl.u32 %v5136, 16
      %v5292 = vrot.slane %v5290, 4
      %v5293 = vshll.u32 %v5136, 16
      %v5295 = vrot.slane %v5293, 5
      %v5296 = vor.u32 %v5292, %v5295
      %v5297 = vrot.slane %v5296, 4
      %v5299 = vshll.u32 %v5137, 16
      %v5301 = vrot.slane %v5299, 5
      %v5302 = vsel %vm668, %v5297, %v5301
      %v5303 = vshrl.u32 %v5137, 16
      %v5305 = vrot.slane %v5303, 4
      %v5306 = vor.u32 %v5305, %v5301
      %v5307 = vrot.slane %v5306, 4
      %v5309 = vshll.u32 %v5138, 16
      %v5311 = vrot.slane %v5309, 5
      %v5312 = vsel %vm668, %v5307, %v5311
      %v5314 = vshrl.u32 %v5139, 16
      %v5316 = vrot.slane %v5314, 4
      %v5317 = vshll.u32 %v5139, 16
      %v5319 = vrot.slane %v5317, 5
      %v5320 = vor.u32 %v5316, %v5319
      %v5321 = vrot.slane %v5320, 4
      %v5323 = vshll.u32 %v5140, 16
      %v5325 = vrot.slane %v5323, 5
      %v5326 = vsel %vm668, %v5321, %v5325
      %v5327 = vshrl.u32 %v5140, 16
      %v5329 = vrot.slane %v5327, 4
      %v5330 = vor.u32 %v5329, %v5325
      %v5331 = vrot.slane %v5330, 4
      %v5333 = vshll.u32 %v5141, 16
      %v5335 = vrot.slane %v5333, 5
      %v5336 = vsel %vm668, %v5331, %v5335
      %v5338 = vshrl.u32 %v5142, 16
      %v5340 = vrot.slane %v5338, 4
      %v5341 = vshll.u32 %v5142, 16
      %v5343 = vrot.slane %v5341, 5
      %v5344 = vor.u32 %v5340, %v5343
      %v5345 = vrot.slane %v5344, 4
      %v5347 = vshll.u32 %v5143, 16
      %v5349 = vrot.slane %v5347, 5
      %v5350 = vsel %vm668, %v5345, %v5349
      %v5351 = vshrl.u32 %v5143, 16
      %v5353 = vrot.slane %v5351, 4
      %v5354 = vor.u32 %v5353, %v5349
      %v5355 = vrot.slane %v5354, 4
      %v5357 = vshll.u32 %v5144, 16
      %v5359 = vrot.slane %v5357, 5
      %v5360 = vsel %vm668, %v5355, %v5359
      %v5361 = vld [vmem:[%s2119] sm:$0xf]
      %v5362 = vld [vmem:[%s2119 + $0x4] sm:$0xf]
      %v5363 = vld [vmem:[%s2119 + $0x8] sm:$0xf]
      %v5364 = vld [vmem:[%s2119 + $0xc] sm:$0xf]
      %v5365 = vld [vmem:[%s2119 + $0x10] sm:$0xf]
      %v5366 = vld [vmem:[%s2119 + $0x14] sm:$0xf]
      %v5367 = vld [vmem:[%s2119 + $0x18] sm:$0xf]
      %v5368 = vld [vmem:[%s2119 + $0x1c] sm:$0xf]
      %v5369 = vld [vmem:[%s2119 + $0x20] sm:$0xf]
      %v5370 = vld [vmem:[%s2119 + $0x24] sm:$0xf]
      %v5371 = vld [vmem:[%s2119 + $0x28] sm:$0xf]
      %v5372 = vld [vmem:[%s2119 + $0x2c] sm:$0xf]
      %v5373 = vld [vmem:[%s2119 + $0x30] sm:$0xf]
      %v5374 = vld [vmem:[%s2119 + $0x34] sm:$0xf]
      %v5375 = vld [vmem:[%s2119 + $0x38] sm:$0xf]
      %v5376 = vld [vmem:[%s2119 + $0x3c] sm:$0xf]
      %v5377 = vunpack.c.l.b16 %v5158
      %v5378 = vunpack.c.l.b16 %v5168
      %v5379 = vunpack.c.l.b16 %v5182
      %v5380 = vunpack.c.l.b16 %v5192
      %v5381 = vunpack.c.l.b16 %v5206
      %v5382 = vunpack.c.l.b16 %v5216
      %v5383 = vunpack.c.l.b16 %v5230
      %v5384 = vunpack.c.l.b16 %v5240
      %v5385 = vunpack.c.l.b16 %v5254
      %v5386 = vunpack.c.l.b16 %v5264
      %v5387 = vunpack.c.l.b16 %v5278
      %v5388 = vunpack.c.l.b16 %v5288
      %v5389 = vunpack.c.l.b16 %v5302
      %v5390 = vunpack.c.l.b16 %v5312
      %v5391 = vunpack.c.l.b16 %v5326
      %v5392 = vunpack.c.l.b16 %v5336
      %v5393 = vunpack.c.l.b16 %v5350
      %v5394 = vunpack.c.l.b16 %v5360
      %v5395 = vpack.c.b16 %v5378, %v5377
      %v5396 = vpack.c.b16 %v5380, %v5379
      %v5397 = vpack.c.b16 %v5382, %v5381
      %v5398 = vpack.c.b16 %v5384, %v5383
      %v5399 = vpack.c.b16 %v5386, %v5385
      %v5400 = vpack.c.b16 %v5388, %v5387
      %v5401 = vpack.c.b16 %v5390, %v5389
      %v5402 = vpack.c.b16 %v5392, %v5391
      %v5403 = vpack.c.b16 %v5394, %v5393
      %v5429 = vunpack.c.l.b16 %v5361
      %v5430 = vunpack.c.l.b16 %v5362
      %v5431 = vunpack.c.l.b16 %v5363
      %v5432 = vunpack.c.l.b16 %v5364
      %v5433 = vunpack.c.l.b16 %v5365
      %v5434 = vunpack.c.l.b16 %v5366
      %v5435 = vunpack.c.l.b16 %v5367
      %v5436 = vunpack.c.l.b16 %v5368
      %v5437 = vunpack.c.l.b16 %v5369
      %v5438 = vunpack.c.l.b16 %v5370
      %v5439 = vunpack.c.l.b16 %v5371
      %v5440 = vunpack.c.l.b16 %v5372
      %v5441 = vunpack.c.l.b16 %v5373
      %v5442 = vunpack.c.l.b16 %v5374
      %v5443 = vunpack.c.l.b16 %v5375
      %v5444 = vunpack.c.l.b16 %v5376
      %v5445 = vpack.c.b16 %v5430, %v5429
      %v5446 = vpack.c.b16 %v5432, %v5431
      %v5447 = vpack.c.b16 %v5434, %v5433
      %v5448 = vpack.c.b16 %v5436, %v5435
      %v5449 = vpack.c.b16 %v5438, %v5437
      %v5450 = vpack.c.b16 %v5440, %v5439
      %v5451 = vpack.c.b16 %v5442, %v5441
      %v5452 = vpack.c.b16 %v5444, %v5443
      %5461 = vmatprep.subr.bf16.mxu0 0
      %5462 = vmatpush1.bf16.msra.mxu0 %v5452
      %5463 = vmatprep.subr.bf16.mxu0 0
      %5464 = vmatpush1.bf16.msra.mxu0 %v5451
      %5465 = vmatprep.subr.bf16.mxu0 0
      %5466 = vmatpush1.bf16.msra.mxu0 %v5450
      %5467 = vmatprep.subr.bf16.mxu0 0
      %5468 = vmatpush1.bf16.msra.mxu0 %v5449
      %5469 = vmatprep.subr.bf16.mxu0 0
      %5470 = vmatpush1.bf16.msra.mxu0 %v5448
      %5471 = vmatprep.subr.bf16.mxu0 0
      %5472 = vmatpush1.bf16.msra.mxu0 %v5447
      %5473 = vmatprep.subr.bf16.mxu0 0
      %5474 = vmatpush1.bf16.msra.mxu0 %v5446
      %5475 = vmatprep.subr.bf16.mxu0 0
      %5476 = vmatpush1.bf16.msra.mxu0 %v5445
      %5477 = vmatprep.subr.bf16.mxu0 0
      %5478 = vmatpush2.bf16.msra.mxu0 0
      %5479 = vmatprep.subr.bf16.mxu0 0
      %5480 = vmatpush2.bf16.msra.mxu0 0
      %5481 = vmatprep.subr.bf16.mxu0 0
      %5482 = vmatpush2.bf16.msra.mxu0 0
      %5483 = vmatprep.subr.bf16.mxu0 0
      %5484 = vmatpush2.bf16.msra.mxu0 0
      %5485 = vmatprep.subr.bf16.mxu0 0
      %5486 = vmatpush2.bf16.msra.mxu0 0
      %5487 = vmatprep.subr.bf16.mxu0 0
      %5488 = vmatpush2.bf16.msra.mxu0 0
      %5489 = vmatprep.subr.bf16.mxu0 0
      %5490 = vmatpush2.bf16.msra.mxu0 0
      %5491 = vmatprep.subr.bf16.mxu0 0
      %5492 = vmatpush2.bf16.msra.mxu0 0
      %5493 = vmatprep.mubr.bf16.mxu0 0
      %5494 = vmatmul.mubr.bf16.gmra.mxu0 %v5395
      %v5495 = vpop.f32.mrf.mxu0
      %v5496 = vadd.f32 0.0, %v5495
      %v5497 = vpop.f32.mrf.mxu0
      %v5498 = vpop.f32.mrf.mxu0
      %v5499 = vadd.f32 0.0, %v5498
      %v5500 = vpop.f32.mrf.mxu0
      %5501 = vmatprep.mubr.bf16.mxu0 0
      %5502 = vmatmul.mubr.bf16.gmra.mxu0 %v5396
      %v5503 = vpop.f32.mrf.mxu0
      %v5504 = vadd.f32 0.0, %v5503
      %v5505 = vpop.f32.mrf.mxu0
      %v5506 = vpop.f32.mrf.mxu0
      %v5507 = vadd.f32 0.0, %v5506
      %v5508 = vpop.f32.mrf.mxu0
      %5509 = vmatprep.mubr.bf16.mxu0 0
      %5510 = vmatmul.mubr.bf16.gmra.mxu0 %v5397
      %v5511 = vpop.f32.mrf.mxu0
      %v5512 = vadd.f32 0.0, %v5511
      %v5513 = vpop.f32.mrf.mxu0
      %v5514 = vpop.f32.mrf.mxu0
      %v5515 = vadd.f32 0.0, %v5514
      %v5516 = vpop.f32.mrf.mxu0
      %5517 = vmatprep.mubr.bf16.mxu0 0
      %5518 = vmatmul.mubr.bf16.gmra.mxu0 %v5398
      %v5519 = vpop.f32.mrf.mxu0
      %v5520 = vadd.f32 0.0, %v5519
      %v5521 = vpop.f32.mrf.mxu0
      %v5522 = vpop.f32.mrf.mxu0
      %v5523 = vadd.f32 0.0, %v5522
      %v5524 = vpop.f32.mrf.mxu0
      %5525 = vmatprep.mubr.bf16.mxu0 0
      %5526 = vmatmul.mubr.bf16.gmra.mxu0 %v5399
      %v5527 = vpop.f32.mrf.mxu0
      %v5528 = vadd.f32 0.0, %v5527
      %v5529 = vpop.f32.mrf.mxu0
      %v5530 = vpop.f32.mrf.mxu0
      %v5531 = vadd.f32 0.0, %v5530
      %v5532 = vpop.f32.mrf.mxu0
      %5533 = vmatprep.mubr.bf16.mxu0 0
      %5534 = vmatmul.mubr.bf16.gmra.mxu0 %v5400
      %v5535 = vpop.f32.mrf.mxu0
      %v5536 = vadd.f32 0.0, %v5535
      %v5537 = vpop.f32.mrf.mxu0
      %v5538 = vpop.f32.mrf.mxu0
      %v5539 = vadd.f32 0.0, %v5538
      %v5540 = vpop.f32.mrf.mxu0
      %5541 = vmatprep.mubr.bf16.mxu0 0
      %5542 = vmatmul.mubr.bf16.gmra.mxu0 %v5401
      %v5543 = vpop.f32.mrf.mxu0
      %v5544 = vadd.f32 0.0, %v5543
      %v5545 = vpop.f32.mrf.mxu0
      %v5546 = vpop.f32.mrf.mxu0
      %v5547 = vadd.f32 0.0, %v5546
      %v5548 = vpop.f32.mrf.mxu0
      %5549 = vmatprep.mubr.bf16.mxu0 0
      %5550 = vmatmul.mubr.bf16.gmra.mxu0 %v5402
      %v5551 = vpop.f32.mrf.mxu0
      %v5552 = vadd.f32 0.0, %v5551
      %v5553 = vpop.f32.mrf.mxu0
      %v5554 = vpop.f32.mrf.mxu0
      %v5555 = vadd.f32 0.0, %v5554
      %v5556 = vpop.f32.mrf.mxu0
      %5557 = vmatprep.mubr.bf16.mxu0 0
      %5558 = vmatmul.mubr.bf16.gmra.mxu0 %v5403
      %v5559 = vpop.f32.mrf.mxu0
      %v5560 = vadd.f32 0.0, %v5559
      %v5561 = vpop.f32.mrf.mxu0
      %v5562 = vpop.f32.mrf.mxu0
      %v5563 = vadd.f32 0.0, %v5562
      %v5564 = vpop.f32.mrf.mxu0
      %5565 = vdwg.mxu0
      %v5566 = vadd.f32 %v5100, %v5496
      %v5567 = vadd.f32 %v5101, %v5499
      %v5568 = vadd.f32 %v5102, %v5504
      %v5569 = vadd.f32 %v5103, %v5507
      %v5570 = vadd.f32 %v5104, %v5512
      %v5571 = vadd.f32 %v5105, %v5515
      %v5572 = vadd.f32 %v5106, %v5520
      %v5573 = vadd.f32 %v5107, %v5523
      %v5574 = vadd.f32 %v5108, %v5528
      %v5575 = vadd.f32 %v5109, %v5531
      %v5576 = vadd.f32 %v5110, %v5536
      %v5577 = vadd.f32 %v5111, %v5539
      %v5578 = vadd.f32 %v5112, %v5544
      %v5579 = vadd.f32 %v5113, %v5547
      %v5580 = vadd.f32 %v5114, %v5552
      %v5581 = vadd.f32 %v5115, %v5555
      %v5582 = vadd.f32 %v5116, %v5560
      %v5583 = vadd.f32 %v5117, %v5563
      %v5584 = vld [vmem:[%s4858] sm:$0xe]
      %v5585 = vld [vmem:[%s4858 + $0xc] sm:$0xe]
      %v5586 = vld [vmem:[%s4858 + $0x18] sm:$0xe]
      %v5587 = vld [vmem:[%s4858 + $0x24] sm:$0xe]
      %v5588 = vld [vmem:[%s4858 + $0x30] sm:$0xe]
      %v5589 = vld [vmem:[%s4858 + $0x3c] sm:$0xe]
      %v5590 = vld [vmem:[%s4858 + $0x48] sm:$0xe]
      %v5591 = vld [vmem:[%s4858 + $0x54] sm:$0xe]
      %v5592 = vld [vmem:[%s4858 + $0x60] sm:$0xe]
      %v5620 = vrot.slane %v5584, 5
      %v5621 = vrot.slane %v5620, 4
      %v5622 = vrot.slane %v5119, 5
      %v5623 = vsel %vm1327, %v5621, %v5622
      %v5624 = vrot.slane %v5622, 4
      %v5625 = vrot.slane %v5120, 5
      %v5626 = vsel %vm1327, %v5624, %v5625
      %v5627 = vrot.slane %v5585, 5
      %v5628 = vrot.slane %v5627, 4
      %v5629 = vrot.slane %v5122, 5
      %v5630 = vsel %vm1327, %v5628, %v5629
      %v5631 = vrot.slane %v5629, 4
      %v5632 = vrot.slane %v5123, 5
      %v5633 = vsel %vm1327, %v5631, %v5632
      %v5634 = vrot.slane %v5586, 5
      %v5635 = vrot.slane %v5634, 4
      %v5636 = vrot.slane %v5125, 5
      %v5637 = vsel %vm1327, %v5635, %v5636
      %v5638 = vrot.slane %v5636, 4
      %v5639 = vrot.slane %v5126, 5
      %v5640 = vsel %vm1327, %v5638, %v5639
      %v5641 = vrot.slane %v5587, 5
      %v5642 = vrot.slane %v5641, 4
      %v5643 = vrot.slane %v5128, 5
      %v5644 = vsel %vm1327, %v5642, %v5643
      %v5645 = vrot.slane %v5643, 4
      %v5646 = vrot.slane %v5129, 5
      %v5647 = vsel %vm1327, %v5645, %v5646
      %v5648 = vrot.slane %v5588, 5
      %v5649 = vrot.slane %v5648, 4
      %v5650 = vrot.slane %v5131, 5
      %v5651 = vsel %vm1327, %v5649, %v5650
      %v5652 = vrot.slane %v5650, 4
      %v5653 = vrot.slane %v5132, 5
      %v5654 = vsel %vm1327, %v5652, %v5653
      %v5655 = vrot.slane %v5589, 5
      %v5656 = vrot.slane %v5655, 4
      %v5657 = vrot.slane %v5134, 5
      %v5658 = vsel %vm1327, %v5656, %v5657
      %v5659 = vrot.slane %v5657, 4
      %v5660 = vrot.slane %v5135, 5
      %v5661 = vsel %vm1327, %v5659, %v5660
      %v5662 = vrot.slane %v5590, 5
      %v5663 = vrot.slane %v5662, 4
      %v5664 = vrot.slane %v5137, 5
      %v5665 = vsel %vm1327, %v5663, %v5664
      %v5666 = vrot.slane %v5664, 4
      %v5667 = vrot.slane %v5138, 5
      %v5668 = vsel %vm1327, %v5666, %v5667
      %v5669 = vrot.slane %v5591, 5
      %v5670 = vrot.slane %v5669, 4
      %v5671 = vrot.slane %v5140, 5
      %v5672 = vsel %vm1327, %v5670, %v5671
      %v5673 = vrot.slane %v5671, 4
      %v5674 = vrot.slane %v5141, 5
      %v5675 = vsel %vm1327, %v5673, %v5674
      %v5676 = vrot.slane %v5592, 5
      %v5677 = vrot.slane %v5676, 4
      %v5678 = vrot.slane %v5143, 5
      %v5679 = vsel %vm1327, %v5677, %v5678
      %v5680 = vrot.slane %v5678, 4
      %v5681 = vrot.slane %v5144, 5
      %v5682 = vsel %vm1327, %v5680, %v5681
      %v5683 = vld [vmem:[%s2442] sm:$0xf]
      %v5684 = vld [vmem:[%s2442 + $0x4] sm:$0xf]
      %v5685 = vld [vmem:[%s2442 + $0x8] sm:$0xf]
      %v5686 = vld [vmem:[%s2442 + $0xc] sm:$0xf]
      %v5687 = vld [vmem:[%s2442 + $0x10] sm:$0xf]
      %v5688 = vld [vmem:[%s2442 + $0x14] sm:$0xf]
      %v5689 = vld [vmem:[%s2442 + $0x18] sm:$0xf]
      %v5690 = vld [vmem:[%s2442 + $0x1c] sm:$0xf]
      %v5691 = vld [vmem:[%s2442 + $0x20] sm:$0xf]
      %v5692 = vld [vmem:[%s2442 + $0x24] sm:$0xf]
      %v5693 = vld [vmem:[%s2442 + $0x28] sm:$0xf]
      %v5694 = vld [vmem:[%s2442 + $0x2c] sm:$0xf]
      %v5695 = vld [vmem:[%s2442 + $0x30] sm:$0xf]
      %v5696 = vld [vmem:[%s2442 + $0x34] sm:$0xf]
      %v5697 = vld [vmem:[%s2442 + $0x38] sm:$0xf]
      %v5698 = vld [vmem:[%s2442 + $0x3c] sm:$0xf]
      %v5699 = vunpack.c.l.b16 %v5623
      %v5700 = vunpack.c.l.b16 %v5626
      %v5701 = vunpack.c.l.b16 %v5630
      %v5702 = vunpack.c.l.b16 %v5633
      %v5703 = vunpack.c.l.b16 %v5637
      %v5704 = vunpack.c.l.b16 %v5640
      %v5705 = vunpack.c.l.b16 %v5644
      %v5706 = vunpack.c.l.b16 %v5647
      %v5707 = vunpack.c.l.b16 %v5651
      %v5708 = vunpack.c.l.b16 %v5654
      %v5709 = vunpack.c.l.b16 %v5658
      %v5710 = vunpack.c.l.b16 %v5661
      %v5711 = vunpack.c.l.b16 %v5665
      %v5712 = vunpack.c.l.b16 %v5668
      %v5713 = vunpack.c.l.b16 %v5672
      %v5714 = vunpack.c.l.b16 %v5675
      %v5715 = vunpack.c.l.b16 %v5679
      %v5716 = vunpack.c.l.b16 %v5682
      %v5717 = vpack.c.b16 %v5700, %v5699
      %v5718 = vpack.c.b16 %v5702, %v5701
      %v5719 = vpack.c.b16 %v5704, %v5703
      %v5720 = vpack.c.b16 %v5706, %v5705
      %v5721 = vpack.c.b16 %v5708, %v5707
      %v5722 = vpack.c.b16 %v5710, %v5709
      %v5723 = vpack.c.b16 %v5712, %v5711
      %v5724 = vpack.c.b16 %v5714, %v5713
      %v5725 = vpack.c.b16 %v5716, %v5715
      %v5751 = vunpack.c.l.b16 %v5683
      %v5752 = vunpack.c.l.b16 %v5684
      %v5753 = vunpack.c.l.b16 %v5685
      %v5754 = vunpack.c.l.b16 %v5686
      %v5755 = vunpack.c.l.b16 %v5687
      %v5756 = vunpack.c.l.b16 %v5688
      %v5757 = vunpack.c.l.b16 %v5689
      %v5758 = vunpack.c.l.b16 %v5690
      %v5759 = vunpack.c.l.b16 %v5691
      %v5760 = vunpack.c.l.b16 %v5692
      %v5761 = vunpack.c.l.b16 %v5693
      %v5762 = vunpack.c.l.b16 %v5694
      %v5763 = vunpack.c.l.b16 %v5695
      %v5764 = vunpack.c.l.b16 %v5696
      %v5765 = vunpack.c.l.b16 %v5697
      %v5766 = vunpack.c.l.b16 %v5698
      %v5767 = vpack.c.b16 %v5752, %v5751
      %v5768 = vpack.c.b16 %v5754, %v5753
      %v5769 = vpack.c.b16 %v5756, %v5755
      %v5770 = vpack.c.b16 %v5758, %v5757
      %v5771 = vpack.c.b16 %v5760, %v5759
      %v5772 = vpack.c.b16 %v5762, %v5761
      %v5773 = vpack.c.b16 %v5764, %v5763
      %v5774 = vpack.c.b16 %v5766, %v5765
      %5783 = vmatprep.subr.bf16.mxu0 0
      %5784 = vmatpush1.bf16.msra.mxu0 %v5774
      %5785 = vmatprep.subr.bf16.mxu0 0
      %5786 = vmatpush1.bf16.msra.mxu0 %v5773
      %5787 = vmatprep.subr.bf16.mxu0 0
      %5788 = vmatpush1.bf16.msra.mxu0 %v5772
      %5789 = vmatprep.subr.bf16.mxu0 0
      %5790 = vmatpush1.bf16.msra.mxu0 %v5771
      %5791 = vmatprep.subr.bf16.mxu0 0
      %5792 = vmatpush1.bf16.msra.mxu0 %v5770
      %5793 = vmatprep.subr.bf16.mxu0 0
      %5794 = vmatpush1.bf16.msra.mxu0 %v5769
      %5795 = vmatprep.subr.bf16.mxu0 0
      %5796 = vmatpush1.bf16.msra.mxu0 %v5768
      %5797 = vmatprep.subr.bf16.mxu0 0
      %5798 = vmatpush1.bf16.msra.mxu0 %v5767
      %5799 = vmatprep.subr.bf16.mxu0 0
      %5800 = vmatpush2.bf16.msra.mxu0 0
      %5801 = vmatprep.subr.bf16.mxu0 0
      %5802 = vmatpush2.bf16.msra.mxu0 0
      %5803 = vmatprep.subr.bf16.mxu0 0
      %5804 = vmatpush2.bf16.msra.mxu0 0
      %5805 = vmatprep.subr.bf16.mxu0 0
      %5806 = vmatpush2.bf16.msra.mxu0 0
      %5807 = vmatprep.subr.bf16.mxu0 0
      %5808 = vmatpush2.bf16.msra.mxu0 0
      %5809 = vmatprep.subr.bf16.mxu0 0
      %5810 = vmatpush2.bf16.msra.mxu0 0
      %5811 = vmatprep.subr.bf16.mxu0 0
      %5812 = vmatpush2.bf16.msra.mxu0 0
      %5813 = vmatprep.subr.bf16.mxu0 0
      %5814 = vmatpush2.bf16.msra.mxu0 0
      %5815 = vmatprep.mubr.bf16.mxu0 0
      %5816 = vmatmul.mubr.bf16.gmra.mxu0 %v5717
      %v5817 = vpop.f32.mrf.mxu0
      %v5818 = vadd.f32 0.0, %v5817
      %v5819 = vpop.f32.mrf.mxu0
      %v5820 = vpop.f32.mrf.mxu0
      %v5821 = vadd.f32 0.0, %v5820
      %v5822 = vpop.f32.mrf.mxu0
      %5823 = vmatprep.mubr.bf16.mxu0 0
      %5824 = vmatmul.mubr.bf16.gmra.mxu0 %v5718
      %v5825 = vpop.f32.mrf.mxu0
      %v5826 = vadd.f32 0.0, %v5825
      %v5827 = vpop.f32.mrf.mxu0
      %v5828 = vpop.f32.mrf.mxu0
      %v5829 = vadd.f32 0.0, %v5828
      %v5830 = vpop.f32.mrf.mxu0
      %5831 = vmatprep.mubr.bf16.mxu0 0
      %5832 = vmatmul.mubr.bf16.gmra.mxu0 %v5719
      %v5833 = vpop.f32.mrf.mxu0
      %v5834 = vadd.f32 0.0, %v5833
      %v5835 = vpop.f32.mrf.mxu0
      %v5836 = vpop.f32.mrf.mxu0
      %v5837 = vadd.f32 0.0, %v5836
      %v5838 = vpop.f32.mrf.mxu0
      %5839 = vmatprep.mubr.bf16.mxu0 0
      %5840 = vmatmul.mubr.bf16.gmra.mxu0 %v5720
      %v5841 = vpop.f32.mrf.mxu0
      %v5842 = vadd.f32 0.0, %v5841
      %v5843 = vpop.f32.mrf.mxu0
      %v5844 = vpop.f32.mrf.mxu0
      %v5845 = vadd.f32 0.0, %v5844
      %v5846 = vpop.f32.mrf.mxu0
      %5847 = vmatprep.mubr.bf16.mxu0 0
      %5848 = vmatmul.mubr.bf16.gmra.mxu0 %v5721
      %v5849 = vpop.f32.mrf.mxu0
      %v5850 = vadd.f32 0.0, %v5849
      %v5851 = vpop.f32.mrf.mxu0
      %v5852 = vpop.f32.mrf.mxu0
      %v5853 = vadd.f32 0.0, %v5852
      %v5854 = vpop.f32.mrf.mxu0
      %5855 = vmatprep.mubr.bf16.mxu0 0
      %5856 = vmatmul.mubr.bf16.gmra.mxu0 %v5722
      %v5857 = vpop.f32.mrf.mxu0
      %v5858 = vadd.f32 0.0, %v5857
      %v5859 = vpop.f32.mrf.mxu0
      %v5860 = vpop.f32.mrf.mxu0
      %v5861 = vadd.f32 0.0, %v5860
      %v5862 = vpop.f32.mrf.mxu0
      %5863 = vmatprep.mubr.bf16.mxu0 0
      %5864 = vmatmul.mubr.bf16.gmra.mxu0 %v5723
      %v5865 = vpop.f32.mrf.mxu0
      %v5866 = vadd.f32 0.0, %v5865
      %v5867 = vpop.f32.mrf.mxu0
      %v5868 = vpop.f32.mrf.mxu0
      %v5869 = vadd.f32 0.0, %v5868
      %v5870 = vpop.f32.mrf.mxu0
      %5871 = vmatprep.mubr.bf16.mxu0 0
      %5872 = vmatmul.mubr.bf16.gmra.mxu0 %v5724
      %v5873 = vpop.f32.mrf.mxu0
      %v5874 = vadd.f32 0.0, %v5873
      %v5875 = vpop.f32.mrf.mxu0
      %v5876 = vpop.f32.mrf.mxu0
      %v5877 = vadd.f32 0.0, %v5876
      %v5878 = vpop.f32.mrf.mxu0
      %5879 = vmatprep.mubr.bf16.mxu0 0
      %5880 = vmatmul.mubr.bf16.gmra.mxu0 %v5725
      %v5881 = vpop.f32.mrf.mxu0
      %v5882 = vadd.f32 0.0, %v5881
      %v5883 = vpop.f32.mrf.mxu0
      %v5884 = vpop.f32.mrf.mxu0
      %v5885 = vadd.f32 0.0, %v5884
      %v5886 = vpop.f32.mrf.mxu0
      %5887 = vdwg.mxu0
      %v5888 = vadd.f32 %v5566, %v5818
      %v5889 = vadd.f32 %v5567, %v5821
      %v5890 = vadd.f32 %v5568, %v5826
      %v5891 = vadd.f32 %v5569, %v5829
      %v5892 = vadd.f32 %v5570, %v5834
      %v5893 = vadd.f32 %v5571, %v5837
      %v5894 = vadd.f32 %v5572, %v5842
      %v5895 = vadd.f32 %v5573, %v5845
      %v5896 = vadd.f32 %v5574, %v5850
      %v5897 = vadd.f32 %v5575, %v5853
      %v5898 = vadd.f32 %v5576, %v5858
      %v5899 = vadd.f32 %v5577, %v5861
      %v5900 = vadd.f32 %v5578, %v5866
      %v5901 = vadd.f32 %v5579, %v5869
      %v5902 = vadd.f32 %v5580, %v5874
      %v5903 = vadd.f32 %v5581, %v5877
      %v5904 = vadd.f32 %v5582, %v5882
      %v5905 = vadd.f32 %v5583, %v5885
      %s5906 = scalar_lea.vmem %s495, 132 [#allocation2]
      %v5907 = vld [vmem:[%s5906] sm:$0xf]
      %v5908 = vld [vmem:[%s5906 + $0x4] sm:$0xf]
      %v5909 = vld [vmem:[%s5906 + $0xc] sm:$0xf]
      %v5910 = vld [vmem:[%s5906 + $0x10] sm:$0xf]
      %v5911 = vld [vmem:[%s5906 + $0x18] sm:$0xf]
      %v5912 = vld [vmem:[%s5906 + $0x1c] sm:$0xf]
      %v5913 = vld [vmem:[%s5906 + $0x24] sm:$0xf]
      %v5914 = vld [vmem:[%s5906 + $0x28] sm:$0xf]
      %v5915 = vld [vmem:[%s5906 + $0x30] sm:$0xf]
      %v5916 = vld [vmem:[%s5906 + $0x34] sm:$0xf]
      %v5917 = vld [vmem:[%s5906 + $0x3c] sm:$0xf]
      %v5918 = vld [vmem:[%s5906 + $0x40] sm:$0xf]
      %v5919 = vld [vmem:[%s5906 + $0x48] sm:$0xf]
      %v5920 = vld [vmem:[%s5906 + $0x4c] sm:$0xf]
      %v5921 = vld [vmem:[%s5906 + $0x54] sm:$0xf]
      %v5922 = vld [vmem:[%s5906 + $0x58] sm:$0xf]
      %v5923 = vld [vmem:[%s5906 + $0x60] sm:$0xf]
      %v5924 = vld [vmem:[%s5906 + $0x64] sm:$0xf]
      %v5925 = vld [vmem:[%s2685] sm:$0xf]
      %v5926 = vld [vmem:[%s2685 + $0x4] sm:$0xf]
      %v5927 = vld [vmem:[%s2685 + $0x8] sm:$0xf]
      %v5928 = vld [vmem:[%s2685 + $0xc] sm:$0xf]
      %v5929 = vld [vmem:[%s2685 + $0x10] sm:$0xf]
      %v5930 = vld [vmem:[%s2685 + $0x14] sm:$0xf]
      %v5931 = vld [vmem:[%s2685 + $0x18] sm:$0xf]
      %v5932 = vld [vmem:[%s2685 + $0x1c] sm:$0xf]
      %v5933 = vld [vmem:[%s2685 + $0x20] sm:$0xf]
      %v5934 = vld [vmem:[%s2685 + $0x24] sm:$0xf]
      %v5935 = vld [vmem:[%s2685 + $0x28] sm:$0xf]
      %v5936 = vld [vmem:[%s2685 + $0x2c] sm:$0xf]
      %v5937 = vld [vmem:[%s2685 + $0x30] sm:$0xf]
      %v5938 = vld [vmem:[%s2685 + $0x34] sm:$0xf]
      %v5939 = vld [vmem:[%s2685 + $0x38] sm:$0xf]
      %v5940 = vld [vmem:[%s2685 + $0x3c] sm:$0xf]
      %v5959 = vunpack.c.l.b16 %v5907
      %v5960 = vunpack.c.l.b16 %v5908
      %v5961 = vunpack.c.l.b16 %v5909
      %v5962 = vunpack.c.l.b16 %v5910
      %v5963 = vunpack.c.l.b16 %v5911
      %v5964 = vunpack.c.l.b16 %v5912
      %v5965 = vunpack.c.l.b16 %v5913
      %v5966 = vunpack.c.l.b16 %v5914
      %v5967 = vunpack.c.l.b16 %v5915
      %v5968 = vunpack.c.l.b16 %v5916
      %v5969 = vunpack.c.l.b16 %v5917
      %v5970 = vunpack.c.l.b16 %v5918
      %v5971 = vunpack.c.l.b16 %v5919
      %v5972 = vunpack.c.l.b16 %v5920
      %v5973 = vunpack.c.l.b16 %v5921
      %v5974 = vunpack.c.l.b16 %v5922
      %v5975 = vunpack.c.l.b16 %v5923
      %v5976 = vunpack.c.l.b16 %v5924
      %v5977 = vpack.c.b16 %v5960, %v5959
      %v5978 = vpack.c.b16 %v5962, %v5961
      %v5979 = vpack.c.b16 %v5964, %v5963
      %v5980 = vpack.c.b16 %v5966, %v5965
      %v5981 = vpack.c.b16 %v5968, %v5967
      %v5982 = vpack.c.b16 %v5970, %v5969
      %v5983 = vpack.c.b16 %v5972, %v5971
      %v5984 = vpack.c.b16 %v5974, %v5973
      %v5985 = vpack.c.b16 %v5976, %v5975
      %v6011 = vunpack.c.l.b16 %v5925
      %v6012 = vunpack.c.l.b16 %v5926
      %v6013 = vunpack.c.l.b16 %v5927
      %v6014 = vunpack.c.l.b16 %v5928
      %v6015 = vunpack.c.l.b16 %v5929
      %v6016 = vunpack.c.l.b16 %v5930
      %v6017 = vunpack.c.l.b16 %v5931
      %v6018 = vunpack.c.l.b16 %v5932
      %v6019 = vunpack.c.l.b16 %v5933
      %v6020 = vunpack.c.l.b16 %v5934
      %v6021 = vunpack.c.l.b16 %v5935
      %v6022 = vunpack.c.l.b16 %v5936
      %v6023 = vunpack.c.l.b16 %v5937
      %v6024 = vunpack.c.l.b16 %v5938
      %v6025 = vunpack.c.l.b16 %v5939
      %v6026 = vunpack.c.l.b16 %v5940
      %v6027 = vpack.c.b16 %v6012, %v6011
      %v6028 = vpack.c.b16 %v6014, %v6013
      %v6029 = vpack.c.b16 %v6016, %v6015
      %v6030 = vpack.c.b16 %v6018, %v6017
      %v6031 = vpack.c.b16 %v6020, %v6019
      %v6032 = vpack.c.b16 %v6022, %v6021
      %v6033 = vpack.c.b16 %v6024, %v6023
      %v6034 = vpack.c.b16 %v6026, %v6025
      %6043 = vmatprep.subr.bf16.mxu0 0
      %6044 = vmatpush1.bf16.msra.mxu0 %v6034
      %6045 = vmatprep.subr.bf16.mxu0 0
      %6046 = vmatpush1.bf16.msra.mxu0 %v6033
      %6047 = vmatprep.subr.bf16.mxu0 0
      %6048 = vmatpush1.bf16.msra.mxu0 %v6032
      %6049 = vmatprep.subr.bf16.mxu0 0
      %6050 = vmatpush1.bf16.msra.mxu0 %v6031
      %6051 = vmatprep.subr.bf16.mxu0 0
      %6052 = vmatpush1.bf16.msra.mxu0 %v6030
      %6053 = vmatprep.subr.bf16.mxu0 0
      %6054 = vmatpush1.bf16.msra.mxu0 %v6029
      %6055 = vmatprep.subr.bf16.mxu0 0
      %6056 = vmatpush1.bf16.msra.mxu0 %v6028
      %6057 = vmatprep.subr.bf16.mxu0 0
      %6058 = vmatpush1.bf16.msra.mxu0 %v6027
      %6059 = vmatprep.subr.bf16.mxu0 0
      %6060 = vmatpush2.bf16.msra.mxu0 0
      %6061 = vmatprep.subr.bf16.mxu0 0
      %6062 = vmatpush2.bf16.msra.mxu0 0
      %6063 = vmatprep.subr.bf16.mxu0 0
      %6064 = vmatpush2.bf16.msra.mxu0 0
      %6065 = vmatprep.subr.bf16.mxu0 0
      %6066 = vmatpush2.bf16.msra.mxu0 0
      %6067 = vmatprep.subr.bf16.mxu0 0
      %6068 = vmatpush2.bf16.msra.mxu0 0
      %6069 = vmatprep.subr.bf16.mxu0 0
      %6070 = vmatpush2.bf16.msra.mxu0 0
      %6071 = vmatprep.subr.bf16.mxu0 0
      %6072 = vmatpush2.bf16.msra.mxu0 0
      %6073 = vmatprep.subr.bf16.mxu0 0
      %6074 = vmatpush2.bf16.msra.mxu0 0
      %6075 = vmatprep.mubr.bf16.mxu0 0
      %6076 = vmatmul.mubr.bf16.gmra.mxu0 %v5977
      %v6077 = vpop.f32.mrf.mxu0
      %v6078 = vadd.f32 0.0, %v6077
      %v6079 = vpop.f32.mrf.mxu0
      %v6080 = vpop.f32.mrf.mxu0
      %v6081 = vadd.f32 0.0, %v6080
      %v6082 = vpop.f32.mrf.mxu0
      %6083 = vmatprep.mubr.bf16.mxu0 0
      %6084 = vmatmul.mubr.bf16.gmra.mxu0 %v5978
      %v6085 = vpop.f32.mrf.mxu0
      %v6086 = vadd.f32 0.0, %v6085
      %v6087 = vpop.f32.mrf.mxu0
      %v6088 = vpop.f32.mrf.mxu0
      %v6089 = vadd.f32 0.0, %v6088
      %v6090 = vpop.f32.mrf.mxu0
      %6091 = vmatprep.mubr.bf16.mxu0 0
      %6092 = vmatmul.mubr.bf16.gmra.mxu0 %v5979
      %v6093 = vpop.f32.mrf.mxu0
      %v6094 = vadd.f32 0.0, %v6093
      %v6095 = vpop.f32.mrf.mxu0
      %v6096 = vpop.f32.mrf.mxu0
      %v6097 = vadd.f32 0.0, %v6096
      %v6098 = vpop.f32.mrf.mxu0
      %6099 = vmatprep.mubr.bf16.mxu0 0
      %6100 = vmatmul.mubr.bf16.gmra.mxu0 %v5980
      %v6101 = vpop.f32.mrf.mxu0
      %v6102 = vadd.f32 0.0, %v6101
      %v6103 = vpop.f32.mrf.mxu0
      %v6104 = vpop.f32.mrf.mxu0
      %v6105 = vadd.f32 0.0, %v6104
      %v6106 = vpop.f32.mrf.mxu0
      %6107 = vmatprep.mubr.bf16.mxu0 0
      %6108 = vmatmul.mubr.bf16.gmra.mxu0 %v5981
      %v6109 = vpop.f32.mrf.mxu0
      %v6110 = vadd.f32 0.0, %v6109
      %v6111 = vpop.f32.mrf.mxu0
      %v6112 = vpop.f32.mrf.mxu0
      %v6113 = vadd.f32 0.0, %v6112
      %v6114 = vpop.f32.mrf.mxu0
      %6115 = vmatprep.mubr.bf16.mxu0 0
      %6116 = vmatmul.mubr.bf16.gmra.mxu0 %v5982
      %v6117 = vpop.f32.mrf.mxu0
      %v6118 = vadd.f32 0.0, %v6117
      %v6119 = vpop.f32.mrf.mxu0
      %v6120 = vpop.f32.mrf.mxu0
      %v6121 = vadd.f32 0.0, %v6120
      %v6122 = vpop.f32.mrf.mxu0
      %6123 = vmatprep.mubr.bf16.mxu0 0
      %6124 = vmatmul.mubr.bf16.gmra.mxu0 %v5983
      %v6125 = vpop.f32.mrf.mxu0
      %v6126 = vadd.f32 0.0, %v6125
      %v6127 = vpop.f32.mrf.mxu0
      %v6128 = vpop.f32.mrf.mxu0
      %v6129 = vadd.f32 0.0, %v6128
      %v6130 = vpop.f32.mrf.mxu0
      %6131 = vmatprep.mubr.bf16.mxu0 0
      %6132 = vmatmul.mubr.bf16.gmra.mxu0 %v5984
      %v6133 = vpop.f32.mrf.mxu0
      %v6134 = vadd.f32 0.0, %v6133
      %v6135 = vpop.f32.mrf.mxu0
      %v6136 = vpop.f32.mrf.mxu0
      %v6137 = vadd.f32 0.0, %v6136
      %v6138 = vpop.f32.mrf.mxu0
      %6139 = vmatprep.mubr.bf16.mxu0 0
      %6140 = vmatmul.mubr.bf16.gmra.mxu0 %v5985
      %v6141 = vpop.f32.mrf.mxu0
      %v6142 = vadd.f32 0.0, %v6141
      %v6143 = vpop.f32.mrf.mxu0
      %v6144 = vpop.f32.mrf.mxu0
      %v6145 = vadd.f32 0.0, %v6144
      %v6146 = vpop.f32.mrf.mxu0
      %6147 = vdwg.mxu0
      %v6148 = vadd.f32 %v5888, %v6078
      %v6149 = vadd.f32 %v5889, %v6081
      %v6150 = vadd.f32 %v5890, %v6086
      %v6151 = vadd.f32 %v5891, %v6089
      %v6152 = vadd.f32 %v5892, %v6094
      %v6153 = vadd.f32 %v5893, %v6097
      %v6154 = vadd.f32 %v5894, %v6102
      %v6155 = vadd.f32 %v5895, %v6105
      %v6156 = vadd.f32 %v5896, %v6110
      %v6157 = vadd.f32 %v5897, %v6113
      %v6158 = vadd.f32 %v5898, %v6118
      %v6159 = vadd.f32 %v5899, %v6121
      %v6160 = vadd.f32 %v5900, %v6126
      %v6161 = vadd.f32 %v5901, %v6129
      %v6162 = vadd.f32 %v5902, %v6134
      %v6163 = vadd.f32 %v5903, %v6137
      %v6164 = vadd.f32 %v5904, %v6142
      %v6165 = vadd.f32 %v5905, %v6145
      %v6166 = vld [vmem:[%s5906] sm:$0xf]
      %v6167 = vld [vmem:[%s5906 + $0x4] sm:$0xf]
      %v6168 = vld [vmem:[%s5906 + $0x8] sm:$0x1]
      %v6169 = vld [vmem:[%s5906 + $0xc] sm:$0xf]
      %v6170 = vld [vmem:[%s5906 + $0x10] sm:$0xf]
      %v6171 = vld [vmem:[%s5906 + $0x14] sm:$0x1]
      %v6172 = vld [vmem:[%s5906 + $0x18] sm:$0xf]
      %v6173 = vld [vmem:[%s5906 + $0x1c] sm:$0xf]
      %v6174 = vld [vmem:[%s5906 + $0x20] sm:$0x1]
      %v6175 = vld [vmem:[%s5906 + $0x24] sm:$0xf]
      %v6176 = vld [vmem:[%s5906 + $0x28] sm:$0xf]
      %v6177 = vld [vmem:[%s5906 + $0x2c] sm:$0x1]
      %v6178 = vld [vmem:[%s5906 + $0x30] sm:$0xf]
      %v6179 = vld [vmem:[%s5906 + $0x34] sm:$0xf]
      %v6180 = vld [vmem:[%s5906 + $0x38] sm:$0x1]
      %v6181 = vld [vmem:[%s5906 + $0x3c] sm:$0xf]
      %v6182 = vld [vmem:[%s5906 + $0x40] sm:$0xf]
      %v6183 = vld [vmem:[%s5906 + $0x44] sm:$0x1]
      %v6184 = vld [vmem:[%s5906 + $0x48] sm:$0xf]
      %v6185 = vld [vmem:[%s5906 + $0x4c] sm:$0xf]
      %v6186 = vld [vmem:[%s5906 + $0x50] sm:$0x1]
      %v6187 = vld [vmem:[%s5906 + $0x54] sm:$0xf]
      %v6188 = vld [vmem:[%s5906 + $0x58] sm:$0xf]
      %v6189 = vld [vmem:[%s5906 + $0x5c] sm:$0x1]
      %v6190 = vld [vmem:[%s5906 + $0x60] sm:$0xf]
      %v6191 = vld [vmem:[%s5906 + $0x64] sm:$0xf]
      %v6192 = vld [vmem:[%s5906 + $0x68] sm:$0x1]
      %v6194 = vshrl.u32 %v6166, 16
      %v6196 = vrot.slane %v6194, 4
      %v6197 = vshll.u32 %v6166, 16
      %v6199 = vrot.slane %v6197, 5
      %v6200 = vor.u32 %v6196, %v6199
      %v6201 = vrot.slane %v6200, 4
      %v6203 = vshll.u32 %v6167, 16
      %v6205 = vrot.slane %v6203, 5
      %v6206 = vsel %vm668, %v6201, %v6205
      %v6207 = vshrl.u32 %v6167, 16
      %v6209 = vrot.slane %v6207, 4
      %v6210 = vor.u32 %v6209, %v6205
      %v6211 = vrot.slane %v6210, 4
      %v6213 = vshll.u32 %v6168, 16
      %v6215 = vrot.slane %v6213, 5
      %v6216 = vsel %vm668, %v6211, %v6215
      %v6218 = vshrl.u32 %v6169, 16
      %v6220 = vrot.slane %v6218, 4
      %v6221 = vshll.u32 %v6169, 16
      %v6223 = vrot.slane %v6221, 5
      %v6224 = vor.u32 %v6220, %v6223
      %v6225 = vrot.slane %v6224, 4
      %v6227 = vshll.u32 %v6170, 16
      %v6229 = vrot.slane %v6227, 5
      %v6230 = vsel %vm668, %v6225, %v6229
      %v6231 = vshrl.u32 %v6170, 16
      %v6233 = vrot.slane %v6231, 4
      %v6234 = vor.u32 %v6233, %v6229
      %v6235 = vrot.slane %v6234, 4
      %v6237 = vshll.u32 %v6171, 16
      %v6239 = vrot.slane %v6237, 5
      %v6240 = vsel %vm668, %v6235, %v6239
      %v6242 = vshrl.u32 %v6172, 16
      %v6244 = vrot.slane %v6242, 4
      %v6245 = vshll.u32 %v6172, 16
      %v6247 = vrot.slane %v6245, 5
      %v6248 = vor.u32 %v6244, %v6247
      %v6249 = vrot.slane %v6248, 4
      %v6251 = vshll.u32 %v6173, 16
      %v6253 = vrot.slane %v6251, 5
      %v6254 = vsel %vm668, %v6249, %v6253
      %v6255 = vshrl.u32 %v6173, 16
      %v6257 = vrot.slane %v6255, 4
      %v6258 = vor.u32 %v6257, %v6253
      %v6259 = vrot.slane %v6258, 4
      %v6261 = vshll.u32 %v6174, 16
      %v6263 = vrot.slane %v6261, 5
      %v6264 = vsel %vm668, %v6259, %v6263
      %v6266 = vshrl.u32 %v6175, 16
      %v6268 = vrot.slane %v6266, 4
      %v6269 = vshll.u32 %v6175, 16
      %v6271 = vrot.slane %v6269, 5
      %v6272 = vor.u32 %v6268, %v6271
      %v6273 = vrot.slane %v6272, 4
      %v6275 = vshll.u32 %v6176, 16
      %v6277 = vrot.slane %v6275, 5
      %v6278 = vsel %vm668, %v6273, %v6277
      %v6279 = vshrl.u32 %v6176, 16
      %v6281 = vrot.slane %v6279, 4
      %v6282 = vor.u32 %v6281, %v6277
      %v6283 = vrot.slane %v6282, 4
      %v6285 = vshll.u32 %v6177, 16
      %v6287 = vrot.slane %v6285, 5
      %v6288 = vsel %vm668, %v6283, %v6287
      %v6290 = vshrl.u32 %v6178, 16
      %v6292 = vrot.slane %v6290, 4
      %v6293 = vshll.u32 %v6178, 16
      %v6295 = vrot.slane %v6293, 5
      %v6296 = vor.u32 %v6292, %v6295
      %v6297 = vrot.slane %v6296, 4
      %v6299 = vshll.u32 %v6179, 16
      %v6301 = vrot.slane %v6299, 5
      %v6302 = vsel %vm668, %v6297, %v6301
      %v6303 = vshrl.u32 %v6179, 16
      %v6305 = vrot.slane %v6303, 4
      %v6306 = vor.u32 %v6305, %v6301
      %v6307 = vrot.slane %v6306, 4
      %v6309 = vshll.u32 %v6180, 16
      %v6311 = vrot.slane %v6309, 5
      %v6312 = vsel %vm668, %v6307, %v6311
      %v6314 = vshrl.u32 %v6181, 16
      %v6316 = vrot.slane %v6314, 4
      %v6317 = vshll.u32 %v6181, 16
      %v6319 = vrot.slane %v6317, 5
      %v6320 = vor.u32 %v6316, %v6319
      %v6321 = vrot.slane %v6320, 4
      %v6323 = vshll.u32 %v6182, 16
      %v6325 = vrot.slane %v6323, 5
      %v6326 = vsel %vm668, %v6321, %v6325
      %v6327 = vshrl.u32 %v6182, 16
      %v6329 = vrot.slane %v6327, 4
      %v6330 = vor.u32 %v6329, %v6325
      %v6331 = vrot.slane %v6330, 4
      %v6333 = vshll.u32 %v6183, 16
      %v6335 = vrot.slane %v6333, 5
      %v6336 = vsel %vm668, %v6331, %v6335
      %v6338 = vshrl.u32 %v6184, 16
      %v6340 = vrot.slane %v6338, 4
      %v6341 = vshll.u32 %v6184, 16
      %v6343 = vrot.slane %v6341, 5
      %v6344 = vor.u32 %v6340, %v6343
      %v6345 = vrot.slane %v6344, 4
      %v6347 = vshll.u32 %v6185, 16
      %v6349 = vrot.slane %v6347, 5
      %v6350 = vsel %vm668, %v6345, %v6349
      %v6351 = vshrl.u32 %v6185, 16
      %v6353 = vrot.slane %v6351, 4
      %v6354 = vor.u32 %v6353, %v6349
      %v6355 = vrot.slane %v6354, 4
      %v6357 = vshll.u32 %v6186, 16
      %v6359 = vrot.slane %v6357, 5
      %v6360 = vsel %vm668, %v6355, %v6359
      %v6362 = vshrl.u32 %v6187, 16
      %v6364 = vrot.slane %v6362, 4
      %v6365 = vshll.u32 %v6187, 16
      %v6367 = vrot.slane %v6365, 5
      %v6368 = vor.u32 %v6364, %v6367
      %v6369 = vrot.slane %v6368, 4
      %v6371 = vshll.u32 %v6188, 16
      %v6373 = vrot.slane %v6371, 5
      %v6374 = vsel %vm668, %v6369, %v6373
      %v6375 = vshrl.u32 %v6188, 16
      %v6377 = vrot.slane %v6375, 4
      %v6378 = vor.u32 %v6377, %v6373
      %v6379 = vrot.slane %v6378, 4
      %v6381 = vshll.u32 %v6189, 16
      %v6383 = vrot.slane %v6381, 5
      %v6384 = vsel %vm668, %v6379, %v6383
      %v6386 = vshrl.u32 %v6190, 16
      %v6388 = vrot.slane %v6386, 4
      %v6389 = vshll.u32 %v6190, 16
      %v6391 = vrot.slane %v6389, 5
      %v6392 = vor.u32 %v6388, %v6391
      %v6393 = vrot.slane %v6392, 4
      %v6395 = vshll.u32 %v6191, 16
      %v6397 = vrot.slane %v6395, 5
      %v6398 = vsel %vm668, %v6393, %v6397
      %v6399 = vshrl.u32 %v6191, 16
      %v6401 = vrot.slane %v6399, 4
      %v6402 = vor.u32 %v6401, %v6397
      %v6403 = vrot.slane %v6402, 4
      %v6405 = vshll.u32 %v6192, 16
      %v6407 = vrot.slane %v6405, 5
      %v6408 = vsel %vm668, %v6403, %v6407
      %v6409 = vld [vmem:[%s3170] sm:$0xf]
      %v6410 = vld [vmem:[%s3170 + $0x4] sm:$0xf]
      %v6411 = vld [vmem:[%s3170 + $0x8] sm:$0xf]
      %v6412 = vld [vmem:[%s3170 + $0xc] sm:$0xf]
      %v6413 = vld [vmem:[%s3170 + $0x10] sm:$0xf]
      %v6414 = vld [vmem:[%s3170 + $0x14] sm:$0xf]
      %v6415 = vld [vmem:[%s3170 + $0x18] sm:$0xf]
      %v6416 = vld [vmem:[%s3170 + $0x1c] sm:$0xf]
      %v6417 = vld [vmem:[%s3170 + $0x20] sm:$0xf]
      %v6418 = vld [vmem:[%s3170 + $0x24] sm:$0xf]
      %v6419 = vld [vmem:[%s3170 + $0x28] sm:$0xf]
      %v6420 = vld [vmem:[%s3170 + $0x2c] sm:$0xf]
      %v6421 = vld [vmem:[%s3170 + $0x30] sm:$0xf]
      %v6422 = vld [vmem:[%s3170 + $0x34] sm:$0xf]
      %v6423 = vld [vmem:[%s3170 + $0x38] sm:$0xf]
      %v6424 = vld [vmem:[%s3170 + $0x3c] sm:$0xf]
      %v6425 = vunpack.c.l.b16 %v6206
      %v6426 = vunpack.c.l.b16 %v6216
      %v6427 = vunpack.c.l.b16 %v6230
      %v6428 = vunpack.c.l.b16 %v6240
      %v6429 = vunpack.c.l.b16 %v6254
      %v6430 = vunpack.c.l.b16 %v6264
      %v6431 = vunpack.c.l.b16 %v6278
      %v6432 = vunpack.c.l.b16 %v6288
      %v6433 = vunpack.c.l.b16 %v6302
      %v6434 = vunpack.c.l.b16 %v6312
      %v6435 = vunpack.c.l.b16 %v6326
      %v6436 = vunpack.c.l.b16 %v6336
      %v6437 = vunpack.c.l.b16 %v6350
      %v6438 = vunpack.c.l.b16 %v6360
      %v6439 = vunpack.c.l.b16 %v6374
      %v6440 = vunpack.c.l.b16 %v6384
      %v6441 = vunpack.c.l.b16 %v6398
      %v6442 = vunpack.c.l.b16 %v6408
      %v6443 = vpack.c.b16 %v6426, %v6425
      %v6444 = vpack.c.b16 %v6428, %v6427
      %v6445 = vpack.c.b16 %v6430, %v6429
      %v6446 = vpack.c.b16 %v6432, %v6431
      %v6447 = vpack.c.b16 %v6434, %v6433
      %v6448 = vpack.c.b16 %v6436, %v6435
      %v6449 = vpack.c.b16 %v6438, %v6437
      %v6450 = vpack.c.b16 %v6440, %v6439
      %v6451 = vpack.c.b16 %v6442, %v6441
      %v6477 = vunpack.c.l.b16 %v6409
      %v6478 = vunpack.c.l.b16 %v6410
      %v6479 = vunpack.c.l.b16 %v6411
      %v6480 = vunpack.c.l.b16 %v6412
      %v6481 = vunpack.c.l.b16 %v6413
      %v6482 = vunpack.c.l.b16 %v6414
      %v6483 = vunpack.c.l.b16 %v6415
      %v6484 = vunpack.c.l.b16 %v6416
      %v6485 = vunpack.c.l.b16 %v6417
      %v6486 = vunpack.c.l.b16 %v6418
      %v6487 = vunpack.c.l.b16 %v6419
      %v6488 = vunpack.c.l.b16 %v6420
      %v6489 = vunpack.c.l.b16 %v6421
      %v6490 = vunpack.c.l.b16 %v6422
      %v6491 = vunpack.c.l.b16 %v6423
      %v6492 = vunpack.c.l.b16 %v6424
      %v6493 = vpack.c.b16 %v6478, %v6477
      %v6494 = vpack.c.b16 %v6480, %v6479
      %v6495 = vpack.c.b16 %v6482, %v6481
      %v6496 = vpack.c.b16 %v6484, %v6483
      %v6497 = vpack.c.b16 %v6486, %v6485
      %v6498 = vpack.c.b16 %v6488, %v6487
      %v6499 = vpack.c.b16 %v6490, %v6489
      %v6500 = vpack.c.b16 %v6492, %v6491
      %6509 = vmatprep.subr.bf16.mxu0 0
      %6510 = vmatpush1.bf16.msra.mxu0 %v6500
      %6511 = vmatprep.subr.bf16.mxu0 0
      %6512 = vmatpush1.bf16.msra.mxu0 %v6499
      %6513 = vmatprep.subr.bf16.mxu0 0
      %6514 = vmatpush1.bf16.msra.mxu0 %v6498
      %6515 = vmatprep.subr.bf16.mxu0 0
      %6516 = vmatpush1.bf16.msra.mxu0 %v6497
      %6517 = vmatprep.subr.bf16.mxu0 0
      %6518 = vmatpush1.bf16.msra.mxu0 %v6496
      %6519 = vmatprep.subr.bf16.mxu0 0
      %6520 = vmatpush1.bf16.msra.mxu0 %v6495
      %6521 = vmatprep.subr.bf16.mxu0 0
      %6522 = vmatpush1.bf16.msra.mxu0 %v6494
      %6523 = vmatprep.subr.bf16.mxu0 0
      %6524 = vmatpush1.bf16.msra.mxu0 %v6493
      %6525 = vmatprep.subr.bf16.mxu0 0
      %6526 = vmatpush2.bf16.msra.mxu0 0
      %6527 = vmatprep.subr.bf16.mxu0 0
      %6528 = vmatpush2.bf16.msra.mxu0 0
      %6529 = vmatprep.subr.bf16.mxu0 0
      %6530 = vmatpush2.bf16.msra.mxu0 0
      %6531 = vmatprep.subr.bf16.mxu0 0
      %6532 = vmatpush2.bf16.msra.mxu0 0
      %6533 = vmatprep.subr.bf16.mxu0 0
      %6534 = vmatpush2.bf16.msra.mxu0 0
      %6535 = vmatprep.subr.bf16.mxu0 0
      %6536 = vmatpush2.bf16.msra.mxu0 0
      %6537 = vmatprep.subr.bf16.mxu0 0
      %6538 = vmatpush2.bf16.msra.mxu0 0
      %6539 = vmatprep.subr.bf16.mxu0 0
      %6540 = vmatpush2.bf16.msra.mxu0 0
      %6541 = vmatprep.mubr.bf16.mxu0 0
      %6542 = vmatmul.mubr.bf16.gmra.mxu0 %v6443
      %v6543 = vpop.f32.mrf.mxu0
      %v6544 = vadd.f32 0.0, %v6543
      %v6545 = vpop.f32.mrf.mxu0
      %v6546 = vpop.f32.mrf.mxu0
      %v6547 = vadd.f32 0.0, %v6546
      %v6548 = vpop.f32.mrf.mxu0
      %6549 = vmatprep.mubr.bf16.mxu0 0
      %6550 = vmatmul.mubr.bf16.gmra.mxu0 %v6444
      %v6551 = vpop.f32.mrf.mxu0
      %v6552 = vadd.f32 0.0, %v6551
      %v6553 = vpop.f32.mrf.mxu0
      %v6554 = vpop.f32.mrf.mxu0
      %v6555 = vadd.f32 0.0, %v6554
      %v6556 = vpop.f32.mrf.mxu0
      %6557 = vmatprep.mubr.bf16.mxu0 0
      %6558 = vmatmul.mubr.bf16.gmra.mxu0 %v6445
      %v6559 = vpop.f32.mrf.mxu0
      %v6560 = vadd.f32 0.0, %v6559
      %v6561 = vpop.f32.mrf.mxu0
      %v6562 = vpop.f32.mrf.mxu0
      %v6563 = vadd.f32 0.0, %v6562
      %v6564 = vpop.f32.mrf.mxu0
      %6565 = vmatprep.mubr.bf16.mxu0 0
      %6566 = vmatmul.mubr.bf16.gmra.mxu0 %v6446
      %v6567 = vpop.f32.mrf.mxu0
      %v6568 = vadd.f32 0.0, %v6567
      %v6569 = vpop.f32.mrf.mxu0
      %v6570 = vpop.f32.mrf.mxu0
      %v6571 = vadd.f32 0.0, %v6570
      %v6572 = vpop.f32.mrf.mxu0
      %6573 = vmatprep.mubr.bf16.mxu0 0
      %6574 = vmatmul.mubr.bf16.gmra.mxu0 %v6447
      %v6575 = vpop.f32.mrf.mxu0
      %v6576 = vadd.f32 0.0, %v6575
      %v6577 = vpop.f32.mrf.mxu0
      %v6578 = vpop.f32.mrf.mxu0
      %v6579 = vadd.f32 0.0, %v6578
      %v6580 = vpop.f32.mrf.mxu0
      %6581 = vmatprep.mubr.bf16.mxu0 0
      %6582 = vmatmul.mubr.bf16.gmra.mxu0 %v6448
      %v6583 = vpop.f32.mrf.mxu0
      %v6584 = vadd.f32 0.0, %v6583
      %v6585 = vpop.f32.mrf.mxu0
      %v6586 = vpop.f32.mrf.mxu0
      %v6587 = vadd.f32 0.0, %v6586
      %v6588 = vpop.f32.mrf.mxu0
      %6589 = vmatprep.mubr.bf16.mxu0 0
      %6590 = vmatmul.mubr.bf16.gmra.mxu0 %v6449
      %v6591 = vpop.f32.mrf.mxu0
      %v6592 = vadd.f32 0.0, %v6591
      %v6593 = vpop.f32.mrf.mxu0
      %v6594 = vpop.f32.mrf.mxu0
      %v6595 = vadd.f32 0.0, %v6594
      %v6596 = vpop.f32.mrf.mxu0
      %6597 = vmatprep.mubr.bf16.mxu0 0
      %6598 = vmatmul.mubr.bf16.gmra.mxu0 %v6450
      %v6599 = vpop.f32.mrf.mxu0
      %v6600 = vadd.f32 0.0, %v6599
      %v6601 = vpop.f32.mrf.mxu0
      %v6602 = vpop.f32.mrf.mxu0
      %v6603 = vadd.f32 0.0, %v6602
      %v6604 = vpop.f32.mrf.mxu0
      %6605 = vmatprep.mubr.bf16.mxu0 0
      %6606 = vmatmul.mubr.bf16.gmra.mxu0 %v6451
      %v6607 = vpop.f32.mrf.mxu0
      %v6608 = vadd.f32 0.0, %v6607
      %v6609 = vpop.f32.mrf.mxu0
      %v6610 = vpop.f32.mrf.mxu0
      %v6611 = vadd.f32 0.0, %v6610
      %v6612 = vpop.f32.mrf.mxu0
      %6613 = vdwg.mxu0
      %v6614 = vadd.f32 %v6148, %v6544
      %v6615 = vadd.f32 %v6149, %v6547
      %v6616 = vadd.f32 %v6150, %v6552
      %v6617 = vadd.f32 %v6151, %v6555
      %v6618 = vadd.f32 %v6152, %v6560
      %v6619 = vadd.f32 %v6153, %v6563
      %v6620 = vadd.f32 %v6154, %v6568
      %v6621 = vadd.f32 %v6155, %v6571
      %v6622 = vadd.f32 %v6156, %v6576
      %v6623 = vadd.f32 %v6157, %v6579
      %v6624 = vadd.f32 %v6158, %v6584
      %v6625 = vadd.f32 %v6159, %v6587
      %v6626 = vadd.f32 %v6160, %v6592
      %v6627 = vadd.f32 %v6161, %v6595
      %v6628 = vadd.f32 %v6162, %v6600
      %v6629 = vadd.f32 %v6163, %v6603
      %v6630 = vadd.f32 %v6164, %v6608
      %v6631 = vadd.f32 %v6165, %v6611
      %v6632 = vld [vmem:[%s5906] sm:$0xe]
      %v6633 = vld [vmem:[%s5906 + $0xc] sm:$0xe]
      %v6634 = vld [vmem:[%s5906 + $0x18] sm:$0xe]
      %v6635 = vld [vmem:[%s5906 + $0x24] sm:$0xe]
      %v6636 = vld [vmem:[%s5906 + $0x30] sm:$0xe]
      %v6637 = vld [vmem:[%s5906 + $0x3c] sm:$0xe]
      %v6638 = vld [vmem:[%s5906 + $0x48] sm:$0xe]
      %v6639 = vld [vmem:[%s5906 + $0x54] sm:$0xe]
      %v6640 = vld [vmem:[%s5906 + $0x60] sm:$0xe]
      %v6668 = vrot.slane %v6632, 5
      %v6669 = vrot.slane %v6668, 4
      %v6670 = vrot.slane %v6167, 5
      %v6671 = vsel %vm1327, %v6669, %v6670
      %v6672 = vrot.slane %v6670, 4
      %v6673 = vrot.slane %v6168, 5
      %v6674 = vsel %vm1327, %v6672, %v6673
      %v6675 = vrot.slane %v6633, 5
      %v6676 = vrot.slane %v6675, 4
      %v6677 = vrot.slane %v6170, 5
      %v6678 = vsel %vm1327, %v6676, %v6677
      %v6679 = vrot.slane %v6677, 4
      %v6680 = vrot.slane %v6171, 5
      %v6681 = vsel %vm1327, %v6679, %v6680
      %v6682 = vrot.slane %v6634, 5
      %v6683 = vrot.slane %v6682, 4
      %v6684 = vrot.slane %v6173, 5
      %v6685 = vsel %vm1327, %v6683, %v6684
      %v6686 = vrot.slane %v6684, 4
      %v6687 = vrot.slane %v6174, 5
      %v6688 = vsel %vm1327, %v6686, %v6687
      %v6689 = vrot.slane %v6635, 5
      %v6690 = vrot.slane %v6689, 4
      %v6691 = vrot.slane %v6176, 5
      %v6692 = vsel %vm1327, %v6690, %v6691
      %v6693 = vrot.slane %v6691, 4
      %v6694 = vrot.slane %v6177, 5
      %v6695 = vsel %vm1327, %v6693, %v6694
      %v6696 = vrot.slane %v6636, 5
      %v6697 = vrot.slane %v6696, 4
      %v6698 = vrot.slane %v6179, 5
      %v6699 = vsel %vm1327, %v6697, %v6698
      %v6700 = vrot.slane %v6698, 4
      %v6701 = vrot.slane %v6180, 5
      %v6702 = vsel %vm1327, %v6700, %v6701
      %v6703 = vrot.slane %v6637, 5
      %v6704 = vrot.slane %v6703, 4
      %v6705 = vrot.slane %v6182, 5
      %v6706 = vsel %vm1327, %v6704, %v6705
      %v6707 = vrot.slane %v6705, 4
      %v6708 = vrot.slane %v6183, 5
      %v6709 = vsel %vm1327, %v6707, %v6708
      %v6710 = vrot.slane %v6638, 5
      %v6711 = vrot.slane %v6710, 4
      %v6712 = vrot.slane %v6185, 5
      %v6713 = vsel %vm1327, %v6711, %v6712
      %v6714 = vrot.slane %v6712, 4
      %v6715 = vrot.slane %v6186, 5
      %v6716 = vsel %vm1327, %v6714, %v6715
      %v6717 = vrot.slane %v6639, 5
      %v6718 = vrot.slane %v6717, 4
      %v6719 = vrot.slane %v6188, 5
      %v6720 = vsel %vm1327, %v6718, %v6719
      %v6721 = vrot.slane %v6719, 4
      %v6722 = vrot.slane %v6189, 5
      %v6723 = vsel %vm1327, %v6721, %v6722
      %v6724 = vrot.slane %v6640, 5
      %v6725 = vrot.slane %v6724, 4
      %v6726 = vrot.slane %v6191, 5
      %v6727 = vsel %vm1327, %v6725, %v6726
      %v6728 = vrot.slane %v6726, 4
      %v6729 = vrot.slane %v6192, 5
      %v6730 = vsel %vm1327, %v6728, %v6729
      %v6731 = vld [vmem:[%s3493] sm:$0xf]
      %v6732 = vld [vmem:[%s3493 + $0x4] sm:$0xf]
      %v6733 = vld [vmem:[%s3493 + $0x8] sm:$0xf]
      %v6734 = vld [vmem:[%s3493 + $0xc] sm:$0xf]
      %v6735 = vld [vmem:[%s3493 + $0x10] sm:$0xf]
      %v6736 = vld [vmem:[%s3493 + $0x14] sm:$0xf]
      %v6737 = vld [vmem:[%s3493 + $0x18] sm:$0xf]
      %v6738 = vld [vmem:[%s3493 + $0x1c] sm:$0xf]
      %v6739 = vld [vmem:[%s3493 + $0x20] sm:$0xf]
      %v6740 = vld [vmem:[%s3493 + $0x24] sm:$0xf]
      %v6741 = vld [vmem:[%s3493 + $0x28] sm:$0xf]
      %v6742 = vld [vmem:[%s3493 + $0x2c] sm:$0xf]
      %v6743 = vld [vmem:[%s3493 + $0x30] sm:$0xf]
      %v6744 = vld [vmem:[%s3493 + $0x34] sm:$0xf]
      %v6745 = vld [vmem:[%s3493 + $0x38] sm:$0xf]
      %v6746 = vld [vmem:[%s3493 + $0x3c] sm:$0xf]
      %v6747 = vunpack.c.l.b16 %v6671
      %v6748 = vunpack.c.l.b16 %v6674
      %v6749 = vunpack.c.l.b16 %v6678
      %v6750 = vunpack.c.l.b16 %v6681
      %v6751 = vunpack.c.l.b16 %v6685
      %v6752 = vunpack.c.l.b16 %v6688
      %v6753 = vunpack.c.l.b16 %v6692
      %v6754 = vunpack.c.l.b16 %v6695
      %v6755 = vunpack.c.l.b16 %v6699
      %v6756 = vunpack.c.l.b16 %v6702
      %v6757 = vunpack.c.l.b16 %v6706
      %v6758 = vunpack.c.l.b16 %v6709
      %v6759 = vunpack.c.l.b16 %v6713
      %v6760 = vunpack.c.l.b16 %v6716
      %v6761 = vunpack.c.l.b16 %v6720
      %v6762 = vunpack.c.l.b16 %v6723
      %v6763 = vunpack.c.l.b16 %v6727
      %v6764 = vunpack.c.l.b16 %v6730
      %v6765 = vpack.c.b16 %v6748, %v6747
      %v6766 = vpack.c.b16 %v6750, %v6749
      %v6767 = vpack.c.b16 %v6752, %v6751
      %v6768 = vpack.c.b16 %v6754, %v6753
      %v6769 = vpack.c.b16 %v6756, %v6755
      %v6770 = vpack.c.b16 %v6758, %v6757
      %v6771 = vpack.c.b16 %v6760, %v6759
      %v6772 = vpack.c.b16 %v6762, %v6761
      %v6773 = vpack.c.b16 %v6764, %v6763
      %v6799 = vunpack.c.l.b16 %v6731
      %v6800 = vunpack.c.l.b16 %v6732
      %v6801 = vunpack.c.l.b16 %v6733
      %v6802 = vunpack.c.l.b16 %v6734
      %v6803 = vunpack.c.l.b16 %v6735
      %v6804 = vunpack.c.l.b16 %v6736
      %v6805 = vunpack.c.l.b16 %v6737
      %v6806 = vunpack.c.l.b16 %v6738
      %v6807 = vunpack.c.l.b16 %v6739
      %v6808 = vunpack.c.l.b16 %v6740
      %v6809 = vunpack.c.l.b16 %v6741
      %v6810 = vunpack.c.l.b16 %v6742
      %v6811 = vunpack.c.l.b16 %v6743
      %v6812 = vunpack.c.l.b16 %v6744
      %v6813 = vunpack.c.l.b16 %v6745
      %v6814 = vunpack.c.l.b16 %v6746
      %v6815 = vpack.c.b16 %v6800, %v6799
      %v6816 = vpack.c.b16 %v6802, %v6801
      %v6817 = vpack.c.b16 %v6804, %v6803
      %v6818 = vpack.c.b16 %v6806, %v6805
      %v6819 = vpack.c.b16 %v6808, %v6807
      %v6820 = vpack.c.b16 %v6810, %v6809
      %v6821 = vpack.c.b16 %v6812, %v6811
      %v6822 = vpack.c.b16 %v6814, %v6813
      %6831 = vmatprep.subr.bf16.mxu0 0
      %6832 = vmatpush1.bf16.msra.mxu0 %v6822
      %6833 = vmatprep.subr.bf16.mxu0 0
      %6834 = vmatpush1.bf16.msra.mxu0 %v6821
      %6835 = vmatprep.subr.bf16.mxu0 0
      %6836 = vmatpush1.bf16.msra.mxu0 %v6820
      %6837 = vmatprep.subr.bf16.mxu0 0
      %6838 = vmatpush1.bf16.msra.mxu0 %v6819
      %6839 = vmatprep.subr.bf16.mxu0 0
      %6840 = vmatpush1.bf16.msra.mxu0 %v6818
      %6841 = vmatprep.subr.bf16.mxu0 0
      %6842 = vmatpush1.bf16.msra.mxu0 %v6817
      %6843 = vmatprep.subr.bf16.mxu0 0
      %6844 = vmatpush1.bf16.msra.mxu0 %v6816
      %6845 = vmatprep.subr.bf16.mxu0 0
      %6846 = vmatpush1.bf16.msra.mxu0 %v6815
      %6847 = vmatprep.subr.bf16.mxu0 0
      %6848 = vmatpush2.bf16.msra.mxu0 0
      %6849 = vmatprep.subr.bf16.mxu0 0
      %6850 = vmatpush2.bf16.msra.mxu0 0
      %6851 = vmatprep.subr.bf16.mxu0 0
      %6852 = vmatpush2.bf16.msra.mxu0 0
      %6853 = vmatprep.subr.bf16.mxu0 0
      %6854 = vmatpush2.bf16.msra.mxu0 0
      %6855 = vmatprep.subr.bf16.mxu0 0
      %6856 = vmatpush2.bf16.msra.mxu0 0
      %6857 = vmatprep.subr.bf16.mxu0 0
      %6858 = vmatpush2.bf16.msra.mxu0 0
      %6859 = vmatprep.subr.bf16.mxu0 0
      %6860 = vmatpush2.bf16.msra.mxu0 0
      %6861 = vmatprep.subr.bf16.mxu0 0
      %6862 = vmatpush2.bf16.msra.mxu0 0
      %6863 = vmatprep.mubr.bf16.mxu0 0
      %6864 = vmatmul.mubr.bf16.gmra.mxu0 %v6765
      %v6865 = vpop.f32.mrf.mxu0
      %v6866 = vadd.f32 0.0, %v6865
      %v6867 = vpop.f32.mrf.mxu0
      %v6868 = vpop.f32.mrf.mxu0
      %v6869 = vadd.f32 0.0, %v6868
      %v6870 = vpop.f32.mrf.mxu0
      %6871 = vmatprep.mubr.bf16.mxu0 0
      %6872 = vmatmul.mubr.bf16.gmra.mxu0 %v6766
      %v6873 = vpop.f32.mrf.mxu0
      %v6874 = vadd.f32 0.0, %v6873
      %v6875 = vpop.f32.mrf.mxu0
      %v6876 = vpop.f32.mrf.mxu0
      %v6877 = vadd.f32 0.0, %v6876
      %v6878 = vpop.f32.mrf.mxu0
      %6879 = vmatprep.mubr.bf16.mxu0 0
      %6880 = vmatmul.mubr.bf16.gmra.mxu0 %v6767
      %v6881 = vpop.f32.mrf.mxu0
      %v6882 = vadd.f32 0.0, %v6881
      %v6883 = vpop.f32.mrf.mxu0
      %v6884 = vpop.f32.mrf.mxu0
      %v6885 = vadd.f32 0.0, %v6884
      %v6886 = vpop.f32.mrf.mxu0
      %6887 = vmatprep.mubr.bf16.mxu0 0
      %6888 = vmatmul.mubr.bf16.gmra.mxu0 %v6768
      %v6889 = vpop.f32.mrf.mxu0
      %v6890 = vadd.f32 0.0, %v6889
      %v6891 = vpop.f32.mrf.mxu0
      %v6892 = vpop.f32.mrf.mxu0
      %v6893 = vadd.f32 0.0, %v6892
      %v6894 = vpop.f32.mrf.mxu0
      %6895 = vmatprep.mubr.bf16.mxu0 0
      %6896 = vmatmul.mubr.bf16.gmra.mxu0 %v6769
      %v6897 = vpop.f32.mrf.mxu0
      %v6898 = vadd.f32 0.0, %v6897
      %v6899 = vpop.f32.mrf.mxu0
      %v6900 = vpop.f32.mrf.mxu0
      %v6901 = vadd.f32 0.0, %v6900
      %v6902 = vpop.f32.mrf.mxu0
      %6903 = vmatprep.mubr.bf16.mxu0 0
      %6904 = vmatmul.mubr.bf16.gmra.mxu0 %v6770
      %v6905 = vpop.f32.mrf.mxu0
      %v6906 = vadd.f32 0.0, %v6905
      %v6907 = vpop.f32.mrf.mxu0
      %v6908 = vpop.f32.mrf.mxu0
      %v6909 = vadd.f32 0.0, %v6908
      %v6910 = vpop.f32.mrf.mxu0
      %6911 = vmatprep.mubr.bf16.mxu0 0
      %6912 = vmatmul.mubr.bf16.gmra.mxu0 %v6771
      %v6913 = vpop.f32.mrf.mxu0
      %v6914 = vadd.f32 0.0, %v6913
      %v6915 = vpop.f32.mrf.mxu0
      %v6916 = vpop.f32.mrf.mxu0
      %v6917 = vadd.f32 0.0, %v6916
      %v6918 = vpop.f32.mrf.mxu0
      %6919 = vmatprep.mubr.bf16.mxu0 0
      %6920 = vmatmul.mubr.bf16.gmra.mxu0 %v6772
      %v6921 = vpop.f32.mrf.mxu0
      %v6922 = vadd.f32 0.0, %v6921
      %v6923 = vpop.f32.mrf.mxu0
      %v6924 = vpop.f32.mrf.mxu0
      %v6925 = vadd.f32 0.0, %v6924
      %v6926 = vpop.f32.mrf.mxu0
      %6927 = vmatprep.mubr.bf16.mxu0 0
      %6928 = vmatmul.mubr.bf16.gmra.mxu0 %v6773
      %v6929 = vpop.f32.mrf.mxu0
      %v6930 = vadd.f32 0.0, %v6929
      %v6931 = vpop.f32.mrf.mxu0
      %v6932 = vpop.f32.mrf.mxu0
      %v6933 = vadd.f32 0.0, %v6932
      %v6934 = vpop.f32.mrf.mxu0
      %6935 = vdwg.mxu0
      %v6936 = vadd.f32 %v6614, %v6866
      %v6937 = vadd.f32 %v6615, %v6869
      %v6938 = vadd.f32 %v6616, %v6874
      %v6939 = vadd.f32 %v6617, %v6877
      %v6940 = vadd.f32 %v6618, %v6882
      %v6941 = vadd.f32 %v6619, %v6885
      %v6942 = vadd.f32 %v6620, %v6890
      %v6943 = vadd.f32 %v6621, %v6893
      %v6944 = vadd.f32 %v6622, %v6898
      %v6945 = vadd.f32 %v6623, %v6901
      %v6946 = vadd.f32 %v6624, %v6906
      %v6947 = vadd.f32 %v6625, %v6909
      %v6948 = vadd.f32 %v6626, %v6914
      %v6949 = vadd.f32 %v6627, %v6917
      %v6950 = vadd.f32 %v6628, %v6922
      %v6951 = vadd.f32 %v6629, %v6925
      %v6952 = vadd.f32 %v6630, %v6930
      %v6953 = vadd.f32 %v6631, %v6933
      %v6954 = vmul.f32 %v6936, %v3721
      %v6955 = vmul.f32 %v6937, %v3721
      %v6956 = vmul.f32 %v6938, %v3721
      %v6957 = vmul.f32 %v6939, %v3721
      %v6958 = vmul.f32 %v6940, %v3721
      %v6959 = vmul.f32 %v6941, %v3721
      %v6960 = vmul.f32 %v6942, %v3721
      %v6961 = vmul.f32 %v6943, %v3721
      %v6962 = vmul.f32 %v6944, %v3721
      %v6963 = vmul.f32 %v6945, %v3721
      %v6964 = vmul.f32 %v6946, %v3721
      %v6965 = vmul.f32 %v6947, %v3721
      %v6966 = vmul.f32 %v6948, %v3721
      %v6967 = vmul.f32 %v6949, %v3721
      %v6968 = vmul.f32 %v6950, %v3721
      %v6969 = vmul.f32 %v6951, %v3721
      %v6970 = vmul.f32 %v6952, %v3721
      %v6971 = vmul.f32 %v6953, %v3721
      %v6972 = vadd.f32 %v6954, %v3745
      %v6973 = vadd.f32 %v6955, %v3745
      %v6974 = vadd.f32 %v6956, %v3745
      %v6975 = vadd.f32 %v6957, %v3745
      %v6976 = vadd.f32 %v6958, %v3745
      %v6977 = vadd.f32 %v6959, %v3745
      %v6978 = vadd.f32 %v6960, %v3745
      %v6979 = vadd.f32 %v6961, %v3745
      %v6980 = vadd.f32 %v6962, %v3745
      %v6981 = vadd.f32 %v6963, %v3745
      %v6982 = vadd.f32 %v6964, %v3745
      %v6983 = vadd.f32 %v6965, %v3745
      %v6984 = vadd.f32 %v6966, %v3745
      %v6985 = vadd.f32 %v6967, %v3745
      %v6986 = vadd.f32 %v6968, %v3745
      %v6987 = vadd.f32 %v6969, %v3745
      %v6988 = vadd.f32 %v6970, %v3745
      %v6989 = vadd.f32 %v6971, %v3745
      %v6990 = vmax.f32 %v6972, 0.0
      %v6991 = vmax.f32 %v6973, 0.0
      %v6992 = vmax.f32 %v6974, 0.0
      %v6993 = vmax.f32 %v6975, 0.0
      %v6994 = vmax.f32 %v6976, 0.0
      %v6995 = vmax.f32 %v6977, 0.0
      %v6996 = vmax.f32 %v6978, 0.0
      %v6997 = vmax.f32 %v6979, 0.0
      %v6998 = vmax.f32 %v6980, 0.0
      %v6999 = vmax.f32 %v6981, 0.0
      %v7000 = vmax.f32 %v6982, 0.0
      %v7001 = vmax.f32 %v6983, 0.0
      %v7002 = vmax.f32 %v6984, 0.0
      %v7003 = vmax.f32 %v6985, 0.0
      %v7004 = vmax.f32 %v6986, 0.0
      %v7005 = vmax.f32 %v6987, 0.0
      %v7006 = vmax.f32 %v6988, 0.0
      %v7007 = vmax.f32 %v6989, 0.0
      %v7008 = vpack.c.bf16 %v6991, %v6990
      %v7009 = vpack.c.bf16 %v6993, %v6992
      %v7010 = vpack.c.bf16 %v6995, %v6994
      %v7011 = vpack.c.bf16 %v6997, %v6996
      %v7012 = vpack.c.bf16 %v6999, %v6998
      %v7013 = vpack.c.bf16 %v7001, %v7000
      %v7014 = vpack.c.bf16 %v7003, %v7002
      %v7015 = vpack.c.bf16 %v7005, %v7004
      %v7016 = vpack.c.bf16 %v7007, %v7006
      %v7026 = vunpack.c.l.b16 %v7008
      %v7027 = vunpack.c.h.b16 %v7008
      %v7028 = vunpack.c.l.b16 %v7009
      %v7029 = vunpack.c.h.b16 %v7009
      %v7030 = vunpack.c.l.b16 %v7010
      %v7031 = vunpack.c.h.b16 %v7010
      %v7032 = vunpack.c.l.b16 %v7011
      %v7033 = vunpack.c.h.b16 %v7011
      %v7034 = vunpack.c.l.b16 %v7012
      %v7035 = vunpack.c.h.b16 %v7012
      %v7036 = vunpack.c.l.b16 %v7013
      %v7037 = vunpack.c.h.b16 %v7013
      %v7038 = vunpack.c.l.b16 %v7014
      %v7039 = vunpack.c.h.b16 %v7014
      %v7040 = vunpack.c.l.b16 %v7015
      %v7041 = vunpack.c.h.b16 %v7015
      %v7042 = vunpack.c.l.b16 %v7016
      %v7043 = vunpack.c.h.b16 %v7016
      %v7044 = vpack.c.b16 %v7026, %v7026
      %v7045 = vpack.c.b16 %v7027, %v7027
      %v7046 = vpack.c.b16 %v7028, %v7028
      %v7047 = vpack.c.b16 %v7029, %v7029
      %v7048 = vpack.c.b16 %v7030, %v7030
      %v7049 = vpack.c.b16 %v7031, %v7031
      %v7050 = vpack.c.b16 %v7032, %v7032
      %v7051 = vpack.c.b16 %v7033, %v7033
      %v7052 = vpack.c.b16 %v7034, %v7034
      %v7053 = vpack.c.b16 %v7035, %v7035
      %v7054 = vpack.c.b16 %v7036, %v7036
      %v7055 = vpack.c.b16 %v7037, %v7037
      %v7056 = vpack.c.b16 %v7038, %v7038
      %v7057 = vpack.c.b16 %v7039, %v7039
      %v7058 = vpack.c.b16 %v7040, %v7040
      %v7059 = vpack.c.b16 %v7041, %v7041
      %v7060 = vpack.c.b16 %v7042, %v7042
      %v7061 = vpack.c.b16 %v7043, %v7043
      %s7080 = scalar_lea.vmem [#allocation4], 144
      %7081 = vst [vmem:[%s7080 + $0x4] sm:$0xf] %v7044
      %7082 = vst [vmem:[%s7080 + $0x8] sm:$0xf] %v7045
      %7083 = vst [vmem:[%s7080 + $0x14] sm:$0xf] %v7046
      %7084 = vst [vmem:[%s7080 + $0x18] sm:$0xf] %v7047
      %7085 = vst [vmem:[%s7080 + $0x24] sm:$0xf] %v7048
      %7086 = vst [vmem:[%s7080 + $0x28] sm:$0xf] %v7049
      %7087 = vst [vmem:[%s7080 + $0x34] sm:$0xf] %v7050
      %7088 = vst [vmem:[%s7080 + $0x38] sm:$0xf] %v7051
      %7089 = vst [vmem:[%s7080 + $0x44] sm:$0xf] %v7052
      %7090 = vst [vmem:[%s7080 + $0x48] sm:$0xf] %v7053
      %7091 = vst [vmem:[%s7080 + $0x54] sm:$0xf] %v7054
      %7092 = vst [vmem:[%s7080 + $0x58] sm:$0xf] %v7055
      %7093 = vst [vmem:[%s7080 + $0x64] sm:$0xf] %v7056
      %7094 = vst [vmem:[%s7080 + $0x68] sm:$0xf] %v7057
      %7095 = vst [vmem:[%s7080 + $0x74] sm:$0xf] %v7058
      %7096 = vst [vmem:[%s7080 + $0x78] sm:$0xf] %v7059
      %7097 = vst [vmem:[%s7080 + $0x84] sm:$0xf] %v7060
      %7098 = vst [vmem:[%s7080 + $0x88] sm:$0xf] %v7061
      // Predicated region
      $region121: #{vgg_block_forward.1} parent=43 // pred_check
        %p7099 = pneg %p271
      $region122: #{vgg_block_forward.1} parent=43 // pred_check_branch
        %7101 = sbr.rel (%p7099) target = $region124
      $region123: #{vgg_block_forward.1} parent=43 // pred_region
        %7102 = vst [vmem:[#allocation4 + $0x4] sm:$0xf] 0
        %7103 = vst [vmem:[#allocation4 + $0x8] sm:$0xf] 0
        %s7104 = scalar_lea.vmem [#allocation4], 272
        %7105 = vst [vmem:[%s7104 + $0x4] sm:$0xf] 0
        %7106 = vst [vmem:[%s7104 + $0x8] sm:$0xf] 0
      $region124: #{vgg_block_forward.1} parent=43 // pred_fallthru
        _
      %v7107 = vld [vmem:[#allocation4] sm:$0x8]
      %v7108 = vld [vmem:[#allocation4 + $0x4] sm:$0xf]
      %v7109 = vld [vmem:[#allocation4 + $0x8] sm:$0xf]
      %v7110 = vld [vmem:[#allocation4 + $0x10] sm:$0x8]
      %v7111 = vld [vmem:[#allocation4 + $0x14] sm:$0xf]
      %v7112 = vld [vmem:[#allocation4 + $0x18] sm:$0xf]
      %v7113 = vld [vmem:[#allocation4 + $0x20] sm:$0x8]
      %v7114 = vld [vmem:[#allocation4 + $0x24] sm:$0xf]
      %v7115 = vld [vmem:[#allocation4 + $0x28] sm:$0xf]
      %v7116 = vld [vmem:[#allocation4 + $0x30] sm:$0x8]
      %v7117 = vld [vmem:[#allocation4 + $0x34] sm:$0xf]
      %v7118 = vld [vmem:[#allocation4 + $0x38] sm:$0xf]
      %v7119 = vld [vmem:[#allocation4 + $0x40] sm:$0x8]
      %v7120 = vld [vmem:[#allocation4 + $0x44] sm:$0xf]
      %v7121 = vld [vmem:[#allocation4 + $0x48] sm:$0xf]
      %v7122 = vld [vmem:[#allocation4 + $0x50] sm:$0x8]
      %v7123 = vld [vmem:[#allocation4 + $0x54] sm:$0xf]
      %v7124 = vld [vmem:[#allocation4 + $0x58] sm:$0xf]
      %v7125 = vld [vmem:[#allocation4 + $0x60] sm:$0x8]
      %v7126 = vld [vmem:[#allocation4 + $0x64] sm:$0xf]
      %v7127 = vld [vmem:[#allocation4 + $0x68] sm:$0xf]
      %v7128 = vld [vmem:[#allocation4 + $0x70] sm:$0x8]
      %v7129 = vld [vmem:[#allocation4 + $0x74] sm:$0xf]
      %v7130 = vld [vmem:[#allocation4 + $0x78] sm:$0xf]
      %v7131 = vld [vmem:[#allocation4 + $0x80] sm:$0x8]
      %v7132 = vld [vmem:[#allocation4 + $0x84] sm:$0xf]
      %v7133 = vld [vmem:[#allocation4 + $0x88] sm:$0xf]
      %v7134 = vld [vmem:[#allocation4 + $0x90] sm:$0x8]
      %v7135 = vld [vmem:[#allocation4 + $0x94] sm:$0xf]
      %v7136 = vld [vmem:[#allocation4 + $0x98] sm:$0xf]
      %v7137 = vld [vmem:[#allocation4 + $0xa0] sm:$0x8]
      %v7138 = vld [vmem:[#allocation4 + $0xa4] sm:$0xf]
      %v7139 = vld [vmem:[#allocation4 + $0xa8] sm:$0xf]
      %v7140 = vld [vmem:[#allocation4 + $0xb0] sm:$0x8]
      %v7141 = vld [vmem:[#allocation4 + $0xb4] sm:$0xf]
      %v7142 = vld [vmem:[#allocation4 + $0xb8] sm:$0xf]
      %v7143 = vld [vmem:[#allocation4 + $0xc0] sm:$0x8]
      %v7144 = vld [vmem:[#allocation4 + $0xc4] sm:$0xf]
      %v7145 = vld [vmem:[#allocation4 + $0xc8] sm:$0xf]
      %v7146 = vld [vmem:[#allocation4 + $0xd0] sm:$0x8]
      %v7147 = vld [vmem:[#allocation4 + $0xd4] sm:$0xf]
      %v7148 = vld [vmem:[#allocation4 + $0xd8] sm:$0xf]
      %v7149 = vld [vmem:[#allocation4 + $0xe0] sm:$0x8]
      %v7150 = vld [vmem:[#allocation4 + $0xe4] sm:$0xf]
      %v7151 = vld [vmem:[#allocation4 + $0xe8] sm:$0xf]
      %v7152 = vld [vmem:[#allocation4 + $0xf0] sm:$0x8]
      %v7153 = vld [vmem:[#allocation4 + $0xf4] sm:$0xf]
      %v7154 = vld [vmem:[#allocation4 + $0xf8] sm:$0xf]
      %vm7155 = vsmask.f32 256
      %vm7156 = vsmask.f32 4368
      %vm7157 = vmor %vm7155, %vm7156
      %v7159 = vshrl.u32 %v7107, 16
      %v7161 = vrot.slane %v7159, 7
      %v7162 = vrot.slane %v7161, 4
      %v7164 = vshrl.u32 %v7108, 16
      %v7166 = vrot.slane %v7164, 7
      %v7167 = vshll.u32 %v7108, 16
      %v7169 = vor.u32 %v7166, %v7167
      %v7170 = vsel %vm7157, %v7162, %v7169
      %v7171 = vrot.slane %v7166, 4
      %v7173 = vshrl.u32 %v7109, 16
      %v7175 = vrot.slane %v7173, 7
      %v7176 = vshll.u32 %v7109, 16
      %v7178 = vor.u32 %v7175, %v7176
      %v7179 = vsel %vm7157, %v7171, %v7178
      %v7181 = vshrl.u32 %v7110, 16
      %v7183 = vrot.slane %v7181, 7
      %v7184 = vrot.slane %v7183, 4
      %v7186 = vshrl.u32 %v7111, 16
      %v7188 = vrot.slane %v7186, 7
      %v7189 = vshll.u32 %v7111, 16
      %v7191 = vor.u32 %v7188, %v7189
      %v7192 = vsel %vm7157, %v7184, %v7191
      %v7193 = vrot.slane %v7188, 4
      %v7195 = vshrl.u32 %v7112, 16
      %v7197 = vrot.slane %v7195, 7
      %v7198 = vshll.u32 %v7112, 16
      %v7200 = vor.u32 %v7197, %v7198
      %v7201 = vsel %vm7157, %v7193, %v7200
      %v7203 = vshrl.u32 %v7113, 16
      %v7205 = vrot.slane %v7203, 7
      %v7206 = vrot.slane %v7205, 4
      %v7208 = vshrl.u32 %v7114, 16
      %v7210 = vrot.slane %v7208, 7
      %v7211 = vshll.u32 %v7114, 16
      %v7213 = vor.u32 %v7210, %v7211
      %v7214 = vsel %vm7157, %v7206, %v7213
      %v7215 = vrot.slane %v7210, 4
      %v7217 = vshrl.u32 %v7115, 16
      %v7219 = vrot.slane %v7217, 7
      %v7220 = vshll.u32 %v7115, 16
      %v7222 = vor.u32 %v7219, %v7220
      %v7223 = vsel %vm7157, %v7215, %v7222
      %v7225 = vshrl.u32 %v7116, 16
      %v7227 = vrot.slane %v7225, 7
      %v7228 = vrot.slane %v7227, 4
      %v7230 = vshrl.u32 %v7117, 16
      %v7232 = vrot.slane %v7230, 7
      %v7233 = vshll.u32 %v7117, 16
      %v7235 = vor.u32 %v7232, %v7233
      %v7236 = vsel %vm7157, %v7228, %v7235
      %v7237 = vrot.slane %v7232, 4
      %v7239 = vshrl.u32 %v7118, 16
      %v7241 = vrot.slane %v7239, 7
      %v7242 = vshll.u32 %v7118, 16
      %v7244 = vor.u32 %v7241, %v7242
      %v7245 = vsel %vm7157, %v7237, %v7244
      %v7247 = vshrl.u32 %v7119, 16
      %v7249 = vrot.slane %v7247, 7
      %v7250 = vrot.slane %v7249, 4
      %v7252 = vshrl.u32 %v7120, 16
      %v7254 = vrot.slane %v7252, 7
      %v7255 = vshll.u32 %v7120, 16
      %v7257 = vor.u32 %v7254, %v7255
      %v7258 = vsel %vm7157, %v7250, %v7257
      %v7259 = vrot.slane %v7254, 4
      %v7261 = vshrl.u32 %v7121, 16
      %v7263 = vrot.slane %v7261, 7
      %v7264 = vshll.u32 %v7121, 16
      %v7266 = vor.u32 %v7263, %v7264
      %v7267 = vsel %vm7157, %v7259, %v7266
      %v7269 = vshrl.u32 %v7122, 16
      %v7271 = vrot.slane %v7269, 7
      %v7272 = vrot.slane %v7271, 4
      %v7274 = vshrl.u32 %v7123, 16
      %v7276 = vrot.slane %v7274, 7
      %v7277 = vshll.u32 %v7123, 16
      %v7279 = vor.u32 %v7276, %v7277
      %v7280 = vsel %vm7157, %v7272, %v7279
      %v7281 = vrot.slane %v7276, 4
      %v7283 = vshrl.u32 %v7124, 16
      %v7285 = vrot.slane %v7283, 7
      %v7286 = vshll.u32 %v7124, 16
      %v7288 = vor.u32 %v7285, %v7286
      %v7289 = vsel %vm7157, %v7281, %v7288
      %v7291 = vshrl.u32 %v7125, 16
      %v7293 = vrot.slane %v7291, 7
      %v7294 = vrot.slane %v7293, 4
      %v7296 = vshrl.u32 %v7126, 16
      %v7298 = vrot.slane %v7296, 7
      %v7299 = vshll.u32 %v7126, 16
      %v7301 = vor.u32 %v7298, %v7299
      %v7302 = vsel %vm7157, %v7294, %v7301
      %v7303 = vrot.slane %v7298, 4
      %v7305 = vshrl.u32 %v7127, 16
      %v7307 = vrot.slane %v7305, 7
      %v7308 = vshll.u32 %v7127, 16
      %v7310 = vor.u32 %v7307, %v7308
      %v7311 = vsel %vm7157, %v7303, %v7310
      %v7313 = vshrl.u32 %v7128, 16
      %v7315 = vrot.slane %v7313, 7
      %v7316 = vrot.slane %v7315, 4
      %v7318 = vshrl.u32 %v7129, 16
      %v7320 = vrot.slane %v7318, 7
      %v7321 = vshll.u32 %v7129, 16
      %v7323 = vor.u32 %v7320, %v7321
      %v7324 = vsel %vm7157, %v7316, %v7323
      %v7325 = vrot.slane %v7320, 4
      %v7327 = vshrl.u32 %v7130, 16
      %v7329 = vrot.slane %v7327, 7
      %v7330 = vshll.u32 %v7130, 16
      %v7332 = vor.u32 %v7329, %v7330
      %v7333 = vsel %vm7157, %v7325, %v7332
      %v7335 = vshrl.u32 %v7131, 16
      %v7337 = vrot.slane %v7335, 7
      %v7338 = vrot.slane %v7337, 4
      %v7340 = vshrl.u32 %v7132, 16
      %v7342 = vrot.slane %v7340, 7
      %v7343 = vshll.u32 %v7132, 16
      %v7345 = vor.u32 %v7342, %v7343
      %v7346 = vsel %vm7157, %v7338, %v7345
      %v7347 = vrot.slane %v7342, 4
      %v7349 = vshrl.u32 %v7133, 16
      %v7351 = vrot.slane %v7349, 7
      %v7352 = vshll.u32 %v7133, 16
      %v7354 = vor.u32 %v7351, %v7352
      %v7355 = vsel %vm7157, %v7347, %v7354
      %v7357 = vshrl.u32 %v7134, 16
      %v7359 = vrot.slane %v7357, 7
      %v7360 = vrot.slane %v7359, 4
      %v7362 = vshrl.u32 %v7135, 16
      %v7364 = vrot.slane %v7362, 7
      %v7365 = vshll.u32 %v7135, 16
      %v7367 = vor.u32 %v7364, %v7365
      %v7368 = vsel %vm7157, %v7360, %v7367
      %v7369 = vrot.slane %v7364, 4
      %v7371 = vshrl.u32 %v7136, 16
      %v7373 = vrot.slane %v7371, 7
      %v7374 = vshll.u32 %v7136, 16
      %v7376 = vor.u32 %v7373, %v7374
      %v7377 = vsel %vm7157, %v7369, %v7376
      %v7379 = vshrl.u32 %v7137, 16
      %v7381 = vrot.slane %v7379, 7
      %v7382 = vrot.slane %v7381, 4
      %v7384 = vshrl.u32 %v7138, 16
      %v7386 = vrot.slane %v7384, 7
      %v7387 = vshll.u32 %v7138, 16
      %v7389 = vor.u32 %v7386, %v7387
      %v7390 = vsel %vm7157, %v7382, %v7389
      %v7391 = vrot.slane %v7386, 4
      %v7393 = vshrl.u32 %v7139, 16
      %v7395 = vrot.slane %v7393, 7
      %v7396 = vshll.u32 %v7139, 16
      %v7398 = vor.u32 %v7395, %v7396
      %v7399 = vsel %vm7157, %v7391, %v7398
      %v7401 = vshrl.u32 %v7140, 16
      %v7403 = vrot.slane %v7401, 7
      %v7404 = vrot.slane %v7403, 4
      %v7406 = vshrl.u32 %v7141, 16
      %v7408 = vrot.slane %v7406, 7
      %v7409 = vshll.u32 %v7141, 16
      %v7411 = vor.u32 %v7408, %v7409
      %v7412 = vsel %vm7157, %v7404, %v7411
      %v7413 = vrot.slane %v7408, 4
      %v7415 = vshrl.u32 %v7142, 16
      %v7417 = vrot.slane %v7415, 7
      %v7418 = vshll.u32 %v7142, 16
      %v7420 = vor.u32 %v7417, %v7418
      %v7421 = vsel %vm7157, %v7413, %v7420
      %v7423 = vshrl.u32 %v7143, 16
      %v7425 = vrot.slane %v7423, 7
      %v7426 = vrot.slane %v7425, 4
      %v7428 = vshrl.u32 %v7144, 16
      %v7430 = vrot.slane %v7428, 7
      %v7431 = vshll.u32 %v7144, 16
      %v7433 = vor.u32 %v7430, %v7431
      %v7434 = vsel %vm7157, %v7426, %v7433
      %v7435 = vrot.slane %v7430, 4
      %v7437 = vshrl.u32 %v7145, 16
      %v7439 = vrot.slane %v7437, 7
      %v7440 = vshll.u32 %v7145, 16
      %v7442 = vor.u32 %v7439, %v7440
      %v7443 = vsel %vm7157, %v7435, %v7442
      %v7445 = vshrl.u32 %v7146, 16
      %v7447 = vrot.slane %v7445, 7
      %v7448 = vrot.slane %v7447, 4
      %v7450 = vshrl.u32 %v7147, 16
      %v7452 = vrot.slane %v7450, 7
      %v7453 = vshll.u32 %v7147, 16
      %v7455 = vor.u32 %v7452, %v7453
      %v7456 = vsel %vm7157, %v7448, %v7455
      %v7457 = vrot.slane %v7452, 4
      %v7459 = vshrl.u32 %v7148, 16
      %v7461 = vrot.slane %v7459, 7
      %v7462 = vshll.u32 %v7148, 16
      %v7464 = vor.u32 %v7461, %v7462
      %v7465 = vsel %vm7157, %v7457, %v7464
      %v7467 = vshrl.u32 %v7149, 16
      %v7469 = vrot.slane %v7467, 7
      %v7470 = vrot.slane %v7469, 4
      %v7472 = vshrl.u32 %v7150, 16
      %v7474 = vrot.slane %v7472, 7
      %v7475 = vshll.u32 %v7150, 16
      %v7477 = vor.u32 %v7474, %v7475
      %v7478 = vsel %vm7157, %v7470, %v7477
      %v7479 = vrot.slane %v7474, 4
      %v7481 = vshrl.u32 %v7151, 16
      %v7483 = vrot.slane %v7481, 7
      %v7484 = vshll.u32 %v7151, 16
      %v7486 = vor.u32 %v7483, %v7484
      %v7487 = vsel %vm7157, %v7479, %v7486
      %v7489 = vshrl.u32 %v7152, 16
      %v7491 = vrot.slane %v7489, 7
      %v7492 = vrot.slane %v7491, 4
      %v7494 = vshrl.u32 %v7153, 16
      %v7496 = vrot.slane %v7494, 7
      %v7497 = vshll.u32 %v7153, 16
      %v7499 = vor.u32 %v7496, %v7497
      %v7500 = vsel %vm7157, %v7492, %v7499
      %v7501 = vrot.slane %v7496, 4
      %v7503 = vshrl.u32 %v7154, 16
      %v7505 = vrot.slane %v7503, 7
      %v7506 = vshll.u32 %v7154, 16
      %v7508 = vor.u32 %v7505, %v7506
      %v7509 = vsel %vm7157, %v7501, %v7508
      %v7510 = vld [vmem:[%s4] sm:$0xf]
      %v7511 = vld [vmem:[%s4 + $0x4] sm:$0xf]
      %v7512 = vld [vmem:[%s4 + $0x8] sm:$0xf]
      %v7513 = vld [vmem:[%s4 + $0xc] sm:$0xf]
      %v7514 = vld [vmem:[%s4 + $0x10] sm:$0xf]
      %v7515 = vld [vmem:[%s4 + $0x14] sm:$0xf]
      %v7516 = vld [vmem:[%s4 + $0x18] sm:$0xf]
      %v7517 = vld [vmem:[%s4 + $0x1c] sm:$0xf]
      %v7518 = vld [vmem:[%s4 + $0x20] sm:$0xf]
      %v7519 = vld [vmem:[%s4 + $0x24] sm:$0xf]
      %v7520 = vld [vmem:[%s4 + $0x28] sm:$0xf]
      %v7521 = vld [vmem:[%s4 + $0x2c] sm:$0xf]
      %v7522 = vld [vmem:[%s4 + $0x30] sm:$0xf]
      %v7523 = vld [vmem:[%s4 + $0x34] sm:$0xf]
      %v7524 = vld [vmem:[%s4 + $0x38] sm:$0xf]
      %v7525 = vld [vmem:[%s4 + $0x3c] sm:$0xf]
      %s7526 = scalar_lea.vmem %s4, 64
      %v7527 = vld [vmem:[%s7526] sm:$0xf]
      %v7528 = vld [vmem:[%s7526 + $0x4] sm:$0xf]
      %v7529 = vld [vmem:[%s7526 + $0x8] sm:$0xf]
      %v7530 = vld [vmem:[%s7526 + $0xc] sm:$0xf]
      %v7531 = vld [vmem:[%s7526 + $0x10] sm:$0xf]
      %v7532 = vld [vmem:[%s7526 + $0x14] sm:$0xf]
      %v7533 = vld [vmem:[%s7526 + $0x18] sm:$0xf]
      %v7534 = vld [vmem:[%s7526 + $0x1c] sm:$0xf]
      %v7535 = vld [vmem:[%s7526 + $0x20] sm:$0xf]
      %v7536 = vld [vmem:[%s7526 + $0x24] sm:$0xf]
      %v7537 = vld [vmem:[%s7526 + $0x28] sm:$0xf]
      %v7538 = vld [vmem:[%s7526 + $0x2c] sm:$0xf]
      %v7539 = vld [vmem:[%s7526 + $0x30] sm:$0xf]
      %v7540 = vld [vmem:[%s7526 + $0x34] sm:$0xf]
      %v7541 = vld [vmem:[%s7526 + $0x38] sm:$0xf]
      %v7542 = vld [vmem:[%s7526 + $0x3c] sm:$0xf]
      %v7575 = vunpack.c.l.b16 %v7108
      %v7576 = vunpack.c.l.b16 %v7109
      %v7577 = vunpack.c.l.b16 %v7111
      %v7578 = vunpack.c.l.b16 %v7112
      %v7579 = vunpack.c.l.b16 %v7114
      %v7580 = vunpack.c.l.b16 %v7115
      %v7581 = vunpack.c.l.b16 %v7117
      %v7582 = vunpack.c.l.b16 %v7118
      %v7583 = vunpack.c.l.b16 %v7120
      %v7584 = vunpack.c.l.b16 %v7121
      %v7585 = vunpack.c.l.b16 %v7123
      %v7586 = vunpack.c.l.b16 %v7124
      %v7587 = vunpack.c.l.b16 %v7126
      %v7588 = vunpack.c.l.b16 %v7127
      %v7589 = vunpack.c.l.b16 %v7129
      %v7590 = vunpack.c.l.b16 %v7130
      %v7591 = vunpack.c.l.b16 %v7132
      %v7592 = vunpack.c.l.b16 %v7133
      %v7593 = vunpack.c.l.b16 %v7135
      %v7594 = vunpack.c.l.b16 %v7136
      %v7595 = vunpack.c.l.b16 %v7138
      %v7596 = vunpack.c.l.b16 %v7139
      %v7597 = vunpack.c.l.b16 %v7141
      %v7598 = vunpack.c.l.b16 %v7142
      %v7599 = vunpack.c.l.b16 %v7144
      %v7600 = vunpack.c.l.b16 %v7145
      %v7601 = vunpack.c.l.b16 %v7147
      %v7602 = vunpack.c.l.b16 %v7148
      %v7603 = vunpack.c.l.b16 %v7150
      %v7604 = vunpack.c.l.b16 %v7151
      %v7605 = vunpack.c.l.b16 %v7153
      %v7606 = vunpack.c.l.b16 %v7154
      %v7607 = vpack.c.b16 %v7576, %v7575
      %v7608 = vpack.c.b16 %v7578, %v7577
      %v7609 = vpack.c.b16 %v7580, %v7579
      %v7610 = vpack.c.b16 %v7582, %v7581
      %v7611 = vpack.c.b16 %v7584, %v7583
      %v7612 = vpack.c.b16 %v7586, %v7585
      %v7613 = vpack.c.b16 %v7588, %v7587
      %v7614 = vpack.c.b16 %v7590, %v7589
      %v7615 = vpack.c.b16 %v7592, %v7591
      %v7616 = vpack.c.b16 %v7594, %v7593
      %v7617 = vpack.c.b16 %v7596, %v7595
      %v7618 = vpack.c.b16 %v7598, %v7597
      %v7619 = vpack.c.b16 %v7600, %v7599
      %v7620 = vpack.c.b16 %v7602, %v7601
      %v7621 = vpack.c.b16 %v7604, %v7603
      %v7622 = vpack.c.b16 %v7606, %v7605
      %v7655 = vunpack.c.l.b16 %v7527
      %v7656 = vunpack.c.l.b16 %v7528
      %v7657 = vunpack.c.l.b16 %v7529
      %v7658 = vunpack.c.l.b16 %v7530
      %v7659 = vunpack.c.l.b16 %v7531
      %v7660 = vunpack.c.l.b16 %v7532
      %v7661 = vunpack.c.l.b16 %v7533
      %v7662 = vunpack.c.l.b16 %v7534
      %v7663 = vunpack.c.l.b16 %v7535
      %v7664 = vunpack.c.l.b16 %v7536
      %v7665 = vunpack.c.l.b16 %v7537
      %v7666 = vunpack.c.l.b16 %v7538
      %v7667 = vunpack.c.l.b16 %v7539
      %v7668 = vunpack.c.l.b16 %v7540
      %v7669 = vunpack.c.l.b16 %v7541
      %v7670 = vunpack.c.l.b16 %v7542
      %v7671 = vpack.c.b16 %v7656, %v7655
      %v7672 = vpack.c.b16 %v7658, %v7657
      %v7673 = vpack.c.b16 %v7660, %v7659
      %v7674 = vpack.c.b16 %v7662, %v7661
      %v7675 = vpack.c.b16 %v7664, %v7663
      %v7676 = vpack.c.b16 %v7666, %v7665
      %v7677 = vpack.c.b16 %v7668, %v7667
      %v7678 = vpack.c.b16 %v7670, %v7669
      %7687 = vmatprep.subr.bf16.mxu0 0
      %7688 = vmatpush1.bf16.msra.mxu0 %v7678
      %7689 = vmatprep.subr.bf16.mxu0 0
      %7690 = vmatpush1.bf16.msra.mxu0 %v7677
      %7691 = vmatprep.subr.bf16.mxu0 0
      %7692 = vmatpush1.bf16.msra.mxu0 %v7676
      %7693 = vmatprep.subr.bf16.mxu0 0
      %7694 = vmatpush1.bf16.msra.mxu0 %v7675
      %7695 = vmatprep.subr.bf16.mxu0 0
      %7696 = vmatpush1.bf16.msra.mxu0 %v7674
      %7697 = vmatprep.subr.bf16.mxu0 0
      %7698 = vmatpush1.bf16.msra.mxu0 %v7673
      %7699 = vmatprep.subr.bf16.mxu0 0
      %7700 = vmatpush1.bf16.msra.mxu0 %v7672
      %7701 = vmatprep.subr.bf16.mxu0 0
      %7702 = vmatpush1.bf16.msra.mxu0 %v7671
      %7703 = vmatprep.subr.bf16.mxu0 0
      %7704 = vmatpush2.bf16.msra.mxu0 0
      %7705 = vmatprep.subr.bf16.mxu0 0
      %7706 = vmatpush2.bf16.msra.mxu0 0
      %7707 = vmatprep.subr.bf16.mxu0 0
      %7708 = vmatpush2.bf16.msra.mxu0 0
      %7709 = vmatprep.subr.bf16.mxu0 0
      %7710 = vmatpush2.bf16.msra.mxu0 0
      %7711 = vmatprep.subr.bf16.mxu0 0
      %7712 = vmatpush2.bf16.msra.mxu0 0
      %7713 = vmatprep.subr.bf16.mxu0 0
      %7714 = vmatpush2.bf16.msra.mxu0 0
      %7715 = vmatprep.subr.bf16.mxu0 0
      %7716 = vmatpush2.bf16.msra.mxu0 0
      %7717 = vmatprep.subr.bf16.mxu0 0
      %7718 = vmatpush2.bf16.msra.mxu0 0
      %7719 = vmatprep.mubr.bf16.mxu0 0
      %7720 = vmatmul.mubr.bf16.gmra.mxu0 %v7607
      %v7721 = vpop.f32.mrf.mxu0
      %v7722 = vadd.f32 0.0, %v7721
      %v7723 = vpop.f32.mrf.mxu0
      %v7724 = vpop.f32.mrf.mxu0
      %v7725 = vadd.f32 0.0, %v7724
      %v7726 = vpop.f32.mrf.mxu0
      %7727 = vmatprep.mubr.bf16.mxu0 0
      %7728 = vmatmul.mubr.bf16.gmra.mxu0 %v7608
      %v7729 = vpop.f32.mrf.mxu0
      %v7730 = vadd.f32 0.0, %v7729
      %v7731 = vpop.f32.mrf.mxu0
      %v7732 = vpop.f32.mrf.mxu0
      %v7733 = vadd.f32 0.0, %v7732
      %v7734 = vpop.f32.mrf.mxu0
      %7735 = vmatprep.mubr.bf16.mxu0 0
      %7736 = vmatmul.mubr.bf16.gmra.mxu0 %v7609
      %v7737 = vpop.f32.mrf.mxu0
      %v7738 = vadd.f32 0.0, %v7737
      %v7739 = vpop.f32.mrf.mxu0
      %v7740 = vpop.f32.mrf.mxu0
      %v7741 = vadd.f32 0.0, %v7740
      %v7742 = vpop.f32.mrf.mxu0
      %7743 = vmatprep.mubr.bf16.mxu0 0
      %7744 = vmatmul.mubr.bf16.gmra.mxu0 %v7610
      %v7745 = vpop.f32.mrf.mxu0
      %v7746 = vadd.f32 0.0, %v7745
      %v7747 = vpop.f32.mrf.mxu0
      %v7748 = vpop.f32.mrf.mxu0
      %v7749 = vadd.f32 0.0, %v7748
      %v7750 = vpop.f32.mrf.mxu0
      %7751 = vmatprep.mubr.bf16.mxu0 0
      %7752 = vmatmul.mubr.bf16.gmra.mxu0 %v7611
      %v7753 = vpop.f32.mrf.mxu0
      %v7754 = vadd.f32 0.0, %v7753
      %v7755 = vpop.f32.mrf.mxu0
      %v7756 = vpop.f32.mrf.mxu0
      %v7757 = vadd.f32 0.0, %v7756
      %v7758 = vpop.f32.mrf.mxu0
      %7759 = vmatprep.mubr.bf16.mxu0 0
      %7760 = vmatmul.mubr.bf16.gmra.mxu0 %v7612
      %v7761 = vpop.f32.mrf.mxu0
      %v7762 = vadd.f32 0.0, %v7761
      %v7763 = vpop.f32.mrf.mxu0
      %v7764 = vpop.f32.mrf.mxu0
      %v7765 = vadd.f32 0.0, %v7764
      %v7766 = vpop.f32.mrf.mxu0
      %7767 = vmatprep.mubr.bf16.mxu0 0
      %7768 = vmatmul.mubr.bf16.gmra.mxu0 %v7613
      %v7769 = vpop.f32.mrf.mxu0
      %v7770 = vadd.f32 0.0, %v7769
      %v7771 = vpop.f32.mrf.mxu0
      %v7772 = vpop.f32.mrf.mxu0
      %v7773 = vadd.f32 0.0, %v7772
      %v7774 = vpop.f32.mrf.mxu0
      %7775 = vmatprep.mubr.bf16.mxu0 0
      %7776 = vmatmul.mubr.bf16.gmra.mxu0 %v7614
      %v7777 = vpop.f32.mrf.mxu0
      %v7778 = vadd.f32 0.0, %v7777
      %v7779 = vpop.f32.mrf.mxu0
      %v7780 = vpop.f32.mrf.mxu0
      %v7781 = vadd.f32 0.0, %v7780
      %v7782 = vpop.f32.mrf.mxu0
      %7783 = vmatprep.mubr.bf16.mxu0 0
      %7784 = vmatmul.mubr.bf16.gmra.mxu0 %v7615
      %v7785 = vpop.f32.mrf.mxu0
      %v7786 = vadd.f32 0.0, %v7785
      %v7787 = vpop.f32.mrf.mxu0
      %v7788 = vpop.f32.mrf.mxu0
      %v7789 = vadd.f32 0.0, %v7788
      %v7790 = vpop.f32.mrf.mxu0
      %7791 = vmatprep.mubr.bf16.mxu0 0
      %7792 = vmatmul.mubr.bf16.gmra.mxu0 %v7616
      %v7793 = vpop.f32.mrf.mxu0
      %v7794 = vadd.f32 0.0, %v7793
      %v7795 = vpop.f32.mrf.mxu0
      %v7796 = vpop.f32.mrf.mxu0
      %v7797 = vadd.f32 0.0, %v7796
      %v7798 = vpop.f32.mrf.mxu0
      %7799 = vmatprep.mubr.bf16.mxu0 0
      %7800 = vmatmul.mubr.bf16.gmra.mxu0 %v7617
      %v7801 = vpop.f32.mrf.mxu0
      %v7802 = vadd.f32 0.0, %v7801
      %v7803 = vpop.f32.mrf.mxu0
      %v7804 = vpop.f32.mrf.mxu0
      %v7805 = vadd.f32 0.0, %v7804
      %v7806 = vpop.f32.mrf.mxu0
      %7807 = vmatprep.mubr.bf16.mxu0 0
      %7808 = vmatmul.mubr.bf16.gmra.mxu0 %v7618
      %v7809 = vpop.f32.mrf.mxu0
      %v7810 = vadd.f32 0.0, %v7809
      %v7811 = vpop.f32.mrf.mxu0
      %v7812 = vpop.f32.mrf.mxu0
      %v7813 = vadd.f32 0.0, %v7812
      %v7814 = vpop.f32.mrf.mxu0
      %7815 = vmatprep.mubr.bf16.mxu0 0
      %7816 = vmatmul.mubr.bf16.gmra.mxu0 %v7619
      %v7817 = vpop.f32.mrf.mxu0
      %v7818 = vadd.f32 0.0, %v7817
      %v7819 = vpop.f32.mrf.mxu0
      %v7820 = vpop.f32.mrf.mxu0
      %v7821 = vadd.f32 0.0, %v7820
      %v7822 = vpop.f32.mrf.mxu0
      %7823 = vmatprep.mubr.bf16.mxu0 0
      %7824 = vmatmul.mubr.bf16.gmra.mxu0 %v7620
      %v7825 = vpop.f32.mrf.mxu0
      %v7826 = vadd.f32 0.0, %v7825
      %v7827 = vpop.f32.mrf.mxu0
      %v7828 = vpop.f32.mrf.mxu0
      %v7829 = vadd.f32 0.0, %v7828
      %v7830 = vpop.f32.mrf.mxu0
      %7831 = vmatprep.mubr.bf16.mxu0 0
      %7832 = vmatmul.mubr.bf16.gmra.mxu0 %v7621
      %v7833 = vpop.f32.mrf.mxu0
      %v7834 = vadd.f32 0.0, %v7833
      %v7835 = vpop.f32.mrf.mxu0
      %v7836 = vpop.f32.mrf.mxu0
      %v7837 = vadd.f32 0.0, %v7836
      %v7838 = vpop.f32.mrf.mxu0
      %7839 = vmatprep.mubr.bf16.mxu0 0
      %7840 = vmatmul.mubr.bf16.gmra.mxu0 %v7622
      %v7841 = vpop.f32.mrf.mxu0
      %v7842 = vadd.f32 0.0, %v7841
      %v7843 = vpop.f32.mrf.mxu0
      %v7844 = vpop.f32.mrf.mxu0
      %v7845 = vadd.f32 0.0, %v7844
      %v7846 = vpop.f32.mrf.mxu0
      %7847 = vdwg.mxu0
      %v7848 = vunpack.c.l.b16 %v7170
      %v7849 = vunpack.c.l.b16 %v7179
      %v7850 = vunpack.c.l.b16 %v7192
      %v7851 = vunpack.c.l.b16 %v7201
      %v7852 = vunpack.c.l.b16 %v7214
      %v7853 = vunpack.c.l.b16 %v7223
      %v7854 = vunpack.c.l.b16 %v7236
      %v7855 = vunpack.c.l.b16 %v7245
      %v7856 = vunpack.c.l.b16 %v7258
      %v7857 = vunpack.c.l.b16 %v7267
      %v7858 = vunpack.c.l.b16 %v7280
      %v7859 = vunpack.c.l.b16 %v7289
      %v7860 = vunpack.c.l.b16 %v7302
      %v7861 = vunpack.c.l.b16 %v7311
      %v7862 = vunpack.c.l.b16 %v7324
      %v7863 = vunpack.c.l.b16 %v7333
      %v7864 = vunpack.c.l.b16 %v7346
      %v7865 = vunpack.c.l.b16 %v7355
      %v7866 = vunpack.c.l.b16 %v7368
      %v7867 = vunpack.c.l.b16 %v7377
      %v7868 = vunpack.c.l.b16 %v7390
      %v7869 = vunpack.c.l.b16 %v7399
      %v7870 = vunpack.c.l.b16 %v7412
      %v7871 = vunpack.c.l.b16 %v7421
      %v7872 = vunpack.c.l.b16 %v7434
      %v7873 = vunpack.c.l.b16 %v7443
      %v7874 = vunpack.c.l.b16 %v7456
      %v7875 = vunpack.c.l.b16 %v7465
      %v7876 = vunpack.c.l.b16 %v7478
      %v7877 = vunpack.c.l.b16 %v7487
      %v7878 = vunpack.c.l.b16 %v7500
      %v7879 = vunpack.c.l.b16 %v7509
      %v7880 = vpack.c.b16 %v7849, %v7848
      %v7881 = vpack.c.b16 %v7851, %v7850
      %v7882 = vpack.c.b16 %v7853, %v7852
      %v7883 = vpack.c.b16 %v7855, %v7854
      %v7884 = vpack.c.b16 %v7857, %v7856
      %v7885 = vpack.c.b16 %v7859, %v7858
      %v7886 = vpack.c.b16 %v7861, %v7860
      %v7887 = vpack.c.b16 %v7863, %v7862
      %v7888 = vpack.c.b16 %v7865, %v7864
      %v7889 = vpack.c.b16 %v7867, %v7866
      %v7890 = vpack.c.b16 %v7869, %v7868
      %v7891 = vpack.c.b16 %v7871, %v7870
      %v7892 = vpack.c.b16 %v7873, %v7872
      %v7893 = vpack.c.b16 %v7875, %v7874
      %v7894 = vpack.c.b16 %v7877, %v7876
      %v7895 = vpack.c.b16 %v7879, %v7878
      %v7928 = vunpack.c.l.b16 %v7510
      %v7929 = vunpack.c.l.b16 %v7511
      %v7930 = vunpack.c.l.b16 %v7512
      %v7931 = vunpack.c.l.b16 %v7513
      %v7932 = vunpack.c.l.b16 %v7514
      %v7933 = vunpack.c.l.b16 %v7515
      %v7934 = vunpack.c.l.b16 %v7516
      %v7935 = vunpack.c.l.b16 %v7517
      %v7936 = vunpack.c.l.b16 %v7518
      %v7937 = vunpack.c.l.b16 %v7519
      %v7938 = vunpack.c.l.b16 %v7520
      %v7939 = vunpack.c.l.b16 %v7521
      %v7940 = vunpack.c.l.b16 %v7522
      %v7941 = vunpack.c.l.b16 %v7523
      %v7942 = vunpack.c.l.b16 %v7524
      %v7943 = vunpack.c.l.b16 %v7525
      %v7944 = vpack.c.b16 %v7929, %v7928
      %v7945 = vpack.c.b16 %v7931, %v7930
      %v7946 = vpack.c.b16 %v7933, %v7932
      %v7947 = vpack.c.b16 %v7935, %v7934
      %v7948 = vpack.c.b16 %v7937, %v7936
      %v7949 = vpack.c.b16 %v7939, %v7938
      %v7950 = vpack.c.b16 %v7941, %v7940
      %v7951 = vpack.c.b16 %v7943, %v7942
      %7960 = vmatprep.subr.bf16.mxu0 0
      %7961 = vmatpush1.bf16.msra.mxu0 %v7951
      %7962 = vmatprep.subr.bf16.mxu0 0
      %7963 = vmatpush1.bf16.msra.mxu0 %v7950
      %7964 = vmatprep.subr.bf16.mxu0 0
      %7965 = vmatpush1.bf16.msra.mxu0 %v7949
      %7966 = vmatprep.subr.bf16.mxu0 0
      %7967 = vmatpush1.bf16.msra.mxu0 %v7948
      %7968 = vmatprep.subr.bf16.mxu0 0
      %7969 = vmatpush1.bf16.msra.mxu0 %v7947
      %7970 = vmatprep.subr.bf16.mxu0 0
      %7971 = vmatpush1.bf16.msra.mxu0 %v7946
      %7972 = vmatprep.subr.bf16.mxu0 0
      %7973 = vmatpush1.bf16.msra.mxu0 %v7945
      %7974 = vmatprep.subr.bf16.mxu0 0
      %7975 = vmatpush1.bf16.msra.mxu0 %v7944
      %7976 = vmatprep.subr.bf16.mxu0 0
      %7977 = vmatpush2.bf16.msra.mxu0 0
      %7978 = vmatprep.subr.bf16.mxu0 0
      %7979 = vmatpush2.bf16.msra.mxu0 0
      %7980 = vmatprep.subr.bf16.mxu0 0
      %7981 = vmatpush2.bf16.msra.mxu0 0
      %7982 = vmatprep.subr.bf16.mxu0 0
      %7983 = vmatpush2.bf16.msra.mxu0 0
      %7984 = vmatprep.subr.bf16.mxu0 0
      %7985 = vmatpush2.bf16.msra.mxu0 0
      %7986 = vmatprep.subr.bf16.mxu0 0
      %7987 = vmatpush2.bf16.msra.mxu0 0
      %7988 = vmatprep.subr.bf16.mxu0 0
      %7989 = vmatpush2.bf16.msra.mxu0 0
      %7990 = vmatprep.subr.bf16.mxu0 0
      %7991 = vmatpush2.bf16.msra.mxu0 0
      %7992 = vmatprep.mubr.bf16.mxu0 0
      %7993 = vmatmul.mubr.bf16.gmra.mxu0 %v7880
      %v7994 = vpop.f32.mrf.mxu0
      %v7995 = vadd.f32 %v7722, %v7994
      %v7996 = vpop.f32.mrf.mxu0
      %v7997 = vpop.f32.mrf.mxu0
      %v7998 = vadd.f32 %v7725, %v7997
      %v7999 = vpop.f32.mrf.mxu0
      %8000 = vmatprep.mubr.bf16.mxu0 0
      %8001 = vmatmul.mubr.bf16.gmra.mxu0 %v7881
      %v8002 = vpop.f32.mrf.mxu0
      %v8003 = vadd.f32 %v7730, %v8002
      %v8004 = vpop.f32.mrf.mxu0
      %v8005 = vpop.f32.mrf.mxu0
      %v8006 = vadd.f32 %v7733, %v8005
      %v8007 = vpop.f32.mrf.mxu0
      %8008 = vmatprep.mubr.bf16.mxu0 0
      %8009 = vmatmul.mubr.bf16.gmra.mxu0 %v7882
      %v8010 = vpop.f32.mrf.mxu0
      %v8011 = vadd.f32 %v7738, %v8010
      %v8012 = vpop.f32.mrf.mxu0
      %v8013 = vpop.f32.mrf.mxu0
      %v8014 = vadd.f32 %v7741, %v8013
      %v8015 = vpop.f32.mrf.mxu0
      %8016 = vmatprep.mubr.bf16.mxu0 0
      %8017 = vmatmul.mubr.bf16.gmra.mxu0 %v7883
      %v8018 = vpop.f32.mrf.mxu0
      %v8019 = vadd.f32 %v7746, %v8018
      %v8020 = vpop.f32.mrf.mxu0
      %v8021 = vpop.f32.mrf.mxu0
      %v8022 = vadd.f32 %v7749, %v8021
      %v8023 = vpop.f32.mrf.mxu0
      %8024 = vmatprep.mubr.bf16.mxu0 0
      %8025 = vmatmul.mubr.bf16.gmra.mxu0 %v7884
      %v8026 = vpop.f32.mrf.mxu0
      %v8027 = vadd.f32 %v7754, %v8026
      %v8028 = vpop.f32.mrf.mxu0
      %v8029 = vpop.f32.mrf.mxu0
      %v8030 = vadd.f32 %v7757, %v8029
      %v8031 = vpop.f32.mrf.mxu0
      %8032 = vmatprep.mubr.bf16.mxu0 0
      %8033 = vmatmul.mubr.bf16.gmra.mxu0 %v7885
      %v8034 = vpop.f32.mrf.mxu0
      %v8035 = vadd.f32 %v7762, %v8034
      %v8036 = vpop.f32.mrf.mxu0
      %v8037 = vpop.f32.mrf.mxu0
      %v8038 = vadd.f32 %v7765, %v8037
      %v8039 = vpop.f32.mrf.mxu0
      %8040 = vmatprep.mubr.bf16.mxu0 0
      %8041 = vmatmul.mubr.bf16.gmra.mxu0 %v7886
      %v8042 = vpop.f32.mrf.mxu0
      %v8043 = vadd.f32 %v7770, %v8042
      %v8044 = vpop.f32.mrf.mxu0
      %v8045 = vpop.f32.mrf.mxu0
      %v8046 = vadd.f32 %v7773, %v8045
      %v8047 = vpop.f32.mrf.mxu0
      %8048 = vmatprep.mubr.bf16.mxu0 0
      %8049 = vmatmul.mubr.bf16.gmra.mxu0 %v7887
      %v8050 = vpop.f32.mrf.mxu0
      %v8051 = vadd.f32 %v7778, %v8050
      %v8052 = vpop.f32.mrf.mxu0
      %v8053 = vpop.f32.mrf.mxu0
      %v8054 = vadd.f32 %v7781, %v8053
      %v8055 = vpop.f32.mrf.mxu0
      %8056 = vmatprep.mubr.bf16.mxu0 0
      %8057 = vmatmul.mubr.bf16.gmra.mxu0 %v7888
      %v8058 = vpop.f32.mrf.mxu0
      %v8059 = vadd.f32 %v7786, %v8058
      %v8060 = vpop.f32.mrf.mxu0
      %v8061 = vpop.f32.mrf.mxu0
      %v8062 = vadd.f32 %v7789, %v8061
      %v8063 = vpop.f32.mrf.mxu0
      %8064 = vmatprep.mubr.bf16.mxu0 0
      %8065 = vmatmul.mubr.bf16.gmra.mxu0 %v7889
      %v8066 = vpop.f32.mrf.mxu0
      %v8067 = vadd.f32 %v7794, %v8066
      %v8068 = vpop.f32.mrf.mxu0
      %v8069 = vpop.f32.mrf.mxu0
      %v8070 = vadd.f32 %v7797, %v8069
      %v8071 = vpop.f32.mrf.mxu0
      %8072 = vmatprep.mubr.bf16.mxu0 0
      %8073 = vmatmul.mubr.bf16.gmra.mxu0 %v7890
      %v8074 = vpop.f32.mrf.mxu0
      %v8075 = vadd.f32 %v7802, %v8074
      %v8076 = vpop.f32.mrf.mxu0
      %v8077 = vpop.f32.mrf.mxu0
      %v8078 = vadd.f32 %v7805, %v8077
      %v8079 = vpop.f32.mrf.mxu0
      %8080 = vmatprep.mubr.bf16.mxu0 0
      %8081 = vmatmul.mubr.bf16.gmra.mxu0 %v7891
      %v8082 = vpop.f32.mrf.mxu0
      %v8083 = vadd.f32 %v7810, %v8082
      %v8084 = vpop.f32.mrf.mxu0
      %v8085 = vpop.f32.mrf.mxu0
      %v8086 = vadd.f32 %v7813, %v8085
      %v8087 = vpop.f32.mrf.mxu0
      %8088 = vmatprep.mubr.bf16.mxu0 0
      %8089 = vmatmul.mubr.bf16.gmra.mxu0 %v7892
      %v8090 = vpop.f32.mrf.mxu0
      %v8091 = vadd.f32 %v7818, %v8090
      %v8092 = vpop.f32.mrf.mxu0
      %v8093 = vpop.f32.mrf.mxu0
      %v8094 = vadd.f32 %v7821, %v8093
      %v8095 = vpop.f32.mrf.mxu0
      %8096 = vmatprep.mubr.bf16.mxu0 0
      %8097 = vmatmul.mubr.bf16.gmra.mxu0 %v7893
      %v8098 = vpop.f32.mrf.mxu0
      %v8099 = vadd.f32 %v7826, %v8098
      %v8100 = vpop.f32.mrf.mxu0
      %v8101 = vpop.f32.mrf.mxu0
      %v8102 = vadd.f32 %v7829, %v8101
      %v8103 = vpop.f32.mrf.mxu0
      %8104 = vmatprep.mubr.bf16.mxu0 0
      %8105 = vmatmul.mubr.bf16.gmra.mxu0 %v7894
      %v8106 = vpop.f32.mrf.mxu0
      %v8107 = vadd.f32 %v7834, %v8106
      %v8108 = vpop.f32.mrf.mxu0
      %v8109 = vpop.f32.mrf.mxu0
      %v8110 = vadd.f32 %v7837, %v8109
      %v8111 = vpop.f32.mrf.mxu0
      %8112 = vmatprep.mubr.bf16.mxu0 0
      %8113 = vmatmul.mubr.bf16.gmra.mxu0 %v7895
      %v8114 = vpop.f32.mrf.mxu0
      %v8115 = vadd.f32 %v7842, %v8114
      %v8116 = vpop.f32.mrf.mxu0
      %v8117 = vpop.f32.mrf.mxu0
      %v8118 = vadd.f32 %v7845, %v8117
      %v8119 = vpop.f32.mrf.mxu0
      %8120 = vdwg.mxu0
      %v8121 = vld [vmem:[#allocation4 + $0x4] sm:$0xf]
      %v8122 = vld [vmem:[#allocation4 + $0x8] sm:$0xf]
      %v8123 = vld [vmem:[#allocation4 + $0xc] sm:$0x1]
      %v8124 = vld [vmem:[#allocation4 + $0x14] sm:$0xf]
      %v8125 = vld [vmem:[#allocation4 + $0x18] sm:$0xf]
      %v8126 = vld [vmem:[#allocation4 + $0x1c] sm:$0x1]
      %v8127 = vld [vmem:[#allocation4 + $0x24] sm:$0xf]
      %v8128 = vld [vmem:[#allocation4 + $0x28] sm:$0xf]
      %v8129 = vld [vmem:[#allocation4 + $0x2c] sm:$0x1]
      %v8130 = vld [vmem:[#allocation4 + $0x34] sm:$0xf]
      %v8131 = vld [vmem:[#allocation4 + $0x38] sm:$0xf]
      %v8132 = vld [vmem:[#allocation4 + $0x3c] sm:$0x1]
      %v8133 = vld [vmem:[#allocation4 + $0x44] sm:$0xf]
      %v8134 = vld [vmem:[#allocation4 + $0x48] sm:$0xf]
      %v8135 = vld [vmem:[#allocation4 + $0x4c] sm:$0x1]
      %v8136 = vld [vmem:[#allocation4 + $0x54] sm:$0xf]
      %v8137 = vld [vmem:[#allocation4 + $0x58] sm:$0xf]
      %v8138 = vld [vmem:[#allocation4 + $0x5c] sm:$0x1]
      %v8139 = vld [vmem:[#allocation4 + $0x64] sm:$0xf]
      %v8140 = vld [vmem:[#allocation4 + $0x68] sm:$0xf]
      %v8141 = vld [vmem:[#allocation4 + $0x6c] sm:$0x1]
      %v8142 = vld [vmem:[#allocation4 + $0x74] sm:$0xf]
      %v8143 = vld [vmem:[#allocation4 + $0x78] sm:$0xf]
      %v8144 = vld [vmem:[#allocation4 + $0x7c] sm:$0x1]
      %v8145 = vld [vmem:[#allocation4 + $0x84] sm:$0xf]
      %v8146 = vld [vmem:[#allocation4 + $0x88] sm:$0xf]
      %v8147 = vld [vmem:[#allocation4 + $0x8c] sm:$0x1]
      %v8148 = vld [vmem:[#allocation4 + $0x94] sm:$0xf]
      %v8149 = vld [vmem:[#allocation4 + $0x98] sm:$0xf]
      %v8150 = vld [vmem:[#allocation4 + $0x9c] sm:$0x1]
      %v8151 = vld [vmem:[#allocation4 + $0xa4] sm:$0xf]
      %v8152 = vld [vmem:[#allocation4 + $0xa8] sm:$0xf]
      %v8153 = vld [vmem:[#allocation4 + $0xac] sm:$0x1]
      %v8154 = vld [vmem:[#allocation4 + $0xb4] sm:$0xf]
      %v8155 = vld [vmem:[#allocation4 + $0xb8] sm:$0xf]
      %v8156 = vld [vmem:[#allocation4 + $0xbc] sm:$0x1]
      %v8157 = vld [vmem:[#allocation4 + $0xc4] sm:$0xf]
      %v8158 = vld [vmem:[#allocation4 + $0xc8] sm:$0xf]
      %v8159 = vld [vmem:[#allocation4 + $0xcc] sm:$0x1]
      %v8160 = vld [vmem:[#allocation4 + $0xd4] sm:$0xf]
      %v8161 = vld [vmem:[#allocation4 + $0xd8] sm:$0xf]
      %v8162 = vld [vmem:[#allocation4 + $0xdc] sm:$0x1]
      %v8163 = vld [vmem:[#allocation4 + $0xe4] sm:$0xf]
      %v8164 = vld [vmem:[#allocation4 + $0xe8] sm:$0xf]
      %v8165 = vld [vmem:[#allocation4 + $0xec] sm:$0x1]
      %v8166 = vld [vmem:[#allocation4 + $0xf4] sm:$0xf]
      %v8167 = vld [vmem:[#allocation4 + $0xf8] sm:$0xf]
      %v8168 = vld [vmem:[#allocation4 + $0xfc] sm:$0x1]
      %v8170 = vshrl.u32 %v8121, 16
      %v8172 = vrot.slane %v8170, 4
      %v8173 = vshll.u32 %v8121, 16
      %v8175 = vrot.slane %v8173, 5
      %v8176 = vor.u32 %v8172, %v8175
      %v8177 = vrot.slane %v8176, 4
      %v8179 = vshll.u32 %v8122, 16
      %v8181 = vrot.slane %v8179, 5
      %v8182 = vsel %vm668, %v8177, %v8181
      %v8183 = vshrl.u32 %v8122, 16
      %v8185 = vrot.slane %v8183, 4
      %v8186 = vor.u32 %v8185, %v8181
      %v8187 = vrot.slane %v8186, 4
      %v8189 = vshll.u32 %v8123, 16
      %v8191 = vrot.slane %v8189, 5
      %v8192 = vsel %vm668, %v8187, %v8191
      %v8194 = vshrl.u32 %v8124, 16
      %v8196 = vrot.slane %v8194, 4
      %v8197 = vshll.u32 %v8124, 16
      %v8199 = vrot.slane %v8197, 5
      %v8200 = vor.u32 %v8196, %v8199
      %v8201 = vrot.slane %v8200, 4
      %v8203 = vshll.u32 %v8125, 16
      %v8205 = vrot.slane %v8203, 5
      %v8206 = vsel %vm668, %v8201, %v8205
      %v8207 = vshrl.u32 %v8125, 16
      %v8209 = vrot.slane %v8207, 4
      %v8210 = vor.u32 %v8209, %v8205
      %v8211 = vrot.slane %v8210, 4
      %v8213 = vshll.u32 %v8126, 16
      %v8215 = vrot.slane %v8213, 5
      %v8216 = vsel %vm668, %v8211, %v8215
      %v8218 = vshrl.u32 %v8127, 16
      %v8220 = vrot.slane %v8218, 4
      %v8221 = vshll.u32 %v8127, 16
      %v8223 = vrot.slane %v8221, 5
      %v8224 = vor.u32 %v8220, %v8223
      %v8225 = vrot.slane %v8224, 4
      %v8227 = vshll.u32 %v8128, 16
      %v8229 = vrot.slane %v8227, 5
      %v8230 = vsel %vm668, %v8225, %v8229
      %v8231 = vshrl.u32 %v8128, 16
      %v8233 = vrot.slane %v8231, 4
      %v8234 = vor.u32 %v8233, %v8229
      %v8235 = vrot.slane %v8234, 4
      %v8237 = vshll.u32 %v8129, 16
      %v8239 = vrot.slane %v8237, 5
      %v8240 = vsel %vm668, %v8235, %v8239
      %v8242 = vshrl.u32 %v8130, 16
      %v8244 = vrot.slane %v8242, 4
      %v8245 = vshll.u32 %v8130, 16
      %v8247 = vrot.slane %v8245, 5
      %v8248 = vor.u32 %v8244, %v8247
      %v8249 = vrot.slane %v8248, 4
      %v8251 = vshll.u32 %v8131, 16
      %v8253 = vrot.slane %v8251, 5
      %v8254 = vsel %vm668, %v8249, %v8253
      %v8255 = vshrl.u32 %v8131, 16
      %v8257 = vrot.slane %v8255, 4
      %v8258 = vor.u32 %v8257, %v8253
      %v8259 = vrot.slane %v8258, 4
      %v8261 = vshll.u32 %v8132, 16
      %v8263 = vrot.slane %v8261, 5
      %v8264 = vsel %vm668, %v8259, %v8263
      %v8266 = vshrl.u32 %v8133, 16
      %v8268 = vrot.slane %v8266, 4
      %v8269 = vshll.u32 %v8133, 16
      %v8271 = vrot.slane %v8269, 5
      %v8272 = vor.u32 %v8268, %v8271
      %v8273 = vrot.slane %v8272, 4
      %v8275 = vshll.u32 %v8134, 16
      %v8277 = vrot.slane %v8275, 5
      %v8278 = vsel %vm668, %v8273, %v8277
      %v8279 = vshrl.u32 %v8134, 16
      %v8281 = vrot.slane %v8279, 4
      %v8282 = vor.u32 %v8281, %v8277
      %v8283 = vrot.slane %v8282, 4
      %v8285 = vshll.u32 %v8135, 16
      %v8287 = vrot.slane %v8285, 5
      %v8288 = vsel %vm668, %v8283, %v8287
      %v8290 = vshrl.u32 %v8136, 16
      %v8292 = vrot.slane %v8290, 4
      %v8293 = vshll.u32 %v8136, 16
      %v8295 = vrot.slane %v8293, 5
      %v8296 = vor.u32 %v8292, %v8295
      %v8297 = vrot.slane %v8296, 4
      %v8299 = vshll.u32 %v8137, 16
      %v8301 = vrot.slane %v8299, 5
      %v8302 = vsel %vm668, %v8297, %v8301
      %v8303 = vshrl.u32 %v8137, 16
      %v8305 = vrot.slane %v8303, 4
      %v8306 = vor.u32 %v8305, %v8301
      %v8307 = vrot.slane %v8306, 4
      %v8309 = vshll.u32 %v8138, 16
      %v8311 = vrot.slane %v8309, 5
      %v8312 = vsel %vm668, %v8307, %v8311
      %v8314 = vshrl.u32 %v8139, 16
      %v8316 = vrot.slane %v8314, 4
      %v8317 = vshll.u32 %v8139, 16
      %v8319 = vrot.slane %v8317, 5
      %v8320 = vor.u32 %v8316, %v8319
      %v8321 = vrot.slane %v8320, 4
      %v8323 = vshll.u32 %v8140, 16
      %v8325 = vrot.slane %v8323, 5
      %v8326 = vsel %vm668, %v8321, %v8325
      %v8327 = vshrl.u32 %v8140, 16
      %v8329 = vrot.slane %v8327, 4
      %v8330 = vor.u32 %v8329, %v8325
      %v8331 = vrot.slane %v8330, 4
      %v8333 = vshll.u32 %v8141, 16
      %v8335 = vrot.slane %v8333, 5
      %v8336 = vsel %vm668, %v8331, %v8335
      %v8338 = vshrl.u32 %v8142, 16
      %v8340 = vrot.slane %v8338, 4
      %v8341 = vshll.u32 %v8142, 16
      %v8343 = vrot.slane %v8341, 5
      %v8344 = vor.u32 %v8340, %v8343
      %v8345 = vrot.slane %v8344, 4
      %v8347 = vshll.u32 %v8143, 16
      %v8349 = vrot.slane %v8347, 5
      %v8350 = vsel %vm668, %v8345, %v8349
      %v8351 = vshrl.u32 %v8143, 16
      %v8353 = vrot.slane %v8351, 4
      %v8354 = vor.u32 %v8353, %v8349
      %v8355 = vrot.slane %v8354, 4
      %v8357 = vshll.u32 %v8144, 16
      %v8359 = vrot.slane %v8357, 5
      %v8360 = vsel %vm668, %v8355, %v8359
      %v8362 = vshrl.u32 %v8145, 16
      %v8364 = vrot.slane %v8362, 4
      %v8365 = vshll.u32 %v8145, 16
      %v8367 = vrot.slane %v8365, 5
      %v8368 = vor.u32 %v8364, %v8367
      %v8369 = vrot.slane %v8368, 4
      %v8371 = vshll.u32 %v8146, 16
      %v8373 = vrot.slane %v8371, 5
      %v8374 = vsel %vm668, %v8369, %v8373
      %v8375 = vshrl.u32 %v8146, 16
      %v8377 = vrot.slane %v8375, 4
      %v8378 = vor.u32 %v8377, %v8373
      %v8379 = vrot.slane %v8378, 4
      %v8381 = vshll.u32 %v8147, 16
      %v8383 = vrot.slane %v8381, 5
      %v8384 = vsel %vm668, %v8379, %v8383
      %v8386 = vshrl.u32 %v8148, 16
      %v8388 = vrot.slane %v8386, 4
      %v8389 = vshll.u32 %v8148, 16
      %v8391 = vrot.slane %v8389, 5
      %v8392 = vor.u32 %v8388, %v8391
      %v8393 = vrot.slane %v8392, 4
      %v8395 = vshll.u32 %v8149, 16
      %v8397 = vrot.slane %v8395, 5
      %v8398 = vsel %vm668, %v8393, %v8397
      %v8399 = vshrl.u32 %v8149, 16
      %v8401 = vrot.slane %v8399, 4
      %v8402 = vor.u32 %v8401, %v8397
      %v8403 = vrot.slane %v8402, 4
      %v8405 = vshll.u32 %v8150, 16
      %v8407 = vrot.slane %v8405, 5
      %v8408 = vsel %vm668, %v8403, %v8407
      %v8410 = vshrl.u32 %v8151, 16
      %v8412 = vrot.slane %v8410, 4
      %v8413 = vshll.u32 %v8151, 16
      %v8415 = vrot.slane %v8413, 5
      %v8416 = vor.u32 %v8412, %v8415
      %v8417 = vrot.slane %v8416, 4
      %v8419 = vshll.u32 %v8152, 16
      %v8421 = vrot.slane %v8419, 5
      %v8422 = vsel %vm668, %v8417, %v8421
      %v8423 = vshrl.u32 %v8152, 16
      %v8425 = vrot.slane %v8423, 4
      %v8426 = vor.u32 %v8425, %v8421
      %v8427 = vrot.slane %v8426, 4
      %v8429 = vshll.u32 %v8153, 16
      %v8431 = vrot.slane %v8429, 5
      %v8432 = vsel %vm668, %v8427, %v8431
      %v8434 = vshrl.u32 %v8154, 16
      %v8436 = vrot.slane %v8434, 4
      %v8437 = vshll.u32 %v8154, 16
      %v8439 = vrot.slane %v8437, 5
      %v8440 = vor.u32 %v8436, %v8439
      %v8441 = vrot.slane %v8440, 4
      %v8443 = vshll.u32 %v8155, 16
      %v8445 = vrot.slane %v8443, 5
      %v8446 = vsel %vm668, %v8441, %v8445
      %v8447 = vshrl.u32 %v8155, 16
      %v8449 = vrot.slane %v8447, 4
      %v8450 = vor.u32 %v8449, %v8445
      %v8451 = vrot.slane %v8450, 4
      %v8453 = vshll.u32 %v8156, 16
      %v8455 = vrot.slane %v8453, 5
      %v8456 = vsel %vm668, %v8451, %v8455
      %v8458 = vshrl.u32 %v8157, 16
      %v8460 = vrot.slane %v8458, 4
      %v8461 = vshll.u32 %v8157, 16
      %v8463 = vrot.slane %v8461, 5
      %v8464 = vor.u32 %v8460, %v8463
      %v8465 = vrot.slane %v8464, 4
      %v8467 = vshll.u32 %v8158, 16
      %v8469 = vrot.slane %v8467, 5
      %v8470 = vsel %vm668, %v8465, %v8469
      %v8471 = vshrl.u32 %v8158, 16
      %v8473 = vrot.slane %v8471, 4
      %v8474 = vor.u32 %v8473, %v8469
      %v8475 = vrot.slane %v8474, 4
      %v8477 = vshll.u32 %v8159, 16
      %v8479 = vrot.slane %v8477, 5
      %v8480 = vsel %vm668, %v8475, %v8479
      %v8482 = vshrl.u32 %v8160, 16
      %v8484 = vrot.slane %v8482, 4
      %v8485 = vshll.u32 %v8160, 16
      %v8487 = vrot.slane %v8485, 5
      %v8488 = vor.u32 %v8484, %v8487
      %v8489 = vrot.slane %v8488, 4
      %v8491 = vshll.u32 %v8161, 16
      %v8493 = vrot.slane %v8491, 5
      %v8494 = vsel %vm668, %v8489, %v8493
      %v8495 = vshrl.u32 %v8161, 16
      %v8497 = vrot.slane %v8495, 4
      %v8498 = vor.u32 %v8497, %v8493
      %v8499 = vrot.slane %v8498, 4
      %v8501 = vshll.u32 %v8162, 16
      %v8503 = vrot.slane %v8501, 5
      %v8504 = vsel %vm668, %v8499, %v8503
      %v8506 = vshrl.u32 %v8163, 16
      %v8508 = vrot.slane %v8506, 4
      %v8509 = vshll.u32 %v8163, 16
      %v8511 = vrot.slane %v8509, 5
      %v8512 = vor.u32 %v8508, %v8511
      %v8513 = vrot.slane %v8512, 4
      %v8515 = vshll.u32 %v8164, 16
      %v8517 = vrot.slane %v8515, 5
      %v8518 = vsel %vm668, %v8513, %v8517
      %v8519 = vshrl.u32 %v8164, 16
      %v8521 = vrot.slane %v8519, 4
      %v8522 = vor.u32 %v8521, %v8517
      %v8523 = vrot.slane %v8522, 4
      %v8525 = vshll.u32 %v8165, 16
      %v8527 = vrot.slane %v8525, 5
      %v8528 = vsel %vm668, %v8523, %v8527
      %v8530 = vshrl.u32 %v8166, 16
      %v8532 = vrot.slane %v8530, 4
      %v8533 = vshll.u32 %v8166, 16
      %v8535 = vrot.slane %v8533, 5
      %v8536 = vor.u32 %v8532, %v8535
      %v8537 = vrot.slane %v8536, 4
      %v8539 = vshll.u32 %v8167, 16
      %v8541 = vrot.slane %v8539, 5
      %v8542 = vsel %vm668, %v8537, %v8541
      %v8543 = vshrl.u32 %v8167, 16
      %v8545 = vrot.slane %v8543, 4
      %v8546 = vor.u32 %v8545, %v8541
      %v8547 = vrot.slane %v8546, 4
      %v8549 = vshll.u32 %v8168, 16
      %v8551 = vrot.slane %v8549, 5
      %v8552 = vsel %vm668, %v8547, %v8551
      %s8553 = scalar_lea.vmem %s4, 128
      %v8554 = vld [vmem:[%s8553] sm:$0xf]
      %v8555 = vld [vmem:[%s8553 + $0x4] sm:$0xf]
      %v8556 = vld [vmem:[%s8553 + $0x8] sm:$0xf]
      %v8557 = vld [vmem:[%s8553 + $0xc] sm:$0xf]
      %v8558 = vld [vmem:[%s8553 + $0x10] sm:$0xf]
      %v8559 = vld [vmem:[%s8553 + $0x14] sm:$0xf]
      %v8560 = vld [vmem:[%s8553 + $0x18] sm:$0xf]
      %v8561 = vld [vmem:[%s8553 + $0x1c] sm:$0xf]
      %v8562 = vld [vmem:[%s8553 + $0x20] sm:$0xf]
      %v8563 = vld [vmem:[%s8553 + $0x24] sm:$0xf]
      %v8564 = vld [vmem:[%s8553 + $0x28] sm:$0xf]
      %v8565 = vld [vmem:[%s8553 + $0x2c] sm:$0xf]
      %v8566 = vld [vmem:[%s8553 + $0x30] sm:$0xf]
      %v8567 = vld [vmem:[%s8553 + $0x34] sm:$0xf]
      %v8568 = vld [vmem:[%s8553 + $0x38] sm:$0xf]
      %v8569 = vld [vmem:[%s8553 + $0x3c] sm:$0xf]
      %v8570 = vunpack.c.l.b16 %v8182
      %v8571 = vunpack.c.l.b16 %v8192
      %v8572 = vunpack.c.l.b16 %v8206
      %v8573 = vunpack.c.l.b16 %v8216
      %v8574 = vunpack.c.l.b16 %v8230
      %v8575 = vunpack.c.l.b16 %v8240
      %v8576 = vunpack.c.l.b16 %v8254
      %v8577 = vunpack.c.l.b16 %v8264
      %v8578 = vunpack.c.l.b16 %v8278
      %v8579 = vunpack.c.l.b16 %v8288
      %v8580 = vunpack.c.l.b16 %v8302
      %v8581 = vunpack.c.l.b16 %v8312
      %v8582 = vunpack.c.l.b16 %v8326
      %v8583 = vunpack.c.l.b16 %v8336
      %v8584 = vunpack.c.l.b16 %v8350
      %v8585 = vunpack.c.l.b16 %v8360
      %v8586 = vunpack.c.l.b16 %v8374
      %v8587 = vunpack.c.l.b16 %v8384
      %v8588 = vunpack.c.l.b16 %v8398
      %v8589 = vunpack.c.l.b16 %v8408
      %v8590 = vunpack.c.l.b16 %v8422
      %v8591 = vunpack.c.l.b16 %v8432
      %v8592 = vunpack.c.l.b16 %v8446
      %v8593 = vunpack.c.l.b16 %v8456
      %v8594 = vunpack.c.l.b16 %v8470
      %v8595 = vunpack.c.l.b16 %v8480
      %v8596 = vunpack.c.l.b16 %v8494
      %v8597 = vunpack.c.l.b16 %v8504
      %v8598 = vunpack.c.l.b16 %v8518
      %v8599 = vunpack.c.l.b16 %v8528
      %v8600 = vunpack.c.l.b16 %v8542
      %v8601 = vunpack.c.l.b16 %v8552
      %v8602 = vpack.c.b16 %v8571, %v8570
      %v8603 = vpack.c.b16 %v8573, %v8572
      %v8604 = vpack.c.b16 %v8575, %v8574
      %v8605 = vpack.c.b16 %v8577, %v8576
      %v8606 = vpack.c.b16 %v8579, %v8578
      %v8607 = vpack.c.b16 %v8581, %v8580
      %v8608 = vpack.c.b16 %v8583, %v8582
      %v8609 = vpack.c.b16 %v8585, %v8584
      %v8610 = vpack.c.b16 %v8587, %v8586
      %v8611 = vpack.c.b16 %v8589, %v8588
      %v8612 = vpack.c.b16 %v8591, %v8590
      %v8613 = vpack.c.b16 %v8593, %v8592
      %v8614 = vpack.c.b16 %v8595, %v8594
      %v8615 = vpack.c.b16 %v8597, %v8596
      %v8616 = vpack.c.b16 %v8599, %v8598
      %v8617 = vpack.c.b16 %v8601, %v8600
      %v8650 = vunpack.c.l.b16 %v8554
      %v8651 = vunpack.c.l.b16 %v8555
      %v8652 = vunpack.c.l.b16 %v8556
      %v8653 = vunpack.c.l.b16 %v8557
      %v8654 = vunpack.c.l.b16 %v8558
      %v8655 = vunpack.c.l.b16 %v8559
      %v8656 = vunpack.c.l.b16 %v8560
      %v8657 = vunpack.c.l.b16 %v8561
      %v8658 = vunpack.c.l.b16 %v8562
      %v8659 = vunpack.c.l.b16 %v8563
      %v8660 = vunpack.c.l.b16 %v8564
      %v8661 = vunpack.c.l.b16 %v8565
      %v8662 = vunpack.c.l.b16 %v8566
      %v8663 = vunpack.c.l.b16 %v8567
      %v8664 = vunpack.c.l.b16 %v8568
      %v8665 = vunpack.c.l.b16 %v8569
      %v8666 = vpack.c.b16 %v8651, %v8650
      %v8667 = vpack.c.b16 %v8653, %v8652
      %v8668 = vpack.c.b16 %v8655, %v8654
      %v8669 = vpack.c.b16 %v8657, %v8656
      %v8670 = vpack.c.b16 %v8659, %v8658
      %v8671 = vpack.c.b16 %v8661, %v8660
      %v8672 = vpack.c.b16 %v8663, %v8662
      %v8673 = vpack.c.b16 %v8665, %v8664
      %8682 = vmatprep.subr.bf16.mxu0 0
      %8683 = vmatpush1.bf16.msra.mxu0 %v8673
      %8684 = vmatprep.subr.bf16.mxu0 0
      %8685 = vmatpush1.bf16.msra.mxu0 %v8672
      %8686 = vmatprep.subr.bf16.mxu0 0
      %8687 = vmatpush1.bf16.msra.mxu0 %v8671
      %8688 = vmatprep.subr.bf16.mxu0 0
      %8689 = vmatpush1.bf16.msra.mxu0 %v8670
      %8690 = vmatprep.subr.bf16.mxu0 0
      %8691 = vmatpush1.bf16.msra.mxu0 %v8669
      %8692 = vmatprep.subr.bf16.mxu0 0
      %8693 = vmatpush1.bf16.msra.mxu0 %v8668
      %8694 = vmatprep.subr.bf16.mxu0 0
      %8695 = vmatpush1.bf16.msra.mxu0 %v8667
      %8696 = vmatprep.subr.bf16.mxu0 0
      %8697 = vmatpush1.bf16.msra.mxu0 %v8666
      %8698 = vmatprep.subr.bf16.mxu0 0
      %8699 = vmatpush2.bf16.msra.mxu0 0
      %8700 = vmatprep.subr.bf16.mxu0 0
      %8701 = vmatpush2.bf16.msra.mxu0 0
      %8702 = vmatprep.subr.bf16.mxu0 0
      %8703 = vmatpush2.bf16.msra.mxu0 0
      %8704 = vmatprep.subr.bf16.mxu0 0
      %8705 = vmatpush2.bf16.msra.mxu0 0
      %8706 = vmatprep.subr.bf16.mxu0 0
      %8707 = vmatpush2.bf16.msra.mxu0 0
      %8708 = vmatprep.subr.bf16.mxu0 0
      %8709 = vmatpush2.bf16.msra.mxu0 0
      %8710 = vmatprep.subr.bf16.mxu0 0
      %8711 = vmatpush2.bf16.msra.mxu0 0
      %8712 = vmatprep.subr.bf16.mxu0 0
      %8713 = vmatpush2.bf16.msra.mxu0 0
      %8714 = vmatprep.mubr.bf16.mxu0 0
      %8715 = vmatmul.mubr.bf16.gmra.mxu0 %v8602
      %v8716 = vpop.f32.mrf.mxu0
      %v8717 = vadd.f32 0.0, %v8716
      %v8718 = vpop.f32.mrf.mxu0
      %v8719 = vpop.f32.mrf.mxu0
      %v8720 = vadd.f32 0.0, %v8719
      %v8721 = vpop.f32.mrf.mxu0
      %8722 = vmatprep.mubr.bf16.mxu0 0
      %8723 = vmatmul.mubr.bf16.gmra.mxu0 %v8603
      %v8724 = vpop.f32.mrf.mxu0
      %v8725 = vadd.f32 0.0, %v8724
      %v8726 = vpop.f32.mrf.mxu0
      %v8727 = vpop.f32.mrf.mxu0
      %v8728 = vadd.f32 0.0, %v8727
      %v8729 = vpop.f32.mrf.mxu0
      %8730 = vmatprep.mubr.bf16.mxu0 0
      %8731 = vmatmul.mubr.bf16.gmra.mxu0 %v8604
      %v8732 = vpop.f32.mrf.mxu0
      %v8733 = vadd.f32 0.0, %v8732
      %v8734 = vpop.f32.mrf.mxu0
      %v8735 = vpop.f32.mrf.mxu0
      %v8736 = vadd.f32 0.0, %v8735
      %v8737 = vpop.f32.mrf.mxu0
      %8738 = vmatprep.mubr.bf16.mxu0 0
      %8739 = vmatmul.mubr.bf16.gmra.mxu0 %v8605
      %v8740 = vpop.f32.mrf.mxu0
      %v8741 = vadd.f32 0.0, %v8740
      %v8742 = vpop.f32.mrf.mxu0
      %v8743 = vpop.f32.mrf.mxu0
      %v8744 = vadd.f32 0.0, %v8743
      %v8745 = vpop.f32.mrf.mxu0
      %8746 = vmatprep.mubr.bf16.mxu0 0
      %8747 = vmatmul.mubr.bf16.gmra.mxu0 %v8606
      %v8748 = vpop.f32.mrf.mxu0
      %v8749 = vadd.f32 0.0, %v8748
      %v8750 = vpop.f32.mrf.mxu0
      %v8751 = vpop.f32.mrf.mxu0
      %v8752 = vadd.f32 0.0, %v8751
      %v8753 = vpop.f32.mrf.mxu0
      %8754 = vmatprep.mubr.bf16.mxu0 0
      %8755 = vmatmul.mubr.bf16.gmra.mxu0 %v8607
      %v8756 = vpop.f32.mrf.mxu0
      %v8757 = vadd.f32 0.0, %v8756
      %v8758 = vpop.f32.mrf.mxu0
      %v8759 = vpop.f32.mrf.mxu0
      %v8760 = vadd.f32 0.0, %v8759
      %v8761 = vpop.f32.mrf.mxu0
      %8762 = vmatprep.mubr.bf16.mxu0 0
      %8763 = vmatmul.mubr.bf16.gmra.mxu0 %v8608
      %v8764 = vpop.f32.mrf.mxu0
      %v8765 = vadd.f32 0.0, %v8764
      %v8766 = vpop.f32.mrf.mxu0
      %v8767 = vpop.f32.mrf.mxu0
      %v8768 = vadd.f32 0.0, %v8767
      %v8769 = vpop.f32.mrf.mxu0
      %8770 = vmatprep.mubr.bf16.mxu0 0
      %8771 = vmatmul.mubr.bf16.gmra.mxu0 %v8609
      %v8772 = vpop.f32.mrf.mxu0
      %v8773 = vadd.f32 0.0, %v8772
      %v8774 = vpop.f32.mrf.mxu0
      %v8775 = vpop.f32.mrf.mxu0
      %v8776 = vadd.f32 0.0, %v8775
      %v8777 = vpop.f32.mrf.mxu0
      %8778 = vmatprep.mubr.bf16.mxu0 0
      %8779 = vmatmul.mubr.bf16.gmra.mxu0 %v8610
      %v8780 = vpop.f32.mrf.mxu0
      %v8781 = vadd.f32 0.0, %v8780
      %v8782 = vpop.f32.mrf.mxu0
      %v8783 = vpop.f32.mrf.mxu0
      %v8784 = vadd.f32 0.0, %v8783
      %v8785 = vpop.f32.mrf.mxu0
      %8786 = vmatprep.mubr.bf16.mxu0 0
      %8787 = vmatmul.mubr.bf16.gmra.mxu0 %v8611
      %v8788 = vpop.f32.mrf.mxu0
      %v8789 = vadd.f32 0.0, %v8788
      %v8790 = vpop.f32.mrf.mxu0
      %v8791 = vpop.f32.mrf.mxu0
      %v8792 = vadd.f32 0.0, %v8791
      %v8793 = vpop.f32.mrf.mxu0
      %8794 = vmatprep.mubr.bf16.mxu0 0
      %8795 = vmatmul.mubr.bf16.gmra.mxu0 %v8612
      %v8796 = vpop.f32.mrf.mxu0
      %v8797 = vadd.f32 0.0, %v8796
      %v8798 = vpop.f32.mrf.mxu0
      %v8799 = vpop.f32.mrf.mxu0
      %v8800 = vadd.f32 0.0, %v8799
      %v8801 = vpop.f32.mrf.mxu0
      %8802 = vmatprep.mubr.bf16.mxu0 0
      %8803 = vmatmul.mubr.bf16.gmra.mxu0 %v8613
      %v8804 = vpop.f32.mrf.mxu0
      %v8805 = vadd.f32 0.0, %v8804
      %v8806 = vpop.f32.mrf.mxu0
      %v8807 = vpop.f32.mrf.mxu0
      %v8808 = vadd.f32 0.0, %v8807
      %v8809 = vpop.f32.mrf.mxu0
      %8810 = vmatprep.mubr.bf16.mxu0 0
      %8811 = vmatmul.mubr.bf16.gmra.mxu0 %v8614
      %v8812 = vpop.f32.mrf.mxu0
      %v8813 = vadd.f32 0.0, %v8812
      %v8814 = vpop.f32.mrf.mxu0
      %v8815 = vpop.f32.mrf.mxu0
      %v8816 = vadd.f32 0.0, %v8815
      %v8817 = vpop.f32.mrf.mxu0
      %8818 = vmatprep.mubr.bf16.mxu0 0
      %8819 = vmatmul.mubr.bf16.gmra.mxu0 %v8615
      %v8820 = vpop.f32.mrf.mxu0
      %v8821 = vadd.f32 0.0, %v8820
      %v8822 = vpop.f32.mrf.mxu0
      %v8823 = vpop.f32.mrf.mxu0
      %v8824 = vadd.f32 0.0, %v8823
      %v8825 = vpop.f32.mrf.mxu0
      %8826 = vmatprep.mubr.bf16.mxu0 0
      %8827 = vmatmul.mubr.bf16.gmra.mxu0 %v8616
      %v8828 = vpop.f32.mrf.mxu0
      %v8829 = vadd.f32 0.0, %v8828
      %v8830 = vpop.f32.mrf.mxu0
      %v8831 = vpop.f32.mrf.mxu0
      %v8832 = vadd.f32 0.0, %v8831
      %v8833 = vpop.f32.mrf.mxu0
      %8834 = vmatprep.mubr.bf16.mxu0 0
      %8835 = vmatmul.mubr.bf16.gmra.mxu0 %v8617
      %v8836 = vpop.f32.mrf.mxu0
      %v8837 = vadd.f32 0.0, %v8836
      %v8838 = vpop.f32.mrf.mxu0
      %v8839 = vpop.f32.mrf.mxu0
      %v8840 = vadd.f32 0.0, %v8839
      %v8841 = vpop.f32.mrf.mxu0
      %8842 = vdwg.mxu0
      %v8843 = vadd.f32 %v7995, %v8717
      %v8844 = vadd.f32 %v7998, %v8720
      %v8845 = vadd.f32 %v8003, %v8725
      %v8846 = vadd.f32 %v8006, %v8728
      %v8847 = vadd.f32 %v8011, %v8733
      %v8848 = vadd.f32 %v8014, %v8736
      %v8849 = vadd.f32 %v8019, %v8741
      %v8850 = vadd.f32 %v8022, %v8744
      %v8851 = vadd.f32 %v8027, %v8749
      %v8852 = vadd.f32 %v8030, %v8752
      %v8853 = vadd.f32 %v8035, %v8757
      %v8854 = vadd.f32 %v8038, %v8760
      %v8855 = vadd.f32 %v8043, %v8765
      %v8856 = vadd.f32 %v8046, %v8768
      %v8857 = vadd.f32 %v8051, %v8773
      %v8858 = vadd.f32 %v8054, %v8776
      %v8859 = vadd.f32 %v8059, %v8781
      %v8860 = vadd.f32 %v8062, %v8784
      %v8861 = vadd.f32 %v8067, %v8789
      %v8862 = vadd.f32 %v8070, %v8792
      %v8863 = vadd.f32 %v8075, %v8797
      %v8864 = vadd.f32 %v8078, %v8800
      %v8865 = vadd.f32 %v8083, %v8805
      %v8866 = vadd.f32 %v8086, %v8808
      %v8867 = vadd.f32 %v8091, %v8813
      %v8868 = vadd.f32 %v8094, %v8816
      %v8869 = vadd.f32 %v8099, %v8821
      %v8870 = vadd.f32 %v8102, %v8824
      %v8871 = vadd.f32 %v8107, %v8829
      %v8872 = vadd.f32 %v8110, %v8832
      %v8873 = vadd.f32 %v8115, %v8837
      %v8874 = vadd.f32 %v8118, %v8840
      %s8875 = scalar_lea.vmem [#allocation4], 16
      %v8876 = vld [vmem:[%s8875] sm:$0x8]
      %v8877 = vld [vmem:[%s8875 + $0x4] sm:$0xf]
      %v8878 = vld [vmem:[%s8875 + $0x8] sm:$0xf]
      %v8879 = vld [vmem:[%s8875 + $0x10] sm:$0x8]
      %v8880 = vld [vmem:[%s8875 + $0x14] sm:$0xf]
      %v8881 = vld [vmem:[%s8875 + $0x18] sm:$0xf]
      %v8882 = vld [vmem:[%s8875 + $0x20] sm:$0x8]
      %v8883 = vld [vmem:[%s8875 + $0x24] sm:$0xf]
      %v8884 = vld [vmem:[%s8875 + $0x28] sm:$0xf]
      %v8885 = vld [vmem:[%s8875 + $0x30] sm:$0x8]
      %v8886 = vld [vmem:[%s8875 + $0x34] sm:$0xf]
      %v8887 = vld [vmem:[%s8875 + $0x38] sm:$0xf]
      %v8888 = vld [vmem:[%s8875 + $0x40] sm:$0x8]
      %v8889 = vld [vmem:[%s8875 + $0x44] sm:$0xf]
      %v8890 = vld [vmem:[%s8875 + $0x48] sm:$0xf]
      %v8891 = vld [vmem:[%s8875 + $0x50] sm:$0x8]
      %v8892 = vld [vmem:[%s8875 + $0x54] sm:$0xf]
      %v8893 = vld [vmem:[%s8875 + $0x58] sm:$0xf]
      %v8894 = vld [vmem:[%s8875 + $0x60] sm:$0x8]
      %v8895 = vld [vmem:[%s8875 + $0x64] sm:$0xf]
      %v8896 = vld [vmem:[%s8875 + $0x68] sm:$0xf]
      %v8897 = vld [vmem:[%s8875 + $0x70] sm:$0x8]
      %v8898 = vld [vmem:[%s8875 + $0x74] sm:$0xf]
      %v8899 = vld [vmem:[%s8875 + $0x78] sm:$0xf]
      %v8900 = vld [vmem:[%s8875 + $0x80] sm:$0x8]
      %v8901 = vld [vmem:[%s8875 + $0x84] sm:$0xf]
      %v8902 = vld [vmem:[%s8875 + $0x88] sm:$0xf]
      %v8903 = vld [vmem:[%s8875 + $0x90] sm:$0x8]
      %v8904 = vld [vmem:[%s8875 + $0x94] sm:$0xf]
      %v8905 = vld [vmem:[%s8875 + $0x98] sm:$0xf]
      %v8906 = vld [vmem:[%s8875 + $0xa0] sm:$0x8]
      %v8907 = vld [vmem:[%s8875 + $0xa4] sm:$0xf]
      %v8908 = vld [vmem:[%s8875 + $0xa8] sm:$0xf]
      %v8909 = vld [vmem:[%s8875 + $0xb0] sm:$0x8]
      %v8910 = vld [vmem:[%s8875 + $0xb4] sm:$0xf]
      %v8911 = vld [vmem:[%s8875 + $0xb8] sm:$0xf]
      %v8912 = vld [vmem:[%s8875 + $0xc0] sm:$0x8]
      %v8913 = vld [vmem:[%s8875 + $0xc4] sm:$0xf]
      %v8914 = vld [vmem:[%s8875 + $0xc8] sm:$0xf]
      %v8915 = vld [vmem:[%s8875 + $0xd0] sm:$0x8]
      %v8916 = vld [vmem:[%s8875 + $0xd4] sm:$0xf]
      %v8917 = vld [vmem:[%s8875 + $0xd8] sm:$0xf]
      %v8918 = vld [vmem:[%s8875 + $0xe0] sm:$0x8]
      %v8919 = vld [vmem:[%s8875 + $0xe4] sm:$0xf]
      %v8920 = vld [vmem:[%s8875 + $0xe8] sm:$0xf]
      %v8921 = vld [vmem:[%s8875 + $0xf0] sm:$0x8]
      %v8922 = vld [vmem:[%s8875 + $0xf4] sm:$0xf]
      %v8923 = vld [vmem:[%s8875 + $0xf8] sm:$0xf]
      %v8925 = vshrl.u32 %v8876, 16
      %v8927 = vrot.slane %v8925, 7
      %v8928 = vrot.slane %v8927, 4
      %v8930 = vshrl.u32 %v8877, 16
      %v8932 = vrot.slane %v8930, 7
      %v8933 = vshll.u32 %v8877, 16
      %v8935 = vor.u32 %v8932, %v8933
      %v8936 = vsel %vm7157, %v8928, %v8935
      %v8937 = vrot.slane %v8932, 4
      %v8939 = vshrl.u32 %v8878, 16
      %v8941 = vrot.slane %v8939, 7
      %v8942 = vshll.u32 %v8878, 16
      %v8944 = vor.u32 %v8941, %v8942
      %v8945 = vsel %vm7157, %v8937, %v8944
      %v8947 = vshrl.u32 %v8879, 16
      %v8949 = vrot.slane %v8947, 7
      %v8950 = vrot.slane %v8949, 4
      %v8952 = vshrl.u32 %v8880, 16
      %v8954 = vrot.slane %v8952, 7
      %v8955 = vshll.u32 %v8880, 16
      %v8957 = vor.u32 %v8954, %v8955
      %v8958 = vsel %vm7157, %v8950, %v8957
      %v8959 = vrot.slane %v8954, 4
      %v8961 = vshrl.u32 %v8881, 16
      %v8963 = vrot.slane %v8961, 7
      %v8964 = vshll.u32 %v8881, 16
      %v8966 = vor.u32 %v8963, %v8964
      %v8967 = vsel %vm7157, %v8959, %v8966
      %v8969 = vshrl.u32 %v8882, 16
      %v8971 = vrot.slane %v8969, 7
      %v8972 = vrot.slane %v8971, 4
      %v8974 = vshrl.u32 %v8883, 16
      %v8976 = vrot.slane %v8974, 7
      %v8977 = vshll.u32 %v8883, 16
      %v8979 = vor.u32 %v8976, %v8977
      %v8980 = vsel %vm7157, %v8972, %v8979
      %v8981 = vrot.slane %v8976, 4
      %v8983 = vshrl.u32 %v8884, 16
      %v8985 = vrot.slane %v8983, 7
      %v8986 = vshll.u32 %v8884, 16
      %v8988 = vor.u32 %v8985, %v8986
      %v8989 = vsel %vm7157, %v8981, %v8988
      %v8991 = vshrl.u32 %v8885, 16
      %v8993 = vrot.slane %v8991, 7
      %v8994 = vrot.slane %v8993, 4
      %v8996 = vshrl.u32 %v8886, 16
      %v8998 = vrot.slane %v8996, 7
      %v8999 = vshll.u32 %v8886, 16
      %v9001 = vor.u32 %v8998, %v8999
      %v9002 = vsel %vm7157, %v8994, %v9001
      %v9003 = vrot.slane %v8998, 4
      %v9005 = vshrl.u32 %v8887, 16
      %v9007 = vrot.slane %v9005, 7
      %v9008 = vshll.u32 %v8887, 16
      %v9010 = vor.u32 %v9007, %v9008
      %v9011 = vsel %vm7157, %v9003, %v9010
      %v9013 = vshrl.u32 %v8888, 16
      %v9015 = vrot.slane %v9013, 7
      %v9016 = vrot.slane %v9015, 4
      %v9018 = vshrl.u32 %v8889, 16
      %v9020 = vrot.slane %v9018, 7
      %v9021 = vshll.u32 %v8889, 16
      %v9023 = vor.u32 %v9020, %v9021
      %v9024 = vsel %vm7157, %v9016, %v9023
      %v9025 = vrot.slane %v9020, 4
      %v9027 = vshrl.u32 %v8890, 16
      %v9029 = vrot.slane %v9027, 7
      %v9030 = vshll.u32 %v8890, 16
      %v9032 = vor.u32 %v9029, %v9030
      %v9033 = vsel %vm7157, %v9025, %v9032
      %v9035 = vshrl.u32 %v8891, 16
      %v9037 = vrot.slane %v9035, 7
      %v9038 = vrot.slane %v9037, 4
      %v9040 = vshrl.u32 %v8892, 16
      %v9042 = vrot.slane %v9040, 7
      %v9043 = vshll.u32 %v8892, 16
      %v9045 = vor.u32 %v9042, %v9043
      %v9046 = vsel %vm7157, %v9038, %v9045
      %v9047 = vrot.slane %v9042, 4
      %v9049 = vshrl.u32 %v8893, 16
      %v9051 = vrot.slane %v9049, 7
      %v9052 = vshll.u32 %v8893, 16
      %v9054 = vor.u32 %v9051, %v9052
      %v9055 = vsel %vm7157, %v9047, %v9054
      %v9057 = vshrl.u32 %v8894, 16
      %v9059 = vrot.slane %v9057, 7
      %v9060 = vrot.slane %v9059, 4
      %v9062 = vshrl.u32 %v8895, 16
      %v9064 = vrot.slane %v9062, 7
      %v9065 = vshll.u32 %v8895, 16
      %v9067 = vor.u32 %v9064, %v9065
      %v9068 = vsel %vm7157, %v9060, %v9067
      %v9069 = vrot.slane %v9064, 4
      %v9071 = vshrl.u32 %v8896, 16
      %v9073 = vrot.slane %v9071, 7
      %v9074 = vshll.u32 %v8896, 16
      %v9076 = vor.u32 %v9073, %v9074
      %v9077 = vsel %vm7157, %v9069, %v9076
      %v9079 = vshrl.u32 %v8897, 16
      %v9081 = vrot.slane %v9079, 7
      %v9082 = vrot.slane %v9081, 4
      %v9084 = vshrl.u32 %v8898, 16
      %v9086 = vrot.slane %v9084, 7
      %v9087 = vshll.u32 %v8898, 16
      %v9089 = vor.u32 %v9086, %v9087
      %v9090 = vsel %vm7157, %v9082, %v9089
      %v9091 = vrot.slane %v9086, 4
      %v9093 = vshrl.u32 %v8899, 16
      %v9095 = vrot.slane %v9093, 7
      %v9096 = vshll.u32 %v8899, 16
      %v9098 = vor.u32 %v9095, %v9096
      %v9099 = vsel %vm7157, %v9091, %v9098
      %v9101 = vshrl.u32 %v8900, 16
      %v9103 = vrot.slane %v9101, 7
      %v9104 = vrot.slane %v9103, 4
      %v9106 = vshrl.u32 %v8901, 16
      %v9108 = vrot.slane %v9106, 7
      %v9109 = vshll.u32 %v8901, 16
      %v9111 = vor.u32 %v9108, %v9109
      %v9112 = vsel %vm7157, %v9104, %v9111
      %v9113 = vrot.slane %v9108, 4
      %v9115 = vshrl.u32 %v8902, 16
      %v9117 = vrot.slane %v9115, 7
      %v9118 = vshll.u32 %v8902, 16
      %v9120 = vor.u32 %v9117, %v9118
      %v9121 = vsel %vm7157, %v9113, %v9120
      %v9123 = vshrl.u32 %v8903, 16
      %v9125 = vrot.slane %v9123, 7
      %v9126 = vrot.slane %v9125, 4
      %v9128 = vshrl.u32 %v8904, 16
      %v9130 = vrot.slane %v9128, 7
      %v9131 = vshll.u32 %v8904, 16
      %v9133 = vor.u32 %v9130, %v9131
      %v9134 = vsel %vm7157, %v9126, %v9133
      %v9135 = vrot.slane %v9130, 4
      %v9137 = vshrl.u32 %v8905, 16
      %v9139 = vrot.slane %v9137, 7
      %v9140 = vshll.u32 %v8905, 16
      %v9142 = vor.u32 %v9139, %v9140
      %v9143 = vsel %vm7157, %v9135, %v9142
      %v9145 = vshrl.u32 %v8906, 16
      %v9147 = vrot.slane %v9145, 7
      %v9148 = vrot.slane %v9147, 4
      %v9150 = vshrl.u32 %v8907, 16
      %v9152 = vrot.slane %v9150, 7
      %v9153 = vshll.u32 %v8907, 16
      %v9155 = vor.u32 %v9152, %v9153
      %v9156 = vsel %vm7157, %v9148, %v9155
      %v9157 = vrot.slane %v9152, 4
      %v9159 = vshrl.u32 %v8908, 16
      %v9161 = vrot.slane %v9159, 7
      %v9162 = vshll.u32 %v8908, 16
      %v9164 = vor.u32 %v9161, %v9162
      %v9165 = vsel %vm7157, %v9157, %v9164
      %v9167 = vshrl.u32 %v8909, 16
      %v9169 = vrot.slane %v9167, 7
      %v9170 = vrot.slane %v9169, 4
      %v9172 = vshrl.u32 %v8910, 16
      %v9174 = vrot.slane %v9172, 7
      %v9175 = vshll.u32 %v8910, 16
      %v9177 = vor.u32 %v9174, %v9175
      %v9178 = vsel %vm7157, %v9170, %v9177
      %v9179 = vrot.slane %v9174, 4
      %v9181 = vshrl.u32 %v8911, 16
      %v9183 = vrot.slane %v9181, 7
      %v9184 = vshll.u32 %v8911, 16
      %v9186 = vor.u32 %v9183, %v9184
      %v9187 = vsel %vm7157, %v9179, %v9186
      %v9189 = vshrl.u32 %v8912, 16
      %v9191 = vrot.slane %v9189, 7
      %v9192 = vrot.slane %v9191, 4
      %v9194 = vshrl.u32 %v8913, 16
      %v9196 = vrot.slane %v9194, 7
      %v9197 = vshll.u32 %v8913, 16
      %v9199 = vor.u32 %v9196, %v9197
      %v9200 = vsel %vm7157, %v9192, %v9199
      %v9201 = vrot.slane %v9196, 4
      %v9203 = vshrl.u32 %v8914, 16
      %v9205 = vrot.slane %v9203, 7
      %v9206 = vshll.u32 %v8914, 16
      %v9208 = vor.u32 %v9205, %v9206
      %v9209 = vsel %vm7157, %v9201, %v9208
      %v9211 = vshrl.u32 %v8915, 16
      %v9213 = vrot.slane %v9211, 7
      %v9214 = vrot.slane %v9213, 4
      %v9216 = vshrl.u32 %v8916, 16
      %v9218 = vrot.slane %v9216, 7
      %v9219 = vshll.u32 %v8916, 16
      %v9221 = vor.u32 %v9218, %v9219
      %v9222 = vsel %vm7157, %v9214, %v9221
      %v9223 = vrot.slane %v9218, 4
      %v9225 = vshrl.u32 %v8917, 16
      %v9227 = vrot.slane %v9225, 7
      %v9228 = vshll.u32 %v8917, 16
      %v9230 = vor.u32 %v9227, %v9228
      %v9231 = vsel %vm7157, %v9223, %v9230
      %v9233 = vshrl.u32 %v8918, 16
      %v9235 = vrot.slane %v9233, 7
      %v9236 = vrot.slane %v9235, 4
      %v9238 = vshrl.u32 %v8919, 16
      %v9240 = vrot.slane %v9238, 7
      %v9241 = vshll.u32 %v8919, 16
      %v9243 = vor.u32 %v9240, %v9241
      %v9244 = vsel %vm7157, %v9236, %v9243
      %v9245 = vrot.slane %v9240, 4
      %v9247 = vshrl.u32 %v8920, 16
      %v9249 = vrot.slane %v9247, 7
      %v9250 = vshll.u32 %v8920, 16
      %v9252 = vor.u32 %v9249, %v9250
      %v9253 = vsel %vm7157, %v9245, %v9252
      %v9255 = vshrl.u32 %v8921, 16
      %v9257 = vrot.slane %v9255, 7
      %v9258 = vrot.slane %v9257, 4
      %v9260 = vshrl.u32 %v8922, 16
      %v9262 = vrot.slane %v9260, 7
      %v9263 = vshll.u32 %v8922, 16
      %v9265 = vor.u32 %v9262, %v9263
      %v9266 = vsel %vm7157, %v9258, %v9265
      %v9267 = vrot.slane %v9262, 4
      %v9269 = vshrl.u32 %v8923, 16
      %v9271 = vrot.slane %v9269, 7
      %v9272 = vshll.u32 %v8923, 16
      %v9274 = vor.u32 %v9271, %v9272
      %v9275 = vsel %vm7157, %v9267, %v9274
      %s9276 = scalar_lea.vmem %s4, 192
      %v9277 = vld [vmem:[%s9276] sm:$0xf]
      %v9278 = vld [vmem:[%s9276 + $0x4] sm:$0xf]
      %v9279 = vld [vmem:[%s9276 + $0x8] sm:$0xf]
      %v9280 = vld [vmem:[%s9276 + $0xc] sm:$0xf]
      %v9281 = vld [vmem:[%s9276 + $0x10] sm:$0xf]
      %v9282 = vld [vmem:[%s9276 + $0x14] sm:$0xf]
      %v9283 = vld [vmem:[%s9276 + $0x18] sm:$0xf]
      %v9284 = vld [vmem:[%s9276 + $0x1c] sm:$0xf]
      %v9285 = vld [vmem:[%s9276 + $0x20] sm:$0xf]
      %v9286 = vld [vmem:[%s9276 + $0x24] sm:$0xf]
      %v9287 = vld [vmem:[%s9276 + $0x28] sm:$0xf]
      %v9288 = vld [vmem:[%s9276 + $0x2c] sm:$0xf]
      %v9289 = vld [vmem:[%s9276 + $0x30] sm:$0xf]
      %v9290 = vld [vmem:[%s9276 + $0x34] sm:$0xf]
      %v9291 = vld [vmem:[%s9276 + $0x38] sm:$0xf]
      %v9292 = vld [vmem:[%s9276 + $0x3c] sm:$0xf]
      %v9293 = vunpack.c.l.b16 %v8936
      %v9294 = vunpack.c.l.b16 %v8945
      %v9295 = vunpack.c.l.b16 %v8958
      %v9296 = vunpack.c.l.b16 %v8967
      %v9297 = vunpack.c.l.b16 %v8980
      %v9298 = vunpack.c.l.b16 %v8989
      %v9299 = vunpack.c.l.b16 %v9002
      %v9300 = vunpack.c.l.b16 %v9011
      %v9301 = vunpack.c.l.b16 %v9024
      %v9302 = vunpack.c.l.b16 %v9033
      %v9303 = vunpack.c.l.b16 %v9046
      %v9304 = vunpack.c.l.b16 %v9055
      %v9305 = vunpack.c.l.b16 %v9068
      %v9306 = vunpack.c.l.b16 %v9077
      %v9307 = vunpack.c.l.b16 %v9090
      %v9308 = vunpack.c.l.b16 %v9099
      %v9309 = vunpack.c.l.b16 %v9112
      %v9310 = vunpack.c.l.b16 %v9121
      %v9311 = vunpack.c.l.b16 %v9134
      %v9312 = vunpack.c.l.b16 %v9143
      %v9313 = vunpack.c.l.b16 %v9156
      %v9314 = vunpack.c.l.b16 %v9165
      %v9315 = vunpack.c.l.b16 %v9178
      %v9316 = vunpack.c.l.b16 %v9187
      %v9317 = vunpack.c.l.b16 %v9200
      %v9318 = vunpack.c.l.b16 %v9209
      %v9319 = vunpack.c.l.b16 %v9222
      %v9320 = vunpack.c.l.b16 %v9231
      %v9321 = vunpack.c.l.b16 %v9244
      %v9322 = vunpack.c.l.b16 %v9253
      %v9323 = vunpack.c.l.b16 %v9266
      %v9324 = vunpack.c.l.b16 %v9275
      %v9325 = vpack.c.b16 %v9294, %v9293
      %v9326 = vpack.c.b16 %v9296, %v9295
      %v9327 = vpack.c.b16 %v9298, %v9297
      %v9328 = vpack.c.b16 %v9300, %v9299
      %v9329 = vpack.c.b16 %v9302, %v9301
      %v9330 = vpack.c.b16 %v9304, %v9303
      %v9331 = vpack.c.b16 %v9306, %v9305
      %v9332 = vpack.c.b16 %v9308, %v9307
      %v9333 = vpack.c.b16 %v9310, %v9309
      %v9334 = vpack.c.b16 %v9312, %v9311
      %v9335 = vpack.c.b16 %v9314, %v9313
      %v9336 = vpack.c.b16 %v9316, %v9315
      %v9337 = vpack.c.b16 %v9318, %v9317
      %v9338 = vpack.c.b16 %v9320, %v9319
      %v9339 = vpack.c.b16 %v9322, %v9321
      %v9340 = vpack.c.b16 %v9324, %v9323
      %v9373 = vunpack.c.l.b16 %v9277
      %v9374 = vunpack.c.l.b16 %v9278
      %v9375 = vunpack.c.l.b16 %v9279
      %v9376 = vunpack.c.l.b16 %v9280
      %v9377 = vunpack.c.l.b16 %v9281
      %v9378 = vunpack.c.l.b16 %v9282
      %v9379 = vunpack.c.l.b16 %v9283
      %v9380 = vunpack.c.l.b16 %v9284
      %v9381 = vunpack.c.l.b16 %v9285
      %v9382 = vunpack.c.l.b16 %v9286
      %v9383 = vunpack.c.l.b16 %v9287
      %v9384 = vunpack.c.l.b16 %v9288
      %v9385 = vunpack.c.l.b16 %v9289
      %v9386 = vunpack.c.l.b16 %v9290
      %v9387 = vunpack.c.l.b16 %v9291
      %v9388 = vunpack.c.l.b16 %v9292
      %v9389 = vpack.c.b16 %v9374, %v9373
      %v9390 = vpack.c.b16 %v9376, %v9375
      %v9391 = vpack.c.b16 %v9378, %v9377
      %v9392 = vpack.c.b16 %v9380, %v9379
      %v9393 = vpack.c.b16 %v9382, %v9381
      %v9394 = vpack.c.b16 %v9384, %v9383
      %v9395 = vpack.c.b16 %v9386, %v9385
      %v9396 = vpack.c.b16 %v9388, %v9387
      %9405 = vmatprep.subr.bf16.mxu0 0
      %9406 = vmatpush1.bf16.msra.mxu0 %v9396
      %9407 = vmatprep.subr.bf16.mxu0 0
      %9408 = vmatpush1.bf16.msra.mxu0 %v9395
      %9409 = vmatprep.subr.bf16.mxu0 0
      %9410 = vmatpush1.bf16.msra.mxu0 %v9394
      %9411 = vmatprep.subr.bf16.mxu0 0
      %9412 = vmatpush1.bf16.msra.mxu0 %v9393
      %9413 = vmatprep.subr.bf16.mxu0 0
      %9414 = vmatpush1.bf16.msra.mxu0 %v9392
      %9415 = vmatprep.subr.bf16.mxu0 0
      %9416 = vmatpush1.bf16.msra.mxu0 %v9391
      %9417 = vmatprep.subr.bf16.mxu0 0
      %9418 = vmatpush1.bf16.msra.mxu0 %v9390
      %9419 = vmatprep.subr.bf16.mxu0 0
      %9420 = vmatpush1.bf16.msra.mxu0 %v9389
      %9421 = vmatprep.subr.bf16.mxu0 0
      %9422 = vmatpush2.bf16.msra.mxu0 0
      %9423 = vmatprep.subr.bf16.mxu0 0
      %9424 = vmatpush2.bf16.msra.mxu0 0
      %9425 = vmatprep.subr.bf16.mxu0 0
      %9426 = vmatpush2.bf16.msra.mxu0 0
      %9427 = vmatprep.subr.bf16.mxu0 0
      %9428 = vmatpush2.bf16.msra.mxu0 0
      %9429 = vmatprep.subr.bf16.mxu0 0
      %9430 = vmatpush2.bf16.msra.mxu0 0
      %9431 = vmatprep.subr.bf16.mxu0 0
      %9432 = vmatpush2.bf16.msra.mxu0 0
      %9433 = vmatprep.subr.bf16.mxu0 0
      %9434 = vmatpush2.bf16.msra.mxu0 0
      %9435 = vmatprep.subr.bf16.mxu0 0
      %9436 = vmatpush2.bf16.msra.mxu0 0
      %9437 = vmatprep.mubr.bf16.mxu0 0
      %9438 = vmatmul.mubr.bf16.gmra.mxu0 %v9325
      %v9439 = vpop.f32.mrf.mxu0
      %v9440 = vadd.f32 0.0, %v9439
      %v9441 = vpop.f32.mrf.mxu0
      %v9442 = vpop.f32.mrf.mxu0
      %v9443 = vadd.f32 0.0, %v9442
      %v9444 = vpop.f32.mrf.mxu0
      %9445 = vmatprep.mubr.bf16.mxu0 0
      %9446 = vmatmul.mubr.bf16.gmra.mxu0 %v9326
      %v9447 = vpop.f32.mrf.mxu0
      %v9448 = vadd.f32 0.0, %v9447
      %v9449 = vpop.f32.mrf.mxu0
      %v9450 = vpop.f32.mrf.mxu0
      %v9451 = vadd.f32 0.0, %v9450
      %v9452 = vpop.f32.mrf.mxu0
      %9453 = vmatprep.mubr.bf16.mxu0 0
      %9454 = vmatmul.mubr.bf16.gmra.mxu0 %v9327
      %v9455 = vpop.f32.mrf.mxu0
      %v9456 = vadd.f32 0.0, %v9455
      %v9457 = vpop.f32.mrf.mxu0
      %v9458 = vpop.f32.mrf.mxu0
      %v9459 = vadd.f32 0.0, %v9458
      %v9460 = vpop.f32.mrf.mxu0
      %9461 = vmatprep.mubr.bf16.mxu0 0
      %9462 = vmatmul.mubr.bf16.gmra.mxu0 %v9328
      %v9463 = vpop.f32.mrf.mxu0
      %v9464 = vadd.f32 0.0, %v9463
      %v9465 = vpop.f32.mrf.mxu0
      %v9466 = vpop.f32.mrf.mxu0
      %v9467 = vadd.f32 0.0, %v9466
      %v9468 = vpop.f32.mrf.mxu0
      %9469 = vmatprep.mubr.bf16.mxu0 0
      %9470 = vmatmul.mubr.bf16.gmra.mxu0 %v9329
      %v9471 = vpop.f32.mrf.mxu0
      %v9472 = vadd.f32 0.0, %v9471
      %v9473 = vpop.f32.mrf.mxu0
      %v9474 = vpop.f32.mrf.mxu0
      %v9475 = vadd.f32 0.0, %v9474
      %v9476 = vpop.f32.mrf.mxu0
      %9477 = vmatprep.mubr.bf16.mxu0 0
      %9478 = vmatmul.mubr.bf16.gmra.mxu0 %v9330
      %v9479 = vpop.f32.mrf.mxu0
      %v9480 = vadd.f32 0.0, %v9479
      %v9481 = vpop.f32.mrf.mxu0
      %v9482 = vpop.f32.mrf.mxu0
      %v9483 = vadd.f32 0.0, %v9482
      %v9484 = vpop.f32.mrf.mxu0
      %9485 = vmatprep.mubr.bf16.mxu0 0
      %9486 = vmatmul.mubr.bf16.gmra.mxu0 %v9331
      %v9487 = vpop.f32.mrf.mxu0
      %v9488 = vadd.f32 0.0, %v9487
      %v9489 = vpop.f32.mrf.mxu0
      %v9490 = vpop.f32.mrf.mxu0
      %v9491 = vadd.f32 0.0, %v9490
      %v9492 = vpop.f32.mrf.mxu0
      %9493 = vmatprep.mubr.bf16.mxu0 0
      %9494 = vmatmul.mubr.bf16.gmra.mxu0 %v9332
      %v9495 = vpop.f32.mrf.mxu0
      %v9496 = vadd.f32 0.0, %v9495
      %v9497 = vpop.f32.mrf.mxu0
      %v9498 = vpop.f32.mrf.mxu0
      %v9499 = vadd.f32 0.0, %v9498
      %v9500 = vpop.f32.mrf.mxu0
      %9501 = vmatprep.mubr.bf16.mxu0 0
      %9502 = vmatmul.mubr.bf16.gmra.mxu0 %v9333
      %v9503 = vpop.f32.mrf.mxu0
      %v9504 = vadd.f32 0.0, %v9503
      %v9505 = vpop.f32.mrf.mxu0
      %v9506 = vpop.f32.mrf.mxu0
      %v9507 = vadd.f32 0.0, %v9506
      %v9508 = vpop.f32.mrf.mxu0
      %9509 = vmatprep.mubr.bf16.mxu0 0
      %9510 = vmatmul.mubr.bf16.gmra.mxu0 %v9334
      %v9511 = vpop.f32.mrf.mxu0
      %v9512 = vadd.f32 0.0, %v9511
      %v9513 = vpop.f32.mrf.mxu0
      %v9514 = vpop.f32.mrf.mxu0
      %v9515 = vadd.f32 0.0, %v9514
      %v9516 = vpop.f32.mrf.mxu0
      %9517 = vmatprep.mubr.bf16.mxu0 0
      %9518 = vmatmul.mubr.bf16.gmra.mxu0 %v9335
      %v9519 = vpop.f32.mrf.mxu0
      %v9520 = vadd.f32 0.0, %v9519
      %v9521 = vpop.f32.mrf.mxu0
      %v9522 = vpop.f32.mrf.mxu0
      %v9523 = vadd.f32 0.0, %v9522
      %v9524 = vpop.f32.mrf.mxu0
      %9525 = vmatprep.mubr.bf16.mxu0 0
      %9526 = vmatmul.mubr.bf16.gmra.mxu0 %v9336
      %v9527 = vpop.f32.mrf.mxu0
      %v9528 = vadd.f32 0.0, %v9527
      %v9529 = vpop.f32.mrf.mxu0
      %v9530 = vpop.f32.mrf.mxu0
      %v9531 = vadd.f32 0.0, %v9530
      %v9532 = vpop.f32.mrf.mxu0
      %9533 = vmatprep.mubr.bf16.mxu0 0
      %9534 = vmatmul.mubr.bf16.gmra.mxu0 %v9337
      %v9535 = vpop.f32.mrf.mxu0
      %v9536 = vadd.f32 0.0, %v9535
      %v9537 = vpop.f32.mrf.mxu0
      %v9538 = vpop.f32.mrf.mxu0
      %v9539 = vadd.f32 0.0, %v9538
      %v9540 = vpop.f32.mrf.mxu0
      %9541 = vmatprep.mubr.bf16.mxu0 0
      %9542 = vmatmul.mubr.bf16.gmra.mxu0 %v9338
      %v9543 = vpop.f32.mrf.mxu0
      %v9544 = vadd.f32 0.0, %v9543
      %v9545 = vpop.f32.mrf.mxu0
      %v9546 = vpop.f32.mrf.mxu0
      %v9547 = vadd.f32 0.0, %v9546
      %v9548 = vpop.f32.mrf.mxu0
      %9549 = vmatprep.mubr.bf16.mxu0 0
      %9550 = vmatmul.mubr.bf16.gmra.mxu0 %v9339
      %v9551 = vpop.f32.mrf.mxu0
      %v9552 = vadd.f32 0.0, %v9551
      %v9553 = vpop.f32.mrf.mxu0
      %v9554 = vpop.f32.mrf.mxu0
      %v9555 = vadd.f32 0.0, %v9554
      %v9556 = vpop.f32.mrf.mxu0
      %9557 = vmatprep.mubr.bf16.mxu0 0
      %9558 = vmatmul.mubr.bf16.gmra.mxu0 %v9340
      %v9559 = vpop.f32.mrf.mxu0
      %v9560 = vadd.f32 0.0, %v9559
      %v9561 = vpop.f32.mrf.mxu0
      %v9562 = vpop.f32.mrf.mxu0
      %v9563 = vadd.f32 0.0, %v9562
      %v9564 = vpop.f32.mrf.mxu0
      %9565 = vdwg.mxu0
      %v9566 = vadd.f32 %v8843, %v9440
      %v9567 = vadd.f32 %v8844, %v9443
      %v9568 = vadd.f32 %v8845, %v9448
      %v9569 = vadd.f32 %v8846, %v9451
      %v9570 = vadd.f32 %v8847, %v9456
      %v9571 = vadd.f32 %v8848, %v9459
      %v9572 = vadd.f32 %v8849, %v9464
      %v9573 = vadd.f32 %v8850, %v9467
      %v9574 = vadd.f32 %v8851, %v9472
      %v9575 = vadd.f32 %v8852, %v9475
      %v9576 = vadd.f32 %v8853, %v9480
      %v9577 = vadd.f32 %v8854, %v9483
      %v9578 = vadd.f32 %v8855, %v9488
      %v9579 = vadd.f32 %v8856, %v9491
      %v9580 = vadd.f32 %v8857, %v9496
      %v9581 = vadd.f32 %v8858, %v9499
      %v9582 = vadd.f32 %v8859, %v9504
      %v9583 = vadd.f32 %v8860, %v9507
      %v9584 = vadd.f32 %v8861, %v9512
      %v9585 = vadd.f32 %v8862, %v9515
      %v9586 = vadd.f32 %v8863, %v9520
      %v9587 = vadd.f32 %v8864, %v9523
      %v9588 = vadd.f32 %v8865, %v9528
      %v9589 = vadd.f32 %v8866, %v9531
      %v9590 = vadd.f32 %v8867, %v9536
      %v9591 = vadd.f32 %v8868, %v9539
      %v9592 = vadd.f32 %v8869, %v9544
      %v9593 = vadd.f32 %v8870, %v9547
      %v9594 = vadd.f32 %v8871, %v9552
      %v9595 = vadd.f32 %v8872, %v9555
      %v9596 = vadd.f32 %v8873, %v9560
      %v9597 = vadd.f32 %v8874, %v9563
      %s9598 = scalar_lea.vmem %s4, 256
      %v9599 = vld [vmem:[%s9598] sm:$0xf]
      %v9600 = vld [vmem:[%s9598 + $0x4] sm:$0xf]
      %v9601 = vld [vmem:[%s9598 + $0x8] sm:$0xf]
      %v9602 = vld [vmem:[%s9598 + $0xc] sm:$0xf]
      %v9603 = vld [vmem:[%s9598 + $0x10] sm:$0xf]
      %v9604 = vld [vmem:[%s9598 + $0x14] sm:$0xf]
      %v9605 = vld [vmem:[%s9598 + $0x18] sm:$0xf]
      %v9606 = vld [vmem:[%s9598 + $0x1c] sm:$0xf]
      %v9607 = vld [vmem:[%s9598 + $0x20] sm:$0xf]
      %v9608 = vld [vmem:[%s9598 + $0x24] sm:$0xf]
      %v9609 = vld [vmem:[%s9598 + $0x28] sm:$0xf]
      %v9610 = vld [vmem:[%s9598 + $0x2c] sm:$0xf]
      %v9611 = vld [vmem:[%s9598 + $0x30] sm:$0xf]
      %v9612 = vld [vmem:[%s9598 + $0x34] sm:$0xf]
      %v9613 = vld [vmem:[%s9598 + $0x38] sm:$0xf]
      %v9614 = vld [vmem:[%s9598 + $0x3c] sm:$0xf]
      %v9647 = vunpack.c.l.b16 %v8877
      %v9648 = vunpack.c.l.b16 %v8878
      %v9649 = vunpack.c.l.b16 %v8880
      %v9650 = vunpack.c.l.b16 %v8881
      %v9651 = vunpack.c.l.b16 %v8883
      %v9652 = vunpack.c.l.b16 %v8884
      %v9653 = vunpack.c.l.b16 %v8886
      %v9654 = vunpack.c.l.b16 %v8887
      %v9655 = vunpack.c.l.b16 %v8889
      %v9656 = vunpack.c.l.b16 %v8890
      %v9657 = vunpack.c.l.b16 %v8892
      %v9658 = vunpack.c.l.b16 %v8893
      %v9659 = vunpack.c.l.b16 %v8895
      %v9660 = vunpack.c.l.b16 %v8896
      %v9661 = vunpack.c.l.b16 %v8898
      %v9662 = vunpack.c.l.b16 %v8899
      %v9663 = vunpack.c.l.b16 %v8901
      %v9664 = vunpack.c.l.b16 %v8902
      %v9665 = vunpack.c.l.b16 %v8904
      %v9666 = vunpack.c.l.b16 %v8905
      %v9667 = vunpack.c.l.b16 %v8907
      %v9668 = vunpack.c.l.b16 %v8908
      %v9669 = vunpack.c.l.b16 %v8910
      %v9670 = vunpack.c.l.b16 %v8911
      %v9671 = vunpack.c.l.b16 %v8913
      %v9672 = vunpack.c.l.b16 %v8914
      %v9673 = vunpack.c.l.b16 %v8916
      %v9674 = vunpack.c.l.b16 %v8917
      %v9675 = vunpack.c.l.b16 %v8919
      %v9676 = vunpack.c.l.b16 %v8920
      %v9677 = vunpack.c.l.b16 %v8922
      %v9678 = vunpack.c.l.b16 %v8923
      %v9679 = vpack.c.b16 %v9648, %v9647
      %v9680 = vpack.c.b16 %v9650, %v9649
      %v9681 = vpack.c.b16 %v9652, %v9651
      %v9682 = vpack.c.b16 %v9654, %v9653
      %v9683 = vpack.c.b16 %v9656, %v9655
      %v9684 = vpack.c.b16 %v9658, %v9657
      %v9685 = vpack.c.b16 %v9660, %v9659
      %v9686 = vpack.c.b16 %v9662, %v9661
      %v9687 = vpack.c.b16 %v9664, %v9663
      %v9688 = vpack.c.b16 %v9666, %v9665
      %v9689 = vpack.c.b16 %v9668, %v9667
      %v9690 = vpack.c.b16 %v9670, %v9669
      %v9691 = vpack.c.b16 %v9672, %v9671
      %v9692 = vpack.c.b16 %v9674, %v9673
      %v9693 = vpack.c.b16 %v9676, %v9675
      %v9694 = vpack.c.b16 %v9678, %v9677
      %v9727 = vunpack.c.l.b16 %v9599
      %v9728 = vunpack.c.l.b16 %v9600
      %v9729 = vunpack.c.l.b16 %v9601
      %v9730 = vunpack.c.l.b16 %v9602
      %v9731 = vunpack.c.l.b16 %v9603
      %v9732 = vunpack.c.l.b16 %v9604
      %v9733 = vunpack.c.l.b16 %v9605
      %v9734 = vunpack.c.l.b16 %v9606
      %v9735 = vunpack.c.l.b16 %v9607
      %v9736 = vunpack.c.l.b16 %v9608
      %v9737 = vunpack.c.l.b16 %v9609
      %v9738 = vunpack.c.l.b16 %v9610
      %v9739 = vunpack.c.l.b16 %v9611
      %v9740 = vunpack.c.l.b16 %v9612
      %v9741 = vunpack.c.l.b16 %v9613
      %v9742 = vunpack.c.l.b16 %v9614
      %v9743 = vpack.c.b16 %v9728, %v9727
      %v9744 = vpack.c.b16 %v9730, %v9729
      %v9745 = vpack.c.b16 %v9732, %v9731
      %v9746 = vpack.c.b16 %v9734, %v9733
      %v9747 = vpack.c.b16 %v9736, %v9735
      %v9748 = vpack.c.b16 %v9738, %v9737
      %v9749 = vpack.c.b16 %v9740, %v9739
      %v9750 = vpack.c.b16 %v9742, %v9741
      %9759 = vmatprep.subr.bf16.mxu0 0
      %9760 = vmatpush1.bf16.msra.mxu0 %v9750
      %9761 = vmatprep.subr.bf16.mxu0 0
      %9762 = vmatpush1.bf16.msra.mxu0 %v9749
      %9763 = vmatprep.subr.bf16.mxu0 0
      %9764 = vmatpush1.bf16.msra.mxu0 %v9748
      %9765 = vmatprep.subr.bf16.mxu0 0
      %9766 = vmatpush1.bf16.msra.mxu0 %v9747
      %9767 = vmatprep.subr.bf16.mxu0 0
      %9768 = vmatpush1.bf16.msra.mxu0 %v9746
      %9769 = vmatprep.subr.bf16.mxu0 0
      %9770 = vmatpush1.bf16.msra.mxu0 %v9745
      %9771 = vmatprep.subr.bf16.mxu0 0
      %9772 = vmatpush1.bf16.msra.mxu0 %v9744
      %9773 = vmatprep.subr.bf16.mxu0 0
      %9774 = vmatpush1.bf16.msra.mxu0 %v9743
      %9775 = vmatprep.subr.bf16.mxu0 0
      %9776 = vmatpush2.bf16.msra.mxu0 0
      %9777 = vmatprep.subr.bf16.mxu0 0
      %9778 = vmatpush2.bf16.msra.mxu0 0
      %9779 = vmatprep.subr.bf16.mxu0 0
      %9780 = vmatpush2.bf16.msra.mxu0 0
      %9781 = vmatprep.subr.bf16.mxu0 0
      %9782 = vmatpush2.bf16.msra.mxu0 0
      %9783 = vmatprep.subr.bf16.mxu0 0
      %9784 = vmatpush2.bf16.msra.mxu0 0
      %9785 = vmatprep.subr.bf16.mxu0 0
      %9786 = vmatpush2.bf16.msra.mxu0 0
      %9787 = vmatprep.subr.bf16.mxu0 0
      %9788 = vmatpush2.bf16.msra.mxu0 0
      %9789 = vmatprep.subr.bf16.mxu0 0
      %9790 = vmatpush2.bf16.msra.mxu0 0
      %9791 = vmatprep.mubr.bf16.mxu0 0
      %9792 = vmatmul.mubr.bf16.gmra.mxu0 %v9679
      %v9793 = vpop.f32.mrf.mxu0
      %v9794 = vadd.f32 0.0, %v9793
      %v9795 = vpop.f32.mrf.mxu0
      %v9796 = vpop.f32.mrf.mxu0
      %v9797 = vadd.f32 0.0, %v9796
      %v9798 = vpop.f32.mrf.mxu0
      %9799 = vmatprep.mubr.bf16.mxu0 0
      %9800 = vmatmul.mubr.bf16.gmra.mxu0 %v9680
      %v9801 = vpop.f32.mrf.mxu0
      %v9802 = vadd.f32 0.0, %v9801
      %v9803 = vpop.f32.mrf.mxu0
      %v9804 = vpop.f32.mrf.mxu0
      %v9805 = vadd.f32 0.0, %v9804
      %v9806 = vpop.f32.mrf.mxu0
      %9807 = vmatprep.mubr.bf16.mxu0 0
      %9808 = vmatmul.mubr.bf16.gmra.mxu0 %v9681
      %v9809 = vpop.f32.mrf.mxu0
      %v9810 = vadd.f32 0.0, %v9809
      %v9811 = vpop.f32.mrf.mxu0
      %v9812 = vpop.f32.mrf.mxu0
      %v9813 = vadd.f32 0.0, %v9812
      %v9814 = vpop.f32.mrf.mxu0
      %9815 = vmatprep.mubr.bf16.mxu0 0
      %9816 = vmatmul.mubr.bf16.gmra.mxu0 %v9682
      %v9817 = vpop.f32.mrf.mxu0
      %v9818 = vadd.f32 0.0, %v9817
      %v9819 = vpop.f32.mrf.mxu0
      %v9820 = vpop.f32.mrf.mxu0
      %v9821 = vadd.f32 0.0, %v9820
      %v9822 = vpop.f32.mrf.mxu0
      %9823 = vmatprep.mubr.bf16.mxu0 0
      %9824 = vmatmul.mubr.bf16.gmra.mxu0 %v9683
      %v9825 = vpop.f32.mrf.mxu0
      %v9826 = vadd.f32 0.0, %v9825
      %v9827 = vpop.f32.mrf.mxu0
      %v9828 = vpop.f32.mrf.mxu0
      %v9829 = vadd.f32 0.0, %v9828
      %v9830 = vpop.f32.mrf.mxu0
      %9831 = vmatprep.mubr.bf16.mxu0 0
      %9832 = vmatmul.mubr.bf16.gmra.mxu0 %v9684
      %v9833 = vpop.f32.mrf.mxu0
      %v9834 = vadd.f32 0.0, %v9833
      %v9835 = vpop.f32.mrf.mxu0
      %v9836 = vpop.f32.mrf.mxu0
      %v9837 = vadd.f32 0.0, %v9836
      %v9838 = vpop.f32.mrf.mxu0
      %9839 = vmatprep.mubr.bf16.mxu0 0
      %9840 = vmatmul.mubr.bf16.gmra.mxu0 %v9685
      %v9841 = vpop.f32.mrf.mxu0
      %v9842 = vadd.f32 0.0, %v9841
      %v9843 = vpop.f32.mrf.mxu0
      %v9844 = vpop.f32.mrf.mxu0
      %v9845 = vadd.f32 0.0, %v9844
      %v9846 = vpop.f32.mrf.mxu0
      %9847 = vmatprep.mubr.bf16.mxu0 0
      %9848 = vmatmul.mubr.bf16.gmra.mxu0 %v9686
      %v9849 = vpop.f32.mrf.mxu0
      %v9850 = vadd.f32 0.0, %v9849
      %v9851 = vpop.f32.mrf.mxu0
      %v9852 = vpop.f32.mrf.mxu0
      %v9853 = vadd.f32 0.0, %v9852
      %v9854 = vpop.f32.mrf.mxu0
      %9855 = vmatprep.mubr.bf16.mxu0 0
      %9856 = vmatmul.mubr.bf16.gmra.mxu0 %v9687
      %v9857 = vpop.f32.mrf.mxu0
      %v9858 = vadd.f32 0.0, %v9857
      %v9859 = vpop.f32.mrf.mxu0
      %v9860 = vpop.f32.mrf.mxu0
      %v9861 = vadd.f32 0.0, %v9860
      %v9862 = vpop.f32.mrf.mxu0
      %9863 = vmatprep.mubr.bf16.mxu0 0
      %9864 = vmatmul.mubr.bf16.gmra.mxu0 %v9688
      %v9865 = vpop.f32.mrf.mxu0
      %v9866 = vadd.f32 0.0, %v9865
      %v9867 = vpop.f32.mrf.mxu0
      %v9868 = vpop.f32.mrf.mxu0
      %v9869 = vadd.f32 0.0, %v9868
      %v9870 = vpop.f32.mrf.mxu0
      %9871 = vmatprep.mubr.bf16.mxu0 0
      %9872 = vmatmul.mubr.bf16.gmra.mxu0 %v9689
      %v9873 = vpop.f32.mrf.mxu0
      %v9874 = vadd.f32 0.0, %v9873
      %v9875 = vpop.f32.mrf.mxu0
      %v9876 = vpop.f32.mrf.mxu0
      %v9877 = vadd.f32 0.0, %v9876
      %v9878 = vpop.f32.mrf.mxu0
      %9879 = vmatprep.mubr.bf16.mxu0 0
      %9880 = vmatmul.mubr.bf16.gmra.mxu0 %v9690
      %v9881 = vpop.f32.mrf.mxu0
      %v9882 = vadd.f32 0.0, %v9881
      %v9883 = vpop.f32.mrf.mxu0
      %v9884 = vpop.f32.mrf.mxu0
      %v9885 = vadd.f32 0.0, %v9884
      %v9886 = vpop.f32.mrf.mxu0
      %9887 = vmatprep.mubr.bf16.mxu0 0
      %9888 = vmatmul.mubr.bf16.gmra.mxu0 %v9691
      %v9889 = vpop.f32.mrf.mxu0
      %v9890 = vadd.f32 0.0, %v9889
      %v9891 = vpop.f32.mrf.mxu0
      %v9892 = vpop.f32.mrf.mxu0
      %v9893 = vadd.f32 0.0, %v9892
      %v9894 = vpop.f32.mrf.mxu0
      %9895 = vmatprep.mubr.bf16.mxu0 0
      %9896 = vmatmul.mubr.bf16.gmra.mxu0 %v9692
      %v9897 = vpop.f32.mrf.mxu0
      %v9898 = vadd.f32 0.0, %v9897
      %v9899 = vpop.f32.mrf.mxu0
      %v9900 = vpop.f32.mrf.mxu0
      %v9901 = vadd.f32 0.0, %v9900
      %v9902 = vpop.f32.mrf.mxu0
      %9903 = vmatprep.mubr.bf16.mxu0 0
      %9904 = vmatmul.mubr.bf16.gmra.mxu0 %v9693
      %v9905 = vpop.f32.mrf.mxu0
      %v9906 = vadd.f32 0.0, %v9905
      %v9907 = vpop.f32.mrf.mxu0
      %v9908 = vpop.f32.mrf.mxu0
      %v9909 = vadd.f32 0.0, %v9908
      %v9910 = vpop.f32.mrf.mxu0
      %9911 = vmatprep.mubr.bf16.mxu0 0
      %9912 = vmatmul.mubr.bf16.gmra.mxu0 %v9694
      %v9913 = vpop.f32.mrf.mxu0
      %v9914 = vadd.f32 0.0, %v9913
      %v9915 = vpop.f32.mrf.mxu0
      %v9916 = vpop.f32.mrf.mxu0
      %v9917 = vadd.f32 0.0, %v9916
      %v9918 = vpop.f32.mrf.mxu0
      %9919 = vdwg.mxu0
      %v9920 = vadd.f32 %v9566, %v9794
      %v9921 = vadd.f32 %v9567, %v9797
      %v9922 = vadd.f32 %v9568, %v9802
      %v9923 = vadd.f32 %v9569, %v9805
      %v9924 = vadd.f32 %v9570, %v9810
      %v9925 = vadd.f32 %v9571, %v9813
      %v9926 = vadd.f32 %v9572, %v9818
      %v9927 = vadd.f32 %v9573, %v9821
      %v9928 = vadd.f32 %v9574, %v9826
      %v9929 = vadd.f32 %v9575, %v9829
      %v9930 = vadd.f32 %v9576, %v9834
      %v9931 = vadd.f32 %v9577, %v9837
      %v9932 = vadd.f32 %v9578, %v9842
      %v9933 = vadd.f32 %v9579, %v9845
      %v9934 = vadd.f32 %v9580, %v9850
      %v9935 = vadd.f32 %v9581, %v9853
      %v9936 = vadd.f32 %v9582, %v9858
      %v9937 = vadd.f32 %v9583, %v9861
      %v9938 = vadd.f32 %v9584, %v9866
      %v9939 = vadd.f32 %v9585, %v9869
      %v9940 = vadd.f32 %v9586, %v9874
      %v9941 = vadd.f32 %v9587, %v9877
      %v9942 = vadd.f32 %v9588, %v9882
      %v9943 = vadd.f32 %v9589, %v9885
      %v9944 = vadd.f32 %v9590, %v9890
      %v9945 = vadd.f32 %v9591, %v9893
      %v9946 = vadd.f32 %v9592, %v9898
      %v9947 = vadd.f32 %v9593, %v9901
      %v9948 = vadd.f32 %v9594, %v9906
      %v9949 = vadd.f32 %v9595, %v9909
      %v9950 = vadd.f32 %v9596, %v9914
      %v9951 = vadd.f32 %v9597, %v9917
      %v9952 = vld [vmem:[%s8875 + $0x4] sm:$0xf]
      %v9953 = vld [vmem:[%s8875 + $0x8] sm:$0xf]
      %v9954 = vld [vmem:[%s8875 + $0xc] sm:$0x1]
      %v9955 = vld [vmem:[%s8875 + $0x14] sm:$0xf]
      %v9956 = vld [vmem:[%s8875 + $0x18] sm:$0xf]
      %v9957 = vld [vmem:[%s8875 + $0x1c] sm:$0x1]
      %v9958 = vld [vmem:[%s8875 + $0x24] sm:$0xf]
      %v9959 = vld [vmem:[%s8875 + $0x28] sm:$0xf]
      %v9960 = vld [vmem:[%s8875 + $0x2c] sm:$0x1]
      %v9961 = vld [vmem:[%s8875 + $0x34] sm:$0xf]
      %v9962 = vld [vmem:[%s8875 + $0x38] sm:$0xf]
      %v9963 = vld [vmem:[%s8875 + $0x3c] sm:$0x1]
      %v9964 = vld [vmem:[%s8875 + $0x44] sm:$0xf]
      %v9965 = vld [vmem:[%s8875 + $0x48] sm:$0xf]
      %v9966 = vld [vmem:[%s8875 + $0x4c] sm:$0x1]
      %v9967 = vld [vmem:[%s8875 + $0x54] sm:$0xf]
      %v9968 = vld [vmem:[%s8875 + $0x58] sm:$0xf]
      %v9969 = vld [vmem:[%s8875 + $0x5c] sm:$0x1]
      %v9970 = vld [vmem:[%s8875 + $0x64] sm:$0xf]
      %v9971 = vld [vmem:[%s8875 + $0x68] sm:$0xf]
      %v9972 = vld [vmem:[%s8875 + $0x6c] sm:$0x1]
      %v9973 = vld [vmem:[%s8875 + $0x74] sm:$0xf]
      %v9974 = vld [vmem:[%s8875 + $0x78] sm:$0xf]
      %v9975 = vld [vmem:[%s8875 + $0x7c] sm:$0x1]
      %v9976 = vld [vmem:[%s8875 + $0x84] sm:$0xf]
      %v9977 = vld [vmem:[%s8875 + $0x88] sm:$0xf]
      %v9978 = vld [vmem:[%s8875 + $0x8c] sm:$0x1]
      %v9979 = vld [vmem:[%s8875 + $0x94] sm:$0xf]
      %v9980 = vld [vmem:[%s8875 + $0x98] sm:$0xf]
      %v9981 = vld [vmem:[%s8875 + $0x9c] sm:$0x1]
      %v9982 = vld [vmem:[%s8875 + $0xa4] sm:$0xf]
      %v9983 = vld [vmem:[%s8875 + $0xa8] sm:$0xf]
      %v9984 = vld [vmem:[%s8875 + $0xac] sm:$0x1]
      %v9985 = vld [vmem:[%s8875 + $0xb4] sm:$0xf]
      %v9986 = vld [vmem:[%s8875 + $0xb8] sm:$0xf]
      %v9987 = vld [vmem:[%s8875 + $0xbc] sm:$0x1]
      %v9988 = vld [vmem:[%s8875 + $0xc4] sm:$0xf]
      %v9989 = vld [vmem:[%s8875 + $0xc8] sm:$0xf]
      %v9990 = vld [vmem:[%s8875 + $0xcc] sm:$0x1]
      %v9991 = vld [vmem:[%s8875 + $0xd4] sm:$0xf]
      %v9992 = vld [vmem:[%s8875 + $0xd8] sm:$0xf]
      %v9993 = vld [vmem:[%s8875 + $0xdc] sm:$0x1]
      %v9994 = vld [vmem:[%s8875 + $0xe4] sm:$0xf]
      %v9995 = vld [vmem:[%s8875 + $0xe8] sm:$0xf]
      %v9996 = vld [vmem:[%s8875 + $0xec] sm:$0x1]
      %v9997 = vld [vmem:[%s8875 + $0xf4] sm:$0xf]
      %v9998 = vld [vmem:[%s8875 + $0xf8] sm:$0xf]
      %v9999 = vld [vmem:[%s8875 + $0xfc] sm:$0x1]
      %v10001 = vshrl.u32 %v9952, 16
      %v10003 = vrot.slane %v10001, 4
      %v10004 = vshll.u32 %v9952, 16
      %v10006 = vrot.slane %v10004, 5
      %v10007 = vor.u32 %v10003, %v10006
      %v10008 = vrot.slane %v10007, 4
      %v10010 = vshll.u32 %v9953, 16
      %v10012 = vrot.slane %v10010, 5
      %v10013 = vsel %vm668, %v10008, %v10012
      %v10014 = vshrl.u32 %v9953, 16
      %v10016 = vrot.slane %v10014, 4
      %v10017 = vor.u32 %v10016, %v10012
      %v10018 = vrot.slane %v10017, 4
      %v10020 = vshll.u32 %v9954, 16
      %v10022 = vrot.slane %v10020, 5
      %v10023 = vsel %vm668, %v10018, %v10022
      %v10025 = vshrl.u32 %v9955, 16
      %v10027 = vrot.slane %v10025, 4
      %v10028 = vshll.u32 %v9955, 16
      %v10030 = vrot.slane %v10028, 5
      %v10031 = vor.u32 %v10027, %v10030
      %v10032 = vrot.slane %v10031, 4
      %v10034 = vshll.u32 %v9956, 16
      %v10036 = vrot.slane %v10034, 5
      %v10037 = vsel %vm668, %v10032, %v10036
      %v10038 = vshrl.u32 %v9956, 16
      %v10040 = vrot.slane %v10038, 4
      %v10041 = vor.u32 %v10040, %v10036
      %v10042 = vrot.slane %v10041, 4
      %v10044 = vshll.u32 %v9957, 16
      %v10046 = vrot.slane %v10044, 5
      %v10047 = vsel %vm668, %v10042, %v10046
      %v10049 = vshrl.u32 %v9958, 16
      %v10051 = vrot.slane %v10049, 4
      %v10052 = vshll.u32 %v9958, 16
      %v10054 = vrot.slane %v10052, 5
      %v10055 = vor.u32 %v10051, %v10054
      %v10056 = vrot.slane %v10055, 4
      %v10058 = vshll.u32 %v9959, 16
      %v10060 = vrot.slane %v10058, 5
      %v10061 = vsel %vm668, %v10056, %v10060
      %v10062 = vshrl.u32 %v9959, 16
      %v10064 = vrot.slane %v10062, 4
      %v10065 = vor.u32 %v10064, %v10060
      %v10066 = vrot.slane %v10065, 4
      %v10068 = vshll.u32 %v9960, 16
      %v10070 = vrot.slane %v10068, 5
      %v10071 = vsel %vm668, %v10066, %v10070
      %v10073 = vshrl.u32 %v9961, 16
      %v10075 = vrot.slane %v10073, 4
      %v10076 = vshll.u32 %v9961, 16
      %v10078 = vrot.slane %v10076, 5
      %v10079 = vor.u32 %v10075, %v10078
      %v10080 = vrot.slane %v10079, 4
      %v10082 = vshll.u32 %v9962, 16
      %v10084 = vrot.slane %v10082, 5
      %v10085 = vsel %vm668, %v10080, %v10084
      %v10086 = vshrl.u32 %v9962, 16
      %v10088 = vrot.slane %v10086, 4
      %v10089 = vor.u32 %v10088, %v10084
      %v10090 = vrot.slane %v10089, 4
      %v10092 = vshll.u32 %v9963, 16
      %v10094 = vrot.slane %v10092, 5
      %v10095 = vsel %vm668, %v10090, %v10094
      %v10097 = vshrl.u32 %v9964, 16
      %v10099 = vrot.slane %v10097, 4
      %v10100 = vshll.u32 %v9964, 16
      %v10102 = vrot.slane %v10100, 5
      %v10103 = vor.u32 %v10099, %v10102
      %v10104 = vrot.slane %v10103, 4
      %v10106 = vshll.u32 %v9965, 16
      %v10108 = vrot.slane %v10106, 5
      %v10109 = vsel %vm668, %v10104, %v10108
      %v10110 = vshrl.u32 %v9965, 16
      %v10112 = vrot.slane %v10110, 4
      %v10113 = vor.u32 %v10112, %v10108
      %v10114 = vrot.slane %v10113, 4
      %v10116 = vshll.u32 %v9966, 16
      %v10118 = vrot.slane %v10116, 5
      %v10119 = vsel %vm668, %v10114, %v10118
      %v10121 = vshrl.u32 %v9967, 16
      %v10123 = vrot.slane %v10121, 4
      %v10124 = vshll.u32 %v9967, 16
      %v10126 = vrot.slane %v10124, 5
      %v10127 = vor.u32 %v10123, %v10126
      %v10128 = vrot.slane %v10127, 4
      %v10130 = vshll.u32 %v9968, 16
      %v10132 = vrot.slane %v10130, 5
      %v10133 = vsel %vm668, %v10128, %v10132
      %v10134 = vshrl.u32 %v9968, 16
      %v10136 = vrot.slane %v10134, 4
      %v10137 = vor.u32 %v10136, %v10132
      %v10138 = vrot.slane %v10137, 4
      %v10140 = vshll.u32 %v9969, 16
      %v10142 = vrot.slane %v10140, 5
      %v10143 = vsel %vm668, %v10138, %v10142
      %v10145 = vshrl.u32 %v9970, 16
      %v10147 = vrot.slane %v10145, 4
      %v10148 = vshll.u32 %v9970, 16
      %v10150 = vrot.slane %v10148, 5
      %v10151 = vor.u32 %v10147, %v10150
      %v10152 = vrot.slane %v10151, 4
      %v10154 = vshll.u32 %v9971, 16
      %v10156 = vrot.slane %v10154, 5
      %v10157 = vsel %vm668, %v10152, %v10156
      %v10158 = vshrl.u32 %v9971, 16
      %v10160 = vrot.slane %v10158, 4
      %v10161 = vor.u32 %v10160, %v10156
      %v10162 = vrot.slane %v10161, 4
      %v10164 = vshll.u32 %v9972, 16
      %v10166 = vrot.slane %v10164, 5
      %v10167 = vsel %vm668, %v10162, %v10166
      %v10169 = vshrl.u32 %v9973, 16
      %v10171 = vrot.slane %v10169, 4
      %v10172 = vshll.u32 %v9973, 16
      %v10174 = vrot.slane %v10172, 5
      %v10175 = vor.u32 %v10171, %v10174
      %v10176 = vrot.slane %v10175, 4
      %v10178 = vshll.u32 %v9974, 16
      %v10180 = vrot.slane %v10178, 5
      %v10181 = vsel %vm668, %v10176, %v10180
      %v10182 = vshrl.u32 %v9974, 16
      %v10184 = vrot.slane %v10182, 4
      %v10185 = vor.u32 %v10184, %v10180
      %v10186 = vrot.slane %v10185, 4
      %v10188 = vshll.u32 %v9975, 16
      %v10190 = vrot.slane %v10188, 5
      %v10191 = vsel %vm668, %v10186, %v10190
      %v10193 = vshrl.u32 %v9976, 16
      %v10195 = vrot.slane %v10193, 4
      %v10196 = vshll.u32 %v9976, 16
      %v10198 = vrot.slane %v10196, 5
      %v10199 = vor.u32 %v10195, %v10198
      %v10200 = vrot.slane %v10199, 4
      %v10202 = vshll.u32 %v9977, 16
      %v10204 = vrot.slane %v10202, 5
      %v10205 = vsel %vm668, %v10200, %v10204
      %v10206 = vshrl.u32 %v9977, 16
      %v10208 = vrot.slane %v10206, 4
      %v10209 = vor.u32 %v10208, %v10204
      %v10210 = vrot.slane %v10209, 4
      %v10212 = vshll.u32 %v9978, 16
      %v10214 = vrot.slane %v10212, 5
      %v10215 = vsel %vm668, %v10210, %v10214
      %v10217 = vshrl.u32 %v9979, 16
      %v10219 = vrot.slane %v10217, 4
      %v10220 = vshll.u32 %v9979, 16
      %v10222 = vrot.slane %v10220, 5
      %v10223 = vor.u32 %v10219, %v10222
      %v10224 = vrot.slane %v10223, 4
      %v10226 = vshll.u32 %v9980, 16
      %v10228 = vrot.slane %v10226, 5
      %v10229 = vsel %vm668, %v10224, %v10228
      %v10230 = vshrl.u32 %v9980, 16
      %v10232 = vrot.slane %v10230, 4
      %v10233 = vor.u32 %v10232, %v10228
      %v10234 = vrot.slane %v10233, 4
      %v10236 = vshll.u32 %v9981, 16
      %v10238 = vrot.slane %v10236, 5
      %v10239 = vsel %vm668, %v10234, %v10238
      %v10241 = vshrl.u32 %v9982, 16
      %v10243 = vrot.slane %v10241, 4
      %v10244 = vshll.u32 %v9982, 16
      %v10246 = vrot.slane %v10244, 5
      %v10247 = vor.u32 %v10243, %v10246
      %v10248 = vrot.slane %v10247, 4
      %v10250 = vshll.u32 %v9983, 16
      %v10252 = vrot.slane %v10250, 5
      %v10253 = vsel %vm668, %v10248, %v10252
      %v10254 = vshrl.u32 %v9983, 16
      %v10256 = vrot.slane %v10254, 4
      %v10257 = vor.u32 %v10256, %v10252
      %v10258 = vrot.slane %v10257, 4
      %v10260 = vshll.u32 %v9984, 16
      %v10262 = vrot.slane %v10260, 5
      %v10263 = vsel %vm668, %v10258, %v10262
      %v10265 = vshrl.u32 %v9985, 16
      %v10267 = vrot.slane %v10265, 4
      %v10268 = vshll.u32 %v9985, 16
      %v10270 = vrot.slane %v10268, 5
      %v10271 = vor.u32 %v10267, %v10270
      %v10272 = vrot.slane %v10271, 4
      %v10274 = vshll.u32 %v9986, 16
      %v10276 = vrot.slane %v10274, 5
      %v10277 = vsel %vm668, %v10272, %v10276
      %v10278 = vshrl.u32 %v9986, 16
      %v10280 = vrot.slane %v10278, 4
      %v10281 = vor.u32 %v10280, %v10276
      %v10282 = vrot.slane %v10281, 4
      %v10284 = vshll.u32 %v9987, 16
      %v10286 = vrot.slane %v10284, 5
      %v10287 = vsel %vm668, %v10282, %v10286
      %v10289 = vshrl.u32 %v9988, 16
      %v10291 = vrot.slane %v10289, 4
      %v10292 = vshll.u32 %v9988, 16
      %v10294 = vrot.slane %v10292, 5
      %v10295 = vor.u32 %v10291, %v10294
      %v10296 = vrot.slane %v10295, 4
      %v10298 = vshll.u32 %v9989, 16
      %v10300 = vrot.slane %v10298, 5
      %v10301 = vsel %vm668, %v10296, %v10300
      %v10302 = vshrl.u32 %v9989, 16
      %v10304 = vrot.slane %v10302, 4
      %v10305 = vor.u32 %v10304, %v10300
      %v10306 = vrot.slane %v10305, 4
      %v10308 = vshll.u32 %v9990, 16
      %v10310 = vrot.slane %v10308, 5
      %v10311 = vsel %vm668, %v10306, %v10310
      %v10313 = vshrl.u32 %v9991, 16
      %v10315 = vrot.slane %v10313, 4
      %v10316 = vshll.u32 %v9991, 16
      %v10318 = vrot.slane %v10316, 5
      %v10319 = vor.u32 %v10315, %v10318
      %v10320 = vrot.slane %v10319, 4
      %v10322 = vshll.u32 %v9992, 16
      %v10324 = vrot.slane %v10322, 5
      %v10325 = vsel %vm668, %v10320, %v10324
      %v10326 = vshrl.u32 %v9992, 16
      %v10328 = vrot.slane %v10326, 4
      %v10329 = vor.u32 %v10328, %v10324
      %v10330 = vrot.slane %v10329, 4
      %v10332 = vshll.u32 %v9993, 16
      %v10334 = vrot.slane %v10332, 5
      %v10335 = vsel %vm668, %v10330, %v10334
      %v10337 = vshrl.u32 %v9994, 16
      %v10339 = vrot.slane %v10337, 4
      %v10340 = vshll.u32 %v9994, 16
      %v10342 = vrot.slane %v10340, 5
      %v10343 = vor.u32 %v10339, %v10342
      %v10344 = vrot.slane %v10343, 4
      %v10346 = vshll.u32 %v9995, 16
      %v10348 = vrot.slane %v10346, 5
      %v10349 = vsel %vm668, %v10344, %v10348
      %v10350 = vshrl.u32 %v9995, 16
      %v10352 = vrot.slane %v10350, 4
      %v10353 = vor.u32 %v10352, %v10348
      %v10354 = vrot.slane %v10353, 4
      %v10356 = vshll.u32 %v9996, 16
      %v10358 = vrot.slane %v10356, 5
      %v10359 = vsel %vm668, %v10354, %v10358
      %v10361 = vshrl.u32 %v9997, 16
      %v10363 = vrot.slane %v10361, 4
      %v10364 = vshll.u32 %v9997, 16
      %v10366 = vrot.slane %v10364, 5
      %v10367 = vor.u32 %v10363, %v10366
      %v10368 = vrot.slane %v10367, 4
      %v10370 = vshll.u32 %v9998, 16
      %v10372 = vrot.slane %v10370, 5
      %v10373 = vsel %vm668, %v10368, %v10372
      %v10374 = vshrl.u32 %v9998, 16
      %v10376 = vrot.slane %v10374, 4
      %v10377 = vor.u32 %v10376, %v10372
      %v10378 = vrot.slane %v10377, 4
      %v10380 = vshll.u32 %v9999, 16
      %v10382 = vrot.slane %v10380, 5
      %v10383 = vsel %vm668, %v10378, %v10382
      %s10384 = scalar_lea.vmem %s4, 320
      %v10385 = vld [vmem:[%s10384] sm:$0xf]
      %v10386 = vld [vmem:[%s10384 + $0x4] sm:$0xf]
      %v10387 = vld [vmem:[%s10384 + $0x8] sm:$0xf]
      %v10388 = vld [vmem:[%s10384 + $0xc] sm:$0xf]
      %v10389 = vld [vmem:[%s10384 + $0x10] sm:$0xf]
      %v10390 = vld [vmem:[%s10384 + $0x14] sm:$0xf]
      %v10391 = vld [vmem:[%s10384 + $0x18] sm:$0xf]
      %v10392 = vld [vmem:[%s10384 + $0x1c] sm:$0xf]
      %v10393 = vld [vmem:[%s10384 + $0x20] sm:$0xf]
      %v10394 = vld [vmem:[%s10384 + $0x24] sm:$0xf]
      %v10395 = vld [vmem:[%s10384 + $0x28] sm:$0xf]
      %v10396 = vld [vmem:[%s10384 + $0x2c] sm:$0xf]
      %v10397 = vld [vmem:[%s10384 + $0x30] sm:$0xf]
      %v10398 = vld [vmem:[%s10384 + $0x34] sm:$0xf]
      %v10399 = vld [vmem:[%s10384 + $0x38] sm:$0xf]
      %v10400 = vld [vmem:[%s10384 + $0x3c] sm:$0xf]
      %v10401 = vunpack.c.l.b16 %v10013
      %v10402 = vunpack.c.l.b16 %v10023
      %v10403 = vunpack.c.l.b16 %v10037
      %v10404 = vunpack.c.l.b16 %v10047
      %v10405 = vunpack.c.l.b16 %v10061
      %v10406 = vunpack.c.l.b16 %v10071
      %v10407 = vunpack.c.l.b16 %v10085
      %v10408 = vunpack.c.l.b16 %v10095
      %v10409 = vunpack.c.l.b16 %v10109
      %v10410 = vunpack.c.l.b16 %v10119
      %v10411 = vunpack.c.l.b16 %v10133
      %v10412 = vunpack.c.l.b16 %v10143
      %v10413 = vunpack.c.l.b16 %v10157
      %v10414 = vunpack.c.l.b16 %v10167
      %v10415 = vunpack.c.l.b16 %v10181
      %v10416 = vunpack.c.l.b16 %v10191
      %v10417 = vunpack.c.l.b16 %v10205
      %v10418 = vunpack.c.l.b16 %v10215
      %v10419 = vunpack.c.l.b16 %v10229
      %v10420 = vunpack.c.l.b16 %v10239
      %v10421 = vunpack.c.l.b16 %v10253
      %v10422 = vunpack.c.l.b16 %v10263
      %v10423 = vunpack.c.l.b16 %v10277
      %v10424 = vunpack.c.l.b16 %v10287
      %v10425 = vunpack.c.l.b16 %v10301
      %v10426 = vunpack.c.l.b16 %v10311
      %v10427 = vunpack.c.l.b16 %v10325
      %v10428 = vunpack.c.l.b16 %v10335
      %v10429 = vunpack.c.l.b16 %v10349
      %v10430 = vunpack.c.l.b16 %v10359
      %v10431 = vunpack.c.l.b16 %v10373
      %v10432 = vunpack.c.l.b16 %v10383
      %v10433 = vpack.c.b16 %v10402, %v10401
      %v10434 = vpack.c.b16 %v10404, %v10403
      %v10435 = vpack.c.b16 %v10406, %v10405
      %v10436 = vpack.c.b16 %v10408, %v10407
      %v10437 = vpack.c.b16 %v10410, %v10409
      %v10438 = vpack.c.b16 %v10412, %v10411
      %v10439 = vpack.c.b16 %v10414, %v10413
      %v10440 = vpack.c.b16 %v10416, %v10415
      %v10441 = vpack.c.b16 %v10418, %v10417
      %v10442 = vpack.c.b16 %v10420, %v10419
      %v10443 = vpack.c.b16 %v10422, %v10421
      %v10444 = vpack.c.b16 %v10424, %v10423
      %v10445 = vpack.c.b16 %v10426, %v10425
      %v10446 = vpack.c.b16 %v10428, %v10427
      %v10447 = vpack.c.b16 %v10430, %v10429
      %v10448 = vpack.c.b16 %v10432, %v10431
      %v10481 = vunpack.c.l.b16 %v10385
      %v10482 = vunpack.c.l.b16 %v10386
      %v10483 = vunpack.c.l.b16 %v10387
      %v10484 = vunpack.c.l.b16 %v10388
      %v10485 = vunpack.c.l.b16 %v10389
      %v10486 = vunpack.c.l.b16 %v10390
      %v10487 = vunpack.c.l.b16 %v10391
      %v10488 = vunpack.c.l.b16 %v10392
      %v10489 = vunpack.c.l.b16 %v10393
      %v10490 = vunpack.c.l.b16 %v10394
      %v10491 = vunpack.c.l.b16 %v10395
      %v10492 = vunpack.c.l.b16 %v10396
      %v10493 = vunpack.c.l.b16 %v10397
      %v10494 = vunpack.c.l.b16 %v10398
      %v10495 = vunpack.c.l.b16 %v10399
      %v10496 = vunpack.c.l.b16 %v10400
      %v10497 = vpack.c.b16 %v10482, %v10481
      %v10498 = vpack.c.b16 %v10484, %v10483
      %v10499 = vpack.c.b16 %v10486, %v10485
      %v10500 = vpack.c.b16 %v10488, %v10487
      %v10501 = vpack.c.b16 %v10490, %v10489
      %v10502 = vpack.c.b16 %v10492, %v10491
      %v10503 = vpack.c.b16 %v10494, %v10493
      %v10504 = vpack.c.b16 %v10496, %v10495
      %10513 = vmatprep.subr.bf16.mxu0 0
      %10514 = vmatpush1.bf16.msra.mxu0 %v10504
      %10515 = vmatprep.subr.bf16.mxu0 0
      %10516 = vmatpush1.bf16.msra.mxu0 %v10503
      %10517 = vmatprep.subr.bf16.mxu0 0
      %10518 = vmatpush1.bf16.msra.mxu0 %v10502
      %10519 = vmatprep.subr.bf16.mxu0 0
      %10520 = vmatpush1.bf16.msra.mxu0 %v10501
      %10521 = vmatprep.subr.bf16.mxu0 0
      %10522 = vmatpush1.bf16.msra.mxu0 %v10500
      %10523 = vmatprep.subr.bf16.mxu0 0
      %10524 = vmatpush1.bf16.msra.mxu0 %v10499
      %10525 = vmatprep.subr.bf16.mxu0 0
      %10526 = vmatpush1.bf16.msra.mxu0 %v10498
      %10527 = vmatprep.subr.bf16.mxu0 0
      %10528 = vmatpush1.bf16.msra.mxu0 %v10497
      %10529 = vmatprep.subr.bf16.mxu0 0
      %10530 = vmatpush2.bf16.msra.mxu0 0
      %10531 = vmatprep.subr.bf16.mxu0 0
      %10532 = vmatpush2.bf16.msra.mxu0 0
      %10533 = vmatprep.subr.bf16.mxu0 0
      %10534 = vmatpush2.bf16.msra.mxu0 0
      %10535 = vmatprep.subr.bf16.mxu0 0
      %10536 = vmatpush2.bf16.msra.mxu0 0
      %10537 = vmatprep.subr.bf16.mxu0 0
      %10538 = vmatpush2.bf16.msra.mxu0 0
      %10539 = vmatprep.subr.bf16.mxu0 0
      %10540 = vmatpush2.bf16.msra.mxu0 0
      %10541 = vmatprep.subr.bf16.mxu0 0
      %10542 = vmatpush2.bf16.msra.mxu0 0
      %10543 = vmatprep.subr.bf16.mxu0 0
      %10544 = vmatpush2.bf16.msra.mxu0 0
      %10545 = vmatprep.mubr.bf16.mxu0 0
      %10546 = vmatmul.mubr.bf16.gmra.mxu0 %v10433
      %v10547 = vpop.f32.mrf.mxu0
      %v10548 = vadd.f32 0.0, %v10547
      %v10549 = vpop.f32.mrf.mxu0
      %v10550 = vpop.f32.mrf.mxu0
      %v10551 = vadd.f32 0.0, %v10550
      %v10552 = vpop.f32.mrf.mxu0
      %10553 = vmatprep.mubr.bf16.mxu0 0
      %10554 = vmatmul.mubr.bf16.gmra.mxu0 %v10434
      %v10555 = vpop.f32.mrf.mxu0
      %v10556 = vadd.f32 0.0, %v10555
      %v10557 = vpop.f32.mrf.mxu0
      %v10558 = vpop.f32.mrf.mxu0
      %v10559 = vadd.f32 0.0, %v10558
      %v10560 = vpop.f32.mrf.mxu0
      %10561 = vmatprep.mubr.bf16.mxu0 0
      %10562 = vmatmul.mubr.bf16.gmra.mxu0 %v10435
      %v10563 = vpop.f32.mrf.mxu0
      %v10564 = vadd.f32 0.0, %v10563
      %v10565 = vpop.f32.mrf.mxu0
      %v10566 = vpop.f32.mrf.mxu0
      %v10567 = vadd.f32 0.0, %v10566
      %v10568 = vpop.f32.mrf.mxu0
      %10569 = vmatprep.mubr.bf16.mxu0 0
      %10570 = vmatmul.mubr.bf16.gmra.mxu0 %v10436
      %v10571 = vpop.f32.mrf.mxu0
      %v10572 = vadd.f32 0.0, %v10571
      %v10573 = vpop.f32.mrf.mxu0
      %v10574 = vpop.f32.mrf.mxu0
      %v10575 = vadd.f32 0.0, %v10574
      %v10576 = vpop.f32.mrf.mxu0
      %10577 = vmatprep.mubr.bf16.mxu0 0
      %10578 = vmatmul.mubr.bf16.gmra.mxu0 %v10437
      %v10579 = vpop.f32.mrf.mxu0
      %v10580 = vadd.f32 0.0, %v10579
      %v10581 = vpop.f32.mrf.mxu0
      %v10582 = vpop.f32.mrf.mxu0
      %v10583 = vadd.f32 0.0, %v10582
      %v10584 = vpop.f32.mrf.mxu0
      %10585 = vmatprep.mubr.bf16.mxu0 0
      %10586 = vmatmul.mubr.bf16.gmra.mxu0 %v10438
      %v10587 = vpop.f32.mrf.mxu0
      %v10588 = vadd.f32 0.0, %v10587
      %v10589 = vpop.f32.mrf.mxu0
      %v10590 = vpop.f32.mrf.mxu0
      %v10591 = vadd.f32 0.0, %v10590
      %v10592 = vpop.f32.mrf.mxu0
      %10593 = vmatprep.mubr.bf16.mxu0 0
      %10594 = vmatmul.mubr.bf16.gmra.mxu0 %v10439
      %v10595 = vpop.f32.mrf.mxu0
      %v10596 = vadd.f32 0.0, %v10595
      %v10597 = vpop.f32.mrf.mxu0
      %v10598 = vpop.f32.mrf.mxu0
      %v10599 = vadd.f32 0.0, %v10598
      %v10600 = vpop.f32.mrf.mxu0
      %10601 = vmatprep.mubr.bf16.mxu0 0
      %10602 = vmatmul.mubr.bf16.gmra.mxu0 %v10440
      %v10603 = vpop.f32.mrf.mxu0
      %v10604 = vadd.f32 0.0, %v10603
      %v10605 = vpop.f32.mrf.mxu0
      %v10606 = vpop.f32.mrf.mxu0
      %v10607 = vadd.f32 0.0, %v10606
      %v10608 = vpop.f32.mrf.mxu0
      %10609 = vmatprep.mubr.bf16.mxu0 0
      %10610 = vmatmul.mubr.bf16.gmra.mxu0 %v10441
      %v10611 = vpop.f32.mrf.mxu0
      %v10612 = vadd.f32 0.0, %v10611
      %v10613 = vpop.f32.mrf.mxu0
      %v10614 = vpop.f32.mrf.mxu0
      %v10615 = vadd.f32 0.0, %v10614
      %v10616 = vpop.f32.mrf.mxu0
      %10617 = vmatprep.mubr.bf16.mxu0 0
      %10618 = vmatmul.mubr.bf16.gmra.mxu0 %v10442
      %v10619 = vpop.f32.mrf.mxu0
      %v10620 = vadd.f32 0.0, %v10619
      %v10621 = vpop.f32.mrf.mxu0
      %v10622 = vpop.f32.mrf.mxu0
      %v10623 = vadd.f32 0.0, %v10622
      %v10624 = vpop.f32.mrf.mxu0
      %10625 = vmatprep.mubr.bf16.mxu0 0
      %10626 = vmatmul.mubr.bf16.gmra.mxu0 %v10443
      %v10627 = vpop.f32.mrf.mxu0
      %v10628 = vadd.f32 0.0, %v10627
      %v10629 = vpop.f32.mrf.mxu0
      %v10630 = vpop.f32.mrf.mxu0
      %v10631 = vadd.f32 0.0, %v10630
      %v10632 = vpop.f32.mrf.mxu0
      %10633 = vmatprep.mubr.bf16.mxu0 0
      %10634 = vmatmul.mubr.bf16.gmra.mxu0 %v10444
      %v10635 = vpop.f32.mrf.mxu0
      %v10636 = vadd.f32 0.0, %v10635
      %v10637 = vpop.f32.mrf.mxu0
      %v10638 = vpop.f32.mrf.mxu0
      %v10639 = vadd.f32 0.0, %v10638
      %v10640 = vpop.f32.mrf.mxu0
      %10641 = vmatprep.mubr.bf16.mxu0 0
      %10642 = vmatmul.mubr.bf16.gmra.mxu0 %v10445
      %v10643 = vpop.f32.mrf.mxu0
      %v10644 = vadd.f32 0.0, %v10643
      %v10645 = vpop.f32.mrf.mxu0
      %v10646 = vpop.f32.mrf.mxu0
      %v10647 = vadd.f32 0.0, %v10646
      %v10648 = vpop.f32.mrf.mxu0
      %10649 = vmatprep.mubr.bf16.mxu0 0
      %10650 = vmatmul.mubr.bf16.gmra.mxu0 %v10446
      %v10651 = vpop.f32.mrf.mxu0
      %v10652 = vadd.f32 0.0, %v10651
      %v10653 = vpop.f32.mrf.mxu0
      %v10654 = vpop.f32.mrf.mxu0
      %v10655 = vadd.f32 0.0, %v10654
      %v10656 = vpop.f32.mrf.mxu0
      %10657 = vmatprep.mubr.bf16.mxu0 0
      %10658 = vmatmul.mubr.bf16.gmra.mxu0 %v10447
      %v10659 = vpop.f32.mrf.mxu0
      %v10660 = vadd.f32 0.0, %v10659
      %v10661 = vpop.f32.mrf.mxu0
      %v10662 = vpop.f32.mrf.mxu0
      %v10663 = vadd.f32 0.0, %v10662
      %v10664 = vpop.f32.mrf.mxu0
      %10665 = vmatprep.mubr.bf16.mxu0 0
      %10666 = vmatmul.mubr.bf16.gmra.mxu0 %v10448
      %v10667 = vpop.f32.mrf.mxu0
      %v10668 = vadd.f32 0.0, %v10667
      %v10669 = vpop.f32.mrf.mxu0
      %v10670 = vpop.f32.mrf.mxu0
      %v10671 = vadd.f32 0.0, %v10670
      %v10672 = vpop.f32.mrf.mxu0
      %10673 = vdwg.mxu0
      %v10674 = vadd.f32 %v9920, %v10548
      %v10675 = vadd.f32 %v9921, %v10551
      %v10676 = vadd.f32 %v9922, %v10556
      %v10677 = vadd.f32 %v9923, %v10559
      %v10678 = vadd.f32 %v9924, %v10564
      %v10679 = vadd.f32 %v9925, %v10567
      %v10680 = vadd.f32 %v9926, %v10572
      %v10681 = vadd.f32 %v9927, %v10575
      %v10682 = vadd.f32 %v9928, %v10580
      %v10683 = vadd.f32 %v9929, %v10583
      %v10684 = vadd.f32 %v9930, %v10588
      %v10685 = vadd.f32 %v9931, %v10591
      %v10686 = vadd.f32 %v9932, %v10596
      %v10687 = vadd.f32 %v9933, %v10599
      %v10688 = vadd.f32 %v9934, %v10604
      %v10689 = vadd.f32 %v9935, %v10607
      %v10690 = vadd.f32 %v9936, %v10612
      %v10691 = vadd.f32 %v9937, %v10615
      %v10692 = vadd.f32 %v9938, %v10620
      %v10693 = vadd.f32 %v9939, %v10623
      %v10694 = vadd.f32 %v9940, %v10628
      %v10695 = vadd.f32 %v9941, %v10631
      %v10696 = vadd.f32 %v9942, %v10636
      %v10697 = vadd.f32 %v9943, %v10639
      %v10698 = vadd.f32 %v9944, %v10644
      %v10699 = vadd.f32 %v9945, %v10647
      %v10700 = vadd.f32 %v9946, %v10652
      %v10701 = vadd.f32 %v9947, %v10655
      %v10702 = vadd.f32 %v9948, %v10660
      %v10703 = vadd.f32 %v9949, %v10663
      %v10704 = vadd.f32 %v9950, %v10668
      %v10705 = vadd.f32 %v9951, %v10671
      %s10706 = scalar_lea.vmem [#allocation4], 32
      %v10707 = vld [vmem:[%s10706] sm:$0x8]
      %v10708 = vld [vmem:[%s10706 + $0x4] sm:$0xf]
      %v10709 = vld [vmem:[%s10706 + $0x8] sm:$0xf]
      %v10710 = vld [vmem:[%s10706 + $0x10] sm:$0x8]
      %v10711 = vld [vmem:[%s10706 + $0x14] sm:$0xf]
      %v10712 = vld [vmem:[%s10706 + $0x18] sm:$0xf]
      %v10713 = vld [vmem:[%s10706 + $0x20] sm:$0x8]
      %v10714 = vld [vmem:[%s10706 + $0x24] sm:$0xf]
      %v10715 = vld [vmem:[%s10706 + $0x28] sm:$0xf]
      %v10716 = vld [vmem:[%s10706 + $0x30] sm:$0x8]
      %v10717 = vld [vmem:[%s10706 + $0x34] sm:$0xf]
      %v10718 = vld [vmem:[%s10706 + $0x38] sm:$0xf]
      %v10719 = vld [vmem:[%s10706 + $0x40] sm:$0x8]
      %v10720 = vld [vmem:[%s10706 + $0x44] sm:$0xf]
      %v10721 = vld [vmem:[%s10706 + $0x48] sm:$0xf]
      %v10722 = vld [vmem:[%s10706 + $0x50] sm:$0x8]
      %v10723 = vld [vmem:[%s10706 + $0x54] sm:$0xf]
      %v10724 = vld [vmem:[%s10706 + $0x58] sm:$0xf]
      %v10725 = vld [vmem:[%s10706 + $0x60] sm:$0x8]
      %v10726 = vld [vmem:[%s10706 + $0x64] sm:$0xf]
      %v10727 = vld [vmem:[%s10706 + $0x68] sm:$0xf]
      %v10728 = vld [vmem:[%s10706 + $0x70] sm:$0x8]
      %v10729 = vld [vmem:[%s10706 + $0x74] sm:$0xf]
      %v10730 = vld [vmem:[%s10706 + $0x78] sm:$0xf]
      %v10731 = vld [vmem:[%s10706 + $0x80] sm:$0x8]
      %v10732 = vld [vmem:[%s10706 + $0x84] sm:$0xf]
      %v10733 = vld [vmem:[%s10706 + $0x88] sm:$0xf]
      %v10734 = vld [vmem:[%s10706 + $0x90] sm:$0x8]
      %v10735 = vld [vmem:[%s10706 + $0x94] sm:$0xf]
      %v10736 = vld [vmem:[%s10706 + $0x98] sm:$0xf]
      %v10737 = vld [vmem:[%s10706 + $0xa0] sm:$0x8]
      %v10738 = vld [vmem:[%s10706 + $0xa4] sm:$0xf]
      %v10739 = vld [vmem:[%s10706 + $0xa8] sm:$0xf]
      %v10740 = vld [vmem:[%s10706 + $0xb0] sm:$0x8]
      %v10741 = vld [vmem:[%s10706 + $0xb4] sm:$0xf]
      %v10742 = vld [vmem:[%s10706 + $0xb8] sm:$0xf]
      %v10743 = vld [vmem:[%s10706 + $0xc0] sm:$0x8]
      %v10744 = vld [vmem:[%s10706 + $0xc4] sm:$0xf]
      %v10745 = vld [vmem:[%s10706 + $0xc8] sm:$0xf]
      %v10746 = vld [vmem:[%s10706 + $0xd0] sm:$0x8]
      %v10747 = vld [vmem:[%s10706 + $0xd4] sm:$0xf]
      %v10748 = vld [vmem:[%s10706 + $0xd8] sm:$0xf]
      %v10749 = vld [vmem:[%s10706 + $0xe0] sm:$0x8]
      %v10750 = vld [vmem:[%s10706 + $0xe4] sm:$0xf]
      %v10751 = vld [vmem:[%s10706 + $0xe8] sm:$0xf]
      %v10752 = vld [vmem:[%s10706 + $0xf0] sm:$0x8]
      %v10753 = vld [vmem:[%s10706 + $0xf4] sm:$0xf]
      %v10754 = vld [vmem:[%s10706 + $0xf8] sm:$0xf]
      %v10756 = vshrl.u32 %v10707, 16
      %v10758 = vrot.slane %v10756, 7
      %v10759 = vrot.slane %v10758, 4
      %v10761 = vshrl.u32 %v10708, 16
      %v10763 = vrot.slane %v10761, 7
      %v10764 = vshll.u32 %v10708, 16
      %v10766 = vor.u32 %v10763, %v10764
      %v10767 = vsel %vm7157, %v10759, %v10766
      %v10768 = vrot.slane %v10763, 4
      %v10770 = vshrl.u32 %v10709, 16
      %v10772 = vrot.slane %v10770, 7
      %v10773 = vshll.u32 %v10709, 16
      %v10775 = vor.u32 %v10772, %v10773
      %v10776 = vsel %vm7157, %v10768, %v10775
      %v10778 = vshrl.u32 %v10710, 16
      %v10780 = vrot.slane %v10778, 7
      %v10781 = vrot.slane %v10780, 4
      %v10783 = vshrl.u32 %v10711, 16
      %v10785 = vrot.slane %v10783, 7
      %v10786 = vshll.u32 %v10711, 16
      %v10788 = vor.u32 %v10785, %v10786
      %v10789 = vsel %vm7157, %v10781, %v10788
      %v10790 = vrot.slane %v10785, 4
      %v10792 = vshrl.u32 %v10712, 16
      %v10794 = vrot.slane %v10792, 7
      %v10795 = vshll.u32 %v10712, 16
      %v10797 = vor.u32 %v10794, %v10795
      %v10798 = vsel %vm7157, %v10790, %v10797
      %v10800 = vshrl.u32 %v10713, 16
      %v10802 = vrot.slane %v10800, 7
      %v10803 = vrot.slane %v10802, 4
      %v10805 = vshrl.u32 %v10714, 16
      %v10807 = vrot.slane %v10805, 7
      %v10808 = vshll.u32 %v10714, 16
      %v10810 = vor.u32 %v10807, %v10808
      %v10811 = vsel %vm7157, %v10803, %v10810
      %v10812 = vrot.slane %v10807, 4
      %v10814 = vshrl.u32 %v10715, 16
      %v10816 = vrot.slane %v10814, 7
      %v10817 = vshll.u32 %v10715, 16
      %v10819 = vor.u32 %v10816, %v10817
      %v10820 = vsel %vm7157, %v10812, %v10819
      %v10822 = vshrl.u32 %v10716, 16
      %v10824 = vrot.slane %v10822, 7
      %v10825 = vrot.slane %v10824, 4
      %v10827 = vshrl.u32 %v10717, 16
      %v10829 = vrot.slane %v10827, 7
      %v10830 = vshll.u32 %v10717, 16
      %v10832 = vor.u32 %v10829, %v10830
      %v10833 = vsel %vm7157, %v10825, %v10832
      %v10834 = vrot.slane %v10829, 4
      %v10836 = vshrl.u32 %v10718, 16
      %v10838 = vrot.slane %v10836, 7
      %v10839 = vshll.u32 %v10718, 16
      %v10841 = vor.u32 %v10838, %v10839
      %v10842 = vsel %vm7157, %v10834, %v10841
      %v10844 = vshrl.u32 %v10719, 16
      %v10846 = vrot.slane %v10844, 7
      %v10847 = vrot.slane %v10846, 4
      %v10849 = vshrl.u32 %v10720, 16
      %v10851 = vrot.slane %v10849, 7
      %v10852 = vshll.u32 %v10720, 16
      %v10854 = vor.u32 %v10851, %v10852
      %v10855 = vsel %vm7157, %v10847, %v10854
      %v10856 = vrot.slane %v10851, 4
      %v10858 = vshrl.u32 %v10721, 16
      %v10860 = vrot.slane %v10858, 7
      %v10861 = vshll.u32 %v10721, 16
      %v10863 = vor.u32 %v10860, %v10861
      %v10864 = vsel %vm7157, %v10856, %v10863
      %v10866 = vshrl.u32 %v10722, 16
      %v10868 = vrot.slane %v10866, 7
      %v10869 = vrot.slane %v10868, 4
      %v10871 = vshrl.u32 %v10723, 16
      %v10873 = vrot.slane %v10871, 7
      %v10874 = vshll.u32 %v10723, 16
      %v10876 = vor.u32 %v10873, %v10874
      %v10877 = vsel %vm7157, %v10869, %v10876
      %v10878 = vrot.slane %v10873, 4
      %v10880 = vshrl.u32 %v10724, 16
      %v10882 = vrot.slane %v10880, 7
      %v10883 = vshll.u32 %v10724, 16
      %v10885 = vor.u32 %v10882, %v10883
      %v10886 = vsel %vm7157, %v10878, %v10885
      %v10888 = vshrl.u32 %v10725, 16
      %v10890 = vrot.slane %v10888, 7
      %v10891 = vrot.slane %v10890, 4
      %v10893 = vshrl.u32 %v10726, 16
      %v10895 = vrot.slane %v10893, 7
      %v10896 = vshll.u32 %v10726, 16
      %v10898 = vor.u32 %v10895, %v10896
      %v10899 = vsel %vm7157, %v10891, %v10898
      %v10900 = vrot.slane %v10895, 4
      %v10902 = vshrl.u32 %v10727, 16
      %v10904 = vrot.slane %v10902, 7
      %v10905 = vshll.u32 %v10727, 16
      %v10907 = vor.u32 %v10904, %v10905
      %v10908 = vsel %vm7157, %v10900, %v10907
      %v10910 = vshrl.u32 %v10728, 16
      %v10912 = vrot.slane %v10910, 7
      %v10913 = vrot.slane %v10912, 4
      %v10915 = vshrl.u32 %v10729, 16
      %v10917 = vrot.slane %v10915, 7
      %v10918 = vshll.u32 %v10729, 16
      %v10920 = vor.u32 %v10917, %v10918
      %v10921 = vsel %vm7157, %v10913, %v10920
      %v10922 = vrot.slane %v10917, 4
      %v10924 = vshrl.u32 %v10730, 16
      %v10926 = vrot.slane %v10924, 7
      %v10927 = vshll.u32 %v10730, 16
      %v10929 = vor.u32 %v10926, %v10927
      %v10930 = vsel %vm7157, %v10922, %v10929
      %v10932 = vshrl.u32 %v10731, 16
      %v10934 = vrot.slane %v10932, 7
      %v10935 = vrot.slane %v10934, 4
      %v10937 = vshrl.u32 %v10732, 16
      %v10939 = vrot.slane %v10937, 7
      %v10940 = vshll.u32 %v10732, 16
      %v10942 = vor.u32 %v10939, %v10940
      %v10943 = vsel %vm7157, %v10935, %v10942
      %v10944 = vrot.slane %v10939, 4
      %v10946 = vshrl.u32 %v10733, 16
      %v10948 = vrot.slane %v10946, 7
      %v10949 = vshll.u32 %v10733, 16
      %v10951 = vor.u32 %v10948, %v10949
      %v10952 = vsel %vm7157, %v10944, %v10951
      %v10954 = vshrl.u32 %v10734, 16
      %v10956 = vrot.slane %v10954, 7
      %v10957 = vrot.slane %v10956, 4
      %v10959 = vshrl.u32 %v10735, 16
      %v10961 = vrot.slane %v10959, 7
      %v10962 = vshll.u32 %v10735, 16
      %v10964 = vor.u32 %v10961, %v10962
      %v10965 = vsel %vm7157, %v10957, %v10964
      %v10966 = vrot.slane %v10961, 4
      %v10968 = vshrl.u32 %v10736, 16
      %v10970 = vrot.slane %v10968, 7
      %v10971 = vshll.u32 %v10736, 16
      %v10973 = vor.u32 %v10970, %v10971
      %v10974 = vsel %vm7157, %v10966, %v10973
      %v10976 = vshrl.u32 %v10737, 16
      %v10978 = vrot.slane %v10976, 7
      %v10979 = vrot.slane %v10978, 4
      %v10981 = vshrl.u32 %v10738, 16
      %v10983 = vrot.slane %v10981, 7
      %v10984 = vshll.u32 %v10738, 16
      %v10986 = vor.u32 %v10983, %v10984
      %v10987 = vsel %vm7157, %v10979, %v10986
      %v10988 = vrot.slane %v10983, 4
      %v10990 = vshrl.u32 %v10739, 16
      %v10992 = vrot.slane %v10990, 7
      %v10993 = vshll.u32 %v10739, 16
      %v10995 = vor.u32 %v10992, %v10993
      %v10996 = vsel %vm7157, %v10988, %v10995
      %v10998 = vshrl.u32 %v10740, 16
      %v11000 = vrot.slane %v10998, 7
      %v11001 = vrot.slane %v11000, 4
      %v11003 = vshrl.u32 %v10741, 16
      %v11005 = vrot.slane %v11003, 7
      %v11006 = vshll.u32 %v10741, 16
      %v11008 = vor.u32 %v11005, %v11006
      %v11009 = vsel %vm7157, %v11001, %v11008
      %v11010 = vrot.slane %v11005, 4
      %v11012 = vshrl.u32 %v10742, 16
      %v11014 = vrot.slane %v11012, 7
      %v11015 = vshll.u32 %v10742, 16
      %v11017 = vor.u32 %v11014, %v11015
      %v11018 = vsel %vm7157, %v11010, %v11017
      %v11020 = vshrl.u32 %v10743, 16
      %v11022 = vrot.slane %v11020, 7
      %v11023 = vrot.slane %v11022, 4
      %v11025 = vshrl.u32 %v10744, 16
      %v11027 = vrot.slane %v11025, 7
      %v11028 = vshll.u32 %v10744, 16
      %v11030 = vor.u32 %v11027, %v11028
      %v11031 = vsel %vm7157, %v11023, %v11030
      %v11032 = vrot.slane %v11027, 4
      %v11034 = vshrl.u32 %v10745, 16
      %v11036 = vrot.slane %v11034, 7
      %v11037 = vshll.u32 %v10745, 16
      %v11039 = vor.u32 %v11036, %v11037
      %v11040 = vsel %vm7157, %v11032, %v11039
      %v11042 = vshrl.u32 %v10746, 16
      %v11044 = vrot.slane %v11042, 7
      %v11045 = vrot.slane %v11044, 4
      %v11047 = vshrl.u32 %v10747, 16
      %v11049 = vrot.slane %v11047, 7
      %v11050 = vshll.u32 %v10747, 16
      %v11052 = vor.u32 %v11049, %v11050
      %v11053 = vsel %vm7157, %v11045, %v11052
      %v11054 = vrot.slane %v11049, 4
      %v11056 = vshrl.u32 %v10748, 16
      %v11058 = vrot.slane %v11056, 7
      %v11059 = vshll.u32 %v10748, 16
      %v11061 = vor.u32 %v11058, %v11059
      %v11062 = vsel %vm7157, %v11054, %v11061
      %v11064 = vshrl.u32 %v10749, 16
      %v11066 = vrot.slane %v11064, 7
      %v11067 = vrot.slane %v11066, 4
      %v11069 = vshrl.u32 %v10750, 16
      %v11071 = vrot.slane %v11069, 7
      %v11072 = vshll.u32 %v10750, 16
      %v11074 = vor.u32 %v11071, %v11072
      %v11075 = vsel %vm7157, %v11067, %v11074
      %v11076 = vrot.slane %v11071, 4
      %v11078 = vshrl.u32 %v10751, 16
      %v11080 = vrot.slane %v11078, 7
      %v11081 = vshll.u32 %v10751, 16
      %v11083 = vor.u32 %v11080, %v11081
      %v11084 = vsel %vm7157, %v11076, %v11083
      %v11086 = vshrl.u32 %v10752, 16
      %v11088 = vrot.slane %v11086, 7
      %v11089 = vrot.slane %v11088, 4
      %v11091 = vshrl.u32 %v10753, 16
      %v11093 = vrot.slane %v11091, 7
      %v11094 = vshll.u32 %v10753, 16
      %v11096 = vor.u32 %v11093, %v11094
      %v11097 = vsel %vm7157, %v11089, %v11096
      %v11098 = vrot.slane %v11093, 4
      %v11100 = vshrl.u32 %v10754, 16
      %v11102 = vrot.slane %v11100, 7
      %v11103 = vshll.u32 %v10754, 16
      %v11105 = vor.u32 %v11102, %v11103
      %v11106 = vsel %vm7157, %v11098, %v11105
      %s11107 = scalar_lea.vmem %s4, 384
      %v11108 = vld [vmem:[%s11107] sm:$0xf]
      %v11109 = vld [vmem:[%s11107 + $0x4] sm:$0xf]
      %v11110 = vld [vmem:[%s11107 + $0x8] sm:$0xf]
      %v11111 = vld [vmem:[%s11107 + $0xc] sm:$0xf]
      %v11112 = vld [vmem:[%s11107 + $0x10] sm:$0xf]
      %v11113 = vld [vmem:[%s11107 + $0x14] sm:$0xf]
      %v11114 = vld [vmem:[%s11107 + $0x18] sm:$0xf]
      %v11115 = vld [vmem:[%s11107 + $0x1c] sm:$0xf]
      %v11116 = vld [vmem:[%s11107 + $0x20] sm:$0xf]
      %v11117 = vld [vmem:[%s11107 + $0x24] sm:$0xf]
      %v11118 = vld [vmem:[%s11107 + $0x28] sm:$0xf]
      %v11119 = vld [vmem:[%s11107 + $0x2c] sm:$0xf]
      %v11120 = vld [vmem:[%s11107 + $0x30] sm:$0xf]
      %v11121 = vld [vmem:[%s11107 + $0x34] sm:$0xf]
      %v11122 = vld [vmem:[%s11107 + $0x38] sm:$0xf]
      %v11123 = vld [vmem:[%s11107 + $0x3c] sm:$0xf]
      %v11124 = vunpack.c.l.b16 %v10767
      %v11125 = vunpack.c.l.b16 %v10776
      %v11126 = vunpack.c.l.b16 %v10789
      %v11127 = vunpack.c.l.b16 %v10798
      %v11128 = vunpack.c.l.b16 %v10811
      %v11129 = vunpack.c.l.b16 %v10820
      %v11130 = vunpack.c.l.b16 %v10833
      %v11131 = vunpack.c.l.b16 %v10842
      %v11132 = vunpack.c.l.b16 %v10855
      %v11133 = vunpack.c.l.b16 %v10864
      %v11134 = vunpack.c.l.b16 %v10877
      %v11135 = vunpack.c.l.b16 %v10886
      %v11136 = vunpack.c.l.b16 %v10899
      %v11137 = vunpack.c.l.b16 %v10908
      %v11138 = vunpack.c.l.b16 %v10921
      %v11139 = vunpack.c.l.b16 %v10930
      %v11140 = vunpack.c.l.b16 %v10943
      %v11141 = vunpack.c.l.b16 %v10952
      %v11142 = vunpack.c.l.b16 %v10965
      %v11143 = vunpack.c.l.b16 %v10974
      %v11144 = vunpack.c.l.b16 %v10987
      %v11145 = vunpack.c.l.b16 %v10996
      %v11146 = vunpack.c.l.b16 %v11009
      %v11147 = vunpack.c.l.b16 %v11018
      %v11148 = vunpack.c.l.b16 %v11031
      %v11149 = vunpack.c.l.b16 %v11040
      %v11150 = vunpack.c.l.b16 %v11053
      %v11151 = vunpack.c.l.b16 %v11062
      %v11152 = vunpack.c.l.b16 %v11075
      %v11153 = vunpack.c.l.b16 %v11084
      %v11154 = vunpack.c.l.b16 %v11097
      %v11155 = vunpack.c.l.b16 %v11106
      %v11156 = vpack.c.b16 %v11125, %v11124
      %v11157 = vpack.c.b16 %v11127, %v11126
      %v11158 = vpack.c.b16 %v11129, %v11128
      %v11159 = vpack.c.b16 %v11131, %v11130
      %v11160 = vpack.c.b16 %v11133, %v11132
      %v11161 = vpack.c.b16 %v11135, %v11134
      %v11162 = vpack.c.b16 %v11137, %v11136
      %v11163 = vpack.c.b16 %v11139, %v11138
      %v11164 = vpack.c.b16 %v11141, %v11140
      %v11165 = vpack.c.b16 %v11143, %v11142
      %v11166 = vpack.c.b16 %v11145, %v11144
      %v11167 = vpack.c.b16 %v11147, %v11146
      %v11168 = vpack.c.b16 %v11149, %v11148
      %v11169 = vpack.c.b16 %v11151, %v11150
      %v11170 = vpack.c.b16 %v11153, %v11152
      %v11171 = vpack.c.b16 %v11155, %v11154
      %v11204 = vunpack.c.l.b16 %v11108
      %v11205 = vunpack.c.l.b16 %v11109
      %v11206 = vunpack.c.l.b16 %v11110
      %v11207 = vunpack.c.l.b16 %v11111
      %v11208 = vunpack.c.l.b16 %v11112
      %v11209 = vunpack.c.l.b16 %v11113
      %v11210 = vunpack.c.l.b16 %v11114
      %v11211 = vunpack.c.l.b16 %v11115
      %v11212 = vunpack.c.l.b16 %v11116
      %v11213 = vunpack.c.l.b16 %v11117
      %v11214 = vunpack.c.l.b16 %v11118
      %v11215 = vunpack.c.l.b16 %v11119
      %v11216 = vunpack.c.l.b16 %v11120
      %v11217 = vunpack.c.l.b16 %v11121
      %v11218 = vunpack.c.l.b16 %v11122
      %v11219 = vunpack.c.l.b16 %v11123
      %v11220 = vpack.c.b16 %v11205, %v11204
      %v11221 = vpack.c.b16 %v11207, %v11206
      %v11222 = vpack.c.b16 %v11209, %v11208
      %v11223 = vpack.c.b16 %v11211, %v11210
      %v11224 = vpack.c.b16 %v11213, %v11212
      %v11225 = vpack.c.b16 %v11215, %v11214
      %v11226 = vpack.c.b16 %v11217, %v11216
      %v11227 = vpack.c.b16 %v11219, %v11218
      %11236 = vmatprep.subr.bf16.mxu0 0
      %11237 = vmatpush1.bf16.msra.mxu0 %v11227
      %11238 = vmatprep.subr.bf16.mxu0 0
      %11239 = vmatpush1.bf16.msra.mxu0 %v11226
      %11240 = vmatprep.subr.bf16.mxu0 0
      %11241 = vmatpush1.bf16.msra.mxu0 %v11225
      %11242 = vmatprep.subr.bf16.mxu0 0
      %11243 = vmatpush1.bf16.msra.mxu0 %v11224
      %11244 = vmatprep.subr.bf16.mxu0 0
      %11245 = vmatpush1.bf16.msra.mxu0 %v11223
      %11246 = vmatprep.subr.bf16.mxu0 0
      %11247 = vmatpush1.bf16.msra.mxu0 %v11222
      %11248 = vmatprep.subr.bf16.mxu0 0
      %11249 = vmatpush1.bf16.msra.mxu0 %v11221
      %11250 = vmatprep.subr.bf16.mxu0 0
      %11251 = vmatpush1.bf16.msra.mxu0 %v11220
      %11252 = vmatprep.subr.bf16.mxu0 0
      %11253 = vmatpush2.bf16.msra.mxu0 0
      %11254 = vmatprep.subr.bf16.mxu0 0
      %11255 = vmatpush2.bf16.msra.mxu0 0
      %11256 = vmatprep.subr.bf16.mxu0 0
      %11257 = vmatpush2.bf16.msra.mxu0 0
      %11258 = vmatprep.subr.bf16.mxu0 0
      %11259 = vmatpush2.bf16.msra.mxu0 0
      %11260 = vmatprep.subr.bf16.mxu0 0
      %11261 = vmatpush2.bf16.msra.mxu0 0
      %11262 = vmatprep.subr.bf16.mxu0 0
      %11263 = vmatpush2.bf16.msra.mxu0 0
      %11264 = vmatprep.subr.bf16.mxu0 0
      %11265 = vmatpush2.bf16.msra.mxu0 0
      %11266 = vmatprep.subr.bf16.mxu0 0
      %11267 = vmatpush2.bf16.msra.mxu0 0
      %11268 = vmatprep.mubr.bf16.mxu0 0
      %11269 = vmatmul.mubr.bf16.gmra.mxu0 %v11156
      %v11270 = vpop.f32.mrf.mxu0
      %v11271 = vadd.f32 0.0, %v11270
      %v11272 = vpop.f32.mrf.mxu0
      %v11273 = vpop.f32.mrf.mxu0
      %v11274 = vadd.f32 0.0, %v11273
      %v11275 = vpop.f32.mrf.mxu0
      %11276 = vmatprep.mubr.bf16.mxu0 0
      %11277 = vmatmul.mubr.bf16.gmra.mxu0 %v11157
      %v11278 = vpop.f32.mrf.mxu0
      %v11279 = vadd.f32 0.0, %v11278
      %v11280 = vpop.f32.mrf.mxu0
      %v11281 = vpop.f32.mrf.mxu0
      %v11282 = vadd.f32 0.0, %v11281
      %v11283 = vpop.f32.mrf.mxu0
      %11284 = vmatprep.mubr.bf16.mxu0 0
      %11285 = vmatmul.mubr.bf16.gmra.mxu0 %v11158
      %v11286 = vpop.f32.mrf.mxu0
      %v11287 = vadd.f32 0.0, %v11286
      %v11288 = vpop.f32.mrf.mxu0
      %v11289 = vpop.f32.mrf.mxu0
      %v11290 = vadd.f32 0.0, %v11289
      %v11291 = vpop.f32.mrf.mxu0
      %11292 = vmatprep.mubr.bf16.mxu0 0
      %11293 = vmatmul.mubr.bf16.gmra.mxu0 %v11159
      %v11294 = vpop.f32.mrf.mxu0
      %v11295 = vadd.f32 0.0, %v11294
      %v11296 = vpop.f32.mrf.mxu0
      %v11297 = vpop.f32.mrf.mxu0
      %v11298 = vadd.f32 0.0, %v11297
      %v11299 = vpop.f32.mrf.mxu0
      %11300 = vmatprep.mubr.bf16.mxu0 0
      %11301 = vmatmul.mubr.bf16.gmra.mxu0 %v11160
      %v11302 = vpop.f32.mrf.mxu0
      %v11303 = vadd.f32 0.0, %v11302
      %v11304 = vpop.f32.mrf.mxu0
      %v11305 = vpop.f32.mrf.mxu0
      %v11306 = vadd.f32 0.0, %v11305
      %v11307 = vpop.f32.mrf.mxu0
      %11308 = vmatprep.mubr.bf16.mxu0 0
      %11309 = vmatmul.mubr.bf16.gmra.mxu0 %v11161
      %v11310 = vpop.f32.mrf.mxu0
      %v11311 = vadd.f32 0.0, %v11310
      %v11312 = vpop.f32.mrf.mxu0
      %v11313 = vpop.f32.mrf.mxu0
      %v11314 = vadd.f32 0.0, %v11313
      %v11315 = vpop.f32.mrf.mxu0
      %11316 = vmatprep.mubr.bf16.mxu0 0
      %11317 = vmatmul.mubr.bf16.gmra.mxu0 %v11162
      %v11318 = vpop.f32.mrf.mxu0
      %v11319 = vadd.f32 0.0, %v11318
      %v11320 = vpop.f32.mrf.mxu0
      %v11321 = vpop.f32.mrf.mxu0
      %v11322 = vadd.f32 0.0, %v11321
      %v11323 = vpop.f32.mrf.mxu0
      %11324 = vmatprep.mubr.bf16.mxu0 0
      %11325 = vmatmul.mubr.bf16.gmra.mxu0 %v11163
      %v11326 = vpop.f32.mrf.mxu0
      %v11327 = vadd.f32 0.0, %v11326
      %v11328 = vpop.f32.mrf.mxu0
      %v11329 = vpop.f32.mrf.mxu0
      %v11330 = vadd.f32 0.0, %v11329
      %v11331 = vpop.f32.mrf.mxu0
      %11332 = vmatprep.mubr.bf16.mxu0 0
      %11333 = vmatmul.mubr.bf16.gmra.mxu0 %v11164
      %v11334 = vpop.f32.mrf.mxu0
      %v11335 = vadd.f32 0.0, %v11334
      %v11336 = vpop.f32.mrf.mxu0
      %v11337 = vpop.f32.mrf.mxu0
      %v11338 = vadd.f32 0.0, %v11337
      %v11339 = vpop.f32.mrf.mxu0
      %11340 = vmatprep.mubr.bf16.mxu0 0
      %11341 = vmatmul.mubr.bf16.gmra.mxu0 %v11165
      %v11342 = vpop.f32.mrf.mxu0
      %v11343 = vadd.f32 0.0, %v11342
      %v11344 = vpop.f32.mrf.mxu0
      %v11345 = vpop.f32.mrf.mxu0
      %v11346 = vadd.f32 0.0, %v11345
      %v11347 = vpop.f32.mrf.mxu0
      %11348 = vmatprep.mubr.bf16.mxu0 0
      %11349 = vmatmul.mubr.bf16.gmra.mxu0 %v11166
      %v11350 = vpop.f32.mrf.mxu0
      %v11351 = vadd.f32 0.0, %v11350
      %v11352 = vpop.f32.mrf.mxu0
      %v11353 = vpop.f32.mrf.mxu0
      %v11354 = vadd.f32 0.0, %v11353
      %v11355 = vpop.f32.mrf.mxu0
      %11356 = vmatprep.mubr.bf16.mxu0 0
      %11357 = vmatmul.mubr.bf16.gmra.mxu0 %v11167
      %v11358 = vpop.f32.mrf.mxu0
      %v11359 = vadd.f32 0.0, %v11358
      %v11360 = vpop.f32.mrf.mxu0
      %v11361 = vpop.f32.mrf.mxu0
      %v11362 = vadd.f32 0.0, %v11361
      %v11363 = vpop.f32.mrf.mxu0
      %11364 = vmatprep.mubr.bf16.mxu0 0
      %11365 = vmatmul.mubr.bf16.gmra.mxu0 %v11168
      %v11366 = vpop.f32.mrf.mxu0
      %v11367 = vadd.f32 0.0, %v11366
      %v11368 = vpop.f32.mrf.mxu0
      %v11369 = vpop.f32.mrf.mxu0
      %v11370 = vadd.f32 0.0, %v11369
      %v11371 = vpop.f32.mrf.mxu0
      %11372 = vmatprep.mubr.bf16.mxu0 0
      %11373 = vmatmul.mubr.bf16.gmra.mxu0 %v11169
      %v11374 = vpop.f32.mrf.mxu0
      %v11375 = vadd.f32 0.0, %v11374
      %v11376 = vpop.f32.mrf.mxu0
      %v11377 = vpop.f32.mrf.mxu0
      %v11378 = vadd.f32 0.0, %v11377
      %v11379 = vpop.f32.mrf.mxu0
      %11380 = vmatprep.mubr.bf16.mxu0 0
      %11381 = vmatmul.mubr.bf16.gmra.mxu0 %v11170
      %v11382 = vpop.f32.mrf.mxu0
      %v11383 = vadd.f32 0.0, %v11382
      %v11384 = vpop.f32.mrf.mxu0
      %v11385 = vpop.f32.mrf.mxu0
      %v11386 = vadd.f32 0.0, %v11385
      %v11387 = vpop.f32.mrf.mxu0
      %11388 = vmatprep.mubr.bf16.mxu0 0
      %11389 = vmatmul.mubr.bf16.gmra.mxu0 %v11171
      %v11390 = vpop.f32.mrf.mxu0
      %v11391 = vadd.f32 0.0, %v11390
      %v11392 = vpop.f32.mrf.mxu0
      %v11393 = vpop.f32.mrf.mxu0
      %v11394 = vadd.f32 0.0, %v11393
      %v11395 = vpop.f32.mrf.mxu0
      %11396 = vdwg.mxu0
      %v11397 = vadd.f32 %v10674, %v11271
      %v11398 = vadd.f32 %v10675, %v11274
      %v11399 = vadd.f32 %v10676, %v11279
      %v11400 = vadd.f32 %v10677, %v11282
      %v11401 = vadd.f32 %v10678, %v11287
      %v11402 = vadd.f32 %v10679, %v11290
      %v11403 = vadd.f32 %v10680, %v11295
      %v11404 = vadd.f32 %v10681, %v11298
      %v11405 = vadd.f32 %v10682, %v11303
      %v11406 = vadd.f32 %v10683, %v11306
      %v11407 = vadd.f32 %v10684, %v11311
      %v11408 = vadd.f32 %v10685, %v11314
      %v11409 = vadd.f32 %v10686, %v11319
      %v11410 = vadd.f32 %v10687, %v11322
      %v11411 = vadd.f32 %v10688, %v11327
      %v11412 = vadd.f32 %v10689, %v11330
      %v11413 = vadd.f32 %v10690, %v11335
      %v11414 = vadd.f32 %v10691, %v11338
      %v11415 = vadd.f32 %v10692, %v11343
      %v11416 = vadd.f32 %v10693, %v11346
      %v11417 = vadd.f32 %v10694, %v11351
      %v11418 = vadd.f32 %v10695, %v11354
      %v11419 = vadd.f32 %v10696, %v11359
      %v11420 = vadd.f32 %v10697, %v11362
      %v11421 = vadd.f32 %v10698, %v11367
      %v11422 = vadd.f32 %v10699, %v11370
      %v11423 = vadd.f32 %v10700, %v11375
      %v11424 = vadd.f32 %v10701, %v11378
      %v11425 = vadd.f32 %v10702, %v11383
      %v11426 = vadd.f32 %v10703, %v11386
      %v11427 = vadd.f32 %v10704, %v11391
      %v11428 = vadd.f32 %v10705, %v11394
      %s11429 = scalar_lea.vmem %s4, 448
      %v11430 = vld [vmem:[%s11429] sm:$0xf]
      %v11431 = vld [vmem:[%s11429 + $0x4] sm:$0xf]
      %v11432 = vld [vmem:[%s11429 + $0x8] sm:$0xf]
      %v11433 = vld [vmem:[%s11429 + $0xc] sm:$0xf]
      %v11434 = vld [vmem:[%s11429 + $0x10] sm:$0xf]
      %v11435 = vld [vmem:[%s11429 + $0x14] sm:$0xf]
      %v11436 = vld [vmem:[%s11429 + $0x18] sm:$0xf]
      %v11437 = vld [vmem:[%s11429 + $0x1c] sm:$0xf]
      %v11438 = vld [vmem:[%s11429 + $0x20] sm:$0xf]
      %v11439 = vld [vmem:[%s11429 + $0x24] sm:$0xf]
      %v11440 = vld [vmem:[%s11429 + $0x28] sm:$0xf]
      %v11441 = vld [vmem:[%s11429 + $0x2c] sm:$0xf]
      %v11442 = vld [vmem:[%s11429 + $0x30] sm:$0xf]
      %v11443 = vld [vmem:[%s11429 + $0x34] sm:$0xf]
      %v11444 = vld [vmem:[%s11429 + $0x38] sm:$0xf]
      %v11445 = vld [vmem:[%s11429 + $0x3c] sm:$0xf]
      %v11478 = vunpack.c.l.b16 %v10708
      %v11479 = vunpack.c.l.b16 %v10709
      %v11480 = vunpack.c.l.b16 %v10711
      %v11481 = vunpack.c.l.b16 %v10712
      %v11482 = vunpack.c.l.b16 %v10714
      %v11483 = vunpack.c.l.b16 %v10715
      %v11484 = vunpack.c.l.b16 %v10717
      %v11485 = vunpack.c.l.b16 %v10718
      %v11486 = vunpack.c.l.b16 %v10720
      %v11487 = vunpack.c.l.b16 %v10721
      %v11488 = vunpack.c.l.b16 %v10723
      %v11489 = vunpack.c.l.b16 %v10724
      %v11490 = vunpack.c.l.b16 %v10726
      %v11491 = vunpack.c.l.b16 %v10727
      %v11492 = vunpack.c.l.b16 %v10729
      %v11493 = vunpack.c.l.b16 %v10730
      %v11494 = vunpack.c.l.b16 %v10732
      %v11495 = vunpack.c.l.b16 %v10733
      %v11496 = vunpack.c.l.b16 %v10735
      %v11497 = vunpack.c.l.b16 %v10736
      %v11498 = vunpack.c.l.b16 %v10738
      %v11499 = vunpack.c.l.b16 %v10739
      %v11500 = vunpack.c.l.b16 %v10741
      %v11501 = vunpack.c.l.b16 %v10742
      %v11502 = vunpack.c.l.b16 %v10744
      %v11503 = vunpack.c.l.b16 %v10745
      %v11504 = vunpack.c.l.b16 %v10747
      %v11505 = vunpack.c.l.b16 %v10748
      %v11506 = vunpack.c.l.b16 %v10750
      %v11507 = vunpack.c.l.b16 %v10751
      %v11508 = vunpack.c.l.b16 %v10753
      %v11509 = vunpack.c.l.b16 %v10754
      %v11510 = vpack.c.b16 %v11479, %v11478
      %v11511 = vpack.c.b16 %v11481, %v11480
      %v11512 = vpack.c.b16 %v11483, %v11482
      %v11513 = vpack.c.b16 %v11485, %v11484
      %v11514 = vpack.c.b16 %v11487, %v11486
      %v11515 = vpack.c.b16 %v11489, %v11488
      %v11516 = vpack.c.b16 %v11491, %v11490
      %v11517 = vpack.c.b16 %v11493, %v11492
      %v11518 = vpack.c.b16 %v11495, %v11494
      %v11519 = vpack.c.b16 %v11497, %v11496
      %v11520 = vpack.c.b16 %v11499, %v11498
      %v11521 = vpack.c.b16 %v11501, %v11500
      %v11522 = vpack.c.b16 %v11503, %v11502
      %v11523 = vpack.c.b16 %v11505, %v11504
      %v11524 = vpack.c.b16 %v11507, %v11506
      %v11525 = vpack.c.b16 %v11509, %v11508
      %v11558 = vunpack.c.l.b16 %v11430
      %v11559 = vunpack.c.l.b16 %v11431
      %v11560 = vunpack.c.l.b16 %v11432
      %v11561 = vunpack.c.l.b16 %v11433
      %v11562 = vunpack.c.l.b16 %v11434
      %v11563 = vunpack.c.l.b16 %v11435
      %v11564 = vunpack.c.l.b16 %v11436
      %v11565 = vunpack.c.l.b16 %v11437
      %v11566 = vunpack.c.l.b16 %v11438
      %v11567 = vunpack.c.l.b16 %v11439
      %v11568 = vunpack.c.l.b16 %v11440
      %v11569 = vunpack.c.l.b16 %v11441
      %v11570 = vunpack.c.l.b16 %v11442
      %v11571 = vunpack.c.l.b16 %v11443
      %v11572 = vunpack.c.l.b16 %v11444
      %v11573 = vunpack.c.l.b16 %v11445
      %v11574 = vpack.c.b16 %v11559, %v11558
      %v11575 = vpack.c.b16 %v11561, %v11560
      %v11576 = vpack.c.b16 %v11563, %v11562
      %v11577 = vpack.c.b16 %v11565, %v11564
      %v11578 = vpack.c.b16 %v11567, %v11566
      %v11579 = vpack.c.b16 %v11569, %v11568
      %v11580 = vpack.c.b16 %v11571, %v11570
      %v11581 = vpack.c.b16 %v11573, %v11572
      %11590 = vmatprep.subr.bf16.mxu0 0
      %11591 = vmatpush1.bf16.msra.mxu0 %v11581
      %11592 = vmatprep.subr.bf16.mxu0 0
      %11593 = vmatpush1.bf16.msra.mxu0 %v11580
      %11594 = vmatprep.subr.bf16.mxu0 0
      %11595 = vmatpush1.bf16.msra.mxu0 %v11579
      %11596 = vmatprep.subr.bf16.mxu0 0
      %11597 = vmatpush1.bf16.msra.mxu0 %v11578
      %11598 = vmatprep.subr.bf16.mxu0 0
      %11599 = vmatpush1.bf16.msra.mxu0 %v11577
      %11600 = vmatprep.subr.bf16.mxu0 0
      %11601 = vmatpush1.bf16.msra.mxu0 %v11576
      %11602 = vmatprep.subr.bf16.mxu0 0
      %11603 = vmatpush1.bf16.msra.mxu0 %v11575
      %11604 = vmatprep.subr.bf16.mxu0 0
      %11605 = vmatpush1.bf16.msra.mxu0 %v11574
      %11606 = vmatprep.subr.bf16.mxu0 0
      %11607 = vmatpush2.bf16.msra.mxu0 0
      %11608 = vmatprep.subr.bf16.mxu0 0
      %11609 = vmatpush2.bf16.msra.mxu0 0
      %11610 = vmatprep.subr.bf16.mxu0 0
      %11611 = vmatpush2.bf16.msra.mxu0 0
      %11612 = vmatprep.subr.bf16.mxu0 0
      %11613 = vmatpush2.bf16.msra.mxu0 0
      %11614 = vmatprep.subr.bf16.mxu0 0
      %11615 = vmatpush2.bf16.msra.mxu0 0
      %11616 = vmatprep.subr.bf16.mxu0 0
      %11617 = vmatpush2.bf16.msra.mxu0 0
      %11618 = vmatprep.subr.bf16.mxu0 0
      %11619 = vmatpush2.bf16.msra.mxu0 0
      %11620 = vmatprep.subr.bf16.mxu0 0
      %11621 = vmatpush2.bf16.msra.mxu0 0
      %11622 = vmatprep.mubr.bf16.mxu0 0
      %11623 = vmatmul.mubr.bf16.gmra.mxu0 %v11510
      %v11624 = vpop.f32.mrf.mxu0
      %v11625 = vadd.f32 0.0, %v11624
      %v11626 = vpop.f32.mrf.mxu0
      %v11627 = vpop.f32.mrf.mxu0
      %v11628 = vadd.f32 0.0, %v11627
      %v11629 = vpop.f32.mrf.mxu0
      %11630 = vmatprep.mubr.bf16.mxu0 0
      %11631 = vmatmul.mubr.bf16.gmra.mxu0 %v11511
      %v11632 = vpop.f32.mrf.mxu0
      %v11633 = vadd.f32 0.0, %v11632
      %v11634 = vpop.f32.mrf.mxu0
      %v11635 = vpop.f32.mrf.mxu0
      %v11636 = vadd.f32 0.0, %v11635
      %v11637 = vpop.f32.mrf.mxu0
      %11638 = vmatprep.mubr.bf16.mxu0 0
      %11639 = vmatmul.mubr.bf16.gmra.mxu0 %v11512
      %v11640 = vpop.f32.mrf.mxu0
      %v11641 = vadd.f32 0.0, %v11640
      %v11642 = vpop.f32.mrf.mxu0
      %v11643 = vpop.f32.mrf.mxu0
      %v11644 = vadd.f32 0.0, %v11643
      %v11645 = vpop.f32.mrf.mxu0
      %11646 = vmatprep.mubr.bf16.mxu0 0
      %11647 = vmatmul.mubr.bf16.gmra.mxu0 %v11513
      %v11648 = vpop.f32.mrf.mxu0
      %v11649 = vadd.f32 0.0, %v11648
      %v11650 = vpop.f32.mrf.mxu0
      %v11651 = vpop.f32.mrf.mxu0
      %v11652 = vadd.f32 0.0, %v11651
      %v11653 = vpop.f32.mrf.mxu0
      %11654 = vmatprep.mubr.bf16.mxu0 0
      %11655 = vmatmul.mubr.bf16.gmra.mxu0 %v11514
      %v11656 = vpop.f32.mrf.mxu0
      %v11657 = vadd.f32 0.0, %v11656
      %v11658 = vpop.f32.mrf.mxu0
      %v11659 = vpop.f32.mrf.mxu0
      %v11660 = vadd.f32 0.0, %v11659
      %v11661 = vpop.f32.mrf.mxu0
      %11662 = vmatprep.mubr.bf16.mxu0 0
      %11663 = vmatmul.mubr.bf16.gmra.mxu0 %v11515
      %v11664 = vpop.f32.mrf.mxu0
      %v11665 = vadd.f32 0.0, %v11664
      %v11666 = vpop.f32.mrf.mxu0
      %v11667 = vpop.f32.mrf.mxu0
      %v11668 = vadd.f32 0.0, %v11667
      %v11669 = vpop.f32.mrf.mxu0
      %11670 = vmatprep.mubr.bf16.mxu0 0
      %11671 = vmatmul.mubr.bf16.gmra.mxu0 %v11516
      %v11672 = vpop.f32.mrf.mxu0
      %v11673 = vadd.f32 0.0, %v11672
      %v11674 = vpop.f32.mrf.mxu0
      %v11675 = vpop.f32.mrf.mxu0
      %v11676 = vadd.f32 0.0, %v11675
      %v11677 = vpop.f32.mrf.mxu0
      %11678 = vmatprep.mubr.bf16.mxu0 0
      %11679 = vmatmul.mubr.bf16.gmra.mxu0 %v11517
      %v11680 = vpop.f32.mrf.mxu0
      %v11681 = vadd.f32 0.0, %v11680
      %v11682 = vpop.f32.mrf.mxu0
      %v11683 = vpop.f32.mrf.mxu0
      %v11684 = vadd.f32 0.0, %v11683
      %v11685 = vpop.f32.mrf.mxu0
      %11686 = vmatprep.mubr.bf16.mxu0 0
      %11687 = vmatmul.mubr.bf16.gmra.mxu0 %v11518
      %v11688 = vpop.f32.mrf.mxu0
      %v11689 = vadd.f32 0.0, %v11688
      %v11690 = vpop.f32.mrf.mxu0
      %v11691 = vpop.f32.mrf.mxu0
      %v11692 = vadd.f32 0.0, %v11691
      %v11693 = vpop.f32.mrf.mxu0
      %11694 = vmatprep.mubr.bf16.mxu0 0
      %11695 = vmatmul.mubr.bf16.gmra.mxu0 %v11519
      %v11696 = vpop.f32.mrf.mxu0
      %v11697 = vadd.f32 0.0, %v11696
      %v11698 = vpop.f32.mrf.mxu0
      %v11699 = vpop.f32.mrf.mxu0
      %v11700 = vadd.f32 0.0, %v11699
      %v11701 = vpop.f32.mrf.mxu0
      %11702 = vmatprep.mubr.bf16.mxu0 0
      %11703 = vmatmul.mubr.bf16.gmra.mxu0 %v11520
      %v11704 = vpop.f32.mrf.mxu0
      %v11705 = vadd.f32 0.0, %v11704
      %v11706 = vpop.f32.mrf.mxu0
      %v11707 = vpop.f32.mrf.mxu0
      %v11708 = vadd.f32 0.0, %v11707
      %v11709 = vpop.f32.mrf.mxu0
      %11710 = vmatprep.mubr.bf16.mxu0 0
      %11711 = vmatmul.mubr.bf16.gmra.mxu0 %v11521
      %v11712 = vpop.f32.mrf.mxu0
      %v11713 = vadd.f32 0.0, %v11712
      %v11714 = vpop.f32.mrf.mxu0
      %v11715 = vpop.f32.mrf.mxu0
      %v11716 = vadd.f32 0.0, %v11715
      %v11717 = vpop.f32.mrf.mxu0
      %11718 = vmatprep.mubr.bf16.mxu0 0
      %11719 = vmatmul.mubr.bf16.gmra.mxu0 %v11522
      %v11720 = vpop.f32.mrf.mxu0
      %v11721 = vadd.f32 0.0, %v11720
      %v11722 = vpop.f32.mrf.mxu0
      %v11723 = vpop.f32.mrf.mxu0
      %v11724 = vadd.f32 0.0, %v11723
      %v11725 = vpop.f32.mrf.mxu0
      %11726 = vmatprep.mubr.bf16.mxu0 0
      %11727 = vmatmul.mubr.bf16.gmra.mxu0 %v11523
      %v11728 = vpop.f32.mrf.mxu0
      %v11729 = vadd.f32 0.0, %v11728
      %v11730 = vpop.f32.mrf.mxu0
      %v11731 = vpop.f32.mrf.mxu0
      %v11732 = vadd.f32 0.0, %v11731
      %v11733 = vpop.f32.mrf.mxu0
      %11734 = vmatprep.mubr.bf16.mxu0 0
      %11735 = vmatmul.mubr.bf16.gmra.mxu0 %v11524
      %v11736 = vpop.f32.mrf.mxu0
      %v11737 = vadd.f32 0.0, %v11736
      %v11738 = vpop.f32.mrf.mxu0
      %v11739 = vpop.f32.mrf.mxu0
      %v11740 = vadd.f32 0.0, %v11739
      %v11741 = vpop.f32.mrf.mxu0
      %11742 = vmatprep.mubr.bf16.mxu0 0
      %11743 = vmatmul.mubr.bf16.gmra.mxu0 %v11525
      %v11744 = vpop.f32.mrf.mxu0
      %v11745 = vadd.f32 0.0, %v11744
      %v11746 = vpop.f32.mrf.mxu0
      %v11747 = vpop.f32.mrf.mxu0
      %v11748 = vadd.f32 0.0, %v11747
      %v11749 = vpop.f32.mrf.mxu0
      %11750 = vdwg.mxu0
      %v11751 = vadd.f32 %v11397, %v11625
      %v11752 = vadd.f32 %v11398, %v11628
      %v11753 = vadd.f32 %v11399, %v11633
      %v11754 = vadd.f32 %v11400, %v11636
      %v11755 = vadd.f32 %v11401, %v11641
      %v11756 = vadd.f32 %v11402, %v11644
      %v11757 = vadd.f32 %v11403, %v11649
      %v11758 = vadd.f32 %v11404, %v11652
      %v11759 = vadd.f32 %v11405, %v11657
      %v11760 = vadd.f32 %v11406, %v11660
      %v11761 = vadd.f32 %v11407, %v11665
      %v11762 = vadd.f32 %v11408, %v11668
      %v11763 = vadd.f32 %v11409, %v11673
      %v11764 = vadd.f32 %v11410, %v11676
      %v11765 = vadd.f32 %v11411, %v11681
      %v11766 = vadd.f32 %v11412, %v11684
      %v11767 = vadd.f32 %v11413, %v11689
      %v11768 = vadd.f32 %v11414, %v11692
      %v11769 = vadd.f32 %v11415, %v11697
      %v11770 = vadd.f32 %v11416, %v11700
      %v11771 = vadd.f32 %v11417, %v11705
      %v11772 = vadd.f32 %v11418, %v11708
      %v11773 = vadd.f32 %v11419, %v11713
      %v11774 = vadd.f32 %v11420, %v11716
      %v11775 = vadd.f32 %v11421, %v11721
      %v11776 = vadd.f32 %v11422, %v11724
      %v11777 = vadd.f32 %v11423, %v11729
      %v11778 = vadd.f32 %v11424, %v11732
      %v11779 = vadd.f32 %v11425, %v11737
      %v11780 = vadd.f32 %v11426, %v11740
      %v11781 = vadd.f32 %v11427, %v11745
      %v11782 = vadd.f32 %v11428, %v11748
      %v11783 = vld [vmem:[%s10706 + $0x4] sm:$0xf]
      %v11784 = vld [vmem:[%s10706 + $0x8] sm:$0xf]
      %v11785 = vld [vmem:[%s10706 + $0xc] sm:$0x1]
      %v11786 = vld [vmem:[%s10706 + $0x14] sm:$0xf]
      %v11787 = vld [vmem:[%s10706 + $0x18] sm:$0xf]
      %v11788 = vld [vmem:[%s10706 + $0x1c] sm:$0x1]
      %v11789 = vld [vmem:[%s10706 + $0x24] sm:$0xf]
      %v11790 = vld [vmem:[%s10706 + $0x28] sm:$0xf]
      %v11791 = vld [vmem:[%s10706 + $0x2c] sm:$0x1]
      %v11792 = vld [vmem:[%s10706 + $0x34] sm:$0xf]
      %v11793 = vld [vmem:[%s10706 + $0x38] sm:$0xf]
      %v11794 = vld [vmem:[%s10706 + $0x3c] sm:$0x1]
      %v11795 = vld [vmem:[%s10706 + $0x44] sm:$0xf]
      %v11796 = vld [vmem:[%s10706 + $0x48] sm:$0xf]
      %v11797 = vld [vmem:[%s10706 + $0x4c] sm:$0x1]
      %v11798 = vld [vmem:[%s10706 + $0x54] sm:$0xf]
      %v11799 = vld [vmem:[%s10706 + $0x58] sm:$0xf]
      %v11800 = vld [vmem:[%s10706 + $0x5c] sm:$0x1]
      %v11801 = vld [vmem:[%s10706 + $0x64] sm:$0xf]
      %v11802 = vld [vmem:[%s10706 + $0x68] sm:$0xf]
      %v11803 = vld [vmem:[%s10706 + $0x6c] sm:$0x1]
      %v11804 = vld [vmem:[%s10706 + $0x74] sm:$0xf]
      %v11805 = vld [vmem:[%s10706 + $0x78] sm:$0xf]
      %v11806 = vld [vmem:[%s10706 + $0x7c] sm:$0x1]
      %v11807 = vld [vmem:[%s10706 + $0x84] sm:$0xf]
      %v11808 = vld [vmem:[%s10706 + $0x88] sm:$0xf]
      %v11809 = vld [vmem:[%s10706 + $0x8c] sm:$0x1]
      %v11810 = vld [vmem:[%s10706 + $0x94] sm:$0xf]
      %v11811 = vld [vmem:[%s10706 + $0x98] sm:$0xf]
      %v11812 = vld [vmem:[%s10706 + $0x9c] sm:$0x1]
      %v11813 = vld [vmem:[%s10706 + $0xa4] sm:$0xf]
      %v11814 = vld [vmem:[%s10706 + $0xa8] sm:$0xf]
      %v11815 = vld [vmem:[%s10706 + $0xac] sm:$0x1]
      %v11816 = vld [vmem:[%s10706 + $0xb4] sm:$0xf]
      %v11817 = vld [vmem:[%s10706 + $0xb8] sm:$0xf]
      %v11818 = vld [vmem:[%s10706 + $0xbc] sm:$0x1]
      %v11819 = vld [vmem:[%s10706 + $0xc4] sm:$0xf]
      %v11820 = vld [vmem:[%s10706 + $0xc8] sm:$0xf]
      %v11821 = vld [vmem:[%s10706 + $0xcc] sm:$0x1]
      %v11822 = vld [vmem:[%s10706 + $0xd4] sm:$0xf]
      %v11823 = vld [vmem:[%s10706 + $0xd8] sm:$0xf]
      %v11824 = vld [vmem:[%s10706 + $0xdc] sm:$0x1]
      %v11825 = vld [vmem:[%s10706 + $0xe4] sm:$0xf]
      %v11826 = vld [vmem:[%s10706 + $0xe8] sm:$0xf]
      %v11827 = vld [vmem:[%s10706 + $0xec] sm:$0x1]
      %v11828 = vld [vmem:[%s10706 + $0xf4] sm:$0xf]
      %v11829 = vld [vmem:[%s10706 + $0xf8] sm:$0xf]
      %v11830 = vld [vmem:[%s10706 + $0xfc] sm:$0x1]
      %v11832 = vshrl.u32 %v11783, 16
      %v11834 = vrot.slane %v11832, 4
      %v11835 = vshll.u32 %v11783, 16
      %v11837 = vrot.slane %v11835, 5
      %v11838 = vor.u32 %v11834, %v11837
      %v11839 = vrot.slane %v11838, 4
      %v11841 = vshll.u32 %v11784, 16
      %v11843 = vrot.slane %v11841, 5
      %v11844 = vsel %vm668, %v11839, %v11843
      %v11845 = vshrl.u32 %v11784, 16
      %v11847 = vrot.slane %v11845, 4
      %v11848 = vor.u32 %v11847, %v11843
      %v11849 = vrot.slane %v11848, 4
      %v11851 = vshll.u32 %v11785, 16
      %v11853 = vrot.slane %v11851, 5
      %v11854 = vsel %vm668, %v11849, %v11853
      %v11856 = vshrl.u32 %v11786, 16
      %v11858 = vrot.slane %v11856, 4
      %v11859 = vshll.u32 %v11786, 16
      %v11861 = vrot.slane %v11859, 5
      %v11862 = vor.u32 %v11858, %v11861
      %v11863 = vrot.slane %v11862, 4
      %v11865 = vshll.u32 %v11787, 16
      %v11867 = vrot.slane %v11865, 5
      %v11868 = vsel %vm668, %v11863, %v11867
      %v11869 = vshrl.u32 %v11787, 16
      %v11871 = vrot.slane %v11869, 4
      %v11872 = vor.u32 %v11871, %v11867
      %v11873 = vrot.slane %v11872, 4
      %v11875 = vshll.u32 %v11788, 16
      %v11877 = vrot.slane %v11875, 5
      %v11878 = vsel %vm668, %v11873, %v11877
      %v11880 = vshrl.u32 %v11789, 16
      %v11882 = vrot.slane %v11880, 4
      %v11883 = vshll.u32 %v11789, 16
      %v11885 = vrot.slane %v11883, 5
      %v11886 = vor.u32 %v11882, %v11885
      %v11887 = vrot.slane %v11886, 4
      %v11889 = vshll.u32 %v11790, 16
      %v11891 = vrot.slane %v11889, 5
      %v11892 = vsel %vm668, %v11887, %v11891
      %v11893 = vshrl.u32 %v11790, 16
      %v11895 = vrot.slane %v11893, 4
      %v11896 = vor.u32 %v11895, %v11891
      %v11897 = vrot.slane %v11896, 4
      %v11899 = vshll.u32 %v11791, 16
      %v11901 = vrot.slane %v11899, 5
      %v11902 = vsel %vm668, %v11897, %v11901
      %v11904 = vshrl.u32 %v11792, 16
      %v11906 = vrot.slane %v11904, 4
      %v11907 = vshll.u32 %v11792, 16
      %v11909 = vrot.slane %v11907, 5
      %v11910 = vor.u32 %v11906, %v11909
      %v11911 = vrot.slane %v11910, 4
      %v11913 = vshll.u32 %v11793, 16
      %v11915 = vrot.slane %v11913, 5
      %v11916 = vsel %vm668, %v11911, %v11915
      %v11917 = vshrl.u32 %v11793, 16
      %v11919 = vrot.slane %v11917, 4
      %v11920 = vor.u32 %v11919, %v11915
      %v11921 = vrot.slane %v11920, 4
      %v11923 = vshll.u32 %v11794, 16
      %v11925 = vrot.slane %v11923, 5
      %v11926 = vsel %vm668, %v11921, %v11925
      %v11928 = vshrl.u32 %v11795, 16
      %v11930 = vrot.slane %v11928, 4
      %v11931 = vshll.u32 %v11795, 16
      %v11933 = vrot.slane %v11931, 5
      %v11934 = vor.u32 %v11930, %v11933
      %v11935 = vrot.slane %v11934, 4
      %v11937 = vshll.u32 %v11796, 16
      %v11939 = vrot.slane %v11937, 5
      %v11940 = vsel %vm668, %v11935, %v11939
      %v11941 = vshrl.u32 %v11796, 16
      %v11943 = vrot.slane %v11941, 4
      %v11944 = vor.u32 %v11943, %v11939
      %v11945 = vrot.slane %v11944, 4
      %v11947 = vshll.u32 %v11797, 16
      %v11949 = vrot.slane %v11947, 5
      %v11950 = vsel %vm668, %v11945, %v11949
      %v11952 = vshrl.u32 %v11798, 16
      %v11954 = vrot.slane %v11952, 4
      %v11955 = vshll.u32 %v11798, 16
      %v11957 = vrot.slane %v11955, 5
      %v11958 = vor.u32 %v11954, %v11957
      %v11959 = vrot.slane %v11958, 4
      %v11961 = vshll.u32 %v11799, 16
      %v11963 = vrot.slane %v11961, 5
      %v11964 = vsel %vm668, %v11959, %v11963
      %v11965 = vshrl.u32 %v11799, 16
      %v11967 = vrot.slane %v11965, 4
      %v11968 = vor.u32 %v11967, %v11963
      %v11969 = vrot.slane %v11968, 4
      %v11971 = vshll.u32 %v11800, 16
      %v11973 = vrot.slane %v11971, 5
      %v11974 = vsel %vm668, %v11969, %v11973
      %v11976 = vshrl.u32 %v11801, 16
      %v11978 = vrot.slane %v11976, 4
      %v11979 = vshll.u32 %v11801, 16
      %v11981 = vrot.slane %v11979, 5
      %v11982 = vor.u32 %v11978, %v11981
      %v11983 = vrot.slane %v11982, 4
      %v11985 = vshll.u32 %v11802, 16
      %v11987 = vrot.slane %v11985, 5
      %v11988 = vsel %vm668, %v11983, %v11987
      %v11989 = vshrl.u32 %v11802, 16
      %v11991 = vrot.slane %v11989, 4
      %v11992 = vor.u32 %v11991, %v11987
      %v11993 = vrot.slane %v11992, 4
      %v11995 = vshll.u32 %v11803, 16
      %v11997 = vrot.slane %v11995, 5
      %v11998 = vsel %vm668, %v11993, %v11997
      %v12000 = vshrl.u32 %v11804, 16
      %v12002 = vrot.slane %v12000, 4
      %v12003 = vshll.u32 %v11804, 16
      %v12005 = vrot.slane %v12003, 5
      %v12006 = vor.u32 %v12002, %v12005
      %v12007 = vrot.slane %v12006, 4
      %v12009 = vshll.u32 %v11805, 16
      %v12011 = vrot.slane %v12009, 5
      %v12012 = vsel %vm668, %v12007, %v12011
      %v12013 = vshrl.u32 %v11805, 16
      %v12015 = vrot.slane %v12013, 4
      %v12016 = vor.u32 %v12015, %v12011
      %v12017 = vrot.slane %v12016, 4
      %v12019 = vshll.u32 %v11806, 16
      %v12021 = vrot.slane %v12019, 5
      %v12022 = vsel %vm668, %v12017, %v12021
      %v12024 = vshrl.u32 %v11807, 16
      %v12026 = vrot.slane %v12024, 4
      %v12027 = vshll.u32 %v11807, 16
      %v12029 = vrot.slane %v12027, 5
      %v12030 = vor.u32 %v12026, %v12029
      %v12031 = vrot.slane %v12030, 4
      %v12033 = vshll.u32 %v11808, 16
      %v12035 = vrot.slane %v12033, 5
      %v12036 = vsel %vm668, %v12031, %v12035
      %v12037 = vshrl.u32 %v11808, 16
      %v12039 = vrot.slane %v12037, 4
      %v12040 = vor.u32 %v12039, %v12035
      %v12041 = vrot.slane %v12040, 4
      %v12043 = vshll.u32 %v11809, 16
      %v12045 = vrot.slane %v12043, 5
      %v12046 = vsel %vm668, %v12041, %v12045
      %v12048 = vshrl.u32 %v11810, 16
      %v12050 = vrot.slane %v12048, 4
      %v12051 = vshll.u32 %v11810, 16
      %v12053 = vrot.slane %v12051, 5
      %v12054 = vor.u32 %v12050, %v12053
      %v12055 = vrot.slane %v12054, 4
      %v12057 = vshll.u32 %v11811, 16
      %v12059 = vrot.slane %v12057, 5
      %v12060 = vsel %vm668, %v12055, %v12059
      %v12061 = vshrl.u32 %v11811, 16
      %v12063 = vrot.slane %v12061, 4
      %v12064 = vor.u32 %v12063, %v12059
      %v12065 = vrot.slane %v12064, 4
      %v12067 = vshll.u32 %v11812, 16
      %v12069 = vrot.slane %v12067, 5
      %v12070 = vsel %vm668, %v12065, %v12069
      %v12072 = vshrl.u32 %v11813, 16
      %v12074 = vrot.slane %v12072, 4
      %v12075 = vshll.u32 %v11813, 16
      %v12077 = vrot.slane %v12075, 5
      %v12078 = vor.u32 %v12074, %v12077
      %v12079 = vrot.slane %v12078, 4
      %v12081 = vshll.u32 %v11814, 16
      %v12083 = vrot.slane %v12081, 5
      %v12084 = vsel %vm668, %v12079, %v12083
      %v12085 = vshrl.u32 %v11814, 16
      %v12087 = vrot.slane %v12085, 4
      %v12088 = vor.u32 %v12087, %v12083
      %v12089 = vrot.slane %v12088, 4
      %v12091 = vshll.u32 %v11815, 16
      %v12093 = vrot.slane %v12091, 5
      %v12094 = vsel %vm668, %v12089, %v12093
      %v12096 = vshrl.u32 %v11816, 16
      %v12098 = vrot.slane %v12096, 4
      %v12099 = vshll.u32 %v11816, 16
      %v12101 = vrot.slane %v12099, 5
      %v12102 = vor.u32 %v12098, %v12101
      %v12103 = vrot.slane %v12102, 4
      %v12105 = vshll.u32 %v11817, 16
      %v12107 = vrot.slane %v12105, 5
      %v12108 = vsel %vm668, %v12103, %v12107
      %v12109 = vshrl.u32 %v11817, 16
      %v12111 = vrot.slane %v12109, 4
      %v12112 = vor.u32 %v12111, %v12107
      %v12113 = vrot.slane %v12112, 4
      %v12115 = vshll.u32 %v11818, 16
      %v12117 = vrot.slane %v12115, 5
      %v12118 = vsel %vm668, %v12113, %v12117
      %v12120 = vshrl.u32 %v11819, 16
      %v12122 = vrot.slane %v12120, 4
      %v12123 = vshll.u32 %v11819, 16
      %v12125 = vrot.slane %v12123, 5
      %v12126 = vor.u32 %v12122, %v12125
      %v12127 = vrot.slane %v12126, 4
      %v12129 = vshll.u32 %v11820, 16
      %v12131 = vrot.slane %v12129, 5
      %v12132 = vsel %vm668, %v12127, %v12131
      %v12133 = vshrl.u32 %v11820, 16
      %v12135 = vrot.slane %v12133, 4
      %v12136 = vor.u32 %v12135, %v12131
      %v12137 = vrot.slane %v12136, 4
      %v12139 = vshll.u32 %v11821, 16
      %v12141 = vrot.slane %v12139, 5
      %v12142 = vsel %vm668, %v12137, %v12141
      %v12144 = vshrl.u32 %v11822, 16
      %v12146 = vrot.slane %v12144, 4
      %v12147 = vshll.u32 %v11822, 16
      %v12149 = vrot.slane %v12147, 5
      %v12150 = vor.u32 %v12146, %v12149
      %v12151 = vrot.slane %v12150, 4
      %v12153 = vshll.u32 %v11823, 16
      %v12155 = vrot.slane %v12153, 5
      %v12156 = vsel %vm668, %v12151, %v12155
      %v12157 = vshrl.u32 %v11823, 16
      %v12159 = vrot.slane %v12157, 4
      %v12160 = vor.u32 %v12159, %v12155
      %v12161 = vrot.slane %v12160, 4
      %v12163 = vshll.u32 %v11824, 16
      %v12165 = vrot.slane %v12163, 5
      %v12166 = vsel %vm668, %v12161, %v12165
      %v12168 = vshrl.u32 %v11825, 16
      %v12170 = vrot.slane %v12168, 4
      %v12171 = vshll.u32 %v11825, 16
      %v12173 = vrot.slane %v12171, 5
      %v12174 = vor.u32 %v12170, %v12173
      %v12175 = vrot.slane %v12174, 4
      %v12177 = vshll.u32 %v11826, 16
      %v12179 = vrot.slane %v12177, 5
      %v12180 = vsel %vm668, %v12175, %v12179
      %v12181 = vshrl.u32 %v11826, 16
      %v12183 = vrot.slane %v12181, 4
      %v12184 = vor.u32 %v12183, %v12179
      %v12185 = vrot.slane %v12184, 4
      %v12187 = vshll.u32 %v11827, 16
      %v12189 = vrot.slane %v12187, 5
      %v12190 = vsel %vm668, %v12185, %v12189
      %v12192 = vshrl.u32 %v11828, 16
      %v12194 = vrot.slane %v12192, 4
      %v12195 = vshll.u32 %v11828, 16
      %v12197 = vrot.slane %v12195, 5
      %v12198 = vor.u32 %v12194, %v12197
      %v12199 = vrot.slane %v12198, 4
      %v12201 = vshll.u32 %v11829, 16
      %v12203 = vrot.slane %v12201, 5
      %v12204 = vsel %vm668, %v12199, %v12203
      %v12205 = vshrl.u32 %v11829, 16
      %v12207 = vrot.slane %v12205, 4
      %v12208 = vor.u32 %v12207, %v12203
      %v12209 = vrot.slane %v12208, 4
      %v12211 = vshll.u32 %v11830, 16
      %v12213 = vrot.slane %v12211, 5
      %v12214 = vsel %vm668, %v12209, %v12213
      %s12215 = scalar_lea.vmem %s4, 512
      %v12216 = vld [vmem:[%s12215] sm:$0xf]
      %v12217 = vld [vmem:[%s12215 + $0x4] sm:$0xf]
      %v12218 = vld [vmem:[%s12215 + $0x8] sm:$0xf]
      %v12219 = vld [vmem:[%s12215 + $0xc] sm:$0xf]
      %v12220 = vld [vmem:[%s12215 + $0x10] sm:$0xf]
      %v12221 = vld [vmem:[%s12215 + $0x14] sm:$0xf]
      %v12222 = vld [vmem:[%s12215 + $0x18] sm:$0xf]
      %v12223 = vld [vmem:[%s12215 + $0x1c] sm:$0xf]
      %v12224 = vld [vmem:[%s12215 + $0x20] sm:$0xf]
      %v12225 = vld [vmem:[%s12215 + $0x24] sm:$0xf]
      %v12226 = vld [vmem:[%s12215 + $0x28] sm:$0xf]
      %v12227 = vld [vmem:[%s12215 + $0x2c] sm:$0xf]
      %v12228 = vld [vmem:[%s12215 + $0x30] sm:$0xf]
      %v12229 = vld [vmem:[%s12215 + $0x34] sm:$0xf]
      %v12230 = vld [vmem:[%s12215 + $0x38] sm:$0xf]
      %v12231 = vld [vmem:[%s12215 + $0x3c] sm:$0xf]
      %v12232 = vunpack.c.l.b16 %v11844
      %v12233 = vunpack.c.l.b16 %v11854
      %v12234 = vunpack.c.l.b16 %v11868
      %v12235 = vunpack.c.l.b16 %v11878
      %v12236 = vunpack.c.l.b16 %v11892
      %v12237 = vunpack.c.l.b16 %v11902
      %v12238 = vunpack.c.l.b16 %v11916
      %v12239 = vunpack.c.l.b16 %v11926
      %v12240 = vunpack.c.l.b16 %v11940
      %v12241 = vunpack.c.l.b16 %v11950
      %v12242 = vunpack.c.l.b16 %v11964
      %v12243 = vunpack.c.l.b16 %v11974
      %v12244 = vunpack.c.l.b16 %v11988
      %v12245 = vunpack.c.l.b16 %v11998
      %v12246 = vunpack.c.l.b16 %v12012
      %v12247 = vunpack.c.l.b16 %v12022
      %v12248 = vunpack.c.l.b16 %v12036
      %v12249 = vunpack.c.l.b16 %v12046
      %v12250 = vunpack.c.l.b16 %v12060
      %v12251 = vunpack.c.l.b16 %v12070
      %v12252 = vunpack.c.l.b16 %v12084
      %v12253 = vunpack.c.l.b16 %v12094
      %v12254 = vunpack.c.l.b16 %v12108
      %v12255 = vunpack.c.l.b16 %v12118
      %v12256 = vunpack.c.l.b16 %v12132
      %v12257 = vunpack.c.l.b16 %v12142
      %v12258 = vunpack.c.l.b16 %v12156
      %v12259 = vunpack.c.l.b16 %v12166
      %v12260 = vunpack.c.l.b16 %v12180
      %v12261 = vunpack.c.l.b16 %v12190
      %v12262 = vunpack.c.l.b16 %v12204
      %v12263 = vunpack.c.l.b16 %v12214
      %v12264 = vpack.c.b16 %v12233, %v12232
      %v12265 = vpack.c.b16 %v12235, %v12234
      %v12266 = vpack.c.b16 %v12237, %v12236
      %v12267 = vpack.c.b16 %v12239, %v12238
      %v12268 = vpack.c.b16 %v12241, %v12240
      %v12269 = vpack.c.b16 %v12243, %v12242
      %v12270 = vpack.c.b16 %v12245, %v12244
      %v12271 = vpack.c.b16 %v12247, %v12246
      %v12272 = vpack.c.b16 %v12249, %v12248
      %v12273 = vpack.c.b16 %v12251, %v12250
      %v12274 = vpack.c.b16 %v12253, %v12252
      %v12275 = vpack.c.b16 %v12255, %v12254
      %v12276 = vpack.c.b16 %v12257, %v12256
      %v12277 = vpack.c.b16 %v12259, %v12258
      %v12278 = vpack.c.b16 %v12261, %v12260
      %v12279 = vpack.c.b16 %v12263, %v12262
      %v12312 = vunpack.c.l.b16 %v12216
      %v12313 = vunpack.c.l.b16 %v12217
      %v12314 = vunpack.c.l.b16 %v12218
      %v12315 = vunpack.c.l.b16 %v12219
      %v12316 = vunpack.c.l.b16 %v12220
      %v12317 = vunpack.c.l.b16 %v12221
      %v12318 = vunpack.c.l.b16 %v12222
      %v12319 = vunpack.c.l.b16 %v12223
      %v12320 = vunpack.c.l.b16 %v12224
      %v12321 = vunpack.c.l.b16 %v12225
      %v12322 = vunpack.c.l.b16 %v12226
      %v12323 = vunpack.c.l.b16 %v12227
      %v12324 = vunpack.c.l.b16 %v12228
      %v12325 = vunpack.c.l.b16 %v12229
      %v12326 = vunpack.c.l.b16 %v12230
      %v12327 = vunpack.c.l.b16 %v12231
      %v12328 = vpack.c.b16 %v12313, %v12312
      %v12329 = vpack.c.b16 %v12315, %v12314
      %v12330 = vpack.c.b16 %v12317, %v12316
      %v12331 = vpack.c.b16 %v12319, %v12318
      %v12332 = vpack.c.b16 %v12321, %v12320
      %v12333 = vpack.c.b16 %v12323, %v12322
      %v12334 = vpack.c.b16 %v12325, %v12324
      %v12335 = vpack.c.b16 %v12327, %v12326
      %12344 = vmatprep.subr.bf16.mxu0 0
      %12345 = vmatpush1.bf16.msra.mxu0 %v12335
      %12346 = vmatprep.subr.bf16.mxu0 0
      %12347 = vmatpush1.bf16.msra.mxu0 %v12334
      %12348 = vmatprep.subr.bf16.mxu0 0
      %12349 = vmatpush1.bf16.msra.mxu0 %v12333
      %12350 = vmatprep.subr.bf16.mxu0 0
      %12351 = vmatpush1.bf16.msra.mxu0 %v12332
      %12352 = vmatprep.subr.bf16.mxu0 0
      %12353 = vmatpush1.bf16.msra.mxu0 %v12331
      %12354 = vmatprep.subr.bf16.mxu0 0
      %12355 = vmatpush1.bf16.msra.mxu0 %v12330
      %12356 = vmatprep.subr.bf16.mxu0 0
      %12357 = vmatpush1.bf16.msra.mxu0 %v12329
      %12358 = vmatprep.subr.bf16.mxu0 0
      %12359 = vmatpush1.bf16.msra.mxu0 %v12328
      %12360 = vmatprep.subr.bf16.mxu0 0
      %12361 = vmatpush2.bf16.msra.mxu0 0
      %12362 = vmatprep.subr.bf16.mxu0 0
      %12363 = vmatpush2.bf16.msra.mxu0 0
      %12364 = vmatprep.subr.bf16.mxu0 0
      %12365 = vmatpush2.bf16.msra.mxu0 0
      %12366 = vmatprep.subr.bf16.mxu0 0
      %12367 = vmatpush2.bf16.msra.mxu0 0
      %12368 = vmatprep.subr.bf16.mxu0 0
      %12369 = vmatpush2.bf16.msra.mxu0 0
      %12370 = vmatprep.subr.bf16.mxu0 0
      %12371 = vmatpush2.bf16.msra.mxu0 0
      %12372 = vmatprep.subr.bf16.mxu0 0
      %12373 = vmatpush2.bf16.msra.mxu0 0
      %12374 = vmatprep.subr.bf16.mxu0 0
      %12375 = vmatpush2.bf16.msra.mxu0 0
      %12376 = vmatprep.mubr.bf16.mxu0 0
      %12377 = vmatmul.mubr.bf16.gmra.mxu0 %v12264
      %v12378 = vpop.f32.mrf.mxu0
      %v12379 = vadd.f32 0.0, %v12378
      %v12380 = vpop.f32.mrf.mxu0
      %v12381 = vpop.f32.mrf.mxu0
      %v12382 = vadd.f32 0.0, %v12381
      %v12383 = vpop.f32.mrf.mxu0
      %12384 = vmatprep.mubr.bf16.mxu0 0
      %12385 = vmatmul.mubr.bf16.gmra.mxu0 %v12265
      %v12386 = vpop.f32.mrf.mxu0
      %v12387 = vadd.f32 0.0, %v12386
      %v12388 = vpop.f32.mrf.mxu0
      %v12389 = vpop.f32.mrf.mxu0
      %v12390 = vadd.f32 0.0, %v12389
      %v12391 = vpop.f32.mrf.mxu0
      %12392 = vmatprep.mubr.bf16.mxu0 0
      %12393 = vmatmul.mubr.bf16.gmra.mxu0 %v12266
      %v12394 = vpop.f32.mrf.mxu0
      %v12395 = vadd.f32 0.0, %v12394
      %v12396 = vpop.f32.mrf.mxu0
      %v12397 = vpop.f32.mrf.mxu0
      %v12398 = vadd.f32 0.0, %v12397
      %v12399 = vpop.f32.mrf.mxu0
      %12400 = vmatprep.mubr.bf16.mxu0 0
      %12401 = vmatmul.mubr.bf16.gmra.mxu0 %v12267
      %v12402 = vpop.f32.mrf.mxu0
      %v12403 = vadd.f32 0.0, %v12402
      %v12404 = vpop.f32.mrf.mxu0
      %v12405 = vpop.f32.mrf.mxu0
      %v12406 = vadd.f32 0.0, %v12405
      %v12407 = vpop.f32.mrf.mxu0
      %12408 = vmatprep.mubr.bf16.mxu0 0
      %12409 = vmatmul.mubr.bf16.gmra.mxu0 %v12268
      %v12410 = vpop.f32.mrf.mxu0
      %v12411 = vadd.f32 0.0, %v12410
      %v12412 = vpop.f32.mrf.mxu0
      %v12413 = vpop.f32.mrf.mxu0
      %v12414 = vadd.f32 0.0, %v12413
      %v12415 = vpop.f32.mrf.mxu0
      %12416 = vmatprep.mubr.bf16.mxu0 0
      %12417 = vmatmul.mubr.bf16.gmra.mxu0 %v12269
      %v12418 = vpop.f32.mrf.mxu0
      %v12419 = vadd.f32 0.0, %v12418
      %v12420 = vpop.f32.mrf.mxu0
      %v12421 = vpop.f32.mrf.mxu0
      %v12422 = vadd.f32 0.0, %v12421
      %v12423 = vpop.f32.mrf.mxu0
      %12424 = vmatprep.mubr.bf16.mxu0 0
      %12425 = vmatmul.mubr.bf16.gmra.mxu0 %v12270
      %v12426 = vpop.f32.mrf.mxu0
      %v12427 = vadd.f32 0.0, %v12426
      %v12428 = vpop.f32.mrf.mxu0
      %v12429 = vpop.f32.mrf.mxu0
      %v12430 = vadd.f32 0.0, %v12429
      %v12431 = vpop.f32.mrf.mxu0
      %12432 = vmatprep.mubr.bf16.mxu0 0
      %12433 = vmatmul.mubr.bf16.gmra.mxu0 %v12271
      %v12434 = vpop.f32.mrf.mxu0
      %v12435 = vadd.f32 0.0, %v12434
      %v12436 = vpop.f32.mrf.mxu0
      %v12437 = vpop.f32.mrf.mxu0
      %v12438 = vadd.f32 0.0, %v12437
      %v12439 = vpop.f32.mrf.mxu0
      %12440 = vmatprep.mubr.bf16.mxu0 0
      %12441 = vmatmul.mubr.bf16.gmra.mxu0 %v12272
      %v12442 = vpop.f32.mrf.mxu0
      %v12443 = vadd.f32 0.0, %v12442
      %v12444 = vpop.f32.mrf.mxu0
      %v12445 = vpop.f32.mrf.mxu0
      %v12446 = vadd.f32 0.0, %v12445
      %v12447 = vpop.f32.mrf.mxu0
      %12448 = vmatprep.mubr.bf16.mxu0 0
      %12449 = vmatmul.mubr.bf16.gmra.mxu0 %v12273
      %v12450 = vpop.f32.mrf.mxu0
      %v12451 = vadd.f32 0.0, %v12450
      %v12452 = vpop.f32.mrf.mxu0
      %v12453 = vpop.f32.mrf.mxu0
      %v12454 = vadd.f32 0.0, %v12453
      %v12455 = vpop.f32.mrf.mxu0
      %12456 = vmatprep.mubr.bf16.mxu0 0
      %12457 = vmatmul.mubr.bf16.gmra.mxu0 %v12274
      %v12458 = vpop.f32.mrf.mxu0
      %v12459 = vadd.f32 0.0, %v12458
      %v12460 = vpop.f32.mrf.mxu0
      %v12461 = vpop.f32.mrf.mxu0
      %v12462 = vadd.f32 0.0, %v12461
      %v12463 = vpop.f32.mrf.mxu0
      %12464 = vmatprep.mubr.bf16.mxu0 0
      %12465 = vmatmul.mubr.bf16.gmra.mxu0 %v12275
      %v12466 = vpop.f32.mrf.mxu0
      %v12467 = vadd.f32 0.0, %v12466
      %v12468 = vpop.f32.mrf.mxu0
      %v12469 = vpop.f32.mrf.mxu0
      %v12470 = vadd.f32 0.0, %v12469
      %v12471 = vpop.f32.mrf.mxu0
      %12472 = vmatprep.mubr.bf16.mxu0 0
      %12473 = vmatmul.mubr.bf16.gmra.mxu0 %v12276
      %v12474 = vpop.f32.mrf.mxu0
      %v12475 = vadd.f32 0.0, %v12474
      %v12476 = vpop.f32.mrf.mxu0
      %v12477 = vpop.f32.mrf.mxu0
      %v12478 = vadd.f32 0.0, %v12477
      %v12479 = vpop.f32.mrf.mxu0
      %12480 = vmatprep.mubr.bf16.mxu0 0
      %12481 = vmatmul.mubr.bf16.gmra.mxu0 %v12277
      %v12482 = vpop.f32.mrf.mxu0
      %v12483 = vadd.f32 0.0, %v12482
      %v12484 = vpop.f32.mrf.mxu0
      %v12485 = vpop.f32.mrf.mxu0
      %v12486 = vadd.f32 0.0, %v12485
      %v12487 = vpop.f32.mrf.mxu0
      %12488 = vmatprep.mubr.bf16.mxu0 0
      %12489 = vmatmul.mubr.bf16.gmra.mxu0 %v12278
      %v12490 = vpop.f32.mrf.mxu0
      %v12491 = vadd.f32 0.0, %v12490
      %v12492 = vpop.f32.mrf.mxu0
      %v12493 = vpop.f32.mrf.mxu0
      %v12494 = vadd.f32 0.0, %v12493
      %v12495 = vpop.f32.mrf.mxu0
      %12496 = vmatprep.mubr.bf16.mxu0 0
      %12497 = vmatmul.mubr.bf16.gmra.mxu0 %v12279
      %v12498 = vpop.f32.mrf.mxu0
      %v12499 = vadd.f32 0.0, %v12498
      %v12500 = vpop.f32.mrf.mxu0
      %v12501 = vpop.f32.mrf.mxu0
      %v12502 = vadd.f32 0.0, %v12501
      %v12503 = vpop.f32.mrf.mxu0
      %12504 = vdwg.mxu0
      %v12505 = vadd.f32 %v11751, %v12379
      %v12506 = vadd.f32 %v11752, %v12382
      %v12507 = vadd.f32 %v11753, %v12387
      %v12508 = vadd.f32 %v11754, %v12390
      %v12509 = vadd.f32 %v11755, %v12395
      %v12510 = vadd.f32 %v11756, %v12398
      %v12511 = vadd.f32 %v11757, %v12403
      %v12512 = vadd.f32 %v11758, %v12406
      %v12513 = vadd.f32 %v11759, %v12411
      %v12514 = vadd.f32 %v11760, %v12414
      %v12515 = vadd.f32 %v11761, %v12419
      %v12516 = vadd.f32 %v11762, %v12422
      %v12517 = vadd.f32 %v11763, %v12427
      %v12518 = vadd.f32 %v11764, %v12430
      %v12519 = vadd.f32 %v11765, %v12435
      %v12520 = vadd.f32 %v11766, %v12438
      %v12521 = vadd.f32 %v11767, %v12443
      %v12522 = vadd.f32 %v11768, %v12446
      %v12523 = vadd.f32 %v11769, %v12451
      %v12524 = vadd.f32 %v11770, %v12454
      %v12525 = vadd.f32 %v11771, %v12459
      %v12526 = vadd.f32 %v11772, %v12462
      %v12527 = vadd.f32 %v11773, %v12467
      %v12528 = vadd.f32 %v11774, %v12470
      %v12529 = vadd.f32 %v11775, %v12475
      %v12530 = vadd.f32 %v11776, %v12478
      %v12531 = vadd.f32 %v11777, %v12483
      %v12532 = vadd.f32 %v11778, %v12486
      %v12533 = vadd.f32 %v11779, %v12491
      %v12534 = vadd.f32 %v11780, %v12494
      %v12535 = vadd.f32 %v11781, %v12499
      %v12536 = vadd.f32 %v11782, %v12502
      %v12538 = vlaneseq
      %v12539 = vshrl.u32 %v12538, 7
      %v12540 = vsub.s32 0, %v12539
      %v12541 = vrot.slane %v621, %v12540
      %v12543 = vmul.f32 %v12505, %v12541
      %v12544 = vmul.f32 %v12506, %v12541
      %v12545 = vmul.f32 %v12507, %v12541
      %v12546 = vmul.f32 %v12508, %v12541
      %v12547 = vmul.f32 %v12509, %v12541
      %v12548 = vmul.f32 %v12510, %v12541
      %v12549 = vmul.f32 %v12511, %v12541
      %v12550 = vmul.f32 %v12512, %v12541
      %v12551 = vmul.f32 %v12513, %v12541
      %v12552 = vmul.f32 %v12514, %v12541
      %v12553 = vmul.f32 %v12515, %v12541
      %v12554 = vmul.f32 %v12516, %v12541
      %v12555 = vmul.f32 %v12517, %v12541
      %v12556 = vmul.f32 %v12518, %v12541
      %v12557 = vmul.f32 %v12519, %v12541
      %v12558 = vmul.f32 %v12520, %v12541
      %v12559 = vmul.f32 %v12521, %v12541
      %v12560 = vmul.f32 %v12522, %v12541
      %v12561 = vmul.f32 %v12523, %v12541
      %v12562 = vmul.f32 %v12524, %v12541
      %v12563 = vmul.f32 %v12525, %v12541
      %v12564 = vmul.f32 %v12526, %v12541
      %v12565 = vmul.f32 %v12527, %v12541
      %v12566 = vmul.f32 %v12528, %v12541
      %v12567 = vmul.f32 %v12529, %v12541
      %v12568 = vmul.f32 %v12530, %v12541
      %v12569 = vmul.f32 %v12531, %v12541
      %v12570 = vmul.f32 %v12532, %v12541
      %v12571 = vmul.f32 %v12533, %v12541
      %v12572 = vmul.f32 %v12534, %v12541
      %v12573 = vmul.f32 %v12535, %v12541
      %v12574 = vmul.f32 %v12536, %v12541
      %v12576 = vlaneseq
      %v12577 = vshrl.u32 %v12576, 7
      %v12578 = vsub.s32 0, %v12577
      %v12579 = vrot.slane %v622, %v12578
      %v12581 = vadd.f32 %v12543, %v12579
      %v12582 = vadd.f32 %v12544, %v12579
      %v12583 = vadd.f32 %v12545, %v12579
      %v12584 = vadd.f32 %v12546, %v12579
      %v12585 = vadd.f32 %v12547, %v12579
      %v12586 = vadd.f32 %v12548, %v12579
      %v12587 = vadd.f32 %v12549, %v12579
      %v12588 = vadd.f32 %v12550, %v12579
      %v12589 = vadd.f32 %v12551, %v12579
      %v12590 = vadd.f32 %v12552, %v12579
      %v12591 = vadd.f32 %v12553, %v12579
      %v12592 = vadd.f32 %v12554, %v12579
      %v12593 = vadd.f32 %v12555, %v12579
      %v12594 = vadd.f32 %v12556, %v12579
      %v12595 = vadd.f32 %v12557, %v12579
      %v12596 = vadd.f32 %v12558, %v12579
      %v12597 = vadd.f32 %v12559, %v12579
      %v12598 = vadd.f32 %v12560, %v12579
      %v12599 = vadd.f32 %v12561, %v12579
      %v12600 = vadd.f32 %v12562, %v12579
      %v12601 = vadd.f32 %v12563, %v12579
      %v12602 = vadd.f32 %v12564, %v12579
      %v12603 = vadd.f32 %v12565, %v12579
      %v12604 = vadd.f32 %v12566, %v12579
      %v12605 = vadd.f32 %v12567, %v12579
      %v12606 = vadd.f32 %v12568, %v12579
      %v12607 = vadd.f32 %v12569, %v12579
      %v12608 = vadd.f32 %v12570, %v12579
      %v12609 = vadd.f32 %v12571, %v12579
      %v12610 = vadd.f32 %v12572, %v12579
      %v12611 = vadd.f32 %v12573, %v12579
      %v12612 = vadd.f32 %v12574, %v12579
      %v12613 = vmax.f32 %v12581, 0.0
      %v12614 = vmax.f32 %v12582, 0.0
      %v12615 = vmax.f32 %v12583, 0.0
      %v12616 = vmax.f32 %v12584, 0.0
      %v12617 = vmax.f32 %v12585, 0.0
      %v12618 = vmax.f32 %v12586, 0.0
      %v12619 = vmax.f32 %v12587, 0.0
      %v12620 = vmax.f32 %v12588, 0.0
      %v12621 = vmax.f32 %v12589, 0.0
      %v12622 = vmax.f32 %v12590, 0.0
      %v12623 = vmax.f32 %v12591, 0.0
      %v12624 = vmax.f32 %v12592, 0.0
      %v12625 = vmax.f32 %v12593, 0.0
      %v12626 = vmax.f32 %v12594, 0.0
      %v12627 = vmax.f32 %v12595, 0.0
      %v12628 = vmax.f32 %v12596, 0.0
      %v12629 = vmax.f32 %v12597, 0.0
      %v12630 = vmax.f32 %v12598, 0.0
      %v12631 = vmax.f32 %v12599, 0.0
      %v12632 = vmax.f32 %v12600, 0.0
      %v12633 = vmax.f32 %v12601, 0.0
      %v12634 = vmax.f32 %v12602, 0.0
      %v12635 = vmax.f32 %v12603, 0.0
      %v12636 = vmax.f32 %v12604, 0.0
      %v12637 = vmax.f32 %v12605, 0.0
      %v12638 = vmax.f32 %v12606, 0.0
      %v12639 = vmax.f32 %v12607, 0.0
      %v12640 = vmax.f32 %v12608, 0.0
      %v12641 = vmax.f32 %v12609, 0.0
      %v12642 = vmax.f32 %v12610, 0.0
      %v12643 = vmax.f32 %v12611, 0.0
      %v12644 = vmax.f32 %v12612, 0.0
      %v12645 = vpack.c.bf16 %v12614, %v12613
      %v12646 = vpack.c.bf16 %v12616, %v12615
      %v12647 = vpack.c.bf16 %v12618, %v12617
      %v12648 = vpack.c.bf16 %v12620, %v12619
      %v12649 = vpack.c.bf16 %v12622, %v12621
      %v12650 = vpack.c.bf16 %v12624, %v12623
      %v12651 = vpack.c.bf16 %v12626, %v12625
      %v12652 = vpack.c.bf16 %v12628, %v12627
      %v12653 = vpack.c.bf16 %v12630, %v12629
      %v12654 = vpack.c.bf16 %v12632, %v12631
      %v12655 = vpack.c.bf16 %v12634, %v12633
      %v12656 = vpack.c.bf16 %v12636, %v12635
      %v12657 = vpack.c.bf16 %v12638, %v12637
      %v12658 = vpack.c.bf16 %v12640, %v12639
      %v12659 = vpack.c.bf16 %v12642, %v12641
      %v12660 = vpack.c.bf16 %v12644, %v12643
      %v12677 = vunpack.c.l.b16 %v12645
      %v12678 = vunpack.c.h.b16 %v12645
      %v12679 = vunpack.c.l.b16 %v12646
      %v12680 = vunpack.c.h.b16 %v12646
      %v12681 = vunpack.c.l.b16 %v12647
      %v12682 = vunpack.c.h.b16 %v12647
      %v12683 = vunpack.c.l.b16 %v12648
      %v12684 = vunpack.c.h.b16 %v12648
      %v12685 = vunpack.c.l.b16 %v12649
      %v12686 = vunpack.c.h.b16 %v12649
      %v12687 = vunpack.c.l.b16 %v12650
      %v12688 = vunpack.c.h.b16 %v12650
      %v12689 = vunpack.c.l.b16 %v12651
      %v12690 = vunpack.c.h.b16 %v12651
      %v12691 = vunpack.c.l.b16 %v12652
      %v12692 = vunpack.c.h.b16 %v12652
      %v12693 = vunpack.c.l.b16 %v12653
      %v12694 = vunpack.c.h.b16 %v12653
      %v12695 = vunpack.c.l.b16 %v12654
      %v12696 = vunpack.c.h.b16 %v12654
      %v12697 = vunpack.c.l.b16 %v12655
      %v12698 = vunpack.c.h.b16 %v12655
      %v12699 = vunpack.c.l.b16 %v12656
      %v12700 = vunpack.c.h.b16 %v12656
      %v12701 = vunpack.c.l.b16 %v12657
      %v12702 = vunpack.c.h.b16 %v12657
      %v12703 = vunpack.c.l.b16 %v12658
      %v12704 = vunpack.c.h.b16 %v12658
      %v12705 = vunpack.c.l.b16 %v12659
      %v12706 = vunpack.c.h.b16 %v12659
      %v12707 = vunpack.c.l.b16 %v12660
      %v12708 = vunpack.c.h.b16 %v12660
      %v12709 = vpack.c.b16 %v12677, %v12677
      %v12710 = vpack.c.b16 %v12678, %v12678
      %v12711 = vpack.c.b16 %v12679, %v12679
      %v12712 = vpack.c.b16 %v12680, %v12680
      %v12713 = vpack.c.b16 %v12681, %v12681
      %v12714 = vpack.c.b16 %v12682, %v12682
      %v12715 = vpack.c.b16 %v12683, %v12683
      %v12716 = vpack.c.b16 %v12684, %v12684
      %v12717 = vpack.c.b16 %v12685, %v12685
      %v12718 = vpack.c.b16 %v12686, %v12686
      %v12719 = vpack.c.b16 %v12687, %v12687
      %v12720 = vpack.c.b16 %v12688, %v12688
      %v12721 = vpack.c.b16 %v12689, %v12689
      %v12722 = vpack.c.b16 %v12690, %v12690
      %v12723 = vpack.c.b16 %v12691, %v12691
      %v12724 = vpack.c.b16 %v12692, %v12692
      %v12725 = vpack.c.b16 %v12693, %v12693
      %v12726 = vpack.c.b16 %v12694, %v12694
      %v12727 = vpack.c.b16 %v12695, %v12695
      %v12728 = vpack.c.b16 %v12696, %v12696
      %v12729 = vpack.c.b16 %v12697, %v12697
      %v12730 = vpack.c.b16 %v12698, %v12698
      %v12731 = vpack.c.b16 %v12699, %v12699
      %v12732 = vpack.c.b16 %v12700, %v12700
      %v12733 = vpack.c.b16 %v12701, %v12701
      %v12734 = vpack.c.b16 %v12702, %v12702
      %v12735 = vpack.c.b16 %v12703, %v12703
      %v12736 = vpack.c.b16 %v12704, %v12704
      %v12737 = vpack.c.b16 %v12705, %v12705
      %v12738 = vpack.c.b16 %v12706, %v12706
      %v12739 = vpack.c.b16 %v12707, %v12707
      %v12740 = vpack.c.b16 %v12708, %v12708
      %12773 = vst [vmem:[%s256] sm:$0xf] %v12709
      %12774 = vst [vmem:[%s256 + $0x4] sm:$0xf] %v12710
      %12775 = vst [vmem:[%s256 + $0x8] sm:$0xf] %v12711
      %12776 = vst [vmem:[%s256 + $0xc] sm:$0xf] %v12712
      %12777 = vst [vmem:[%s256 + $0x10] sm:$0xf] %v12713
      %12778 = vst [vmem:[%s256 + $0x14] sm:$0xf] %v12714
      %12779 = vst [vmem:[%s256 + $0x18] sm:$0xf] %v12715
      %12780 = vst [vmem:[%s256 + $0x1c] sm:$0xf] %v12716
      %12781 = vst [vmem:[%s256 + $0x20] sm:$0xf] %v12717
      %12782 = vst [vmem:[%s256 + $0x24] sm:$0xf] %v12718
      %12783 = vst [vmem:[%s256 + $0x28] sm:$0xf] %v12719
      %12784 = vst [vmem:[%s256 + $0x2c] sm:$0xf] %v12720
      %12785 = vst [vmem:[%s256 + $0x30] sm:$0xf] %v12721
      %12786 = vst [vmem:[%s256 + $0x34] sm:$0xf] %v12722
      %12787 = vst [vmem:[%s256 + $0x38] sm:$0xf] %v12723
      %12788 = vst [vmem:[%s256 + $0x3c] sm:$0xf] %v12724
      %12789 = vst [vmem:[%s256 + $0x40] sm:$0xf] %v12725
      %12790 = vst [vmem:[%s256 + $0x44] sm:$0xf] %v12726
      %12791 = vst [vmem:[%s256 + $0x48] sm:$0xf] %v12727
      %12792 = vst [vmem:[%s256 + $0x4c] sm:$0xf] %v12728
      %12793 = vst [vmem:[%s256 + $0x50] sm:$0xf] %v12729
      %12794 = vst [vmem:[%s256 + $0x54] sm:$0xf] %v12730
      %12795 = vst [vmem:[%s256 + $0x58] sm:$0xf] %v12731
      %12796 = vst [vmem:[%s256 + $0x5c] sm:$0xf] %v12732
      %12797 = vst [vmem:[%s256 + $0x60] sm:$0xf] %v12733
      %12798 = vst [vmem:[%s256 + $0x64] sm:$0xf] %v12734
      %12799 = vst [vmem:[%s256 + $0x68] sm:$0xf] %v12735
      %12800 = vst [vmem:[%s256 + $0x6c] sm:$0xf] %v12736
      %12801 = vst [vmem:[%s256 + $0x70] sm:$0xf] %v12737
      %12802 = vst [vmem:[%s256 + $0x74] sm:$0xf] %v12738
      %12803 = vst [vmem:[%s256 + $0x78] sm:$0xf] %v12739
      %12804 = vst [vmem:[%s256 + $0x7c] sm:$0xf] %v12740
      %s12805 = smul.u32 16, %s23
      %p12806 = scmp.lt.s32.totalorder %s22, 1
      %s12807 = scalar_select %p12806, %s22, 1
      %p12808 = scmp.lt.s32.totalorder %s12805, 15
      %s12809 = scalar_select %p12808, %s12805, 15
      %s12810 = smul.addr %s12809, 2
      %s12811 = smul.addr %s12807, 32
      %s12812 = sadd.s32 %s12810, %s12811
      %s12813 = smul.addr %s12812, 4
      %s12814 = scalar_lea.vmem %s7, %s12813
      // Predicated region
      $region125: #{vgg_block_forward.1} parent=43 // pred_check
        %p12815 = pneg %p176
      $region126: #{vgg_block_forward.1} parent=43 // pred_check_branch
        %12817 = sbr.rel (%p12815) target = $region128
      $region127: #{vgg_block_forward.1} parent=43 // pred_region
        %s12818 = smul.u32 16, %s23
      $region128: #{vgg_block_forward.1} parent=43 // pred_fallthru
        _
    $region44: #{vgg_block_forward.1} parent=5 // pred_fallthru
      _
    %p12819 = scmp.le.s32.totalorder 2, %s13
    // Predicated region
    $region129: #{vgg_block_forward.1} parent=5 // pred_check
      %p12820 = pneg %p12819
    $region130: #{vgg_block_forward.1} parent=5 // pred_check_branch
      %12822 = sbr.rel (%p12820) target = $region132
    $region131: #{vgg_block_forward.1} parent=5 // pred_region
      %s12823 = ssub.s32 %s13, 2
      // Predicated region
      $region133: #{vgg_block_forward.1} parent=131 // pred_check
        %p12824 = pneg %p182
      $region134: #{vgg_block_forward.1} parent=131 // pred_check_branch
        %12826 = sbr.rel (%p12824) target = $region136
      $region135: #{vgg_block_forward.1} parent=131 // pred_region
        %s12827 = smul.u32 16, %s25
        %p12828 = scmp.lt.s32.totalorder %s24, 1
        %s12829 = scalar_select %p12828, %s24, 1
        %p12830 = scmp.lt.s32.totalorder %s12827, 15
        %s12831 = scalar_select %p12830, %s12827, 15
        %s12832 = smul.addr %s12831, 2
        %s12833 = smul.addr %s12829, 32
        %s12834 = sadd.s32 %s12832, %s12833
        %s12835 = smul.addr %s12834, 4
        %s12836 = scalar_lea.vmem %s7, %s12835
      $region136: #{vgg_block_forward.1} parent=131 // pred_fallthru
        _
    $region132: #{vgg_block_forward.1} parent=5 // pred_fallthru
      _
  $region6: #{vgg_block_forward.1} parent=0 // loop_footer
    %s17 = sadd.s32 1, %s13
  $region7: #{vgg_block_forward.1} parent=0 // loop_footer_branch
    %12 = sbr.rel target = $region3
  $region8: #{vgg_block_forward.1} parent=0 // loop_exit
    _
  %12837 = vsyncmov [#allocation3]
  %s12838 = vpop.sfrf %12837
  %p12839 = scmp.eq.s32.totalorder %s12838, 0
  %p12840 = pneg %p12839
  %12842 = shalt.err (%p12840)
  %s12843 = scalar_lea.sflag [#allocation3], 1
  %12844 = vsyncmov %s12843
  %s12845 = vpop.sfrf %12844
  %p12846 = scmp.eq.s32.totalorder %s12845, 0
  %p12847 = pneg %p12846
  %12849 = shalt.err (%p12847)

</llo_original>
